<compile_context>
chip_gen: v6e
topology: v6e:2x2x1
jax: 0.10.0
libtpu: 0.0.40
codegen_flags: <defaults>
</compile_context>

<pallas_src>
import numpy as np

import jax
import jax.numpy as jnp
from jax.experimental import pallas as pl
from jax.experimental.pallas import tpu as pltpu


# ----------------------------------------------------------------------------
# Fused kernel: whole network for Bt images per grid step
# ----------------------------------------------------------------------------
def mnist_cnn_kernel(x_ref, w1e_ref, w1o_ref, b1_ref, w2e_ref, w2o_ref, b2_ref,
                     w3_ref, b3_ref, w4_ref, b4_ref, o_ref):
    f32 = jnp.float32
    mm = w1e_ref.dtype                      # matmul operand dtype (bf16 or f32)
    bt = x_ref.shape[1]                     # images in this grid step

    # x: (30, Bt, 28) = (H pre-padded by 1, batch, W).  Batch in sublanes and
    # W in lanes keeps every slice below a leading-dim slice and every reshape
    # a pure re-tiling (Bt is a multiple of 8).
    x = x_ref[...].astype(mm)

    # -------- conv1: 3x3, 1->32, pad 1 (width-lowered Toeplitz matmul) -------
    # K folds (dy, input column); N folds (output column, channel).  Width
    # zero-padding is baked into the Toeplitz weight; even/odd output columns
    # are two separate dots so the 2x2 max-pool needs no lane reshuffle.
    x3 = jnp.concatenate([x[dy:dy + 28] for dy in range(3)], axis=2)
    x3 = x3.reshape(28 * bt, 3 * 28)                               # (28*Bt, 84)
    h1e = jnp.dot(x3, w1e_ref[...], preferred_element_type=f32)    # (28*Bt, 448)
    h1o = jnp.dot(x3, w1o_ref[...], preferred_element_type=f32)
    # 2x2 max-pool; bias/ReLU commute with max -> applied once after pooling.
    p1 = jnp.maximum(h1e, h1o).reshape(14, 2, bt, 14 * 32)
    a1 = jnp.maximum(jnp.max(p1, axis=1) + b1_ref[...], 0.0)       # (14, Bt, 448)

    # -------- conv2: 3x3, 32->64, pad 1 (same scheme) -------------------------
    a1m = a1.astype(mm)
    zrow = jnp.zeros((1, bt, 14 * 32), mm)
    a1p = jnp.concatenate([zrow, a1m, zrow], axis=0)               # (16, Bt, 448)
    x2 = jnp.concatenate([a1p[dy:dy + 14] for dy in range(3)], axis=2)
    x2 = x2.reshape(14 * bt, 3 * 14 * 32)                          # (14*Bt, 1344)
    h2e = jnp.dot(x2, w2e_ref[...], preferred_element_type=f32)    # (14*Bt, 448)
    h2o = jnp.dot(x2, w2o_ref[...], preferred_element_type=f32)
    p2 = jnp.maximum(h2e, h2o).reshape(7, 2, bt, 7 * 64)
    a2 = jnp.maximum(jnp.max(p2, axis=1) + b2_ref[...], 0.0)       # (7, Bt, 448)

    # -------- fc1: 3136 -> 128, no flatten ------------------------------------
    # PyTorch's channel-major Flatten order is baked into w3 (7, 448, 128);
    # contract (h, w*c) as 7 accumulated lane-dense dots.
    a2m = a2.astype(mm)
    acc = jnp.zeros((bt, 128), f32)
    for h in range(7):
        acc = acc + jnp.dot(a2m[h], w3_ref[h], preferred_element_type=f32)
    h3 = jnp.maximum(acc + b3_ref[...], 0.0)                       # (Bt, 128)

    # TODO(synk): nn.Dropout(0.2) is identity at inference; training-mode
    #             dropout (random mask + 1/0.8 scaling) is not implemented.

    # -------- fc2: 128 -> 10, N zero-padded to 128 (lane-dense store) ---------
    logits = jnp.dot(h3.astype(mm), w4_ref[...],
                     preferred_element_type=f32) + b4_ref[...]     # (Bt, 128)
    o_ref[...] = logits.astype(o_ref.dtype)


# ----------------------------------------------------------------------------
# Wrapper
# ----------------------------------------------------------------------------
def mnist_cnn_forward(x_nchw, params, batch_tile=16):
    """Forward pass equivalent to MNIST_CNN.forward (inference mode)."""
    B = x_nchw.shape[0]
    Bt = batch_tile                       # multiple of 8 (layout-trivial reshapes)
    Bp = ((B + Bt - 1) // Bt) * Bt

    # NCHW with Cin=1 -> (B, 28, 28); zero-pad batch to a tile multiple and the
    # height by 1 (conv 'same'); width padding is folded into the Toeplitz conv
    # weights.  Transpose once to (30, Bp, 28): batch in sublanes, W in lanes.
    x = x_nchw.reshape(B, 28, 28).astype(jnp.float32)
    x = jnp.pad(x, ((0, Bp - B), (1, 1), (0, 0)))
    x = jnp.transpose(x, (1, 0, 2))                                # (30, Bp, 28)

    const2 = lambda i: (0, 0)
    out = pl.pallas_call(
        mnist_cnn_kernel,
        out_shape=jax.ShapeDtypeStruct((Bp, 128), jnp.float32),
        grid=(Bp // Bt,),
        in_specs=[
            pl.BlockSpec((30, Bt, 28), lambda i: (0, i, 0)),
            # Weights / biases: constant index maps -> resident in VMEM.
            pl.BlockSpec((3 * 28, 14 * 32), const2),          # w1 even cols
            pl.BlockSpec((3 * 28, 14 * 32), const2),          # w1 odd cols
            pl.BlockSpec((1, 14 * 32), const2),               # b1 tiled
            pl.BlockSpec((3 * 14 * 32, 7 * 64), const2),      # w2 even cols
            pl.BlockSpec((3 * 14 * 32, 7 * 64), const2),      # w2 odd cols
            pl.BlockSpec((1, 7 * 64), const2),                # b2 tiled
            pl.BlockSpec((7, 7 * 64, 128), lambda i: (0, 0, 0)),  # w3 (7,448,128)
            pl.BlockSpec((1, 128), const2),                   # b3
            pl.BlockSpec((128, 128), const2),                 # w4 padded
            pl.BlockSpec((1, 128), const2),                   # b4 padded
        ],
        out_specs=pl.BlockSpec((Bt, 128), lambda i: (i, 0)),
        compiler_params=pltpu.CompilerParams(
            dimension_semantics=("parallel",),
            vmem_limit_bytes=48 * 1024 * 1024),
    )(x, params["w1e"], params["w1o"], params["b1"],
      params["w2e"], params["w2o"], params["b2"],
      params["w3"], params["b3"], params["w4"], params["b4"])

    return out[:B, :10]


# ----------------------------------------------------------------------------
# Parameters: PyTorch-native shapes, converted once to the kernel's layouts
# ----------------------------------------------------------------------------
def _lower_conv_weight(k, wi, out_cols, dtype):
    """PyTorch (Cout, Cin, 3, 3) conv kernel -> width-lowered (Toeplitz) matmul
    weight of shape (3*wi*Cin, len(out_cols)*Cout).

    Row index = dy*(wi*Cin) + j*Cin + ci  (j = unpadded input column)
    Col index = oi*Cout + co              (oi enumerates the output columns)
    Entry     = k[co, ci, dy, dx] with dx = j - w + 1; the conv's width
    zero-padding is implicit (out-of-range taps simply have no nonzero row).
    """
    k = np.asarray(k, np.float32)
    cout, cin = k.shape[0], k.shape[1]
    out_cols = list(out_cols)
    wl = np.zeros((3, wi, cin, len(out_cols), cout), np.float32)
    for dy in range(3):
        for oi, w in enumerate(out_cols):
            for dx in range(3):
                j = w + dx - 1
                if 0 <= j < wi:
                    wl[dy, j, :, oi, :] = k[:, :, dy, dx].T
    return jnp.asarray(wl.reshape(3 * wi * cin, len(out_cols) * cout), dtype)


def prepare_params(w1, b1, w2, b2, w3, b3, w4, b4, matmul_dtype=jnp.bfloat16):
    """Convert PyTorch-layout parameters to the layouts baked into the kernel."""
    # fc1: PyTorch flattens NCHW (k = c*49 + h*7 + w); the kernel contracts over
    # (h, w*64+c) -> permute once at init, shape (7, 448, 128).
    w3r = np.asarray(w3, np.float32).reshape(128, 64, 7, 7)
    w3r = np.transpose(w3r, (2, 3, 1, 0)).reshape(7, 7 * 64, 128)
    # fc2: zero-pad N from 10 to 128 for a lane-dense output store.
    w4p = np.zeros((128, 128), np.float32)
    w4p[:, :10] = np.asarray(w4, np.float32).T
    b4p = np.zeros((1, 128), np.float32)
    b4p[0, :10] = np.asarray(b4, np.float32)
    return {
        "w1e": _lower_conv_weight(w1, 28, range(0, 28, 2), matmul_dtype),
        "w1o": _lower_conv_weight(w1, 28, range(1, 28, 2), matmul_dtype),
        "b1": jnp.asarray(np.tile(np.asarray(b1, np.float32), 14)[None, :]),
        "w2e": _lower_conv_weight(w2, 14, range(0, 14, 2), matmul_dtype),
        "w2o": _lower_conv_weight(w2, 14, range(1, 14, 2), matmul_dtype),
        "b2": jnp.asarray(np.tile(np.asarray(b2, np.float32), 7)[None, :]),
        "w3": jnp.asarray(w3r, matmul_dtype),
        "b3": jnp.asarray(np.asarray(b3, np.float32)[None, :]),
        "w4": jnp.asarray(w4p, matmul_dtype),
        "b4": jnp.asarray(b4p),
    }


def init_params(key, matmul_dtype=jnp.bfloat16):
    ks = jax.random.split(key, 8)
    s = 0.05
    # PyTorch-native parameter shapes.
    w1 = jax.random.normal(ks[0], (32, 1, 3, 3), jnp.float32) * s
    b1 = jax.random.normal(ks[1], (32,), jnp.float32) * s
    w2 = jax.random.normal(ks[2], (64, 32, 3, 3), jnp.float32) * s
    b2 = jax.random.normal(ks[3], (64,), jnp.float32) * s
    w3 = jax.random.normal(ks[4], (128, 64 * 7 * 7), jnp.float32) * s
    b3 = jax.random.normal(ks[5], (128,), jnp.float32) * s
    w4 = jax.random.normal(ks[6], (10, 128), jnp.float32) * s
    b4 = jax.random.normal(ks[7], (10,), jnp.float32) * s
    return prepare_params(w1, b1, w2, b2, w3, b3, w4, b4, matmul_dtype)


if __name__ == "__main__":
    key = jax.random.PRNGKey(0)
    k_x, k_p = jax.random.split(key)

    # Linear(64*7*7, 128) fixes the spatial size to 28x28 (MNIST); batch=2
    # (padded internally to one Bt=16 tile).
    x = jax.random.normal(k_x, (2, 1, 28, 28), jnp.float32)
    params = init_params(k_p)

    out = mnist_cnn_forward(x, params)
    out = jax.block_until_ready(out)
    assert out.shape == (2, 10) and out.dtype == jnp.float32
    assert bool(jnp.all(jnp.isfinite(out)))
    print("KERNEL_OK")
</pallas_src>

<mosaic_0001>
module attributes {stable_mosaic.version = 11 : i64} {
  func.func @mnist_cnn_kernel(%arg0: i32, %arg1: memref<30x16x28xf32, #tpu.memory_space<vmem>>, %arg2: memref<84x448xbf16, #tpu.memory_space<vmem>>, %arg3: memref<84x448xbf16, #tpu.memory_space<vmem>>, %arg4: memref<1x448xf32, #tpu.memory_space<vmem>>, %arg5: memref<1344x448xbf16, #tpu.memory_space<vmem>>, %arg6: memref<1344x448xbf16, #tpu.memory_space<vmem>>, %arg7: memref<1x448xf32, #tpu.memory_space<vmem>>, %arg8: memref<7x448x128xbf16, #tpu.memory_space<vmem>>, %arg9: memref<1x128xf32, #tpu.memory_space<vmem>>, %arg10: memref<128x128xbf16, #tpu.memory_space<vmem>>, %arg11: memref<1x128xf32, #tpu.memory_space<vmem>>, %arg12: memref<16x128xf32, #tpu.memory_space<vmem>>) attributes {dimension_semantics = [#tpu.dimension_semantics<parallel>], iteration_bounds = array<i64: 1>, scalar_prefetch = 0 : i64, scratch_operands = 0 : i64, tpu.core_type = #tpu.core_type<tc>, window_params = [{transform_indices = @transform_0, window_bounds = array<i64: 30, 16, 28>}, {pipeline_mode = #tpu.pipeline_mode<synchronous>, transform_indices = @transform_1, window_bounds = array<i64: 84, 448>}, {pipeline_mode = #tpu.pipeline_mode<synchronous>, transform_indices = @transform_2, window_bounds = array<i64: 84, 448>}, {pipeline_mode = #tpu.pipeline_mode<synchronous>, transform_indices = @transform_3, window_bounds = array<i64: 1, 448>}, {pipeline_mode = #tpu.pipeline_mode<synchronous>, transform_indices = @transform_4, window_bounds = array<i64: 1344, 448>}, {pipeline_mode = #tpu.pipeline_mode<synchronous>, transform_indices = @transform_5, window_bounds = array<i64: 1344, 448>}, {pipeline_mode = #tpu.pipeline_mode<synchronous>, transform_indices = @transform_6, window_bounds = array<i64: 1, 448>}, {pipeline_mode = #tpu.pipeline_mode<synchronous>, transform_indices = @transform_7, window_bounds = array<i64: 7, 448, 128>}, {pipeline_mode = #tpu.pipeline_mode<synchronous>, transform_indices = @transform_8, window_bounds = array<i64: 1, 128>}, {pipeline_mode = #tpu.pipeline_mode<synchronous>, transform_indices = @transform_9, window_bounds = array<i64: 128, 128>}, {pipeline_mode = #tpu.pipeline_mode<synchronous>, transform_indices = @transform_10, window_bounds = array<i64: 1, 128>}, {transform_indices = @transform_11, window_bounds = array<i64: 16, 128>}]} {
    %c0 = arith.constant 0 : index
    %c0_0 = arith.constant 0 : index
    %c0_1 = arith.constant 0 : index
    %0 = vector.load %arg1[%c0, %c0_0, %c0_1] : memref<30x16x28xf32, #tpu.memory_space<vmem>>, vector<30x16x28xf32>
    %1 = arith.truncf %0 : vector<30x16x28xf32> to vector<30x16x28xbf16>
    %2 = vector.extract_strided_slice %1 {offsets = [0, 0, 0], sizes = [28, 16, 28], strides = [1, 1, 1]} : vector<30x16x28xbf16> to vector<28x16x28xbf16>
    %3 = vector.extract_strided_slice %1 {offsets = [1, 0, 0], sizes = [28, 16, 28], strides = [1, 1, 1]} : vector<30x16x28xbf16> to vector<28x16x28xbf16>
    %4 = vector.extract_strided_slice %1 {offsets = [2, 0, 0], sizes = [28, 16, 28], strides = [1, 1, 1]} : vector<30x16x28xbf16> to vector<28x16x28xbf16>
    %5 = tpu.concatenate %2, %3, %4 in 2 : vector<28x16x28xbf16>, vector<28x16x28xbf16>, vector<28x16x28xbf16> -> vector<28x16x84xbf16>
    %6 = vector.shape_cast %5 : vector<28x16x84xbf16> to vector<448x84xbf16>
    %c0_2 = arith.constant 0 : index
    %c0_3 = arith.constant 0 : index
    %7 = vector.load %arg2[%c0_2, %c0_3] : memref<84x448xbf16, #tpu.memory_space<vmem>>, vector<84x448xbf16>
    %cst = arith.constant dense<0.000000e+00> : vector<448x448xf32>
    %8 = tpu.matmul %6, %7, %cst {dimension_numbers = #tpu.dot_dimension_numbers<[1], [0], [0], [1], [0, 0, 1, 1], [], []>} : vector<448x84xbf16>, vector<84x448xbf16>, vector<448x448xf32> -> vector<448x448xf32>
    %c0_4 = arith.constant 0 : index
    %c0_5 = arith.constant 0 : index
    %9 = vector.load %arg3[%c0_4, %c0_5] : memref<84x448xbf16, #tpu.memory_space<vmem>>, vector<84x448xbf16>
    %cst_6 = arith.constant dense<0.000000e+00> : vector<448x448xf32>
    %10 = tpu.matmul %6, %9, %cst_6 {dimension_numbers = #tpu.dot_dimension_numbers<[1], [0], [0], [1], [0, 0, 1, 1], [], []>} : vector<448x84xbf16>, vector<84x448xbf16>, vector<448x448xf32> -> vector<448x448xf32>
    %11 = arith.maximumf %8, %10 : vector<448x448xf32>
    %12 = vector.shape_cast %11 : vector<448x448xf32> to vector<14x2x16x448xf32>
    %cst_7 = arith.constant dense<0xFF800000> : vector<14x16x448xf32>
    %13 = vector.multi_reduction <maximumf>, %12, %cst_7 [1] : vector<14x2x16x448xf32> to vector<14x16x448xf32>
    %c0_8 = arith.constant 0 : index
    %c0_9 = arith.constant 0 : index
    %14 = vector.load %arg4[%c0_8, %c0_9] : memref<1x448xf32, #tpu.memory_space<vmem>>, vector<1x448xf32>
    %15 = vector.shape_cast %14 : vector<1x448xf32> to vector<1x1x448xf32>
    %16 = vector.broadcast %15 : vector<1x1x448xf32> to vector<14x16x448xf32>
    %17 = arith.addf %13, %16 : vector<14x16x448xf32>
    %cst_10 = arith.constant 0.000000e+00 : f32
    %18 = vector.broadcast %cst_10 : f32 to vector<14x16x448xf32>
    %19 = arith.maximumf %17, %18 : vector<14x16x448xf32>
    %20 = arith.truncf %19 : vector<14x16x448xf32> to vector<14x16x448xbf16>
    %cst_11 = arith.constant 0.000000e+00 : bf16
    %21 = vector.broadcast %cst_11 : bf16 to vector<1x16x448xbf16>
    %22 = tpu.concatenate %21, %20, %21 in 0 : vector<1x16x448xbf16>, vector<14x16x448xbf16>, vector<1x16x448xbf16> -> vector<16x16x448xbf16>
    %23 = vector.extract_strided_slice %22 {offsets = [0, 0, 0], sizes = [14, 16, 448], strides = [1, 1, 1]} : vector<16x16x448xbf16> to vector<14x16x448xbf16>
    %24 = vector.extract_strided_slice %22 {offsets = [1, 0, 0], sizes = [14, 16, 448], strides = [1, 1, 1]} : vector<16x16x448xbf16> to vector<14x16x448xbf16>
    %25 = vector.extract_strided_slice %22 {offsets = [2, 0, 0], sizes = [14, 16, 448], strides = [1, 1, 1]} : vector<16x16x448xbf16> to vector<14x16x448xbf16>
    %26 = tpu.concatenate %23, %24, %25 in 2 : vector<14x16x448xbf16>, vector<14x16x448xbf16>, vector<14x16x448xbf16> -> vector<14x16x1344xbf16>
    %27 = vector.shape_cast %26 : vector<14x16x1344xbf16> to vector<224x1344xbf16>
    %c0_12 = arith.constant 0 : index
    %c0_13 = arith.constant 0 : index
    %28 = vector.load %arg5[%c0_12, %c0_13] : memref<1344x448xbf16, #tpu.memory_space<vmem>>, vector<1344x448xbf16>
    %cst_14 = arith.constant dense<0.000000e+00> : vector<224x448xf32>
    %29 = tpu.matmul %27, %28, %cst_14 {dimension_numbers = #tpu.dot_dimension_numbers<[1], [0], [0], [1], [0, 0, 1, 1], [], []>} : vector<224x1344xbf16>, vector<1344x448xbf16>, vector<224x448xf32> -> vector<224x448xf32>
    %c0_15 = arith.constant 0 : index
    %c0_16 = arith.constant 0 : index
    %30 = vector.load %arg6[%c0_15, %c0_16] : memref<1344x448xbf16, #tpu.memory_space<vmem>>, vector<1344x448xbf16>
    %cst_17 = arith.constant dense<0.000000e+00> : vector<224x448xf32>
    %31 = tpu.matmul %27, %30, %cst_17 {dimension_numbers = #tpu.dot_dimension_numbers<[1], [0], [0], [1], [0, 0, 1, 1], [], []>} : vector<224x1344xbf16>, vector<1344x448xbf16>, vector<224x448xf32> -> vector<224x448xf32>
    %32 = arith.maximumf %29, %31 : vector<224x448xf32>
    %33 = vector.shape_cast %32 : vector<224x448xf32> to vector<7x2x16x448xf32>
    %cst_18 = arith.constant dense<0xFF800000> : vector<7x16x448xf32>
    %34 = vector.multi_reduction <maximumf>, %33, %cst_18 [1] : vector<7x2x16x448xf32> to vector<7x16x448xf32>
    %c0_19 = arith.constant 0 : index
    %c0_20 = arith.constant 0 : index
    %35 = vector.load %arg7[%c0_19, %c0_20] : memref<1x448xf32, #tpu.memory_space<vmem>>, vector<1x448xf32>
    %36 = vector.shape_cast %35 : vector<1x448xf32> to vector<1x1x448xf32>
    %37 = vector.broadcast %36 : vector<1x1x448xf32> to vector<7x16x448xf32>
    %38 = arith.addf %34, %37 : vector<7x16x448xf32>
    %cst_21 = arith.constant 0.000000e+00 : f32
    %39 = vector.broadcast %cst_21 : f32 to vector<7x16x448xf32>
    %40 = arith.maximumf %38, %39 : vector<7x16x448xf32>
    %41 = arith.truncf %40 : vector<7x16x448xf32> to vector<7x16x448xbf16>
    %cst_22 = arith.constant 0.000000e+00 : f32
    %42 = vector.broadcast %cst_22 : f32 to vector<16x128xf32>
    %43 = vector.extract_strided_slice %41 {offsets = [0, 0, 0], sizes = [1, 16, 448], strides = [1, 1, 1]} : vector<7x16x448xbf16> to vector<1x16x448xbf16>
    %44 = vector.shape_cast %43 : vector<1x16x448xbf16> to vector<16x448xbf16>
    %c0_23 = arith.constant 0 : index
    %c0_24 = arith.constant 0 : index
    %c0_25 = arith.constant 0 : index
    %45 = vector.load %arg8[%c0_23, %c0_24, %c0_25] : memref<7x448x128xbf16, #tpu.memory_space<vmem>>, vector<1x448x128xbf16>
    %46 = vector.shape_cast %45 : vector<1x448x128xbf16> to vector<448x128xbf16>
    %cst_26 = arith.constant dense<0.000000e+00> : vector<16x128xf32>
    %47 = tpu.matmul %44, %46, %cst_26 {dimension_numbers = #tpu.dot_dimension_numbers<[1], [0], [0], [1], [0, 0, 1, 1], [], []>} : vector<16x448xbf16>, vector<448x128xbf16>, vector<16x128xf32> -> vector<16x128xf32>
    %48 = arith.addf %42, %47 : vector<16x128xf32>
    %49 = vector.extract_strided_slice %41 {offsets = [1, 0, 0], sizes = [1, 16, 448], strides = [1, 1, 1]} : vector<7x16x448xbf16> to vector<1x16x448xbf16>
    %50 = vector.shape_cast %49 : vector<1x16x448xbf16> to vector<16x448xbf16>
    %c1 = arith.constant 1 : index
    %c0_27 = arith.constant 0 : index
    %c0_28 = arith.constant 0 : index
    %51 = vector.load %arg8[%c1, %c0_27, %c0_28] : memref<7x448x128xbf16, #tpu.memory_space<vmem>>, vector<1x448x128xbf16>
    %52 = vector.shape_cast %51 : vector<1x448x128xbf16> to vector<448x128xbf16>
    %cst_29 = arith.constant dense<0.000000e+00> : vector<16x128xf32>
    %53 = tpu.matmul %50, %52, %cst_29 {dimension_numbers = #tpu.dot_dimension_numbers<[1], [0], [0], [1], [0, 0, 1, 1], [], []>} : vector<16x448xbf16>, vector<448x128xbf16>, vector<16x128xf32> -> vector<16x128xf32>
    %54 = arith.addf %48, %53 : vector<16x128xf32>
    %55 = vector.extract_strided_slice %41 {offsets = [2, 0, 0], sizes = [1, 16, 448], strides = [1, 1, 1]} : vector<7x16x448xbf16> to vector<1x16x448xbf16>
    %56 = vector.shape_cast %55 : vector<1x16x448xbf16> to vector<16x448xbf16>
    %c2 = arith.constant 2 : index
    %c0_30 = arith.constant 0 : index
    %c0_31 = arith.constant 0 : index
    %57 = vector.load %arg8[%c2, %c0_30, %c0_31] : memref<7x448x128xbf16, #tpu.memory_space<vmem>>, vector<1x448x128xbf16>
    %58 = vector.shape_cast %57 : vector<1x448x128xbf16> to vector<448x128xbf16>
    %cst_32 = arith.constant dense<0.000000e+00> : vector<16x128xf32>
    %59 = tpu.matmul %56, %58, %cst_32 {dimension_numbers = #tpu.dot_dimension_numbers<[1], [0], [0], [1], [0, 0, 1, 1], [], []>} : vector<16x448xbf16>, vector<448x128xbf16>, vector<16x128xf32> -> vector<16x128xf32>
    %60 = arith.addf %54, %59 : vector<16x128xf32>
    %61 = vector.extract_strided_slice %41 {offsets = [3, 0, 0], sizes = [1, 16, 448], strides = [1, 1, 1]} : vector<7x16x448xbf16> to vector<1x16x448xbf16>
    %62 = vector.shape_cast %61 : vector<1x16x448xbf16> to vector<16x448xbf16>
    %c3 = arith.constant 3 : index
    %c0_33 = arith.constant 0 : index
    %c0_34 = arith.constant 0 : index
    %63 = vector.load %arg8[%c3, %c0_33, %c0_34] : memref<7x448x128xbf16, #tpu.memory_space<vmem>>, vector<1x448x128xbf16>
    %64 = vector.shape_cast %63 : vector<1x448x128xbf16> to vector<448x128xbf16>
    %cst_35 = arith.constant dense<0.000000e+00> : vector<16x128xf32>
    %65 = tpu.matmul %62, %64, %cst_35 {dimension_numbers = #tpu.dot_dimension_numbers<[1], [0], [0], [1], [0, 0, 1, 1], [], []>} : vector<16x448xbf16>, vector<448x128xbf16>, vector<16x128xf32> -> vector<16x128xf32>
    %66 = arith.addf %60, %65 : vector<16x128xf32>
    %67 = vector.extract_strided_slice %41 {offsets = [4, 0, 0], sizes = [1, 16, 448], strides = [1, 1, 1]} : vector<7x16x448xbf16> to vector<1x16x448xbf16>
    %68 = vector.shape_cast %67 : vector<1x16x448xbf16> to vector<16x448xbf16>
    %c4 = arith.constant 4 : index
    %c0_36 = arith.constant 0 : index
    %c0_37 = arith.constant 0 : index
    %69 = vector.load %arg8[%c4, %c0_36, %c0_37] : memref<7x448x128xbf16, #tpu.memory_space<vmem>>, vector<1x448x128xbf16>
    %70 = vector.shape_cast %69 : vector<1x448x128xbf16> to vector<448x128xbf16>
    %cst_38 = arith.constant dense<0.000000e+00> : vector<16x128xf32>
    %71 = tpu.matmul %68, %70, %cst_38 {dimension_numbers = #tpu.dot_dimension_numbers<[1], [0], [0], [1], [0, 0, 1, 1], [], []>} : vector<16x448xbf16>, vector<448x128xbf16>, vector<16x128xf32> -> vector<16x128xf32>
    %72 = arith.addf %66, %71 : vector<16x128xf32>
    %73 = vector.extract_strided_slice %41 {offsets = [5, 0, 0], sizes = [1, 16, 448], strides = [1, 1, 1]} : vector<7x16x448xbf16> to vector<1x16x448xbf16>
    %74 = vector.shape_cast %73 : vector<1x16x448xbf16> to vector<16x448xbf16>
    %c5 = arith.constant 5 : index
    %c0_39 = arith.constant 0 : index
    %c0_40 = arith.constant 0 : index
    %75 = vector.load %arg8[%c5, %c0_39, %c0_40] : memref<7x448x128xbf16, #tpu.memory_space<vmem>>, vector<1x448x128xbf16>
    %76 = vector.shape_cast %75 : vector<1x448x128xbf16> to vector<448x128xbf16>
    %cst_41 = arith.constant dense<0.000000e+00> : vector<16x128xf32>
    %77 = tpu.matmul %74, %76, %cst_41 {dimension_numbers = #tpu.dot_dimension_numbers<[1], [0], [0], [1], [0, 0, 1, 1], [], []>} : vector<16x448xbf16>, vector<448x128xbf16>, vector<16x128xf32> -> vector<16x128xf32>
    %78 = arith.addf %72, %77 : vector<16x128xf32>
    %79 = vector.extract_strided_slice %41 {offsets = [6, 0, 0], sizes = [1, 16, 448], strides = [1, 1, 1]} : vector<7x16x448xbf16> to vector<1x16x448xbf16>
    %80 = vector.shape_cast %79 : vector<1x16x448xbf16> to vector<16x448xbf16>
    %c6 = arith.constant 6 : index
    %c0_42 = arith.constant 0 : index
    %c0_43 = arith.constant 0 : index
    %81 = vector.load %arg8[%c6, %c0_42, %c0_43] : memref<7x448x128xbf16, #tpu.memory_space<vmem>>, vector<1x448x128xbf16>
    %82 = vector.shape_cast %81 : vector<1x448x128xbf16> to vector<448x128xbf16>
    %cst_44 = arith.constant dense<0.000000e+00> : vector<16x128xf32>
    %83 = tpu.matmul %80, %82, %cst_44 {dimension_numbers = #tpu.dot_dimension_numbers<[1], [0], [0], [1], [0, 0, 1, 1], [], []>} : vector<16x448xbf16>, vector<448x128xbf16>, vector<16x128xf32> -> vector<16x128xf32>
    %84 = arith.addf %78, %83 : vector<16x128xf32>
    %c0_45 = arith.constant 0 : index
    %c0_46 = arith.constant 0 : index
    %85 = vector.load %arg9[%c0_45, %c0_46] : memref<1x128xf32, #tpu.memory_space<vmem>>, vector<1x128xf32>
    %86 = vector.broadcast %85 : vector<1x128xf32> to vector<16x128xf32>
    %87 = arith.addf %84, %86 : vector<16x128xf32>
    %cst_47 = arith.constant 0.000000e+00 : f32
    %88 = vector.broadcast %cst_47 : f32 to vector<16x128xf32>
    %89 = arith.maximumf %87, %88 : vector<16x128xf32>
    %90 = arith.truncf %89 : vector<16x128xf32> to vector<16x128xbf16>
    %c0_48 = arith.constant 0 : index
    %c0_49 = arith.constant 0 : index
    %91 = vector.load %arg10[%c0_48, %c0_49] : memref<128x128xbf16, #tpu.memory_space<vmem>>, vector<128x128xbf16>
    %cst_50 = arith.constant dense<0.000000e+00> : vector<16x128xf32>
    %92 = tpu.matmul %90, %91, %cst_50 {dimension_numbers = #tpu.dot_dimension_numbers<[1], [0], [0], [1], [0, 0, 1, 1], [], []>} : vector<16x128xbf16>, vector<128x128xbf16>, vector<16x128xf32> -> vector<16x128xf32>
    %c0_51 = arith.constant 0 : index
    %c0_52 = arith.constant 0 : index
    %93 = vector.load %arg11[%c0_51, %c0_52] : memref<1x128xf32, #tpu.memory_space<vmem>>, vector<1x128xf32>
    %94 = vector.broadcast %93 : vector<1x128xf32> to vector<16x128xf32>
    %95 = arith.addf %92, %94 : vector<16x128xf32>
    %c0_53 = arith.constant 0 : index
    %c0_54 = arith.constant 0 : index
    %96 = vector.load %arg12[%c0_53, %c0_54] : memref<16x128xf32, #tpu.memory_space<vmem>>, vector<16x128xf32>
    tpu.vector_store %arg12[%c0_53, %c0_54], %95 {strides = array<i32>} : memref<16x128xf32, #tpu.memory_space<vmem>>, vector<16x128xf32>,
    return
  }
  func.func @transform_0(%arg0: i32) -> (i32, i32, i32) {
    %c0_i32 = arith.constant 0 : i32
    %c0_i32_0 = arith.constant 0 : i32
    %c0_i32_1 = arith.constant 0 : i32
    return %c0_i32, %arg0, %c0_i32_0 : i32, i32, i32
  }
  func.func @transform_1(%arg0: i32) -> (i32, i32) {
    %c0_i32 = arith.constant 0 : i32
    %c0_i32_0 = arith.constant 0 : i32
    %c0_i32_1 = arith.constant 0 : i32
    return %c0_i32, %c0_i32_0 : i32, i32
  }
  func.func @transform_2(%arg0: i32) -> (i32, i32) {
    %c0_i32 = arith.constant 0 : i32
    %c0_i32_0 = arith.constant 0 : i32
    %c0_i32_1 = arith.constant 0 : i32
    return %c0_i32, %c0_i32_0 : i32, i32
  }
  func.func @transform_3(%arg0: i32) -> (i32, i32) {
    %c0_i32 = arith.constant 0 : i32
    %c0_i32_0 = arith.constant 0 : i32
    %c0_i32_1 = arith.constant 0 : i32
    return %c0_i32, %c0_i32_0 : i32, i32
  }
  func.func @transform_4(%arg0: i32) -> (i32, i32) {
    %c0_i32 = arith.constant 0 : i32
    %c0_i32_0 = arith.constant 0 : i32
    %c0_i32_1 = arith.constant 0 : i32
    return %c0_i32, %c0_i32_0 : i32, i32
  }
  func.func @transform_5(%arg0: i32) -> (i32, i32) {
    %c0_i32 = arith.constant 0 : i32
    %c0_i32_0 = arith.constant 0 : i32
    %c0_i32_1 = arith.constant 0 : i32
    return %c0_i32, %c0_i32_0 : i32, i32
  }
  func.func @transform_6(%arg0: i32) -> (i32, i32) {
    %c0_i32 = arith.constant 0 : i32
    %c0_i32_0 = arith.constant 0 : i32
    %c0_i32_1 = arith.constant 0 : i32
    return %c0_i32, %c0_i32_0 : i32, i32
  }
  func.func @transform_7(%arg0: i32) -> (i32, i32, i32) {
    %c0_i32 = arith.constant 0 : i32
    %c0_i32_0 = arith.constant 0 : i32
    %c0_i32_1 = arith.constant 0 : i32
    %c0_i32_2 = arith.constant 0 : i32
    return %c0_i32, %c0_i32_0, %c0_i32_1 : i32, i32, i32
  }
  func.func @transform_8(%arg0: i32) -> (i32, i32) {
    %c0_i32 = arith.constant 0 : i32
    %c0_i32_0 = arith.constant 0 : i32
    %c0_i32_1 = arith.constant 0 : i32
    return %c0_i32, %c0_i32_0 : i32, i32
  }
  func.func @transform_9(%arg0: i32) -> (i32, i32) {
    %c0_i32 = arith.constant 0 : i32
    %c0_i32_0 = arith.constant 0 : i32
    %c0_i32_1 = arith.constant 0 : i32
    return %c0_i32, %c0_i32_0 : i32, i32
  }
  func.func @transform_10(%arg0: i32) -> (i32, i32) {
    %c0_i32 = arith.constant 0 : i32
    %c0_i32_0 = arith.constant 0 : i32
    %c0_i32_1 = arith.constant 0 : i32
    return %c0_i32, %c0_i32_0 : i32, i32
  }
  func.func @transform_11(%arg0: i32) -> (i32, i32) {
    %c0_i32 = arith.constant 0 : i32
    %c0_i32_0 = arith.constant 0 : i32
    return %arg0, %c0_i32 : i32, i32
  }
}

</mosaic_0001>

<llo_original>
// kernel: tpu_custom_call.1
$region0: #{tpu_custom_call.1}
  #allocation0 [shape = 'u32[]', space=smem, size = 0x4, offset = 0x4, fixed_abs, tag = 'smem constant byte address 0x4 - core index']
  #allocation1 [shape = 'u32[144,128]{1,0:T(1,128)}', space=vmem, size = 0x12000, scoped, tag = 'internal scratch']
  %s0 = inlined_call_operand.vmem [shape: f32[30,16,28], index: 0, kind: input, shape index: {}]
  %s1 = inlined_call_operand.vmem [shape: bf16[84,448], index: 1, kind: input, shape index: {}]
  %s2 = inlined_call_operand.vmem [shape: bf16[84,448], index: 2, kind: input, shape index: {}]
  %s3 = inlined_call_operand.vmem [shape: f32[1,448], index: 3, kind: input, shape index: {}]
  %s4 = inlined_call_operand.vmem [shape: bf16[1344,448], index: 4, kind: input, shape index: {}]
  %s5 = inlined_call_operand.vmem [shape: bf16[1344,448], index: 5, kind: input, shape index: {}]
  %s6 = inlined_call_operand.vmem [shape: f32[1,448], index: 6, kind: input, shape index: {}]
  %s7 = inlined_call_operand.vmem [shape: bf16[7,448,128], index: 7, kind: input, shape index: {}]
  %s8 = inlined_call_operand.vmem [shape: f32[1,128], index: 8, kind: input, shape index: {}]
  %s9 = inlined_call_operand.vmem [shape: bf16[128,128], index: 9, kind: input, shape index: {}]
  %s10 = inlined_call_operand.vmem [shape: f32[1,128], index: 10, kind: input, shape index: {}]
  %s11 = inlined_call_operand.hbm [shape: f32[16,128], index: 11, kind: output, shape index: {}]
  %s12 = sld [smem:[#allocation0]]
  $region54: #{tpu_custom_call.1} parent=0
    _
  %s14 = ssub.s32 1, %s12
  %s15 = scalar_select 0, %s14, %s12
  $region1: #{tpu_custom_call.1} parent=0
    #allocation2 [shape = 'u8[8192]{0}', space=vmem, size = 0x2000, scoped, tag = 'output window, operand 0, single buffered']
    #allocation3 [shape = 's32[1]{0}', space=sflag, size = 0x4, scoped, tag = 'scoped memory for tpu_custom_call.1']
    %16 = vsyncpa [#allocation3], 0
    // Predicated region
    $region2: #{tpu_custom_call.1} parent=1 // pred_check
      _
    $region3: #{tpu_custom_call.1} parent=1 // pred_check_branch
      %18 = sbr.rel (0) target = $region5
    $region4: #{tpu_custom_call.1} parent=1 // pred_region
      _
    $region5: #{tpu_custom_call.1} parent=1 // pred_fallthru
      _
    // Predicated region
    $region6: #{tpu_custom_call.1} parent=1 // pred_check
      _
    $region7: #{tpu_custom_call.1} parent=1 // pred_check_branch
      %20 = sbr.rel (0) target = $region9
    $region8: #{tpu_custom_call.1} parent=1 // pred_region
      _
    $region9: #{tpu_custom_call.1} parent=1 // pred_fallthru
      _
    // Predicated region
    $region10: #{tpu_custom_call.1} parent=1 // pred_check
      _
    $region11: #{tpu_custom_call.1} parent=1 // pred_check_branch
      %22 = sbr.rel (0) target = $region13
    $region12: #{tpu_custom_call.1} parent=1 // pred_region
      _
    $region13: #{tpu_custom_call.1} parent=1 // pred_fallthru
      _
    // Predicated region
    $region14: #{tpu_custom_call.1} parent=1 // pred_check
      _
    $region15: #{tpu_custom_call.1} parent=1 // pred_check_branch
      %24 = sbr.rel (0) target = $region17
    $region16: #{tpu_custom_call.1} parent=1 // pred_region
      _
    $region17: #{tpu_custom_call.1} parent=1 // pred_fallthru
      _
    // Predicated region
    $region18: #{tpu_custom_call.1} parent=1 // pred_check
      _
    $region19: #{tpu_custom_call.1} parent=1 // pred_check_branch
      %26 = sbr.rel (0) target = $region21
    $region20: #{tpu_custom_call.1} parent=1 // pred_region
      _
    $region21: #{tpu_custom_call.1} parent=1 // pred_fallthru
      _
    // Predicated region
    $region22: #{tpu_custom_call.1} parent=1 // pred_check
      _
    $region23: #{tpu_custom_call.1} parent=1 // pred_check_branch
      %28 = sbr.rel (0) target = $region25
    $region24: #{tpu_custom_call.1} parent=1 // pred_region
      _
    $region25: #{tpu_custom_call.1} parent=1 // pred_fallthru
      _
    // Predicated region
    $region26: #{tpu_custom_call.1} parent=1 // pred_check
      _
    $region27: #{tpu_custom_call.1} parent=1 // pred_check_branch
      %30 = sbr.rel (0) target = $region29
    $region28: #{tpu_custom_call.1} parent=1 // pred_region
      _
    $region29: #{tpu_custom_call.1} parent=1 // pred_fallthru
      _
    // Predicated region
    $region30: #{tpu_custom_call.1} parent=1 // pred_check
      _
    $region31: #{tpu_custom_call.1} parent=1 // pred_check_branch
      %32 = sbr.rel (0) target = $region33
    $region32: #{tpu_custom_call.1} parent=1 // pred_region
      _
    $region33: #{tpu_custom_call.1} parent=1 // pred_fallthru
      _
    // Predicated region
    $region34: #{tpu_custom_call.1} parent=1 // pred_check
      _
    $region35: #{tpu_custom_call.1} parent=1 // pred_check_branch
      %34 = sbr.rel (0) target = $region37
    $region36: #{tpu_custom_call.1} parent=1 // pred_region
      _
    $region37: #{tpu_custom_call.1} parent=1 // pred_fallthru
      _
    // Predicated region
    $region38: #{tpu_custom_call.1} parent=1 // pred_check
      _
    $region39: #{tpu_custom_call.1} parent=1 // pred_check_branch
      %36 = sbr.rel (0) target = $region41
    $region40: #{tpu_custom_call.1} parent=1 // pred_region
      _
    $region41: #{tpu_custom_call.1} parent=1 // pred_fallthru
      _
    // Predicated region
    $region42: #{tpu_custom_call.1} parent=1 // pred_check
      _
    $region43: #{tpu_custom_call.1} parent=1 // pred_check_branch
      %38 = sbr.rel (0) target = $region45
    $region44: #{tpu_custom_call.1} parent=1 // pred_region
      _
    $region45: #{tpu_custom_call.1} parent=1 // pred_fallthru
      _
    %v40 = vld [vmem:[%s0] sm:$0xff]
    %v41 = vld [vmem:[%s0 + $0x8] sm:$0xff]
    %v42 = vld [vmem:[%s0 + $0x10] sm:$0xff]
    %v43 = vld [vmem:[%s0 + $0x18] sm:$0xff]
    %v44 = vld [vmem:[%s0 + $0x20] sm:$0xff]
    %v45 = vld [vmem:[%s0 + $0x28] sm:$0xff]
    %v46 = vld [vmem:[%s0 + $0x30] sm:$0xff]
    %v47 = vld [vmem:[%s0 + $0x38] sm:$0xff]
    %v48 = vld [vmem:[%s0 + $0x40] sm:$0xff]
    %v49 = vld [vmem:[%s0 + $0x48] sm:$0xff]
    %v50 = vld [vmem:[%s0 + $0x50] sm:$0xff]
    %v51 = vld [vmem:[%s0 + $0x58] sm:$0xff]
    %v52 = vld [vmem:[%s0 + $0x60] sm:$0xff]
    %v53 = vld [vmem:[%s0 + $0x68] sm:$0xff]
    %v54 = vld [vmem:[%s0 + $0x70] sm:$0xff]
    %v55 = vld [vmem:[%s0 + $0x78] sm:$0xff]
    %v56 = vld [vmem:[%s0 + $0x80] sm:$0xff]
    %v57 = vld [vmem:[%s0 + $0x88] sm:$0xff]
    %v58 = vld [vmem:[%s0 + $0x90] sm:$0xff]
    %v59 = vld [vmem:[%s0 + $0x98] sm:$0xff]
    %v60 = vld [vmem:[%s0 + $0xa0] sm:$0xff]
    %v61 = vld [vmem:[%s0 + $0xa8] sm:$0xff]
    %v62 = vld [vmem:[%s0 + $0xb0] sm:$0xff]
    %v63 = vld [vmem:[%s0 + $0xb8] sm:$0xff]
    %v64 = vld [vmem:[%s0 + $0xc0] sm:$0xff]
    %v65 = vld [vmem:[%s0 + $0xc8] sm:$0xff]
    %v66 = vld [vmem:[%s0 + $0xd0] sm:$0xff]
    %v67 = vld [vmem:[%s0 + $0xd8] sm:$0xff]
    %v68 = vld [vmem:[%s0 + $0xe0] sm:$0xff]
    %v69 = vld [vmem:[%s0 + $0xe8] sm:$0xff]
    %v70 = vld [vmem:[%s0 + $0xf0] sm:$0xff]
    %v71 = vld [vmem:[%s0 + $0xf8] sm:$0xff]
    %v72 = vld [vmem:[%s0 + $0x100] sm:$0xff]
    %v73 = vld [vmem:[%s0 + $0x108] sm:$0xff]
    %v74 = vld [vmem:[%s0 + $0x110] sm:$0xff]
    %v75 = vld [vmem:[%s0 + $0x118] sm:$0xff]
    %v76 = vld [vmem:[%s0 + $0x120] sm:$0xff]
    %v77 = vld [vmem:[%s0 + $0x128] sm:$0xff]
    %v78 = vld [vmem:[%s0 + $0x130] sm:$0xff]
    %v79 = vld [vmem:[%s0 + $0x138] sm:$0xff]
    %v80 = vld [vmem:[%s0 + $0x140] sm:$0xff]
    %v81 = vld [vmem:[%s0 + $0x148] sm:$0xff]
    %v82 = vld [vmem:[%s0 + $0x150] sm:$0xff]
    %v83 = vld [vmem:[%s0 + $0x158] sm:$0xff]
    %v84 = vld [vmem:[%s0 + $0x160] sm:$0xff]
    %v85 = vld [vmem:[%s0 + $0x168] sm:$0xff]
    %v86 = vld [vmem:[%s0 + $0x170] sm:$0xff]
    %v87 = vld [vmem:[%s0 + $0x178] sm:$0xff]
    %v88 = vld [vmem:[%s0 + $0x180] sm:$0xff]
    %v89 = vld [vmem:[%s0 + $0x188] sm:$0xff]
    %v90 = vld [vmem:[%s0 + $0x190] sm:$0xff]
    %v91 = vld [vmem:[%s0 + $0x198] sm:$0xff]
    %v92 = vld [vmem:[%s0 + $0x1a0] sm:$0xff]
    %v93 = vld [vmem:[%s0 + $0x1a8] sm:$0xff]
    %v94 = vld [vmem:[%s0 + $0x1b0] sm:$0xff]
    %v95 = vld [vmem:[%s0 + $0x1b8] sm:$0xff]
    %v96 = vld [vmem:[%s0 + $0x1c0] sm:$0xff]
    %v97 = vld [vmem:[%s0 + $0x1c8] sm:$0xff]
    %v98 = vld [vmem:[%s0 + $0x1d0] sm:$0xff]
    %v99 = vld [vmem:[%s0 + $0x1d8] sm:$0xff]
    %v100 = vpack.c.bf16 %v41, %v40
    %v101 = vpack.c.bf16 %v43, %v42
    %v102 = vpack.c.bf16 %v45, %v44
    %v103 = vpack.c.bf16 %v47, %v46
    %v104 = vpack.c.bf16 %v49, %v48
    %v105 = vpack.c.bf16 %v51, %v50
    %v106 = vpack.c.bf16 %v53, %v52
    %v107 = vpack.c.bf16 %v55, %v54
    %v108 = vpack.c.bf16 %v57, %v56
    %v109 = vpack.c.bf16 %v59, %v58
    %v110 = vpack.c.bf16 %v61, %v60
    %v111 = vpack.c.bf16 %v63, %v62
    %v112 = vpack.c.bf16 %v65, %v64
    %v113 = vpack.c.bf16 %v67, %v66
    %v114 = vpack.c.bf16 %v69, %v68
    %v115 = vpack.c.bf16 %v71, %v70
    %v116 = vpack.c.bf16 %v73, %v72
    %v117 = vpack.c.bf16 %v75, %v74
    %v118 = vpack.c.bf16 %v77, %v76
    %v119 = vpack.c.bf16 %v79, %v78
    %v120 = vpack.c.bf16 %v81, %v80
    %v121 = vpack.c.bf16 %v83, %v82
    %v122 = vpack.c.bf16 %v85, %v84
    %v123 = vpack.c.bf16 %v87, %v86
    %v124 = vpack.c.bf16 %v89, %v88
    %v125 = vpack.c.bf16 %v91, %v90
    %v126 = vpack.c.bf16 %v93, %v92
    %v127 = vpack.c.bf16 %v95, %v94
    %v128 = vpack.c.bf16 %v97, %v96
    %v129 = vpack.c.bf16 %v99, %v98
    %158 = vrot.lane.b32.xlu0 %v101, 28
    %v159 = vpop.permute.xlu0 %158
    %160 = vrot.lane.b32.xlu0 %v102, 28
    %v161 = vpop.permute.xlu0 %160
    %162 = vrot.lane.b32.xlu0 %v103, 28
    %v163 = vpop.permute.xlu0 %162
    %164 = vrot.lane.b32.xlu0 %v104, 28
    %v165 = vpop.permute.xlu0 %164
    %166 = vrot.lane.b32.xlu0 %v105, 28
    %v167 = vpop.permute.xlu0 %166
    %168 = vrot.lane.b32.xlu0 %v106, 28
    %v169 = vpop.permute.xlu0 %168
    %170 = vrot.lane.b32.xlu0 %v107, 28
    %v171 = vpop.permute.xlu0 %170
    %172 = vrot.lane.b32.xlu0 %v108, 28
    %v173 = vpop.permute.xlu0 %172
    %174 = vrot.lane.b32.xlu0 %v109, 28
    %v175 = vpop.permute.xlu0 %174
    %176 = vrot.lane.b32.xlu0 %v110, 28
    %v177 = vpop.permute.xlu0 %176
    %178 = vrot.lane.b32.xlu0 %v111, 28
    %v179 = vpop.permute.xlu0 %178
    %180 = vrot.lane.b32.xlu0 %v112, 28
    %v181 = vpop.permute.xlu0 %180
    %182 = vrot.lane.b32.xlu0 %v113, 28
    %v183 = vpop.permute.xlu0 %182
    %184 = vrot.lane.b32.xlu0 %v114, 28
    %v185 = vpop.permute.xlu0 %184
    %186 = vrot.lane.b32.xlu0 %v115, 28
    %v187 = vpop.permute.xlu0 %186
    %188 = vrot.lane.b32.xlu0 %v116, 28
    %v189 = vpop.permute.xlu0 %188
    %190 = vrot.lane.b32.xlu0 %v117, 28
    %v191 = vpop.permute.xlu0 %190
    %192 = vrot.lane.b32.xlu0 %v118, 28
    %v193 = vpop.permute.xlu0 %192
    %194 = vrot.lane.b32.xlu0 %v119, 28
    %v195 = vpop.permute.xlu0 %194
    %196 = vrot.lane.b32.xlu0 %v120, 28
    %v197 = vpop.permute.xlu0 %196
    %198 = vrot.lane.b32.xlu0 %v121, 28
    %v199 = vpop.permute.xlu0 %198
    %200 = vrot.lane.b32.xlu0 %v122, 28
    %v201 = vpop.permute.xlu0 %200
    %202 = vrot.lane.b32.xlu0 %v123, 28
    %v203 = vpop.permute.xlu0 %202
    %204 = vrot.lane.b32.xlu0 %v124, 28
    %v205 = vpop.permute.xlu0 %204
    %206 = vrot.lane.b32.xlu0 %v125, 28
    %v207 = vpop.permute.xlu0 %206
    %208 = vrot.lane.b32.xlu0 %v126, 28
    %v209 = vpop.permute.xlu0 %208
    %210 = vrot.lane.b32.xlu0 %v127, 28
    %v211 = vpop.permute.xlu0 %210
    %212 = vrot.lane.b32.xlu0 %v128, 28
    %v213 = vpop.permute.xlu0 %212
    %215 = vrot.lane.b32.xlu0 %v102, 56
    %v216 = vpop.permute.xlu0 %215
    %217 = vrot.lane.b32.xlu0 %v103, 56
    %v218 = vpop.permute.xlu0 %217
    %219 = vrot.lane.b32.xlu0 %v104, 56
    %v220 = vpop.permute.xlu0 %219
    %221 = vrot.lane.b32.xlu0 %v105, 56
    %v222 = vpop.permute.xlu0 %221
    %223 = vrot.lane.b32.xlu0 %v106, 56
    %v224 = vpop.permute.xlu0 %223
    %225 = vrot.lane.b32.xlu0 %v107, 56
    %v226 = vpop.permute.xlu0 %225
    %227 = vrot.lane.b32.xlu0 %v108, 56
    %v228 = vpop.permute.xlu0 %227
    %229 = vrot.lane.b32.xlu0 %v109, 56
    %v230 = vpop.permute.xlu0 %229
    %231 = vrot.lane.b32.xlu0 %v110, 56
    %v232 = vpop.permute.xlu0 %231
    %233 = vrot.lane.b32.xlu0 %v111, 56
    %v234 = vpop.permute.xlu0 %233
    %235 = vrot.lane.b32.xlu0 %v112, 56
    %v236 = vpop.permute.xlu0 %235
    %237 = vrot.lane.b32.xlu0 %v113, 56
    %v238 = vpop.permute.xlu0 %237
    %239 = vrot.lane.b32.xlu0 %v114, 56
    %v240 = vpop.permute.xlu0 %239
    %241 = vrot.lane.b32.xlu0 %v115, 56
    %v242 = vpop.permute.xlu0 %241
    %243 = vrot.lane.b32.xlu0 %v116, 56
    %v244 = vpop.permute.xlu0 %243
    %245 = vrot.lane.b32.xlu0 %v117, 56
    %v246 = vpop.permute.xlu0 %245
    %247 = vrot.lane.b32.xlu0 %v118, 56
    %v248 = vpop.permute.xlu0 %247
    %249 = vrot.lane.b32.xlu0 %v119, 56
    %v250 = vpop.permute.xlu0 %249
    %251 = vrot.lane.b32.xlu0 %v120, 56
    %v252 = vpop.permute.xlu0 %251
    %253 = vrot.lane.b32.xlu0 %v121, 56
    %v254 = vpop.permute.xlu0 %253
    %255 = vrot.lane.b32.xlu0 %v122, 56
    %v256 = vpop.permute.xlu0 %255
    %257 = vrot.lane.b32.xlu0 %v123, 56
    %v258 = vpop.permute.xlu0 %257
    %259 = vrot.lane.b32.xlu0 %v124, 56
    %v260 = vpop.permute.xlu0 %259
    %261 = vrot.lane.b32.xlu0 %v125, 56
    %v262 = vpop.permute.xlu0 %261
    %263 = vrot.lane.b32.xlu0 %v126, 56
    %v264 = vpop.permute.xlu0 %263
    %265 = vrot.lane.b32.xlu0 %v127, 56
    %v266 = vpop.permute.xlu0 %265
    %267 = vrot.lane.b32.xlu0 %v128, 56
    %v268 = vpop.permute.xlu0 %267
    %269 = vrot.lane.b32.xlu0 %v129, 56
    %v270 = vpop.permute.xlu0 %269
    %vm271 = vcmask 228352
    %v274 = vsel %vm271, %v100, %v159
    %v277 = vsel %vm271, %v101, %v161
    %v280 = vsel %vm271, %v102, %v163
    %v283 = vsel %vm271, %v103, %v165
    %v286 = vsel %vm271, %v104, %v167
    %v289 = vsel %vm271, %v105, %v169
    %v292 = vsel %vm271, %v106, %v171
    %v295 = vsel %vm271, %v107, %v173
    %v298 = vsel %vm271, %v108, %v175
    %v301 = vsel %vm271, %v109, %v177
    %v304 = vsel %vm271, %v110, %v179
    %v307 = vsel %vm271, %v111, %v181
    %v310 = vsel %vm271, %v112, %v183
    %v313 = vsel %vm271, %v113, %v185
    %v316 = vsel %vm271, %v114, %v187
    %v319 = vsel %vm271, %v115, %v189
    %v322 = vsel %vm271, %v116, %v191
    %v325 = vsel %vm271, %v117, %v193
    %v328 = vsel %vm271, %v118, %v195
    %v331 = vsel %vm271, %v119, %v197
    %v334 = vsel %vm271, %v120, %v199
    %v337 = vsel %vm271, %v121, %v201
    %v340 = vsel %vm271, %v122, %v203
    %v343 = vsel %vm271, %v123, %v205
    %v346 = vsel %vm271, %v124, %v207
    %v349 = vsel %vm271, %v125, %v209
    %v352 = vsel %vm271, %v126, %v211
    %v355 = vsel %vm271, %v127, %v213
    %vm356 = vcmask 457728
    %v358 = vsel %vm356, %v274, %v216
    %v360 = vsel %vm356, %v277, %v218
    %v362 = vsel %vm356, %v280, %v220
    %v364 = vsel %vm356, %v283, %v222
    %v366 = vsel %vm356, %v286, %v224
    %v368 = vsel %vm356, %v289, %v226
    %v370 = vsel %vm356, %v292, %v228
    %v372 = vsel %vm356, %v295, %v230
    %v374 = vsel %vm356, %v298, %v232
    %v376 = vsel %vm356, %v301, %v234
    %v378 = vsel %vm356, %v304, %v236
    %v380 = vsel %vm356, %v307, %v238
    %v382 = vsel %vm356, %v310, %v240
    %v384 = vsel %vm356, %v313, %v242
    %v386 = vsel %vm356, %v316, %v244
    %v388 = vsel %vm356, %v319, %v246
    %v390 = vsel %vm356, %v322, %v248
    %v392 = vsel %vm356, %v325, %v250
    %v394 = vsel %vm356, %v328, %v252
    %v396 = vsel %vm356, %v331, %v254
    %v398 = vsel %vm356, %v334, %v256
    %v400 = vsel %vm356, %v337, %v258
    %v402 = vsel %vm356, %v340, %v260
    %v404 = vsel %vm356, %v343, %v262
    %v406 = vsel %vm356, %v346, %v264
    %v408 = vsel %vm356, %v349, %v266
    %v410 = vsel %vm356, %v352, %v268
    %v412 = vsel %vm356, %v355, %v270
    %v413 = vld [vmem:[%s1] sm:$0xff]
    %v414 = vld [vmem:[%s1 + $0x8] sm:$0xff]
    %v415 = vld [vmem:[%s1 + $0x10] sm:$0xff]
    %v416 = vld [vmem:[%s1 + $0x18] sm:$0xff]
    %v417 = vld [vmem:[%s1 + $0x20] sm:$0xff]
    %v418 = vld [vmem:[%s1 + $0x28] sm:$0xff]
    %v419 = vld [vmem:[%s1 + $0x30] sm:$0xff]
    %v420 = vld [vmem:[%s1 + $0x38] sm:$0xff]
    %v421 = vld [vmem:[%s1 + $0x40] sm:$0xff]
    %v422 = vld [vmem:[%s1 + $0x48] sm:$0xff]
    %v423 = vld [vmem:[%s1 + $0x50] sm:$0xff]
    %v424 = vld [vmem:[%s1 + $0x58] sm:$0xff]
    %v425 = vld [vmem:[%s1 + $0x60] sm:$0xff]
    %v426 = vld [vmem:[%s1 + $0x68] sm:$0xff]
    %v427 = vld [vmem:[%s1 + $0x70] sm:$0xff]
    %v428 = vld [vmem:[%s1 + $0x78] sm:$0xff]
    %v429 = vld [vmem:[%s1 + $0x80] sm:$0xff]
    %v430 = vld [vmem:[%s1 + $0x88] sm:$0xff]
    %v431 = vld [vmem:[%s1 + $0x90] sm:$0xff]
    %v432 = vld [vmem:[%s1 + $0x98] sm:$0xff]
    %v433 = vld [vmem:[%s1 + $0xa0] sm:$0x33]
    %v434 = vld [vmem:[%s1 + $0xa8] sm:$0x33]
    %v457 = vunpack.c.l.b16 %v413
    %v458 = vunpack.c.h.b16 %v413
    %v459 = vunpack.c.l.b16 %v414
    %v460 = vunpack.c.h.b16 %v414
    %v461 = vunpack.c.l.b16 %v415
    %v462 = vunpack.c.h.b16 %v415
    %v463 = vunpack.c.l.b16 %v416
    %v464 = vunpack.c.h.b16 %v416
    %v465 = vunpack.c.l.b16 %v417
    %v466 = vunpack.c.h.b16 %v417
    %v467 = vunpack.c.l.b16 %v418
    %v468 = vunpack.c.h.b16 %v418
    %v469 = vunpack.c.l.b16 %v419
    %v470 = vunpack.c.h.b16 %v419
    %v471 = vunpack.c.l.b16 %v420
    %v472 = vunpack.c.h.b16 %v420
    %v473 = vunpack.c.l.b16 %v421
    %v474 = vunpack.c.h.b16 %v421
    %v475 = vunpack.c.l.b16 %v422
    %v476 = vunpack.c.h.b16 %v422
    %v477 = vunpack.c.l.b16 %v423
    %v478 = vunpack.c.h.b16 %v423
    %v479 = vunpack.c.l.b16 %v424
    %v480 = vunpack.c.h.b16 %v424
    %v481 = vunpack.c.l.b16 %v425
    %v482 = vunpack.c.h.b16 %v425
    %v483 = vunpack.c.l.b16 %v426
    %v484 = vunpack.c.h.b16 %v426
    %v485 = vunpack.c.l.b16 %v427
    %v486 = vunpack.c.h.b16 %v427
    %v487 = vunpack.c.l.b16 %v428
    %v488 = vunpack.c.h.b16 %v428
    %v489 = vunpack.c.l.b16 %v429
    %v490 = vunpack.c.h.b16 %v429
    %v491 = vunpack.c.l.b16 %v430
    %v492 = vunpack.c.h.b16 %v430
    %v493 = vunpack.c.l.b16 %v431
    %v494 = vunpack.c.h.b16 %v431
    %v495 = vunpack.c.l.b16 %v432
    %v496 = vunpack.c.h.b16 %v432
    %v497 = vunpack.c.l.b16 %v433
    %v498 = vunpack.c.h.b16 %v433
    %v499 = vunpack.c.l.b16 %v434
    %v500 = vunpack.c.h.b16 %v434
    %v501 = vpack.c.b16 %v461, %v457
    %v502 = vpack.c.b16 %v462, %v458
    %v503 = vpack.c.b16 %v463, %v459
    %v504 = vpack.c.b16 %v464, %v460
    %v505 = vpack.c.b16 %v469, %v465
    %v506 = vpack.c.b16 %v470, %v466
    %v507 = vpack.c.b16 %v471, %v467
    %v508 = vpack.c.b16 %v472, %v468
    %v509 = vpack.c.b16 %v477, %v473
    %v510 = vpack.c.b16 %v478, %v474
    %v511 = vpack.c.b16 %v479, %v475
    %v512 = vpack.c.b16 %v480, %v476
    %v513 = vpack.c.b16 %v485, %v481
    %v514 = vpack.c.b16 %v486, %v482
    %v515 = vpack.c.b16 %v487, %v483
    %v516 = vpack.c.b16 %v488, %v484
    %v517 = vpack.c.b16 %v493, %v489
    %v518 = vpack.c.b16 %v494, %v490
    %v519 = vpack.c.b16 %v495, %v491
    %v520 = vpack.c.b16 %v496, %v492
    %v521 = vpack.c.b16 %v497, %v497
    %v522 = vpack.c.b16 %v498, %v498
    %v523 = vpack.c.b16 %v499, %v499
    %v524 = vpack.c.b16 %v500, %v500
    %vm545 = vcmask 687104
    %v546 = vsel %vm545, %v358, 0
    %v548 = vsel %vm545, %v360, 0
    %v550 = vsel %vm545, %v362, 0
    %v552 = vsel %vm545, %v364, 0
    %v554 = vsel %vm545, %v366, 0
    %v556 = vsel %vm545, %v368, 0
    %v558 = vsel %vm545, %v370, 0
    %v560 = vsel %vm545, %v372, 0
    %v562 = vsel %vm545, %v374, 0
    %v564 = vsel %vm545, %v376, 0
    %v566 = vsel %vm545, %v378, 0
    %v568 = vsel %vm545, %v380, 0
    %v570 = vsel %vm545, %v382, 0
    %v572 = vsel %vm545, %v384, 0
    %v574 = vsel %vm545, %v386, 0
    %v576 = vsel %vm545, %v388, 0
    %v578 = vsel %vm545, %v390, 0
    %v580 = vsel %vm545, %v392, 0
    %v582 = vsel %vm545, %v394, 0
    %v584 = vsel %vm545, %v396, 0
    %v586 = vsel %vm545, %v398, 0
    %v588 = vsel %vm545, %v400, 0
    %v590 = vsel %vm545, %v402, 0
    %v592 = vsel %vm545, %v404, 0
    %v594 = vsel %vm545, %v406, 0
    %v596 = vsel %vm545, %v408, 0
    %v598 = vsel %vm545, %v410, 0
    %v600 = vsel %vm545, %v412, 0
    %vm602 = vcmask 1041408
    %v604 = vsel %vm602, %v521, 0
    %v607 = vsel %vm602, %v522, 0
    %v610 = vsel %vm602, %v523, 0
    %v613 = vsel %vm602, %v524, 0
    %615 = vmatprep.subr.bf16.mxu0 0
    %616 = vmatpush1.bf16.msra.mxu0 0
    %617 = vmatprep.subr.bf16.mxu0 0
    %618 = vmatpush1.bf16.msra.mxu0 0
    %619 = vmatprep.subr.bf16.mxu0 %v607
    %620 = vmatpush1.bf16.msra.mxu0 %v604
    %621 = vmatprep.subr.bf16.mxu0 %v518
    %622 = vmatpush1.bf16.msra.mxu0 %v517
    %623 = vmatprep.subr.bf16.mxu0 %v514
    %624 = vmatpush1.bf16.msra.mxu0 %v513
    %625 = vmatprep.subr.bf16.mxu0 %v510
    %626 = vmatpush1.bf16.msra.mxu0 %v509
    %627 = vmatprep.subr.bf16.mxu0 %v506
    %628 = vmatpush1.bf16.msra.mxu0 %v505
    %629 = vmatprep.subr.bf16.mxu0 %v502
    %630 = vmatpush1.bf16.msra.mxu0 %v501
    %631 = vmatprep.subr.bf16.mxu0 0
    %632 = vmatpush2.bf16.msra.mxu0 0
    %633 = vmatprep.subr.bf16.mxu0 0
    %634 = vmatpush2.bf16.msra.mxu0 0
    %635 = vmatprep.subr.bf16.mxu0 0
    %636 = vmatpush2.bf16.msra.mxu0 0
    %637 = vmatprep.subr.bf16.mxu0 0
    %638 = vmatpush2.bf16.msra.mxu0 0
    %639 = vmatprep.subr.bf16.mxu0 0
    %640 = vmatpush2.bf16.msra.mxu0 0
    %641 = vmatprep.subr.bf16.mxu0 0
    %642 = vmatpush2.bf16.msra.mxu0 0
    %643 = vmatprep.subr.bf16.mxu0 0
    %644 = vmatpush2.bf16.msra.mxu0 0
    %645 = vmatprep.subr.bf16.mxu0 0
    %646 = vmatpush2.bf16.msra.mxu0 0
    %647 = vmatprep.mubr.bf16.mxu0 0
    %648 = vmatmul.mubr.bf16.gmra.mxu0 %v546
    %v649 = vpop.f32.mrf.mxu0
    %v650 = vadd.f32 0.0, %v649
    %v651 = vpop.f32.mrf.mxu0
    %v652 = vadd.f32 0.0, %v651
    %v653 = vpop.f32.mrf.mxu0
    %v654 = vadd.f32 0.0, %v653
    %v655 = vpop.f32.mrf.mxu0
    %v656 = vadd.f32 0.0, %v655
    %657 = vmatprep.mubr.bf16.mxu0 0
    %658 = vmatmul.mubr.bf16.gmra.mxu0 %v548
    %v659 = vpop.f32.mrf.mxu0
    %v660 = vadd.f32 0.0, %v659
    %v661 = vpop.f32.mrf.mxu0
    %v662 = vadd.f32 0.0, %v661
    %v663 = vpop.f32.mrf.mxu0
    %v664 = vadd.f32 0.0, %v663
    %v665 = vpop.f32.mrf.mxu0
    %v666 = vadd.f32 0.0, %v665
    %667 = vmatprep.mubr.bf16.mxu0 0
    %668 = vmatmul.mubr.bf16.gmra.mxu0 %v550
    %v669 = vpop.f32.mrf.mxu0
    %v670 = vadd.f32 0.0, %v669
    %v671 = vpop.f32.mrf.mxu0
    %v672 = vadd.f32 0.0, %v671
    %v673 = vpop.f32.mrf.mxu0
    %v674 = vadd.f32 0.0, %v673
    %v675 = vpop.f32.mrf.mxu0
    %v676 = vadd.f32 0.0, %v675
    %677 = vmatprep.mubr.bf16.mxu0 0
    %678 = vmatmul.mubr.bf16.gmra.mxu0 %v552
    %v679 = vpop.f32.mrf.mxu0
    %v680 = vadd.f32 0.0, %v679
    %v681 = vpop.f32.mrf.mxu0
    %v682 = vadd.f32 0.0, %v681
    %v683 = vpop.f32.mrf.mxu0
    %v684 = vadd.f32 0.0, %v683
    %v685 = vpop.f32.mrf.mxu0
    %v686 = vadd.f32 0.0, %v685
    %687 = vmatprep.mubr.bf16.mxu0 0
    %688 = vmatmul.mubr.bf16.gmra.mxu0 %v554
    %v689 = vpop.f32.mrf.mxu0
    %v690 = vadd.f32 0.0, %v689
    %v691 = vpop.f32.mrf.mxu0
    %v692 = vadd.f32 0.0, %v691
    %v693 = vpop.f32.mrf.mxu0
    %v694 = vadd.f32 0.0, %v693
    %v695 = vpop.f32.mrf.mxu0
    %v696 = vadd.f32 0.0, %v695
    %697 = vmatprep.mubr.bf16.mxu0 0
    %698 = vmatmul.mubr.bf16.gmra.mxu0 %v556
    %v699 = vpop.f32.mrf.mxu0
    %v700 = vadd.f32 0.0, %v699
    %v701 = vpop.f32.mrf.mxu0
    %v702 = vadd.f32 0.0, %v701
    %v703 = vpop.f32.mrf.mxu0
    %v704 = vadd.f32 0.0, %v703
    %v705 = vpop.f32.mrf.mxu0
    %v706 = vadd.f32 0.0, %v705
    %707 = vmatprep.mubr.bf16.mxu0 0
    %708 = vmatmul.mubr.bf16.gmra.mxu0 %v558
    %v709 = vpop.f32.mrf.mxu0
    %v710 = vadd.f32 0.0, %v709
    %v711 = vpop.f32.mrf.mxu0
    %v712 = vadd.f32 0.0, %v711
    %v713 = vpop.f32.mrf.mxu0
    %v714 = vadd.f32 0.0, %v713
    %v715 = vpop.f32.mrf.mxu0
    %v716 = vadd.f32 0.0, %v715
    %717 = vmatprep.mubr.bf16.mxu0 0
    %718 = vmatmul.mubr.bf16.gmra.mxu0 %v560
    %v719 = vpop.f32.mrf.mxu0
    %v720 = vadd.f32 0.0, %v719
    %v721 = vpop.f32.mrf.mxu0
    %v722 = vadd.f32 0.0, %v721
    %v723 = vpop.f32.mrf.mxu0
    %v724 = vadd.f32 0.0, %v723
    %v725 = vpop.f32.mrf.mxu0
    %v726 = vadd.f32 0.0, %v725
    %727 = vmatprep.mubr.bf16.mxu0 0
    %728 = vmatmul.mubr.bf16.gmra.mxu0 %v562
    %v729 = vpop.f32.mrf.mxu0
    %v730 = vadd.f32 0.0, %v729
    %v731 = vpop.f32.mrf.mxu0
    %v732 = vadd.f32 0.0, %v731
    %v733 = vpop.f32.mrf.mxu0
    %v734 = vadd.f32 0.0, %v733
    %v735 = vpop.f32.mrf.mxu0
    %v736 = vadd.f32 0.0, %v735
    %737 = vmatprep.mubr.bf16.mxu0 0
    %738 = vmatmul.mubr.bf16.gmra.mxu0 %v564
    %v739 = vpop.f32.mrf.mxu0
    %v740 = vadd.f32 0.0, %v739
    %v741 = vpop.f32.mrf.mxu0
    %v742 = vadd.f32 0.0, %v741
    %v743 = vpop.f32.mrf.mxu0
    %v744 = vadd.f32 0.0, %v743
    %v745 = vpop.f32.mrf.mxu0
    %v746 = vadd.f32 0.0, %v745
    %747 = vmatprep.mubr.bf16.mxu0 0
    %748 = vmatmul.mubr.bf16.gmra.mxu0 %v566
    %v749 = vpop.f32.mrf.mxu0
    %v750 = vadd.f32 0.0, %v749
    %v751 = vpop.f32.mrf.mxu0
    %v752 = vadd.f32 0.0, %v751
    %v753 = vpop.f32.mrf.mxu0
    %v754 = vadd.f32 0.0, %v753
    %v755 = vpop.f32.mrf.mxu0
    %v756 = vadd.f32 0.0, %v755
    %757 = vmatprep.mubr.bf16.mxu0 0
    %758 = vmatmul.mubr.bf16.gmra.mxu0 %v568
    %v759 = vpop.f32.mrf.mxu0
    %v760 = vadd.f32 0.0, %v759
    %v761 = vpop.f32.mrf.mxu0
    %v762 = vadd.f32 0.0, %v761
    %v763 = vpop.f32.mrf.mxu0
    %v764 = vadd.f32 0.0, %v763
    %v765 = vpop.f32.mrf.mxu0
    %v766 = vadd.f32 0.0, %v765
    %767 = vmatprep.mubr.bf16.mxu0 0
    %768 = vmatmul.mubr.bf16.gmra.mxu0 %v570
    %v769 = vpop.f32.mrf.mxu0
    %v770 = vadd.f32 0.0, %v769
    %v771 = vpop.f32.mrf.mxu0
    %v772 = vadd.f32 0.0, %v771
    %v773 = vpop.f32.mrf.mxu0
    %v774 = vadd.f32 0.0, %v773
    %v775 = vpop.f32.mrf.mxu0
    %v776 = vadd.f32 0.0, %v775
    %777 = vmatprep.mubr.bf16.mxu0 0
    %778 = vmatmul.mubr.bf16.gmra.mxu0 %v572
    %v779 = vpop.f32.mrf.mxu0
    %v780 = vadd.f32 0.0, %v779
    %v781 = vpop.f32.mrf.mxu0
    %v782 = vadd.f32 0.0, %v781
    %v783 = vpop.f32.mrf.mxu0
    %v784 = vadd.f32 0.0, %v783
    %v785 = vpop.f32.mrf.mxu0
    %v786 = vadd.f32 0.0, %v785
    %787 = vmatprep.mubr.bf16.mxu0 0
    %788 = vmatmul.mubr.bf16.gmra.mxu0 %v574
    %v789 = vpop.f32.mrf.mxu0
    %v790 = vadd.f32 0.0, %v789
    %v791 = vpop.f32.mrf.mxu0
    %v792 = vadd.f32 0.0, %v791
    %v793 = vpop.f32.mrf.mxu0
    %v794 = vadd.f32 0.0, %v793
    %v795 = vpop.f32.mrf.mxu0
    %v796 = vadd.f32 0.0, %v795
    %797 = vmatprep.mubr.bf16.mxu0 0
    %798 = vmatmul.mubr.bf16.gmra.mxu0 %v576
    %v799 = vpop.f32.mrf.mxu0
    %v800 = vadd.f32 0.0, %v799
    %v801 = vpop.f32.mrf.mxu0
    %v802 = vadd.f32 0.0, %v801
    %v803 = vpop.f32.mrf.mxu0
    %v804 = vadd.f32 0.0, %v803
    %v805 = vpop.f32.mrf.mxu0
    %v806 = vadd.f32 0.0, %v805
    %807 = vmatprep.mubr.bf16.mxu0 0
    %808 = vmatmul.mubr.bf16.gmra.mxu0 %v578
    %v809 = vpop.f32.mrf.mxu0
    %v810 = vadd.f32 0.0, %v809
    %v811 = vpop.f32.mrf.mxu0
    %v812 = vadd.f32 0.0, %v811
    %v813 = vpop.f32.mrf.mxu0
    %v814 = vadd.f32 0.0, %v813
    %v815 = vpop.f32.mrf.mxu0
    %v816 = vadd.f32 0.0, %v815
    %817 = vmatprep.mubr.bf16.mxu0 0
    %818 = vmatmul.mubr.bf16.gmra.mxu0 %v580
    %v819 = vpop.f32.mrf.mxu0
    %v820 = vadd.f32 0.0, %v819
    %v821 = vpop.f32.mrf.mxu0
    %v822 = vadd.f32 0.0, %v821
    %v823 = vpop.f32.mrf.mxu0
    %v824 = vadd.f32 0.0, %v823
    %v825 = vpop.f32.mrf.mxu0
    %v826 = vadd.f32 0.0, %v825
    %827 = vmatprep.mubr.bf16.mxu0 0
    %828 = vmatmul.mubr.bf16.gmra.mxu0 %v582
    %v829 = vpop.f32.mrf.mxu0
    %v830 = vadd.f32 0.0, %v829
    %v831 = vpop.f32.mrf.mxu0
    %v832 = vadd.f32 0.0, %v831
    %v833 = vpop.f32.mrf.mxu0
    %v834 = vadd.f32 0.0, %v833
    %v835 = vpop.f32.mrf.mxu0
    %v836 = vadd.f32 0.0, %v835
    %837 = vmatprep.mubr.bf16.mxu0 0
    %838 = vmatmul.mubr.bf16.gmra.mxu0 %v584
    %v839 = vpop.f32.mrf.mxu0
    %v840 = vadd.f32 0.0, %v839
    %v841 = vpop.f32.mrf.mxu0
    %v842 = vadd.f32 0.0, %v841
    %v843 = vpop.f32.mrf.mxu0
    %v844 = vadd.f32 0.0, %v843
    %v845 = vpop.f32.mrf.mxu0
    %v846 = vadd.f32 0.0, %v845
    %847 = vmatprep.mubr.bf16.mxu0 0
    %848 = vmatmul.mubr.bf16.gmra.mxu0 %v586
    %v849 = vpop.f32.mrf.mxu0
    %v850 = vadd.f32 0.0, %v849
    %v851 = vpop.f32.mrf.mxu0
    %v852 = vadd.f32 0.0, %v851
    %v853 = vpop.f32.mrf.mxu0
    %v854 = vadd.f32 0.0, %v853
    %v855 = vpop.f32.mrf.mxu0
    %v856 = vadd.f32 0.0, %v855
    %857 = vmatprep.mubr.bf16.mxu0 0
    %858 = vmatmul.mubr.bf16.gmra.mxu0 %v588
    %v859 = vpop.f32.mrf.mxu0
    %v860 = vadd.f32 0.0, %v859
    %v861 = vpop.f32.mrf.mxu0
    %v862 = vadd.f32 0.0, %v861
    %v863 = vpop.f32.mrf.mxu0
    %v864 = vadd.f32 0.0, %v863
    %v865 = vpop.f32.mrf.mxu0
    %v866 = vadd.f32 0.0, %v865
    %867 = vmatprep.mubr.bf16.mxu0 0
    %868 = vmatmul.mubr.bf16.gmra.mxu0 %v590
    %v869 = vpop.f32.mrf.mxu0
    %v870 = vadd.f32 0.0, %v869
    %v871 = vpop.f32.mrf.mxu0
    %v872 = vadd.f32 0.0, %v871
    %v873 = vpop.f32.mrf.mxu0
    %v874 = vadd.f32 0.0, %v873
    %v875 = vpop.f32.mrf.mxu0
    %v876 = vadd.f32 0.0, %v875
    %877 = vmatprep.mubr.bf16.mxu0 0
    %878 = vmatmul.mubr.bf16.gmra.mxu0 %v592
    %v879 = vpop.f32.mrf.mxu0
    %v880 = vadd.f32 0.0, %v879
    %v881 = vpop.f32.mrf.mxu0
    %v882 = vadd.f32 0.0, %v881
    %v883 = vpop.f32.mrf.mxu0
    %v884 = vadd.f32 0.0, %v883
    %v885 = vpop.f32.mrf.mxu0
    %v886 = vadd.f32 0.0, %v885
    %887 = vmatprep.mubr.bf16.mxu0 0
    %888 = vmatmul.mubr.bf16.gmra.mxu0 %v594
    %v889 = vpop.f32.mrf.mxu0
    %v890 = vadd.f32 0.0, %v889
    %v891 = vpop.f32.mrf.mxu0
    %v892 = vadd.f32 0.0, %v891
    %v893 = vpop.f32.mrf.mxu0
    %v894 = vadd.f32 0.0, %v893
    %v895 = vpop.f32.mrf.mxu0
    %v896 = vadd.f32 0.0, %v895
    %897 = vmatprep.mubr.bf16.mxu0 0
    %898 = vmatmul.mubr.bf16.gmra.mxu0 %v596
    %v899 = vpop.f32.mrf.mxu0
    %v900 = vadd.f32 0.0, %v899
    %v901 = vpop.f32.mrf.mxu0
    %v902 = vadd.f32 0.0, %v901
    %v903 = vpop.f32.mrf.mxu0
    %v904 = vadd.f32 0.0, %v903
    %v905 = vpop.f32.mrf.mxu0
    %v906 = vadd.f32 0.0, %v905
    %907 = vmatprep.mubr.bf16.mxu0 0
    %908 = vmatmul.mubr.bf16.gmra.mxu0 %v598
    %v909 = vpop.f32.mrf.mxu0
    %v910 = vadd.f32 0.0, %v909
    %v911 = vpop.f32.mrf.mxu0
    %v912 = vadd.f32 0.0, %v911
    %v913 = vpop.f32.mrf.mxu0
    %v914 = vadd.f32 0.0, %v913
    %v915 = vpop.f32.mrf.mxu0
    %v916 = vadd.f32 0.0, %v915
    %917 = vmatprep.mubr.bf16.mxu0 0
    %918 = vmatmul.mubr.bf16.gmra.mxu0 %v600
    %v919 = vpop.f32.mrf.mxu0
    %v920 = vadd.f32 0.0, %v919
    %v921 = vpop.f32.mrf.mxu0
    %v922 = vadd.f32 0.0, %v921
    %v923 = vpop.f32.mrf.mxu0
    %v924 = vadd.f32 0.0, %v923
    %v925 = vpop.f32.mrf.mxu0
    %v926 = vadd.f32 0.0, %v925
    %927 = vdwg.mxu0
    %928 = vmatprep.subr.bf16.mxu0 0
    %929 = vmatpush1.bf16.msra.mxu0 0
    %930 = vmatprep.subr.bf16.mxu0 0
    %931 = vmatpush1.bf16.msra.mxu0 0
    %932 = vmatprep.subr.bf16.mxu0 %v613
    %933 = vmatpush1.bf16.msra.mxu0 %v610
    %934 = vmatprep.subr.bf16.mxu0 %v520
    %935 = vmatpush1.bf16.msra.mxu0 %v519
    %936 = vmatprep.subr.bf16.mxu0 %v516
    %937 = vmatpush1.bf16.msra.mxu0 %v515
    %938 = vmatprep.subr.bf16.mxu0 %v512
    %939 = vmatpush1.bf16.msra.mxu0 %v511
    %940 = vmatprep.subr.bf16.mxu0 %v508
    %941 = vmatpush1.bf16.msra.mxu0 %v507
    %942 = vmatprep.subr.bf16.mxu0 %v504
    %943 = vmatpush1.bf16.msra.mxu0 %v503
    %944 = vmatprep.subr.bf16.mxu0 0
    %945 = vmatpush2.bf16.msra.mxu0 0
    %946 = vmatprep.subr.bf16.mxu0 0
    %947 = vmatpush2.bf16.msra.mxu0 0
    %948 = vmatprep.subr.bf16.mxu0 0
    %949 = vmatpush2.bf16.msra.mxu0 0
    %950 = vmatprep.subr.bf16.mxu0 0
    %951 = vmatpush2.bf16.msra.mxu0 0
    %952 = vmatprep.subr.bf16.mxu0 0
    %953 = vmatpush2.bf16.msra.mxu0 0
    %954 = vmatprep.subr.bf16.mxu0 0
    %955 = vmatpush2.bf16.msra.mxu0 0
    %956 = vmatprep.subr.bf16.mxu0 0
    %957 = vmatpush2.bf16.msra.mxu0 0
    %958 = vmatprep.subr.bf16.mxu0 0
    %959 = vmatpush2.bf16.msra.mxu0 0
    %960 = vmatprep.mubr.bf16.mxu0 0
    %961 = vmatmul.mubr.bf16.gmra.mxu0 %v546
    %v962 = vpop.f32.mrf.mxu0
    %v963 = vadd.f32 0.0, %v962
    %v964 = vpop.f32.mrf.mxu0
    %v965 = vadd.f32 0.0, %v964
    %v966 = vpop.f32.mrf.mxu0
    %v967 = vadd.f32 0.0, %v966
    %v968 = vpop.f32.mrf.mxu0
    %v969 = vadd.f32 0.0, %v968
    %970 = vmatprep.mubr.bf16.mxu0 0
    %971 = vmatmul.mubr.bf16.gmra.mxu0 %v548
    %v972 = vpop.f32.mrf.mxu0
    %v973 = vadd.f32 0.0, %v972
    %v974 = vpop.f32.mrf.mxu0
    %v975 = vadd.f32 0.0, %v974
    %v976 = vpop.f32.mrf.mxu0
    %v977 = vadd.f32 0.0, %v976
    %v978 = vpop.f32.mrf.mxu0
    %v979 = vadd.f32 0.0, %v978
    %980 = vmatprep.mubr.bf16.mxu0 0
    %981 = vmatmul.mubr.bf16.gmra.mxu0 %v550
    %v982 = vpop.f32.mrf.mxu0
    %v983 = vadd.f32 0.0, %v982
    %v984 = vpop.f32.mrf.mxu0
    %v985 = vadd.f32 0.0, %v984
    %v986 = vpop.f32.mrf.mxu0
    %v987 = vadd.f32 0.0, %v986
    %v988 = vpop.f32.mrf.mxu0
    %v989 = vadd.f32 0.0, %v988
    %990 = vmatprep.mubr.bf16.mxu0 0
    %991 = vmatmul.mubr.bf16.gmra.mxu0 %v552
    %v992 = vpop.f32.mrf.mxu0
    %v993 = vadd.f32 0.0, %v992
    %v994 = vpop.f32.mrf.mxu0
    %v995 = vadd.f32 0.0, %v994
    %v996 = vpop.f32.mrf.mxu0
    %v997 = vadd.f32 0.0, %v996
    %v998 = vpop.f32.mrf.mxu0
    %v999 = vadd.f32 0.0, %v998
    %1000 = vmatprep.mubr.bf16.mxu0 0
    %1001 = vmatmul.mubr.bf16.gmra.mxu0 %v554
    %v1002 = vpop.f32.mrf.mxu0
    %v1003 = vadd.f32 0.0, %v1002
    %v1004 = vpop.f32.mrf.mxu0
    %v1005 = vadd.f32 0.0, %v1004
    %v1006 = vpop.f32.mrf.mxu0
    %v1007 = vadd.f32 0.0, %v1006
    %v1008 = vpop.f32.mrf.mxu0
    %v1009 = vadd.f32 0.0, %v1008
    %1010 = vmatprep.mubr.bf16.mxu0 0
    %1011 = vmatmul.mubr.bf16.gmra.mxu0 %v556
    %v1012 = vpop.f32.mrf.mxu0
    %v1013 = vadd.f32 0.0, %v1012
    %v1014 = vpop.f32.mrf.mxu0
    %v1015 = vadd.f32 0.0, %v1014
    %v1016 = vpop.f32.mrf.mxu0
    %v1017 = vadd.f32 0.0, %v1016
    %v1018 = vpop.f32.mrf.mxu0
    %v1019 = vadd.f32 0.0, %v1018
    %1020 = vmatprep.mubr.bf16.mxu0 0
    %1021 = vmatmul.mubr.bf16.gmra.mxu0 %v558
    %v1022 = vpop.f32.mrf.mxu0
    %v1023 = vadd.f32 0.0, %v1022
    %v1024 = vpop.f32.mrf.mxu0
    %v1025 = vadd.f32 0.0, %v1024
    %v1026 = vpop.f32.mrf.mxu0
    %v1027 = vadd.f32 0.0, %v1026
    %v1028 = vpop.f32.mrf.mxu0
    %v1029 = vadd.f32 0.0, %v1028
    %1030 = vmatprep.mubr.bf16.mxu0 0
    %1031 = vmatmul.mubr.bf16.gmra.mxu0 %v560
    %v1032 = vpop.f32.mrf.mxu0
    %v1033 = vadd.f32 0.0, %v1032
    %v1034 = vpop.f32.mrf.mxu0
    %v1035 = vadd.f32 0.0, %v1034
    %v1036 = vpop.f32.mrf.mxu0
    %v1037 = vadd.f32 0.0, %v1036
    %v1038 = vpop.f32.mrf.mxu0
    %v1039 = vadd.f32 0.0, %v1038
    %1040 = vmatprep.mubr.bf16.mxu0 0
    %1041 = vmatmul.mubr.bf16.gmra.mxu0 %v562
    %v1042 = vpop.f32.mrf.mxu0
    %v1043 = vadd.f32 0.0, %v1042
    %v1044 = vpop.f32.mrf.mxu0
    %v1045 = vadd.f32 0.0, %v1044
    %v1046 = vpop.f32.mrf.mxu0
    %v1047 = vadd.f32 0.0, %v1046
    %v1048 = vpop.f32.mrf.mxu0
    %v1049 = vadd.f32 0.0, %v1048
    %1050 = vmatprep.mubr.bf16.mxu0 0
    %1051 = vmatmul.mubr.bf16.gmra.mxu0 %v564
    %v1052 = vpop.f32.mrf.mxu0
    %v1053 = vadd.f32 0.0, %v1052
    %v1054 = vpop.f32.mrf.mxu0
    %v1055 = vadd.f32 0.0, %v1054
    %v1056 = vpop.f32.mrf.mxu0
    %v1057 = vadd.f32 0.0, %v1056
    %v1058 = vpop.f32.mrf.mxu0
    %v1059 = vadd.f32 0.0, %v1058
    %1060 = vmatprep.mubr.bf16.mxu0 0
    %1061 = vmatmul.mubr.bf16.gmra.mxu0 %v566
    %v1062 = vpop.f32.mrf.mxu0
    %v1063 = vadd.f32 0.0, %v1062
    %v1064 = vpop.f32.mrf.mxu0
    %v1065 = vadd.f32 0.0, %v1064
    %v1066 = vpop.f32.mrf.mxu0
    %v1067 = vadd.f32 0.0, %v1066
    %v1068 = vpop.f32.mrf.mxu0
    %v1069 = vadd.f32 0.0, %v1068
    %1070 = vmatprep.mubr.bf16.mxu0 0
    %1071 = vmatmul.mubr.bf16.gmra.mxu0 %v568
    %v1072 = vpop.f32.mrf.mxu0
    %v1073 = vadd.f32 0.0, %v1072
    %v1074 = vpop.f32.mrf.mxu0
    %v1075 = vadd.f32 0.0, %v1074
    %v1076 = vpop.f32.mrf.mxu0
    %v1077 = vadd.f32 0.0, %v1076
    %v1078 = vpop.f32.mrf.mxu0
    %v1079 = vadd.f32 0.0, %v1078
    %1080 = vmatprep.mubr.bf16.mxu0 0
    %1081 = vmatmul.mubr.bf16.gmra.mxu0 %v570
    %v1082 = vpop.f32.mrf.mxu0
    %v1083 = vadd.f32 0.0, %v1082
    %v1084 = vpop.f32.mrf.mxu0
    %v1085 = vadd.f32 0.0, %v1084
    %v1086 = vpop.f32.mrf.mxu0
    %v1087 = vadd.f32 0.0, %v1086
    %v1088 = vpop.f32.mrf.mxu0
    %v1089 = vadd.f32 0.0, %v1088
    %1090 = vmatprep.mubr.bf16.mxu0 0
    %1091 = vmatmul.mubr.bf16.gmra.mxu0 %v572
    %v1092 = vpop.f32.mrf.mxu0
    %v1093 = vadd.f32 0.0, %v1092
    %v1094 = vpop.f32.mrf.mxu0
    %v1095 = vadd.f32 0.0, %v1094
    %v1096 = vpop.f32.mrf.mxu0
    %v1097 = vadd.f32 0.0, %v1096
    %v1098 = vpop.f32.mrf.mxu0
    %v1099 = vadd.f32 0.0, %v1098
    %1100 = vmatprep.mubr.bf16.mxu0 0
    %1101 = vmatmul.mubr.bf16.gmra.mxu0 %v574
    %v1102 = vpop.f32.mrf.mxu0
    %v1103 = vadd.f32 0.0, %v1102
    %v1104 = vpop.f32.mrf.mxu0
    %v1105 = vadd.f32 0.0, %v1104
    %v1106 = vpop.f32.mrf.mxu0
    %v1107 = vadd.f32 0.0, %v1106
    %v1108 = vpop.f32.mrf.mxu0
    %v1109 = vadd.f32 0.0, %v1108
    %1110 = vmatprep.mubr.bf16.mxu0 0
    %1111 = vmatmul.mubr.bf16.gmra.mxu0 %v576
    %v1112 = vpop.f32.mrf.mxu0
    %v1113 = vadd.f32 0.0, %v1112
    %v1114 = vpop.f32.mrf.mxu0
    %v1115 = vadd.f32 0.0, %v1114
    %v1116 = vpop.f32.mrf.mxu0
    %v1117 = vadd.f32 0.0, %v1116
    %v1118 = vpop.f32.mrf.mxu0
    %v1119 = vadd.f32 0.0, %v1118
    %1120 = vmatprep.mubr.bf16.mxu0 0
    %1121 = vmatmul.mubr.bf16.gmra.mxu0 %v578
    %v1122 = vpop.f32.mrf.mxu0
    %v1123 = vadd.f32 0.0, %v1122
    %v1124 = vpop.f32.mrf.mxu0
    %v1125 = vadd.f32 0.0, %v1124
    %v1126 = vpop.f32.mrf.mxu0
    %v1127 = vadd.f32 0.0, %v1126
    %v1128 = vpop.f32.mrf.mxu0
    %v1129 = vadd.f32 0.0, %v1128
    %1130 = vmatprep.mubr.bf16.mxu0 0
    %1131 = vmatmul.mubr.bf16.gmra.mxu0 %v580
    %v1132 = vpop.f32.mrf.mxu0
    %v1133 = vadd.f32 0.0, %v1132
    %v1134 = vpop.f32.mrf.mxu0
    %v1135 = vadd.f32 0.0, %v1134
    %v1136 = vpop.f32.mrf.mxu0
    %v1137 = vadd.f32 0.0, %v1136
    %v1138 = vpop.f32.mrf.mxu0
    %v1139 = vadd.f32 0.0, %v1138
    %1140 = vmatprep.mubr.bf16.mxu0 0
    %1141 = vmatmul.mubr.bf16.gmra.mxu0 %v582
    %v1142 = vpop.f32.mrf.mxu0
    %v1143 = vadd.f32 0.0, %v1142
    %v1144 = vpop.f32.mrf.mxu0
    %v1145 = vadd.f32 0.0, %v1144
    %v1146 = vpop.f32.mrf.mxu0
    %v1147 = vadd.f32 0.0, %v1146
    %v1148 = vpop.f32.mrf.mxu0
    %v1149 = vadd.f32 0.0, %v1148
    %1150 = vmatprep.mubr.bf16.mxu0 0
    %1151 = vmatmul.mubr.bf16.gmra.mxu0 %v584
    %v1152 = vpop.f32.mrf.mxu0
    %v1153 = vadd.f32 0.0, %v1152
    %v1154 = vpop.f32.mrf.mxu0
    %v1155 = vadd.f32 0.0, %v1154
    %v1156 = vpop.f32.mrf.mxu0
    %v1157 = vadd.f32 0.0, %v1156
    %v1158 = vpop.f32.mrf.mxu0
    %v1159 = vadd.f32 0.0, %v1158
    %1160 = vmatprep.mubr.bf16.mxu0 0
    %1161 = vmatmul.mubr.bf16.gmra.mxu0 %v586
    %v1162 = vpop.f32.mrf.mxu0
    %v1163 = vadd.f32 0.0, %v1162
    %v1164 = vpop.f32.mrf.mxu0
    %v1165 = vadd.f32 0.0, %v1164
    %v1166 = vpop.f32.mrf.mxu0
    %v1167 = vadd.f32 0.0, %v1166
    %v1168 = vpop.f32.mrf.mxu0
    %v1169 = vadd.f32 0.0, %v1168
    %1170 = vmatprep.mubr.bf16.mxu0 0
    %1171 = vmatmul.mubr.bf16.gmra.mxu0 %v588
    %v1172 = vpop.f32.mrf.mxu0
    %v1173 = vadd.f32 0.0, %v1172
    %v1174 = vpop.f32.mrf.mxu0
    %v1175 = vadd.f32 0.0, %v1174
    %v1176 = vpop.f32.mrf.mxu0
    %v1177 = vadd.f32 0.0, %v1176
    %v1178 = vpop.f32.mrf.mxu0
    %v1179 = vadd.f32 0.0, %v1178
    %1180 = vmatprep.mubr.bf16.mxu0 0
    %1181 = vmatmul.mubr.bf16.gmra.mxu0 %v590
    %v1182 = vpop.f32.mrf.mxu0
    %v1183 = vadd.f32 0.0, %v1182
    %v1184 = vpop.f32.mrf.mxu0
    %v1185 = vadd.f32 0.0, %v1184
    %v1186 = vpop.f32.mrf.mxu0
    %v1187 = vadd.f32 0.0, %v1186
    %v1188 = vpop.f32.mrf.mxu0
    %v1189 = vadd.f32 0.0, %v1188
    %1190 = vmatprep.mubr.bf16.mxu0 0
    %1191 = vmatmul.mubr.bf16.gmra.mxu0 %v592
    %v1192 = vpop.f32.mrf.mxu0
    %v1193 = vadd.f32 0.0, %v1192
    %v1194 = vpop.f32.mrf.mxu0
    %v1195 = vadd.f32 0.0, %v1194
    %v1196 = vpop.f32.mrf.mxu0
    %v1197 = vadd.f32 0.0, %v1196
    %v1198 = vpop.f32.mrf.mxu0
    %v1199 = vadd.f32 0.0, %v1198
    %1200 = vmatprep.mubr.bf16.mxu0 0
    %1201 = vmatmul.mubr.bf16.gmra.mxu0 %v594
    %v1202 = vpop.f32.mrf.mxu0
    %v1203 = vadd.f32 0.0, %v1202
    %v1204 = vpop.f32.mrf.mxu0
    %v1205 = vadd.f32 0.0, %v1204
    %v1206 = vpop.f32.mrf.mxu0
    %v1207 = vadd.f32 0.0, %v1206
    %v1208 = vpop.f32.mrf.mxu0
    %v1209 = vadd.f32 0.0, %v1208
    %1210 = vmatprep.mubr.bf16.mxu0 0
    %1211 = vmatmul.mubr.bf16.gmra.mxu0 %v596
    %v1212 = vpop.f32.mrf.mxu0
    %v1213 = vadd.f32 0.0, %v1212
    %v1214 = vpop.f32.mrf.mxu0
    %v1215 = vadd.f32 0.0, %v1214
    %v1216 = vpop.f32.mrf.mxu0
    %v1217 = vadd.f32 0.0, %v1216
    %v1218 = vpop.f32.mrf.mxu0
    %v1219 = vadd.f32 0.0, %v1218
    %1220 = vmatprep.mubr.bf16.mxu0 0
    %1221 = vmatmul.mubr.bf16.gmra.mxu0 %v598
    %v1222 = vpop.f32.mrf.mxu0
    %v1223 = vadd.f32 0.0, %v1222
    %v1224 = vpop.f32.mrf.mxu0
    %v1225 = vadd.f32 0.0, %v1224
    %v1226 = vpop.f32.mrf.mxu0
    %v1227 = vadd.f32 0.0, %v1226
    %v1228 = vpop.f32.mrf.mxu0
    %v1229 = vadd.f32 0.0, %v1228
    %1230 = vmatprep.mubr.bf16.mxu0 0
    %1231 = vmatmul.mubr.bf16.gmra.mxu0 %v600
    %v1232 = vpop.f32.mrf.mxu0
    %v1233 = vadd.f32 0.0, %v1232
    %v1234 = vpop.f32.mrf.mxu0
    %v1235 = vadd.f32 0.0, %v1234
    %v1236 = vpop.f32.mrf.mxu0
    %v1237 = vadd.f32 0.0, %v1236
    %v1238 = vpop.f32.mrf.mxu0
    %v1239 = vadd.f32 0.0, %v1238
    %1240 = vdwg.mxu0
    %v1241 = vld [vmem:[%s2] sm:$0xff]
    %v1242 = vld [vmem:[%s2 + $0x8] sm:$0xff]
    %v1243 = vld [vmem:[%s2 + $0x10] sm:$0xff]
    %v1244 = vld [vmem:[%s2 + $0x18] sm:$0xff]
    %v1245 = vld [vmem:[%s2 + $0x20] sm:$0xff]
    %v1246 = vld [vmem:[%s2 + $0x28] sm:$0xff]
    %v1247 = vld [vmem:[%s2 + $0x30] sm:$0xff]
    %v1248 = vld [vmem:[%s2 + $0x38] sm:$0xff]
    %v1249 = vld [vmem:[%s2 + $0x40] sm:$0xff]
    %v1250 = vld [vmem:[%s2 + $0x48] sm:$0xff]
    %v1251 = vld [vmem:[%s2 + $0x50] sm:$0xff]
    %v1252 = vld [vmem:[%s2 + $0x58] sm:$0xff]
    %v1253 = vld [vmem:[%s2 + $0x60] sm:$0xff]
    %v1254 = vld [vmem:[%s2 + $0x68] sm:$0xff]
    %v1255 = vld [vmem:[%s2 + $0x70] sm:$0xff]
    %v1256 = vld [vmem:[%s2 + $0x78] sm:$0xff]
    %v1257 = vld [vmem:[%s2 + $0x80] sm:$0xff]
    %v1258 = vld [vmem:[%s2 + $0x88] sm:$0xff]
    %v1259 = vld [vmem:[%s2 + $0x90] sm:$0xff]
    %v1260 = vld [vmem:[%s2 + $0x98] sm:$0xff]
    %v1261 = vld [vmem:[%s2 + $0xa0] sm:$0x33]
    %v1262 = vld [vmem:[%s2 + $0xa8] sm:$0x33]
    %v1285 = vunpack.c.l.b16 %v1241
    %v1286 = vunpack.c.h.b16 %v1241
    %v1287 = vunpack.c.l.b16 %v1242
    %v1288 = vunpack.c.h.b16 %v1242
    %v1289 = vunpack.c.l.b16 %v1243
    %v1290 = vunpack.c.h.b16 %v1243
    %v1291 = vunpack.c.l.b16 %v1244
    %v1292 = vunpack.c.h.b16 %v1244
    %v1293 = vunpack.c.l.b16 %v1245
    %v1294 = vunpack.c.h.b16 %v1245
    %v1295 = vunpack.c.l.b16 %v1246
    %v1296 = vunpack.c.h.b16 %v1246
    %v1297 = vunpack.c.l.b16 %v1247
    %v1298 = vunpack.c.h.b16 %v1247
    %v1299 = vunpack.c.l.b16 %v1248
    %v1300 = vunpack.c.h.b16 %v1248
    %v1301 = vunpack.c.l.b16 %v1249
    %v1302 = vunpack.c.h.b16 %v1249
    %v1303 = vunpack.c.l.b16 %v1250
    %v1304 = vunpack.c.h.b16 %v1250
    %v1305 = vunpack.c.l.b16 %v1251
    %v1306 = vunpack.c.h.b16 %v1251
    %v1307 = vunpack.c.l.b16 %v1252
    %v1308 = vunpack.c.h.b16 %v1252
    %v1309 = vunpack.c.l.b16 %v1253
    %v1310 = vunpack.c.h.b16 %v1253
    %v1311 = vunpack.c.l.b16 %v1254
    %v1312 = vunpack.c.h.b16 %v1254
    %v1313 = vunpack.c.l.b16 %v1255
    %v1314 = vunpack.c.h.b16 %v1255
    %v1315 = vunpack.c.l.b16 %v1256
    %v1316 = vunpack.c.h.b16 %v1256
    %v1317 = vunpack.c.l.b16 %v1257
    %v1318 = vunpack.c.h.b16 %v1257
    %v1319 = vunpack.c.l.b16 %v1258
    %v1320 = vunpack.c.h.b16 %v1258
    %v1321 = vunpack.c.l.b16 %v1259
    %v1322 = vunpack.c.h.b16 %v1259
    %v1323 = vunpack.c.l.b16 %v1260
    %v1324 = vunpack.c.h.b16 %v1260
    %v1325 = vunpack.c.l.b16 %v1261
    %v1326 = vunpack.c.h.b16 %v1261
    %v1327 = vunpack.c.l.b16 %v1262
    %v1328 = vunpack.c.h.b16 %v1262
    %v1329 = vpack.c.b16 %v1289, %v1285
    %v1330 = vpack.c.b16 %v1290, %v1286
    %v1331 = vpack.c.b16 %v1291, %v1287
    %v1332 = vpack.c.b16 %v1292, %v1288
    %v1333 = vpack.c.b16 %v1297, %v1293
    %v1334 = vpack.c.b16 %v1298, %v1294
    %v1335 = vpack.c.b16 %v1299, %v1295
    %v1336 = vpack.c.b16 %v1300, %v1296
    %v1337 = vpack.c.b16 %v1305, %v1301
    %v1338 = vpack.c.b16 %v1306, %v1302
    %v1339 = vpack.c.b16 %v1307, %v1303
    %v1340 = vpack.c.b16 %v1308, %v1304
    %v1341 = vpack.c.b16 %v1313, %v1309
    %v1342 = vpack.c.b16 %v1314, %v1310
    %v1343 = vpack.c.b16 %v1315, %v1311
    %v1344 = vpack.c.b16 %v1316, %v1312
    %v1345 = vpack.c.b16 %v1321, %v1317
    %v1346 = vpack.c.b16 %v1322, %v1318
    %v1347 = vpack.c.b16 %v1323, %v1319
    %v1348 = vpack.c.b16 %v1324, %v1320
    %v1349 = vpack.c.b16 %v1325, %v1325
    %v1350 = vpack.c.b16 %v1326, %v1326
    %v1351 = vpack.c.b16 %v1327, %v1327
    %v1352 = vpack.c.b16 %v1328, %v1328
    %v1374 = vsel %vm602, %v1349, 0
    %v1377 = vsel %vm602, %v1350, 0
    %v1380 = vsel %vm602, %v1351, 0
    %v1383 = vsel %vm602, %v1352, 0
    %1385 = vmatprep.subr.bf16.mxu0 0
    %1386 = vmatpush1.bf16.msra.mxu0 0
    %1387 = vmatprep.subr.bf16.mxu0 0
    %1388 = vmatpush1.bf16.msra.mxu0 0
    %1389 = vmatprep.subr.bf16.mxu0 %v1377
    %1390 = vmatpush1.bf16.msra.mxu0 %v1374
    %1391 = vmatprep.subr.bf16.mxu0 %v1346
    %1392 = vmatpush1.bf16.msra.mxu0 %v1345
    %1393 = vmatprep.subr.bf16.mxu0 %v1342
    %1394 = vmatpush1.bf16.msra.mxu0 %v1341
    %1395 = vmatprep.subr.bf16.mxu0 %v1338
    %1396 = vmatpush1.bf16.msra.mxu0 %v1337
    %1397 = vmatprep.subr.bf16.mxu0 %v1334
    %1398 = vmatpush1.bf16.msra.mxu0 %v1333
    %1399 = vmatprep.subr.bf16.mxu0 %v1330
    %1400 = vmatpush1.bf16.msra.mxu0 %v1329
    %1401 = vmatprep.subr.bf16.mxu0 0
    %1402 = vmatpush2.bf16.msra.mxu0 0
    %1403 = vmatprep.subr.bf16.mxu0 0
    %1404 = vmatpush2.bf16.msra.mxu0 0
    %1405 = vmatprep.subr.bf16.mxu0 0
    %1406 = vmatpush2.bf16.msra.mxu0 0
    %1407 = vmatprep.subr.bf16.mxu0 0
    %1408 = vmatpush2.bf16.msra.mxu0 0
    %1409 = vmatprep.subr.bf16.mxu0 0
    %1410 = vmatpush2.bf16.msra.mxu0 0
    %1411 = vmatprep.subr.bf16.mxu0 0
    %1412 = vmatpush2.bf16.msra.mxu0 0
    %1413 = vmatprep.subr.bf16.mxu0 0
    %1414 = vmatpush2.bf16.msra.mxu0 0
    %1415 = vmatprep.subr.bf16.mxu0 0
    %1416 = vmatpush2.bf16.msra.mxu0 0
    %1417 = vmatprep.mubr.bf16.mxu0 0
    %1418 = vmatmul.mubr.bf16.gmra.mxu0 %v546
    %v1419 = vpop.f32.mrf.mxu0
    %v1420 = vadd.f32 0.0, %v1419
    %v1421 = vpop.f32.mrf.mxu0
    %v1422 = vadd.f32 0.0, %v1421
    %v1423 = vpop.f32.mrf.mxu0
    %v1424 = vadd.f32 0.0, %v1423
    %v1425 = vpop.f32.mrf.mxu0
    %v1426 = vadd.f32 0.0, %v1425
    %1427 = vmatprep.mubr.bf16.mxu0 0
    %1428 = vmatmul.mubr.bf16.gmra.mxu0 %v548
    %v1429 = vpop.f32.mrf.mxu0
    %v1430 = vadd.f32 0.0, %v1429
    %v1431 = vpop.f32.mrf.mxu0
    %v1432 = vadd.f32 0.0, %v1431
    %v1433 = vpop.f32.mrf.mxu0
    %v1434 = vadd.f32 0.0, %v1433
    %v1435 = vpop.f32.mrf.mxu0
    %v1436 = vadd.f32 0.0, %v1435
    %1437 = vmatprep.mubr.bf16.mxu0 0
    %1438 = vmatmul.mubr.bf16.gmra.mxu0 %v550
    %v1439 = vpop.f32.mrf.mxu0
    %v1440 = vadd.f32 0.0, %v1439
    %v1441 = vpop.f32.mrf.mxu0
    %v1442 = vadd.f32 0.0, %v1441
    %v1443 = vpop.f32.mrf.mxu0
    %v1444 = vadd.f32 0.0, %v1443
    %v1445 = vpop.f32.mrf.mxu0
    %v1446 = vadd.f32 0.0, %v1445
    %1447 = vmatprep.mubr.bf16.mxu0 0
    %1448 = vmatmul.mubr.bf16.gmra.mxu0 %v552
    %v1449 = vpop.f32.mrf.mxu0
    %v1450 = vadd.f32 0.0, %v1449
    %v1451 = vpop.f32.mrf.mxu0
    %v1452 = vadd.f32 0.0, %v1451
    %v1453 = vpop.f32.mrf.mxu0
    %v1454 = vadd.f32 0.0, %v1453
    %v1455 = vpop.f32.mrf.mxu0
    %v1456 = vadd.f32 0.0, %v1455
    %1457 = vmatprep.mubr.bf16.mxu0 0
    %1458 = vmatmul.mubr.bf16.gmra.mxu0 %v554
    %v1459 = vpop.f32.mrf.mxu0
    %v1460 = vadd.f32 0.0, %v1459
    %v1461 = vpop.f32.mrf.mxu0
    %v1462 = vadd.f32 0.0, %v1461
    %v1463 = vpop.f32.mrf.mxu0
    %v1464 = vadd.f32 0.0, %v1463
    %v1465 = vpop.f32.mrf.mxu0
    %v1466 = vadd.f32 0.0, %v1465
    %1467 = vmatprep.mubr.bf16.mxu0 0
    %1468 = vmatmul.mubr.bf16.gmra.mxu0 %v556
    %v1469 = vpop.f32.mrf.mxu0
    %v1470 = vadd.f32 0.0, %v1469
    %v1471 = vpop.f32.mrf.mxu0
    %v1472 = vadd.f32 0.0, %v1471
    %v1473 = vpop.f32.mrf.mxu0
    %v1474 = vadd.f32 0.0, %v1473
    %v1475 = vpop.f32.mrf.mxu0
    %v1476 = vadd.f32 0.0, %v1475
    %1477 = vmatprep.mubr.bf16.mxu0 0
    %1478 = vmatmul.mubr.bf16.gmra.mxu0 %v558
    %v1479 = vpop.f32.mrf.mxu0
    %v1480 = vadd.f32 0.0, %v1479
    %v1481 = vpop.f32.mrf.mxu0
    %v1482 = vadd.f32 0.0, %v1481
    %v1483 = vpop.f32.mrf.mxu0
    %v1484 = vadd.f32 0.0, %v1483
    %v1485 = vpop.f32.mrf.mxu0
    %v1486 = vadd.f32 0.0, %v1485
    %1487 = vmatprep.mubr.bf16.mxu0 0
    %1488 = vmatmul.mubr.bf16.gmra.mxu0 %v560
    %v1489 = vpop.f32.mrf.mxu0
    %v1490 = vadd.f32 0.0, %v1489
    %v1491 = vpop.f32.mrf.mxu0
    %v1492 = vadd.f32 0.0, %v1491
    %v1493 = vpop.f32.mrf.mxu0
    %v1494 = vadd.f32 0.0, %v1493
    %v1495 = vpop.f32.mrf.mxu0
    %v1496 = vadd.f32 0.0, %v1495
    %1497 = vmatprep.mubr.bf16.mxu0 0
    %1498 = vmatmul.mubr.bf16.gmra.mxu0 %v562
    %v1499 = vpop.f32.mrf.mxu0
    %v1500 = vadd.f32 0.0, %v1499
    %v1501 = vpop.f32.mrf.mxu0
    %v1502 = vadd.f32 0.0, %v1501
    %v1503 = vpop.f32.mrf.mxu0
    %v1504 = vadd.f32 0.0, %v1503
    %v1505 = vpop.f32.mrf.mxu0
    %v1506 = vadd.f32 0.0, %v1505
    %1507 = vmatprep.mubr.bf16.mxu0 0
    %1508 = vmatmul.mubr.bf16.gmra.mxu0 %v564
    %v1509 = vpop.f32.mrf.mxu0
    %v1510 = vadd.f32 0.0, %v1509
    %v1511 = vpop.f32.mrf.mxu0
    %v1512 = vadd.f32 0.0, %v1511
    %v1513 = vpop.f32.mrf.mxu0
    %v1514 = vadd.f32 0.0, %v1513
    %v1515 = vpop.f32.mrf.mxu0
    %v1516 = vadd.f32 0.0, %v1515
    %1517 = vmatprep.mubr.bf16.mxu0 0
    %1518 = vmatmul.mubr.bf16.gmra.mxu0 %v566
    %v1519 = vpop.f32.mrf.mxu0
    %v1520 = vadd.f32 0.0, %v1519
    %v1521 = vpop.f32.mrf.mxu0
    %v1522 = vadd.f32 0.0, %v1521
    %v1523 = vpop.f32.mrf.mxu0
    %v1524 = vadd.f32 0.0, %v1523
    %v1525 = vpop.f32.mrf.mxu0
    %v1526 = vadd.f32 0.0, %v1525
    %1527 = vmatprep.mubr.bf16.mxu0 0
    %1528 = vmatmul.mubr.bf16.gmra.mxu0 %v568
    %v1529 = vpop.f32.mrf.mxu0
    %v1530 = vadd.f32 0.0, %v1529
    %v1531 = vpop.f32.mrf.mxu0
    %v1532 = vadd.f32 0.0, %v1531
    %v1533 = vpop.f32.mrf.mxu0
    %v1534 = vadd.f32 0.0, %v1533
    %v1535 = vpop.f32.mrf.mxu0
    %v1536 = vadd.f32 0.0, %v1535
    %1537 = vmatprep.mubr.bf16.mxu0 0
    %1538 = vmatmul.mubr.bf16.gmra.mxu0 %v570
    %v1539 = vpop.f32.mrf.mxu0
    %v1540 = vadd.f32 0.0, %v1539
    %v1541 = vpop.f32.mrf.mxu0
    %v1542 = vadd.f32 0.0, %v1541
    %v1543 = vpop.f32.mrf.mxu0
    %v1544 = vadd.f32 0.0, %v1543
    %v1545 = vpop.f32.mrf.mxu0
    %v1546 = vadd.f32 0.0, %v1545
    %1547 = vmatprep.mubr.bf16.mxu0 0
    %1548 = vmatmul.mubr.bf16.gmra.mxu0 %v572
    %v1549 = vpop.f32.mrf.mxu0
    %v1550 = vadd.f32 0.0, %v1549
    %v1551 = vpop.f32.mrf.mxu0
    %v1552 = vadd.f32 0.0, %v1551
    %v1553 = vpop.f32.mrf.mxu0
    %v1554 = vadd.f32 0.0, %v1553
    %v1555 = vpop.f32.mrf.mxu0
    %v1556 = vadd.f32 0.0, %v1555
    %1557 = vmatprep.mubr.bf16.mxu0 0
    %1558 = vmatmul.mubr.bf16.gmra.mxu0 %v574
    %v1559 = vpop.f32.mrf.mxu0
    %v1560 = vadd.f32 0.0, %v1559
    %v1561 = vpop.f32.mrf.mxu0
    %v1562 = vadd.f32 0.0, %v1561
    %v1563 = vpop.f32.mrf.mxu0
    %v1564 = vadd.f32 0.0, %v1563
    %v1565 = vpop.f32.mrf.mxu0
    %v1566 = vadd.f32 0.0, %v1565
    %1567 = vmatprep.mubr.bf16.mxu0 0
    %1568 = vmatmul.mubr.bf16.gmra.mxu0 %v576
    %v1569 = vpop.f32.mrf.mxu0
    %v1570 = vadd.f32 0.0, %v1569
    %v1571 = vpop.f32.mrf.mxu0
    %v1572 = vadd.f32 0.0, %v1571
    %v1573 = vpop.f32.mrf.mxu0
    %v1574 = vadd.f32 0.0, %v1573
    %v1575 = vpop.f32.mrf.mxu0
    %v1576 = vadd.f32 0.0, %v1575
    %1577 = vmatprep.mubr.bf16.mxu0 0
    %1578 = vmatmul.mubr.bf16.gmra.mxu0 %v578
    %v1579 = vpop.f32.mrf.mxu0
    %v1580 = vadd.f32 0.0, %v1579
    %v1581 = vpop.f32.mrf.mxu0
    %v1582 = vadd.f32 0.0, %v1581
    %v1583 = vpop.f32.mrf.mxu0
    %v1584 = vadd.f32 0.0, %v1583
    %v1585 = vpop.f32.mrf.mxu0
    %v1586 = vadd.f32 0.0, %v1585
    %1587 = vmatprep.mubr.bf16.mxu0 0
    %1588 = vmatmul.mubr.bf16.gmra.mxu0 %v580
    %v1589 = vpop.f32.mrf.mxu0
    %v1590 = vadd.f32 0.0, %v1589
    %v1591 = vpop.f32.mrf.mxu0
    %v1592 = vadd.f32 0.0, %v1591
    %v1593 = vpop.f32.mrf.mxu0
    %v1594 = vadd.f32 0.0, %v1593
    %v1595 = vpop.f32.mrf.mxu0
    %v1596 = vadd.f32 0.0, %v1595
    %1597 = vmatprep.mubr.bf16.mxu0 0
    %1598 = vmatmul.mubr.bf16.gmra.mxu0 %v582
    %v1599 = vpop.f32.mrf.mxu0
    %v1600 = vadd.f32 0.0, %v1599
    %v1601 = vpop.f32.mrf.mxu0
    %v1602 = vadd.f32 0.0, %v1601
    %v1603 = vpop.f32.mrf.mxu0
    %v1604 = vadd.f32 0.0, %v1603
    %v1605 = vpop.f32.mrf.mxu0
    %v1606 = vadd.f32 0.0, %v1605
    %1607 = vmatprep.mubr.bf16.mxu0 0
    %1608 = vmatmul.mubr.bf16.gmra.mxu0 %v584
    %v1609 = vpop.f32.mrf.mxu0
    %v1610 = vadd.f32 0.0, %v1609
    %v1611 = vpop.f32.mrf.mxu0
    %v1612 = vadd.f32 0.0, %v1611
    %v1613 = vpop.f32.mrf.mxu0
    %v1614 = vadd.f32 0.0, %v1613
    %v1615 = vpop.f32.mrf.mxu0
    %v1616 = vadd.f32 0.0, %v1615
    %1617 = vmatprep.mubr.bf16.mxu0 0
    %1618 = vmatmul.mubr.bf16.gmra.mxu0 %v586
    %v1619 = vpop.f32.mrf.mxu0
    %v1620 = vadd.f32 0.0, %v1619
    %v1621 = vpop.f32.mrf.mxu0
    %v1622 = vadd.f32 0.0, %v1621
    %v1623 = vpop.f32.mrf.mxu0
    %v1624 = vadd.f32 0.0, %v1623
    %v1625 = vpop.f32.mrf.mxu0
    %v1626 = vadd.f32 0.0, %v1625
    %1627 = vmatprep.mubr.bf16.mxu0 0
    %1628 = vmatmul.mubr.bf16.gmra.mxu0 %v588
    %v1629 = vpop.f32.mrf.mxu0
    %v1630 = vadd.f32 0.0, %v1629
    %v1631 = vpop.f32.mrf.mxu0
    %v1632 = vadd.f32 0.0, %v1631
    %v1633 = vpop.f32.mrf.mxu0
    %v1634 = vadd.f32 0.0, %v1633
    %v1635 = vpop.f32.mrf.mxu0
    %v1636 = vadd.f32 0.0, %v1635
    %1637 = vmatprep.mubr.bf16.mxu0 0
    %1638 = vmatmul.mubr.bf16.gmra.mxu0 %v590
    %v1639 = vpop.f32.mrf.mxu0
    %v1640 = vadd.f32 0.0, %v1639
    %v1641 = vpop.f32.mrf.mxu0
    %v1642 = vadd.f32 0.0, %v1641
    %v1643 = vpop.f32.mrf.mxu0
    %v1644 = vadd.f32 0.0, %v1643
    %v1645 = vpop.f32.mrf.mxu0
    %v1646 = vadd.f32 0.0, %v1645
    %1647 = vmatprep.mubr.bf16.mxu0 0
    %1648 = vmatmul.mubr.bf16.gmra.mxu0 %v592
    %v1649 = vpop.f32.mrf.mxu0
    %v1650 = vadd.f32 0.0, %v1649
    %v1651 = vpop.f32.mrf.mxu0
    %v1652 = vadd.f32 0.0, %v1651
    %v1653 = vpop.f32.mrf.mxu0
    %v1654 = vadd.f32 0.0, %v1653
    %v1655 = vpop.f32.mrf.mxu0
    %v1656 = vadd.f32 0.0, %v1655
    %1657 = vmatprep.mubr.bf16.mxu0 0
    %1658 = vmatmul.mubr.bf16.gmra.mxu0 %v594
    %v1659 = vpop.f32.mrf.mxu0
    %v1660 = vadd.f32 0.0, %v1659
    %v1661 = vpop.f32.mrf.mxu0
    %v1662 = vadd.f32 0.0, %v1661
    %v1663 = vpop.f32.mrf.mxu0
    %v1664 = vadd.f32 0.0, %v1663
    %v1665 = vpop.f32.mrf.mxu0
    %v1666 = vadd.f32 0.0, %v1665
    %1667 = vmatprep.mubr.bf16.mxu0 0
    %1668 = vmatmul.mubr.bf16.gmra.mxu0 %v596
    %v1669 = vpop.f32.mrf.mxu0
    %v1670 = vadd.f32 0.0, %v1669
    %v1671 = vpop.f32.mrf.mxu0
    %v1672 = vadd.f32 0.0, %v1671
    %v1673 = vpop.f32.mrf.mxu0
    %v1674 = vadd.f32 0.0, %v1673
    %v1675 = vpop.f32.mrf.mxu0
    %v1676 = vadd.f32 0.0, %v1675
    %1677 = vmatprep.mubr.bf16.mxu0 0
    %1678 = vmatmul.mubr.bf16.gmra.mxu0 %v598
    %v1679 = vpop.f32.mrf.mxu0
    %v1680 = vadd.f32 0.0, %v1679
    %v1681 = vpop.f32.mrf.mxu0
    %v1682 = vadd.f32 0.0, %v1681
    %v1683 = vpop.f32.mrf.mxu0
    %v1684 = vadd.f32 0.0, %v1683
    %v1685 = vpop.f32.mrf.mxu0
    %v1686 = vadd.f32 0.0, %v1685
    %1687 = vmatprep.mubr.bf16.mxu0 0
    %1688 = vmatmul.mubr.bf16.gmra.mxu0 %v600
    %v1689 = vpop.f32.mrf.mxu0
    %v1690 = vadd.f32 0.0, %v1689
    %v1691 = vpop.f32.mrf.mxu0
    %v1692 = vadd.f32 0.0, %v1691
    %v1693 = vpop.f32.mrf.mxu0
    %v1694 = vadd.f32 0.0, %v1693
    %v1695 = vpop.f32.mrf.mxu0
    %v1696 = vadd.f32 0.0, %v1695
    %1697 = vdwg.mxu0
    %1698 = vmatprep.subr.bf16.mxu0 0
    %1699 = vmatpush1.bf16.msra.mxu0 0
    %1700 = vmatprep.subr.bf16.mxu0 0
    %1701 = vmatpush1.bf16.msra.mxu0 0
    %1702 = vmatprep.subr.bf16.mxu0 %v1383
    %1703 = vmatpush1.bf16.msra.mxu0 %v1380
    %1704 = vmatprep.subr.bf16.mxu0 %v1348
    %1705 = vmatpush1.bf16.msra.mxu0 %v1347
    %1706 = vmatprep.subr.bf16.mxu0 %v1344
    %1707 = vmatpush1.bf16.msra.mxu0 %v1343
    %1708 = vmatprep.subr.bf16.mxu0 %v1340
    %1709 = vmatpush1.bf16.msra.mxu0 %v1339
    %1710 = vmatprep.subr.bf16.mxu0 %v1336
    %1711 = vmatpush1.bf16.msra.mxu0 %v1335
    %1712 = vmatprep.subr.bf16.mxu0 %v1332
    %1713 = vmatpush1.bf16.msra.mxu0 %v1331
    %1714 = vmatprep.subr.bf16.mxu0 0
    %1715 = vmatpush2.bf16.msra.mxu0 0
    %1716 = vmatprep.subr.bf16.mxu0 0
    %1717 = vmatpush2.bf16.msra.mxu0 0
    %1718 = vmatprep.subr.bf16.mxu0 0
    %1719 = vmatpush2.bf16.msra.mxu0 0
    %1720 = vmatprep.subr.bf16.mxu0 0
    %1721 = vmatpush2.bf16.msra.mxu0 0
    %1722 = vmatprep.subr.bf16.mxu0 0
    %1723 = vmatpush2.bf16.msra.mxu0 0
    %1724 = vmatprep.subr.bf16.mxu0 0
    %1725 = vmatpush2.bf16.msra.mxu0 0
    %1726 = vmatprep.subr.bf16.mxu0 0
    %1727 = vmatpush2.bf16.msra.mxu0 0
    %1728 = vmatprep.subr.bf16.mxu0 0
    %1729 = vmatpush2.bf16.msra.mxu0 0
    %1730 = vmatprep.mubr.bf16.mxu0 0
    %1731 = vmatmul.mubr.bf16.gmra.mxu0 %v546
    %v1732 = vpop.f32.mrf.mxu0
    %v1733 = vadd.f32 0.0, %v1732
    %v1734 = vpop.f32.mrf.mxu0
    %v1735 = vadd.f32 0.0, %v1734
    %v1736 = vpop.f32.mrf.mxu0
    %v1737 = vadd.f32 0.0, %v1736
    %v1738 = vpop.f32.mrf.mxu0
    %v1739 = vadd.f32 0.0, %v1738
    %1740 = vmatprep.mubr.bf16.mxu0 0
    %1741 = vmatmul.mubr.bf16.gmra.mxu0 %v548
    %v1742 = vpop.f32.mrf.mxu0
    %v1743 = vadd.f32 0.0, %v1742
    %v1744 = vpop.f32.mrf.mxu0
    %v1745 = vadd.f32 0.0, %v1744
    %v1746 = vpop.f32.mrf.mxu0
    %v1747 = vadd.f32 0.0, %v1746
    %v1748 = vpop.f32.mrf.mxu0
    %v1749 = vadd.f32 0.0, %v1748
    %1750 = vmatprep.mubr.bf16.mxu0 0
    %1751 = vmatmul.mubr.bf16.gmra.mxu0 %v550
    %v1752 = vpop.f32.mrf.mxu0
    %v1753 = vadd.f32 0.0, %v1752
    %v1754 = vpop.f32.mrf.mxu0
    %v1755 = vadd.f32 0.0, %v1754
    %v1756 = vpop.f32.mrf.mxu0
    %v1757 = vadd.f32 0.0, %v1756
    %v1758 = vpop.f32.mrf.mxu0
    %v1759 = vadd.f32 0.0, %v1758
    %1760 = vmatprep.mubr.bf16.mxu0 0
    %1761 = vmatmul.mubr.bf16.gmra.mxu0 %v552
    %v1762 = vpop.f32.mrf.mxu0
    %v1763 = vadd.f32 0.0, %v1762
    %v1764 = vpop.f32.mrf.mxu0
    %v1765 = vadd.f32 0.0, %v1764
    %v1766 = vpop.f32.mrf.mxu0
    %v1767 = vadd.f32 0.0, %v1766
    %v1768 = vpop.f32.mrf.mxu0
    %v1769 = vadd.f32 0.0, %v1768
    %1770 = vmatprep.mubr.bf16.mxu0 0
    %1771 = vmatmul.mubr.bf16.gmra.mxu0 %v554
    %v1772 = vpop.f32.mrf.mxu0
    %v1773 = vadd.f32 0.0, %v1772
    %v1774 = vpop.f32.mrf.mxu0
    %v1775 = vadd.f32 0.0, %v1774
    %v1776 = vpop.f32.mrf.mxu0
    %v1777 = vadd.f32 0.0, %v1776
    %v1778 = vpop.f32.mrf.mxu0
    %v1779 = vadd.f32 0.0, %v1778
    %1780 = vmatprep.mubr.bf16.mxu0 0
    %1781 = vmatmul.mubr.bf16.gmra.mxu0 %v556
    %v1782 = vpop.f32.mrf.mxu0
    %v1783 = vadd.f32 0.0, %v1782
    %v1784 = vpop.f32.mrf.mxu0
    %v1785 = vadd.f32 0.0, %v1784
    %v1786 = vpop.f32.mrf.mxu0
    %v1787 = vadd.f32 0.0, %v1786
    %v1788 = vpop.f32.mrf.mxu0
    %v1789 = vadd.f32 0.0, %v1788
    %1790 = vmatprep.mubr.bf16.mxu0 0
    %1791 = vmatmul.mubr.bf16.gmra.mxu0 %v558
    %v1792 = vpop.f32.mrf.mxu0
    %v1793 = vadd.f32 0.0, %v1792
    %v1794 = vpop.f32.mrf.mxu0
    %v1795 = vadd.f32 0.0, %v1794
    %v1796 = vpop.f32.mrf.mxu0
    %v1797 = vadd.f32 0.0, %v1796
    %v1798 = vpop.f32.mrf.mxu0
    %v1799 = vadd.f32 0.0, %v1798
    %1800 = vmatprep.mubr.bf16.mxu0 0
    %1801 = vmatmul.mubr.bf16.gmra.mxu0 %v560
    %v1802 = vpop.f32.mrf.mxu0
    %v1803 = vadd.f32 0.0, %v1802
    %v1804 = vpop.f32.mrf.mxu0
    %v1805 = vadd.f32 0.0, %v1804
    %v1806 = vpop.f32.mrf.mxu0
    %v1807 = vadd.f32 0.0, %v1806
    %v1808 = vpop.f32.mrf.mxu0
    %v1809 = vadd.f32 0.0, %v1808
    %1810 = vmatprep.mubr.bf16.mxu0 0
    %1811 = vmatmul.mubr.bf16.gmra.mxu0 %v562
    %v1812 = vpop.f32.mrf.mxu0
    %v1813 = vadd.f32 0.0, %v1812
    %v1814 = vpop.f32.mrf.mxu0
    %v1815 = vadd.f32 0.0, %v1814
    %v1816 = vpop.f32.mrf.mxu0
    %v1817 = vadd.f32 0.0, %v1816
    %v1818 = vpop.f32.mrf.mxu0
    %v1819 = vadd.f32 0.0, %v1818
    %1820 = vmatprep.mubr.bf16.mxu0 0
    %1821 = vmatmul.mubr.bf16.gmra.mxu0 %v564
    %v1822 = vpop.f32.mrf.mxu0
    %v1823 = vadd.f32 0.0, %v1822
    %v1824 = vpop.f32.mrf.mxu0
    %v1825 = vadd.f32 0.0, %v1824
    %v1826 = vpop.f32.mrf.mxu0
    %v1827 = vadd.f32 0.0, %v1826
    %v1828 = vpop.f32.mrf.mxu0
    %v1829 = vadd.f32 0.0, %v1828
    %1830 = vmatprep.mubr.bf16.mxu0 0
    %1831 = vmatmul.mubr.bf16.gmra.mxu0 %v566
    %v1832 = vpop.f32.mrf.mxu0
    %v1833 = vadd.f32 0.0, %v1832
    %v1834 = vpop.f32.mrf.mxu0
    %v1835 = vadd.f32 0.0, %v1834
    %v1836 = vpop.f32.mrf.mxu0
    %v1837 = vadd.f32 0.0, %v1836
    %v1838 = vpop.f32.mrf.mxu0
    %v1839 = vadd.f32 0.0, %v1838
    %1840 = vmatprep.mubr.bf16.mxu0 0
    %1841 = vmatmul.mubr.bf16.gmra.mxu0 %v568
    %v1842 = vpop.f32.mrf.mxu0
    %v1843 = vadd.f32 0.0, %v1842
    %v1844 = vpop.f32.mrf.mxu0
    %v1845 = vadd.f32 0.0, %v1844
    %v1846 = vpop.f32.mrf.mxu0
    %v1847 = vadd.f32 0.0, %v1846
    %v1848 = vpop.f32.mrf.mxu0
    %v1849 = vadd.f32 0.0, %v1848
    %1850 = vmatprep.mubr.bf16.mxu0 0
    %1851 = vmatmul.mubr.bf16.gmra.mxu0 %v570
    %v1852 = vpop.f32.mrf.mxu0
    %v1853 = vadd.f32 0.0, %v1852
    %v1854 = vpop.f32.mrf.mxu0
    %v1855 = vadd.f32 0.0, %v1854
    %v1856 = vpop.f32.mrf.mxu0
    %v1857 = vadd.f32 0.0, %v1856
    %v1858 = vpop.f32.mrf.mxu0
    %v1859 = vadd.f32 0.0, %v1858
    %1860 = vmatprep.mubr.bf16.mxu0 0
    %1861 = vmatmul.mubr.bf16.gmra.mxu0 %v572
    %v1862 = vpop.f32.mrf.mxu0
    %v1863 = vadd.f32 0.0, %v1862
    %v1864 = vpop.f32.mrf.mxu0
    %v1865 = vadd.f32 0.0, %v1864
    %v1866 = vpop.f32.mrf.mxu0
    %v1867 = vadd.f32 0.0, %v1866
    %v1868 = vpop.f32.mrf.mxu0
    %v1869 = vadd.f32 0.0, %v1868
    %1870 = vmatprep.mubr.bf16.mxu0 0
    %1871 = vmatmul.mubr.bf16.gmra.mxu0 %v574
    %v1872 = vpop.f32.mrf.mxu0
    %v1873 = vadd.f32 0.0, %v1872
    %v1874 = vpop.f32.mrf.mxu0
    %v1875 = vadd.f32 0.0, %v1874
    %v1876 = vpop.f32.mrf.mxu0
    %v1877 = vadd.f32 0.0, %v1876
    %v1878 = vpop.f32.mrf.mxu0
    %v1879 = vadd.f32 0.0, %v1878
    %1880 = vmatprep.mubr.bf16.mxu0 0
    %1881 = vmatmul.mubr.bf16.gmra.mxu0 %v576
    %v1882 = vpop.f32.mrf.mxu0
    %v1883 = vadd.f32 0.0, %v1882
    %v1884 = vpop.f32.mrf.mxu0
    %v1885 = vadd.f32 0.0, %v1884
    %v1886 = vpop.f32.mrf.mxu0
    %v1887 = vadd.f32 0.0, %v1886
    %v1888 = vpop.f32.mrf.mxu0
    %v1889 = vadd.f32 0.0, %v1888
    %1890 = vmatprep.mubr.bf16.mxu0 0
    %1891 = vmatmul.mubr.bf16.gmra.mxu0 %v578
    %v1892 = vpop.f32.mrf.mxu0
    %v1893 = vadd.f32 0.0, %v1892
    %v1894 = vpop.f32.mrf.mxu0
    %v1895 = vadd.f32 0.0, %v1894
    %v1896 = vpop.f32.mrf.mxu0
    %v1897 = vadd.f32 0.0, %v1896
    %v1898 = vpop.f32.mrf.mxu0
    %v1899 = vadd.f32 0.0, %v1898
    %1900 = vmatprep.mubr.bf16.mxu0 0
    %1901 = vmatmul.mubr.bf16.gmra.mxu0 %v580
    %v1902 = vpop.f32.mrf.mxu0
    %v1903 = vadd.f32 0.0, %v1902
    %v1904 = vpop.f32.mrf.mxu0
    %v1905 = vadd.f32 0.0, %v1904
    %v1906 = vpop.f32.mrf.mxu0
    %v1907 = vadd.f32 0.0, %v1906
    %v1908 = vpop.f32.mrf.mxu0
    %v1909 = vadd.f32 0.0, %v1908
    %1910 = vmatprep.mubr.bf16.mxu0 0
    %1911 = vmatmul.mubr.bf16.gmra.mxu0 %v582
    %v1912 = vpop.f32.mrf.mxu0
    %v1913 = vadd.f32 0.0, %v1912
    %v1914 = vpop.f32.mrf.mxu0
    %v1915 = vadd.f32 0.0, %v1914
    %v1916 = vpop.f32.mrf.mxu0
    %v1917 = vadd.f32 0.0, %v1916
    %v1918 = vpop.f32.mrf.mxu0
    %v1919 = vadd.f32 0.0, %v1918
    %1920 = vmatprep.mubr.bf16.mxu0 0
    %1921 = vmatmul.mubr.bf16.gmra.mxu0 %v584
    %v1922 = vpop.f32.mrf.mxu0
    %v1923 = vadd.f32 0.0, %v1922
    %v1924 = vpop.f32.mrf.mxu0
    %v1925 = vadd.f32 0.0, %v1924
    %v1926 = vpop.f32.mrf.mxu0
    %v1927 = vadd.f32 0.0, %v1926
    %v1928 = vpop.f32.mrf.mxu0
    %v1929 = vadd.f32 0.0, %v1928
    %1930 = vmatprep.mubr.bf16.mxu0 0
    %1931 = vmatmul.mubr.bf16.gmra.mxu0 %v586
    %v1932 = vpop.f32.mrf.mxu0
    %v1933 = vadd.f32 0.0, %v1932
    %v1934 = vpop.f32.mrf.mxu0
    %v1935 = vadd.f32 0.0, %v1934
    %v1936 = vpop.f32.mrf.mxu0
    %v1937 = vadd.f32 0.0, %v1936
    %v1938 = vpop.f32.mrf.mxu0
    %v1939 = vadd.f32 0.0, %v1938
    %1940 = vmatprep.mubr.bf16.mxu0 0
    %1941 = vmatmul.mubr.bf16.gmra.mxu0 %v588
    %v1942 = vpop.f32.mrf.mxu0
    %v1943 = vadd.f32 0.0, %v1942
    %v1944 = vpop.f32.mrf.mxu0
    %v1945 = vadd.f32 0.0, %v1944
    %v1946 = vpop.f32.mrf.mxu0
    %v1947 = vadd.f32 0.0, %v1946
    %v1948 = vpop.f32.mrf.mxu0
    %v1949 = vadd.f32 0.0, %v1948
    %1950 = vmatprep.mubr.bf16.mxu0 0
    %1951 = vmatmul.mubr.bf16.gmra.mxu0 %v590
    %v1952 = vpop.f32.mrf.mxu0
    %v1953 = vadd.f32 0.0, %v1952
    %v1954 = vpop.f32.mrf.mxu0
    %v1955 = vadd.f32 0.0, %v1954
    %v1956 = vpop.f32.mrf.mxu0
    %v1957 = vadd.f32 0.0, %v1956
    %v1958 = vpop.f32.mrf.mxu0
    %v1959 = vadd.f32 0.0, %v1958
    %1960 = vmatprep.mubr.bf16.mxu0 0
    %1961 = vmatmul.mubr.bf16.gmra.mxu0 %v592
    %v1962 = vpop.f32.mrf.mxu0
    %v1963 = vadd.f32 0.0, %v1962
    %v1964 = vpop.f32.mrf.mxu0
    %v1965 = vadd.f32 0.0, %v1964
    %v1966 = vpop.f32.mrf.mxu0
    %v1967 = vadd.f32 0.0, %v1966
    %v1968 = vpop.f32.mrf.mxu0
    %v1969 = vadd.f32 0.0, %v1968
    %1970 = vmatprep.mubr.bf16.mxu0 0
    %1971 = vmatmul.mubr.bf16.gmra.mxu0 %v594
    %v1972 = vpop.f32.mrf.mxu0
    %v1973 = vadd.f32 0.0, %v1972
    %v1974 = vpop.f32.mrf.mxu0
    %v1975 = vadd.f32 0.0, %v1974
    %v1976 = vpop.f32.mrf.mxu0
    %v1977 = vadd.f32 0.0, %v1976
    %v1978 = vpop.f32.mrf.mxu0
    %v1979 = vadd.f32 0.0, %v1978
    %1980 = vmatprep.mubr.bf16.mxu0 0
    %1981 = vmatmul.mubr.bf16.gmra.mxu0 %v596
    %v1982 = vpop.f32.mrf.mxu0
    %v1983 = vadd.f32 0.0, %v1982
    %v1984 = vpop.f32.mrf.mxu0
    %v1985 = vadd.f32 0.0, %v1984
    %v1986 = vpop.f32.mrf.mxu0
    %v1987 = vadd.f32 0.0, %v1986
    %v1988 = vpop.f32.mrf.mxu0
    %v1989 = vadd.f32 0.0, %v1988
    %1990 = vmatprep.mubr.bf16.mxu0 0
    %1991 = vmatmul.mubr.bf16.gmra.mxu0 %v598
    %v1992 = vpop.f32.mrf.mxu0
    %v1993 = vadd.f32 0.0, %v1992
    %v1994 = vpop.f32.mrf.mxu0
    %v1995 = vadd.f32 0.0, %v1994
    %v1996 = vpop.f32.mrf.mxu0
    %v1997 = vadd.f32 0.0, %v1996
    %v1998 = vpop.f32.mrf.mxu0
    %v1999 = vadd.f32 0.0, %v1998
    %2000 = vmatprep.mubr.bf16.mxu0 0
    %2001 = vmatmul.mubr.bf16.gmra.mxu0 %v600
    %v2002 = vpop.f32.mrf.mxu0
    %v2003 = vadd.f32 0.0, %v2002
    %v2004 = vpop.f32.mrf.mxu0
    %v2005 = vadd.f32 0.0, %v2004
    %v2006 = vpop.f32.mrf.mxu0
    %v2007 = vadd.f32 0.0, %v2006
    %v2008 = vpop.f32.mrf.mxu0
    %v2009 = vadd.f32 0.0, %v2008
    %2010 = vdwg.mxu0
    %v2011 = vmax.f32 %v650, %v1420
    %v2012 = vmax.f32 %v652, %v1422
    %v2013 = vmax.f32 %v963, %v1733
    %v2014 = vmax.f32 %v965, %v1735
    %v2015 = vmax.f32 %v654, %v1424
    %v2016 = vmax.f32 %v656, %v1426
    %v2017 = vmax.f32 %v967, %v1737
    %v2018 = vmax.f32 %v969, %v1739
    %v2019 = vmax.f32 %v660, %v1430
    %v2020 = vmax.f32 %v662, %v1432
    %v2021 = vmax.f32 %v973, %v1743
    %v2022 = vmax.f32 %v975, %v1745
    %v2023 = vmax.f32 %v664, %v1434
    %v2024 = vmax.f32 %v666, %v1436
    %v2025 = vmax.f32 %v977, %v1747
    %v2026 = vmax.f32 %v979, %v1749
    %v2027 = vmax.f32 %v670, %v1440
    %v2028 = vmax.f32 %v672, %v1442
    %v2029 = vmax.f32 %v983, %v1753
    %v2030 = vmax.f32 %v985, %v1755
    %v2031 = vmax.f32 %v674, %v1444
    %v2032 = vmax.f32 %v676, %v1446
    %v2033 = vmax.f32 %v987, %v1757
    %v2034 = vmax.f32 %v989, %v1759
    %v2035 = vmax.f32 %v680, %v1450
    %v2036 = vmax.f32 %v682, %v1452
    %v2037 = vmax.f32 %v993, %v1763
    %v2038 = vmax.f32 %v995, %v1765
    %v2039 = vmax.f32 %v684, %v1454
    %v2040 = vmax.f32 %v686, %v1456
    %v2041 = vmax.f32 %v997, %v1767
    %v2042 = vmax.f32 %v999, %v1769
    %v2043 = vmax.f32 %v690, %v1460
    %v2044 = vmax.f32 %v692, %v1462
    %v2045 = vmax.f32 %v1003, %v1773
    %v2046 = vmax.f32 %v1005, %v1775
    %v2047 = vmax.f32 %v694, %v1464
    %v2048 = vmax.f32 %v696, %v1466
    %v2049 = vmax.f32 %v1007, %v1777
    %v2050 = vmax.f32 %v1009, %v1779
    %v2051 = vmax.f32 %v700, %v1470
    %v2052 = vmax.f32 %v702, %v1472
    %v2053 = vmax.f32 %v1013, %v1783
    %v2054 = vmax.f32 %v1015, %v1785
    %v2055 = vmax.f32 %v704, %v1474
    %v2056 = vmax.f32 %v706, %v1476
    %v2057 = vmax.f32 %v1017, %v1787
    %v2058 = vmax.f32 %v1019, %v1789
    %v2059 = vmax.f32 %v710, %v1480
    %v2060 = vmax.f32 %v712, %v1482
    %v2061 = vmax.f32 %v1023, %v1793
    %v2062 = vmax.f32 %v1025, %v1795
    %v2063 = vmax.f32 %v714, %v1484
    %v2064 = vmax.f32 %v716, %v1486
    %v2065 = vmax.f32 %v1027, %v1797
    %v2066 = vmax.f32 %v1029, %v1799
    %v2067 = vmax.f32 %v720, %v1490
    %v2068 = vmax.f32 %v722, %v1492
    %v2069 = vmax.f32 %v1033, %v1803
    %v2070 = vmax.f32 %v1035, %v1805
    %v2071 = vmax.f32 %v724, %v1494
    %v2072 = vmax.f32 %v726, %v1496
    %v2073 = vmax.f32 %v1037, %v1807
    %v2074 = vmax.f32 %v1039, %v1809
    %v2075 = vmax.f32 %v730, %v1500
    %v2076 = vmax.f32 %v732, %v1502
    %v2077 = vmax.f32 %v1043, %v1813
    %v2078 = vmax.f32 %v1045, %v1815
    %v2079 = vmax.f32 %v734, %v1504
    %v2080 = vmax.f32 %v736, %v1506
    %v2081 = vmax.f32 %v1047, %v1817
    %v2082 = vmax.f32 %v1049, %v1819
    %v2083 = vmax.f32 %v740, %v1510
    %v2084 = vmax.f32 %v742, %v1512
    %v2085 = vmax.f32 %v1053, %v1823
    %v2086 = vmax.f32 %v1055, %v1825
    %v2087 = vmax.f32 %v744, %v1514
    %v2088 = vmax.f32 %v746, %v1516
    %v2089 = vmax.f32 %v1057, %v1827
    %v2090 = vmax.f32 %v1059, %v1829
    %v2091 = vmax.f32 %v750, %v1520
    %v2092 = vmax.f32 %v752, %v1522
    %v2093 = vmax.f32 %v1063, %v1833
    %v2094 = vmax.f32 %v1065, %v1835
    %v2095 = vmax.f32 %v754, %v1524
    %v2096 = vmax.f32 %v756, %v1526
    %v2097 = vmax.f32 %v1067, %v1837
    %v2098 = vmax.f32 %v1069, %v1839
    %v2099 = vmax.f32 %v760, %v1530
    %v2100 = vmax.f32 %v762, %v1532
    %v2101 = vmax.f32 %v1073, %v1843
    %v2102 = vmax.f32 %v1075, %v1845
    %v2103 = vmax.f32 %v764, %v1534
    %v2104 = vmax.f32 %v766, %v1536
    %v2105 = vmax.f32 %v1077, %v1847
    %v2106 = vmax.f32 %v1079, %v1849
    %v2107 = vmax.f32 %v770, %v1540
    %v2108 = vmax.f32 %v772, %v1542
    %v2109 = vmax.f32 %v1083, %v1853
    %v2110 = vmax.f32 %v1085, %v1855
    %v2111 = vmax.f32 %v774, %v1544
    %v2112 = vmax.f32 %v776, %v1546
    %v2113 = vmax.f32 %v1087, %v1857
    %v2114 = vmax.f32 %v1089, %v1859
    %v2115 = vmax.f32 %v780, %v1550
    %v2116 = vmax.f32 %v782, %v1552
    %v2117 = vmax.f32 %v1093, %v1863
    %v2118 = vmax.f32 %v1095, %v1865
    %v2119 = vmax.f32 %v784, %v1554
    %v2120 = vmax.f32 %v786, %v1556
    %v2121 = vmax.f32 %v1097, %v1867
    %v2122 = vmax.f32 %v1099, %v1869
    %v2123 = vmax.f32 %v790, %v1560
    %v2124 = vmax.f32 %v792, %v1562
    %v2125 = vmax.f32 %v1103, %v1873
    %v2126 = vmax.f32 %v1105, %v1875
    %v2127 = vmax.f32 %v794, %v1564
    %v2128 = vmax.f32 %v796, %v1566
    %v2129 = vmax.f32 %v1107, %v1877
    %v2130 = vmax.f32 %v1109, %v1879
    %v2131 = vmax.f32 %v800, %v1570
    %v2132 = vmax.f32 %v802, %v1572
    %v2133 = vmax.f32 %v1113, %v1883
    %v2134 = vmax.f32 %v1115, %v1885
    %v2135 = vmax.f32 %v804, %v1574
    %v2136 = vmax.f32 %v806, %v1576
    %v2137 = vmax.f32 %v1117, %v1887
    %v2138 = vmax.f32 %v1119, %v1889
    %v2139 = vmax.f32 %v810, %v1580
    %v2140 = vmax.f32 %v812, %v1582
    %v2141 = vmax.f32 %v1123, %v1893
    %v2142 = vmax.f32 %v1125, %v1895
    %v2143 = vmax.f32 %v814, %v1584
    %v2144 = vmax.f32 %v816, %v1586
    %v2145 = vmax.f32 %v1127, %v1897
    %v2146 = vmax.f32 %v1129, %v1899
    %v2147 = vmax.f32 %v820, %v1590
    %v2148 = vmax.f32 %v822, %v1592
    %v2149 = vmax.f32 %v1133, %v1903
    %v2150 = vmax.f32 %v1135, %v1905
    %v2151 = vmax.f32 %v824, %v1594
    %v2152 = vmax.f32 %v826, %v1596
    %v2153 = vmax.f32 %v1137, %v1907
    %v2154 = vmax.f32 %v1139, %v1909
    %v2155 = vmax.f32 %v830, %v1600
    %v2156 = vmax.f32 %v832, %v1602
    %v2157 = vmax.f32 %v1143, %v1913
    %v2158 = vmax.f32 %v1145, %v1915
    %v2159 = vmax.f32 %v834, %v1604
    %v2160 = vmax.f32 %v836, %v1606
    %v2161 = vmax.f32 %v1147, %v1917
    %v2162 = vmax.f32 %v1149, %v1919
    %v2163 = vmax.f32 %v840, %v1610
    %v2164 = vmax.f32 %v842, %v1612
    %v2165 = vmax.f32 %v1153, %v1923
    %v2166 = vmax.f32 %v1155, %v1925
    %v2167 = vmax.f32 %v844, %v1614
    %v2168 = vmax.f32 %v846, %v1616
    %v2169 = vmax.f32 %v1157, %v1927
    %v2170 = vmax.f32 %v1159, %v1929
    %v2171 = vmax.f32 %v850, %v1620
    %v2172 = vmax.f32 %v852, %v1622
    %v2173 = vmax.f32 %v1163, %v1933
    %v2174 = vmax.f32 %v1165, %v1935
    %v2175 = vmax.f32 %v854, %v1624
    %v2176 = vmax.f32 %v856, %v1626
    %v2177 = vmax.f32 %v1167, %v1937
    %v2178 = vmax.f32 %v1169, %v1939
    %v2179 = vmax.f32 %v860, %v1630
    %v2180 = vmax.f32 %v862, %v1632
    %v2181 = vmax.f32 %v1173, %v1943
    %v2182 = vmax.f32 %v1175, %v1945
    %v2183 = vmax.f32 %v864, %v1634
    %v2184 = vmax.f32 %v866, %v1636
    %v2185 = vmax.f32 %v1177, %v1947
    %v2186 = vmax.f32 %v1179, %v1949
    %v2187 = vmax.f32 %v870, %v1640
    %v2188 = vmax.f32 %v872, %v1642
    %v2189 = vmax.f32 %v1183, %v1953
    %v2190 = vmax.f32 %v1185, %v1955
    %v2191 = vmax.f32 %v874, %v1644
    %v2192 = vmax.f32 %v876, %v1646
    %v2193 = vmax.f32 %v1187, %v1957
    %v2194 = vmax.f32 %v1189, %v1959
    %v2195 = vmax.f32 %v880, %v1650
    %v2196 = vmax.f32 %v882, %v1652
    %v2197 = vmax.f32 %v1193, %v1963
    %v2198 = vmax.f32 %v1195, %v1965
    %v2199 = vmax.f32 %v884, %v1654
    %v2200 = vmax.f32 %v886, %v1656
    %v2201 = vmax.f32 %v1197, %v1967
    %v2202 = vmax.f32 %v1199, %v1969
    %v2203 = vmax.f32 %v890, %v1660
    %v2204 = vmax.f32 %v892, %v1662
    %v2205 = vmax.f32 %v1203, %v1973
    %v2206 = vmax.f32 %v1205, %v1975
    %v2207 = vmax.f32 %v894, %v1664
    %v2208 = vmax.f32 %v896, %v1666
    %v2209 = vmax.f32 %v1207, %v1977
    %v2210 = vmax.f32 %v1209, %v1979
    %v2211 = vmax.f32 %v900, %v1670
    %v2212 = vmax.f32 %v902, %v1672
    %v2213 = vmax.f32 %v1213, %v1983
    %v2214 = vmax.f32 %v1215, %v1985
    %v2215 = vmax.f32 %v904, %v1674
    %v2216 = vmax.f32 %v906, %v1676
    %v2217 = vmax.f32 %v1217, %v1987
    %v2218 = vmax.f32 %v1219, %v1989
    %v2219 = vmax.f32 %v910, %v1680
    %v2220 = vmax.f32 %v912, %v1682
    %v2221 = vmax.f32 %v1223, %v1993
    %v2222 = vmax.f32 %v1225, %v1995
    %v2223 = vmax.f32 %v914, %v1684
    %v2224 = vmax.f32 %v916, %v1686
    %v2225 = vmax.f32 %v1227, %v1997
    %v2226 = vmax.f32 %v1229, %v1999
    %v2227 = vmax.f32 %v920, %v1690
    %v2228 = vmax.f32 %v922, %v1692
    %v2229 = vmax.f32 %v1233, %v2003
    %v2230 = vmax.f32 %v1235, %v2005
    %v2231 = vmax.f32 %v924, %v1694
    %v2232 = vmax.f32 %v926, %v1696
    %v2233 = vmax.f32 %v1237, %v2007
    %v2234 = vmax.f32 %v1239, %v2009
    %v2235 = vmax.f32 %v2011, %v2019
    %v2236 = vmax.f32 %v2012, %v2020
    %v2237 = vmax.f32 %v2013, %v2021
    %vm2238 = vcmask 523264
    %v2239 = vsel %vm2238, %v2014, -inf
    %v2240 = vsel %vm2238, %v2022, -inf
    %v2241 = vmax.f32 %v2239, %v2240
    %v2242 = vmax.f32 %v2015, %v2023
    %v2243 = vmax.f32 %v2016, %v2024
    %v2244 = vmax.f32 %v2017, %v2025
    %v2245 = vsel %vm2238, %v2018, -inf
    %v2246 = vsel %vm2238, %v2026, -inf
    %v2247 = vmax.f32 %v2245, %v2246
    %v2248 = vmax.f32 %v2027, %v2035
    %v2249 = vmax.f32 %v2028, %v2036
    %v2250 = vmax.f32 %v2029, %v2037
    %v2251 = vsel %vm2238, %v2030, -inf
    %v2252 = vsel %vm2238, %v2038, -inf
    %v2253 = vmax.f32 %v2251, %v2252
    %v2254 = vmax.f32 %v2031, %v2039
    %v2255 = vmax.f32 %v2032, %v2040
    %v2256 = vmax.f32 %v2033, %v2041
    %v2257 = vsel %vm2238, %v2034, -inf
    %v2258 = vsel %vm2238, %v2042, -inf
    %v2259 = vmax.f32 %v2257, %v2258
    %v2260 = vmax.f32 %v2043, %v2051
    %v2261 = vmax.f32 %v2044, %v2052
    %v2262 = vmax.f32 %v2045, %v2053
    %v2263 = vsel %vm2238, %v2046, -inf
    %v2264 = vsel %vm2238, %v2054, -inf
    %v2265 = vmax.f32 %v2263, %v2264
    %v2266 = vmax.f32 %v2047, %v2055
    %v2267 = vmax.f32 %v2048, %v2056
    %v2268 = vmax.f32 %v2049, %v2057
    %v2269 = vsel %vm2238, %v2050, -inf
    %v2270 = vsel %vm2238, %v2058, -inf
    %v2271 = vmax.f32 %v2269, %v2270
    %v2272 = vmax.f32 %v2059, %v2067
    %v2273 = vmax.f32 %v2060, %v2068
    %v2274 = vmax.f32 %v2061, %v2069
    %v2275 = vsel %vm2238, %v2062, -inf
    %v2276 = vsel %vm2238, %v2070, -inf
    %v2277 = vmax.f32 %v2275, %v2276
    %v2278 = vmax.f32 %v2063, %v2071
    %v2279 = vmax.f32 %v2064, %v2072
    %v2280 = vmax.f32 %v2065, %v2073
    %v2281 = vsel %vm2238, %v2066, -inf
    %v2282 = vsel %vm2238, %v2074, -inf
    %v2283 = vmax.f32 %v2281, %v2282
    %v2284 = vmax.f32 %v2075, %v2083
    %v2285 = vmax.f32 %v2076, %v2084
    %v2286 = vmax.f32 %v2077, %v2085
    %v2287 = vsel %vm2238, %v2078, -inf
    %v2288 = vsel %vm2238, %v2086, -inf
    %v2289 = vmax.f32 %v2287, %v2288
    %v2290 = vmax.f32 %v2079, %v2087
    %v2291 = vmax.f32 %v2080, %v2088
    %v2292 = vmax.f32 %v2081, %v2089
    %v2293 = vsel %vm2238, %v2082, -inf
    %v2294 = vsel %vm2238, %v2090, -inf
    %v2295 = vmax.f32 %v2293, %v2294
    %v2296 = vmax.f32 %v2091, %v2099
    %v2297 = vmax.f32 %v2092, %v2100
    %v2298 = vmax.f32 %v2093, %v2101
    %v2299 = vsel %vm2238, %v2094, -inf
    %v2300 = vsel %vm2238, %v2102, -inf
    %v2301 = vmax.f32 %v2299, %v2300
    %v2302 = vmax.f32 %v2095, %v2103
    %v2303 = vmax.f32 %v2096, %v2104
    %v2304 = vmax.f32 %v2097, %v2105
    %v2305 = vsel %vm2238, %v2098, -inf
    %v2306 = vsel %vm2238, %v2106, -inf
    %v2307 = vmax.f32 %v2305, %v2306
    %v2308 = vmax.f32 %v2107, %v2115
    %v2309 = vmax.f32 %v2108, %v2116
    %v2310 = vmax.f32 %v2109, %v2117
    %v2311 = vsel %vm2238, %v2110, -inf
    %v2312 = vsel %vm2238, %v2118, -inf
    %v2313 = vmax.f32 %v2311, %v2312
    %v2314 = vmax.f32 %v2111, %v2119
    %v2315 = vmax.f32 %v2112, %v2120
    %v2316 = vmax.f32 %v2113, %v2121
    %v2317 = vsel %vm2238, %v2114, -inf
    %v2318 = vsel %vm2238, %v2122, -inf
    %v2319 = vmax.f32 %v2317, %v2318
    %v2320 = vmax.f32 %v2123, %v2131
    %v2321 = vmax.f32 %v2124, %v2132
    %v2322 = vmax.f32 %v2125, %v2133
    %v2323 = vsel %vm2238, %v2126, -inf
    %v2324 = vsel %vm2238, %v2134, -inf
    %v2325 = vmax.f32 %v2323, %v2324
    %v2326 = vmax.f32 %v2127, %v2135
    %v2327 = vmax.f32 %v2128, %v2136
    %v2328 = vmax.f32 %v2129, %v2137
    %v2329 = vsel %vm2238, %v2130, -inf
    %v2330 = vsel %vm2238, %v2138, -inf
    %v2331 = vmax.f32 %v2329, %v2330
    %v2332 = vmax.f32 %v2139, %v2147
    %v2333 = vmax.f32 %v2140, %v2148
    %v2334 = vmax.f32 %v2141, %v2149
    %v2335 = vsel %vm2238, %v2142, -inf
    %v2336 = vsel %vm2238, %v2150, -inf
    %v2337 = vmax.f32 %v2335, %v2336
    %v2338 = vmax.f32 %v2143, %v2151
    %v2339 = vmax.f32 %v2144, %v2152
    %v2340 = vmax.f32 %v2145, %v2153
    %v2341 = vsel %vm2238, %v2146, -inf
    %v2342 = vsel %vm2238, %v2154, -inf
    %v2343 = vmax.f32 %v2341, %v2342
    %v2344 = vmax.f32 %v2155, %v2163
    %v2345 = vmax.f32 %v2156, %v2164
    %v2346 = vmax.f32 %v2157, %v2165
    %v2347 = vsel %vm2238, %v2158, -inf
    %v2348 = vsel %vm2238, %v2166, -inf
    %v2349 = vmax.f32 %v2347, %v2348
    %v2350 = vmax.f32 %v2159, %v2167
    %v2351 = vmax.f32 %v2160, %v2168
    %v2352 = vmax.f32 %v2161, %v2169
    %v2353 = vsel %vm2238, %v2162, -inf
    %v2354 = vsel %vm2238, %v2170, -inf
    %v2355 = vmax.f32 %v2353, %v2354
    %v2356 = vmax.f32 %v2171, %v2179
    %v2357 = vmax.f32 %v2172, %v2180
    %v2358 = vmax.f32 %v2173, %v2181
    %v2359 = vsel %vm2238, %v2174, -inf
    %v2360 = vsel %vm2238, %v2182, -inf
    %v2361 = vmax.f32 %v2359, %v2360
    %v2362 = vmax.f32 %v2175, %v2183
    %v2363 = vmax.f32 %v2176, %v2184
    %v2364 = vmax.f32 %v2177, %v2185
    %v2365 = vsel %vm2238, %v2178, -inf
    %v2366 = vsel %vm2238, %v2186, -inf
    %v2367 = vmax.f32 %v2365, %v2366
    %v2368 = vmax.f32 %v2187, %v2195
    %v2369 = vmax.f32 %v2188, %v2196
    %v2370 = vmax.f32 %v2189, %v2197
    %v2371 = vsel %vm2238, %v2190, -inf
    %v2372 = vsel %vm2238, %v2198, -inf
    %v2373 = vmax.f32 %v2371, %v2372
    %v2374 = vmax.f32 %v2191, %v2199
    %v2375 = vmax.f32 %v2192, %v2200
    %v2376 = vmax.f32 %v2193, %v2201
    %v2377 = vsel %vm2238, %v2194, -inf
    %v2378 = vsel %vm2238, %v2202, -inf
    %v2379 = vmax.f32 %v2377, %v2378
    %v2380 = vmax.f32 %v2203, %v2211
    %v2381 = vmax.f32 %v2204, %v2212
    %v2382 = vmax.f32 %v2205, %v2213
    %v2383 = vsel %vm2238, %v2206, -inf
    %v2384 = vsel %vm2238, %v2214, -inf
    %v2385 = vmax.f32 %v2383, %v2384
    %v2386 = vmax.f32 %v2207, %v2215
    %v2387 = vmax.f32 %v2208, %v2216
    %v2388 = vmax.f32 %v2209, %v2217
    %v2389 = vsel %vm2238, %v2210, -inf
    %v2390 = vsel %vm2238, %v2218, -inf
    %v2391 = vmax.f32 %v2389, %v2390
    %v2392 = vmax.f32 %v2219, %v2227
    %v2393 = vmax.f32 %v2220, %v2228
    %v2394 = vmax.f32 %v2221, %v2229
    %v2395 = vsel %vm2238, %v2222, -inf
    %v2396 = vsel %vm2238, %v2230, -inf
    %v2397 = vmax.f32 %v2395, %v2396
    %v2398 = vmax.f32 %v2223, %v2231
    %v2399 = vmax.f32 %v2224, %v2232
    %v2400 = vmax.f32 %v2225, %v2233
    %v2401 = vsel %vm2238, %v2226, -inf
    %v2402 = vsel %vm2238, %v2234, -inf
    %v2403 = vmax.f32 %v2401, %v2402
    %v2404 = vld [vmem:[%s3] sm:$0xf]
    %v2406 = vlaneseq
    %v2407 = vshrl.u32 %v2406, 7
    %v2408 = vsub.s32 0, %v2407
    %v2409 = vrot.slane %v2404, %v2408
    %v2410 = vlaneseq
    %v2411 = vshrl.u32 %v2410, 7
    %v2412 = vsub.s32 1, %v2411
    %v2413 = vrot.slane %v2404, %v2412
    %v2414 = vlaneseq
    %v2415 = vshrl.u32 %v2414, 7
    %v2416 = vsub.s32 2, %v2415
    %v2417 = vrot.slane %v2404, %v2416
    %v2418 = vlaneseq
    %v2419 = vshrl.u32 %v2418, 7
    %v2420 = vsub.s32 3, %v2419
    %v2421 = vrot.slane %v2404, %v2420
    %v2426 = vadd.f32 %v2235, %v2409
    %v2427 = vadd.f32 %v2236, %v2413
    %v2428 = vadd.f32 %v2237, %v2417
    %v2429 = vadd.f32 %v2241, %v2421
    %v2430 = vadd.f32 %v2242, %v2409
    %v2431 = vadd.f32 %v2243, %v2413
    %v2432 = vadd.f32 %v2244, %v2417
    %v2433 = vadd.f32 %v2247, %v2421
    %v2434 = vadd.f32 %v2248, %v2409
    %v2435 = vadd.f32 %v2249, %v2413
    %v2436 = vadd.f32 %v2250, %v2417
    %v2437 = vadd.f32 %v2253, %v2421
    %v2438 = vadd.f32 %v2254, %v2409
    %v2439 = vadd.f32 %v2255, %v2413
    %v2440 = vadd.f32 %v2256, %v2417
    %v2441 = vadd.f32 %v2259, %v2421
    %v2442 = vadd.f32 %v2260, %v2409
    %v2443 = vadd.f32 %v2261, %v2413
    %v2444 = vadd.f32 %v2262, %v2417
    %v2445 = vadd.f32 %v2265, %v2421
    %v2446 = vadd.f32 %v2266, %v2409
    %v2447 = vadd.f32 %v2267, %v2413
    %v2448 = vadd.f32 %v2268, %v2417
    %v2449 = vadd.f32 %v2271, %v2421
    %v2450 = vadd.f32 %v2272, %v2409
    %v2451 = vadd.f32 %v2273, %v2413
    %v2452 = vadd.f32 %v2274, %v2417
    %v2453 = vadd.f32 %v2277, %v2421
    %v2454 = vadd.f32 %v2278, %v2409
    %v2455 = vadd.f32 %v2279, %v2413
    %v2456 = vadd.f32 %v2280, %v2417
    %v2457 = vadd.f32 %v2283, %v2421
    %v2458 = vadd.f32 %v2284, %v2409
    %v2459 = vadd.f32 %v2285, %v2413
    %v2460 = vadd.f32 %v2286, %v2417
    %v2461 = vadd.f32 %v2289, %v2421
    %v2462 = vadd.f32 %v2290, %v2409
    %v2463 = vadd.f32 %v2291, %v2413
    %v2464 = vadd.f32 %v2292, %v2417
    %v2465 = vadd.f32 %v2295, %v2421
    %v2466 = vadd.f32 %v2296, %v2409
    %v2467 = vadd.f32 %v2297, %v2413
    %v2468 = vadd.f32 %v2298, %v2417
    %v2469 = vadd.f32 %v2301, %v2421
    %v2470 = vadd.f32 %v2302, %v2409
    %v2471 = vadd.f32 %v2303, %v2413
    %v2472 = vadd.f32 %v2304, %v2417
    %v2473 = vadd.f32 %v2307, %v2421
    %v2474 = vadd.f32 %v2308, %v2409
    %v2475 = vadd.f32 %v2309, %v2413
    %v2476 = vadd.f32 %v2310, %v2417
    %v2477 = vadd.f32 %v2313, %v2421
    %v2478 = vadd.f32 %v2314, %v2409
    %v2479 = vadd.f32 %v2315, %v2413
    %v2480 = vadd.f32 %v2316, %v2417
    %v2481 = vadd.f32 %v2319, %v2421
    %v2482 = vadd.f32 %v2320, %v2409
    %v2483 = vadd.f32 %v2321, %v2413
    %v2484 = vadd.f32 %v2322, %v2417
    %v2485 = vadd.f32 %v2325, %v2421
    %v2486 = vadd.f32 %v2326, %v2409
    %v2487 = vadd.f32 %v2327, %v2413
    %v2488 = vadd.f32 %v2328, %v2417
    %v2489 = vadd.f32 %v2331, %v2421
    %v2490 = vadd.f32 %v2332, %v2409
    %v2491 = vadd.f32 %v2333, %v2413
    %v2492 = vadd.f32 %v2334, %v2417
    %v2493 = vadd.f32 %v2337, %v2421
    %v2494 = vadd.f32 %v2338, %v2409
    %v2495 = vadd.f32 %v2339, %v2413
    %v2496 = vadd.f32 %v2340, %v2417
    %v2497 = vadd.f32 %v2343, %v2421
    %v2498 = vadd.f32 %v2344, %v2409
    %v2499 = vadd.f32 %v2345, %v2413
    %v2500 = vadd.f32 %v2346, %v2417
    %v2501 = vadd.f32 %v2349, %v2421
    %v2502 = vadd.f32 %v2350, %v2409
    %v2503 = vadd.f32 %v2351, %v2413
    %v2504 = vadd.f32 %v2352, %v2417
    %v2505 = vadd.f32 %v2355, %v2421
    %v2506 = vadd.f32 %v2356, %v2409
    %v2507 = vadd.f32 %v2357, %v2413
    %v2508 = vadd.f32 %v2358, %v2417
    %v2509 = vadd.f32 %v2361, %v2421
    %v2510 = vadd.f32 %v2362, %v2409
    %v2511 = vadd.f32 %v2363, %v2413
    %v2512 = vadd.f32 %v2364, %v2417
    %v2513 = vadd.f32 %v2367, %v2421
    %v2514 = vadd.f32 %v2368, %v2409
    %v2515 = vadd.f32 %v2369, %v2413
    %v2516 = vadd.f32 %v2370, %v2417
    %v2517 = vadd.f32 %v2373, %v2421
    %v2518 = vadd.f32 %v2374, %v2409
    %v2519 = vadd.f32 %v2375, %v2413
    %v2520 = vadd.f32 %v2376, %v2417
    %v2521 = vadd.f32 %v2379, %v2421
    %v2522 = vadd.f32 %v2380, %v2409
    %v2523 = vadd.f32 %v2381, %v2413
    %v2524 = vadd.f32 %v2382, %v2417
    %v2525 = vadd.f32 %v2385, %v2421
    %v2526 = vadd.f32 %v2386, %v2409
    %v2527 = vadd.f32 %v2387, %v2413
    %v2528 = vadd.f32 %v2388, %v2417
    %v2529 = vadd.f32 %v2391, %v2421
    %v2530 = vadd.f32 %v2392, %v2409
    %v2531 = vadd.f32 %v2393, %v2413
    %v2532 = vadd.f32 %v2394, %v2417
    %v2533 = vadd.f32 %v2397, %v2421
    %v2534 = vadd.f32 %v2398, %v2409
    %v2535 = vadd.f32 %v2399, %v2413
    %v2536 = vadd.f32 %v2400, %v2417
    %v2537 = vadd.f32 %v2403, %v2421
    %v2538 = vmax.f32 %v2426, 0.0
    %v2539 = vmax.f32 %v2427, 0.0
    %v2540 = vmax.f32 %v2428, 0.0
    %v2541 = vmax.f32 %v2429, 0.0
    %v2542 = vmax.f32 %v2430, 0.0
    %v2543 = vmax.f32 %v2431, 0.0
    %v2544 = vmax.f32 %v2432, 0.0
    %v2545 = vmax.f32 %v2433, 0.0
    %v2546 = vmax.f32 %v2434, 0.0
    %v2547 = vmax.f32 %v2435, 0.0
    %v2548 = vmax.f32 %v2436, 0.0
    %v2549 = vmax.f32 %v2437, 0.0
    %v2550 = vmax.f32 %v2438, 0.0
    %v2551 = vmax.f32 %v2439, 0.0
    %v2552 = vmax.f32 %v2440, 0.0
    %v2553 = vmax.f32 %v2441, 0.0
    %v2554 = vmax.f32 %v2442, 0.0
    %v2555 = vmax.f32 %v2443, 0.0
    %v2556 = vmax.f32 %v2444, 0.0
    %v2557 = vmax.f32 %v2445, 0.0
    %v2558 = vmax.f32 %v2446, 0.0
    %v2559 = vmax.f32 %v2447, 0.0
    %v2560 = vmax.f32 %v2448, 0.0
    %v2561 = vmax.f32 %v2449, 0.0
    %v2562 = vmax.f32 %v2450, 0.0
    %v2563 = vmax.f32 %v2451, 0.0
    %v2564 = vmax.f32 %v2452, 0.0
    %v2565 = vmax.f32 %v2453, 0.0
    %v2566 = vmax.f32 %v2454, 0.0
    %v2567 = vmax.f32 %v2455, 0.0
    %v2568 = vmax.f32 %v2456, 0.0
    %v2569 = vmax.f32 %v2457, 0.0
    %v2570 = vmax.f32 %v2458, 0.0
    %v2571 = vmax.f32 %v2459, 0.0
    %v2572 = vmax.f32 %v2460, 0.0
    %v2573 = vmax.f32 %v2461, 0.0
    %v2574 = vmax.f32 %v2462, 0.0
    %v2575 = vmax.f32 %v2463, 0.0
    %v2576 = vmax.f32 %v2464, 0.0
    %v2577 = vmax.f32 %v2465, 0.0
    %v2578 = vmax.f32 %v2466, 0.0
    %v2579 = vmax.f32 %v2467, 0.0
    %v2580 = vmax.f32 %v2468, 0.0
    %v2581 = vmax.f32 %v2469, 0.0
    %v2582 = vmax.f32 %v2470, 0.0
    %v2583 = vmax.f32 %v2471, 0.0
    %v2584 = vmax.f32 %v2472, 0.0
    %v2585 = vmax.f32 %v2473, 0.0
    %v2586 = vmax.f32 %v2474, 0.0
    %v2587 = vmax.f32 %v2475, 0.0
    %v2588 = vmax.f32 %v2476, 0.0
    %v2589 = vmax.f32 %v2477, 0.0
    %v2590 = vmax.f32 %v2478, 0.0
    %v2591 = vmax.f32 %v2479, 0.0
    %v2592 = vmax.f32 %v2480, 0.0
    %v2593 = vmax.f32 %v2481, 0.0
    %v2594 = vmax.f32 %v2482, 0.0
    %v2595 = vmax.f32 %v2483, 0.0
    %v2596 = vmax.f32 %v2484, 0.0
    %v2597 = vmax.f32 %v2485, 0.0
    %v2598 = vmax.f32 %v2486, 0.0
    %v2599 = vmax.f32 %v2487, 0.0
    %v2600 = vmax.f32 %v2488, 0.0
    %v2601 = vmax.f32 %v2489, 0.0
    %v2602 = vmax.f32 %v2490, 0.0
    %v2603 = vmax.f32 %v2491, 0.0
    %v2604 = vmax.f32 %v2492, 0.0
    %v2605 = vmax.f32 %v2493, 0.0
    %v2606 = vmax.f32 %v2494, 0.0
    %v2607 = vmax.f32 %v2495, 0.0
    %v2608 = vmax.f32 %v2496, 0.0
    %v2609 = vmax.f32 %v2497, 0.0
    %v2610 = vmax.f32 %v2498, 0.0
    %v2611 = vmax.f32 %v2499, 0.0
    %v2612 = vmax.f32 %v2500, 0.0
    %v2613 = vmax.f32 %v2501, 0.0
    %v2614 = vmax.f32 %v2502, 0.0
    %v2615 = vmax.f32 %v2503, 0.0
    %v2616 = vmax.f32 %v2504, 0.0
    %v2617 = vmax.f32 %v2505, 0.0
    %v2618 = vmax.f32 %v2506, 0.0
    %v2619 = vmax.f32 %v2507, 0.0
    %v2620 = vmax.f32 %v2508, 0.0
    %v2621 = vmax.f32 %v2509, 0.0
    %v2622 = vmax.f32 %v2510, 0.0
    %v2623 = vmax.f32 %v2511, 0.0
    %v2624 = vmax.f32 %v2512, 0.0
    %v2625 = vmax.f32 %v2513, 0.0
    %v2626 = vmax.f32 %v2514, 0.0
    %v2627 = vmax.f32 %v2515, 0.0
    %v2628 = vmax.f32 %v2516, 0.0
    %v2629 = vmax.f32 %v2517, 0.0
    %v2630 = vmax.f32 %v2518, 0.0
    %v2631 = vmax.f32 %v2519, 0.0
    %v2632 = vmax.f32 %v2520, 0.0
    %v2633 = vmax.f32 %v2521, 0.0
    %v2634 = vmax.f32 %v2522, 0.0
    %v2635 = vmax.f32 %v2523, 0.0
    %v2636 = vmax.f32 %v2524, 0.0
    %v2637 = vmax.f32 %v2525, 0.0
    %v2638 = vmax.f32 %v2526, 0.0
    %v2639 = vmax.f32 %v2527, 0.0
    %v2640 = vmax.f32 %v2528, 0.0
    %v2641 = vmax.f32 %v2529, 0.0
    %v2642 = vmax.f32 %v2530, 0.0
    %v2643 = vmax.f32 %v2531, 0.0
    %v2644 = vmax.f32 %v2532, 0.0
    %v2645 = vmax.f32 %v2533, 0.0
    %v2646 = vmax.f32 %v2534, 0.0
    %v2647 = vmax.f32 %v2535, 0.0
    %v2648 = vmax.f32 %v2536, 0.0
    %v2649 = vmax.f32 %v2537, 0.0
    %v2650 = vpack.c.bf16 %v2542, %v2538
    %v2651 = vpack.c.bf16 %v2543, %v2539
    %v2652 = vpack.c.bf16 %v2544, %v2540
    %v2653 = vpack.c.bf16 %v2545, %v2541
    %v2654 = vpack.c.bf16 %v2550, %v2546
    %v2655 = vpack.c.bf16 %v2551, %v2547
    %v2656 = vpack.c.bf16 %v2552, %v2548
    %v2657 = vpack.c.bf16 %v2553, %v2549
    %v2658 = vpack.c.bf16 %v2558, %v2554
    %v2659 = vpack.c.bf16 %v2559, %v2555
    %v2660 = vpack.c.bf16 %v2560, %v2556
    %v2661 = vpack.c.bf16 %v2561, %v2557
    %v2662 = vpack.c.bf16 %v2566, %v2562
    %v2663 = vpack.c.bf16 %v2567, %v2563
    %v2664 = vpack.c.bf16 %v2568, %v2564
    %v2665 = vpack.c.bf16 %v2569, %v2565
    %v2666 = vpack.c.bf16 %v2574, %v2570
    %v2667 = vpack.c.bf16 %v2575, %v2571
    %v2668 = vpack.c.bf16 %v2576, %v2572
    %v2669 = vpack.c.bf16 %v2577, %v2573
    %v2670 = vpack.c.bf16 %v2582, %v2578
    %v2671 = vpack.c.bf16 %v2583, %v2579
    %v2672 = vpack.c.bf16 %v2584, %v2580
    %v2673 = vpack.c.bf16 %v2585, %v2581
    %v2674 = vpack.c.bf16 %v2590, %v2586
    %v2675 = vpack.c.bf16 %v2591, %v2587
    %v2676 = vpack.c.bf16 %v2592, %v2588
    %v2677 = vpack.c.bf16 %v2593, %v2589
    %v2678 = vpack.c.bf16 %v2598, %v2594
    %v2679 = vpack.c.bf16 %v2599, %v2595
    %v2680 = vpack.c.bf16 %v2600, %v2596
    %v2681 = vpack.c.bf16 %v2601, %v2597
    %v2682 = vpack.c.bf16 %v2606, %v2602
    %v2683 = vpack.c.bf16 %v2607, %v2603
    %v2684 = vpack.c.bf16 %v2608, %v2604
    %v2685 = vpack.c.bf16 %v2609, %v2605
    %v2686 = vpack.c.bf16 %v2614, %v2610
    %v2687 = vpack.c.bf16 %v2615, %v2611
    %v2688 = vpack.c.bf16 %v2616, %v2612
    %v2689 = vpack.c.bf16 %v2617, %v2613
    %v2690 = vpack.c.bf16 %v2622, %v2618
    %v2691 = vpack.c.bf16 %v2623, %v2619
    %v2692 = vpack.c.bf16 %v2624, %v2620
    %v2693 = vpack.c.bf16 %v2625, %v2621
    %v2694 = vpack.c.bf16 %v2630, %v2626
    %v2695 = vpack.c.bf16 %v2631, %v2627
    %v2696 = vpack.c.bf16 %v2632, %v2628
    %v2697 = vpack.c.bf16 %v2633, %v2629
    %v2698 = vpack.c.bf16 %v2638, %v2634
    %v2699 = vpack.c.bf16 %v2639, %v2635
    %v2700 = vpack.c.bf16 %v2640, %v2636
    %v2701 = vpack.c.bf16 %v2641, %v2637
    %v2702 = vpack.c.bf16 %v2646, %v2642
    %v2703 = vpack.c.bf16 %v2647, %v2643
    %v2704 = vpack.c.bf16 %v2648, %v2644
    %v2705 = vpack.c.bf16 %v2649, %v2645
    %2762 = vrot.lane.b32.xlu0 %v2650, 64
    %v2763 = vpop.permute.xlu0 %2762
    %2764 = vrot.lane.b32.xlu0 %v2651, 64
    %v2765 = vpop.permute.xlu0 %2764
    %2766 = vrot.lane.b32.xlu0 %v2652, 64
    %v2767 = vpop.permute.xlu0 %2766
    %2768 = vrot.lane.b32.xlu0 %v2653, 64
    %v2769 = vpop.permute.xlu0 %2768
    %2770 = vrot.lane.b32.xlu0 %v2654, 64
    %v2771 = vpop.permute.xlu0 %2770
    %2772 = vrot.lane.b32.xlu0 %v2655, 64
    %v2773 = vpop.permute.xlu0 %2772
    %2774 = vrot.lane.b32.xlu0 %v2656, 64
    %v2775 = vpop.permute.xlu0 %2774
    %2776 = vrot.lane.b32.xlu0 %v2657, 64
    %v2777 = vpop.permute.xlu0 %2776
    %2778 = vrot.lane.b32.xlu0 %v2658, 64
    %v2779 = vpop.permute.xlu0 %2778
    %2780 = vrot.lane.b32.xlu0 %v2659, 64
    %v2781 = vpop.permute.xlu0 %2780
    %2782 = vrot.lane.b32.xlu0 %v2660, 64
    %v2783 = vpop.permute.xlu0 %2782
    %2784 = vrot.lane.b32.xlu0 %v2661, 64
    %v2785 = vpop.permute.xlu0 %2784
    %2786 = vrot.lane.b32.xlu0 %v2662, 64
    %v2787 = vpop.permute.xlu0 %2786
    %2788 = vrot.lane.b32.xlu0 %v2663, 64
    %v2789 = vpop.permute.xlu0 %2788
    %2790 = vrot.lane.b32.xlu0 %v2664, 64
    %v2791 = vpop.permute.xlu0 %2790
    %2792 = vrot.lane.b32.xlu0 %v2665, 64
    %v2793 = vpop.permute.xlu0 %2792
    %2794 = vrot.lane.b32.xlu0 %v2666, 64
    %v2795 = vpop.permute.xlu0 %2794
    %2796 = vrot.lane.b32.xlu0 %v2667, 64
    %v2797 = vpop.permute.xlu0 %2796
    %2798 = vrot.lane.b32.xlu0 %v2668, 64
    %v2799 = vpop.permute.xlu0 %2798
    %2800 = vrot.lane.b32.xlu0 %v2669, 64
    %v2801 = vpop.permute.xlu0 %2800
    %2802 = vrot.lane.b32.xlu0 %v2670, 64
    %v2803 = vpop.permute.xlu0 %2802
    %2804 = vrot.lane.b32.xlu0 %v2671, 64
    %v2805 = vpop.permute.xlu0 %2804
    %2806 = vrot.lane.b32.xlu0 %v2672, 64
    %v2807 = vpop.permute.xlu0 %2806
    %2808 = vrot.lane.b32.xlu0 %v2673, 64
    %v2809 = vpop.permute.xlu0 %2808
    %2810 = vrot.lane.b32.xlu0 %v2674, 64
    %v2811 = vpop.permute.xlu0 %2810
    %2812 = vrot.lane.b32.xlu0 %v2675, 64
    %v2813 = vpop.permute.xlu0 %2812
    %2814 = vrot.lane.b32.xlu0 %v2676, 64
    %v2815 = vpop.permute.xlu0 %2814
    %2816 = vrot.lane.b32.xlu0 %v2677, 64
    %v2817 = vpop.permute.xlu0 %2816
    %2818 = vrot.lane.b32.xlu0 %v2678, 64
    %v2819 = vpop.permute.xlu0 %2818
    %2820 = vrot.lane.b32.xlu0 %v2679, 64
    %v2821 = vpop.permute.xlu0 %2820
    %2822 = vrot.lane.b32.xlu0 %v2680, 64
    %v2823 = vpop.permute.xlu0 %2822
    %2824 = vrot.lane.b32.xlu0 %v2681, 64
    %v2825 = vpop.permute.xlu0 %2824
    %2826 = vrot.lane.b32.xlu0 %v2682, 64
    %v2827 = vpop.permute.xlu0 %2826
    %2828 = vrot.lane.b32.xlu0 %v2683, 64
    %v2829 = vpop.permute.xlu0 %2828
    %2830 = vrot.lane.b32.xlu0 %v2684, 64
    %v2831 = vpop.permute.xlu0 %2830
    %2832 = vrot.lane.b32.xlu0 %v2685, 64
    %v2833 = vpop.permute.xlu0 %2832
    %2834 = vrot.lane.b32.xlu0 %v2686, 64
    %v2835 = vpop.permute.xlu0 %2834
    %2836 = vrot.lane.b32.xlu0 %v2687, 64
    %v2837 = vpop.permute.xlu0 %2836
    %2838 = vrot.lane.b32.xlu0 %v2688, 64
    %v2839 = vpop.permute.xlu0 %2838
    %2840 = vrot.lane.b32.xlu0 %v2689, 64
    %v2841 = vpop.permute.xlu0 %2840
    %2842 = vrot.lane.b32.xlu0 %v2690, 64
    %v2843 = vpop.permute.xlu0 %2842
    %2844 = vrot.lane.b32.xlu0 %v2691, 64
    %v2845 = vpop.permute.xlu0 %2844
    %2846 = vrot.lane.b32.xlu0 %v2692, 64
    %v2847 = vpop.permute.xlu0 %2846
    %2848 = vrot.lane.b32.xlu0 %v2693, 64
    %v2849 = vpop.permute.xlu0 %2848
    %2850 = vrot.lane.b32.xlu0 %v2694, 64
    %v2851 = vpop.permute.xlu0 %2850
    %2852 = vrot.lane.b32.xlu0 %v2695, 64
    %v2853 = vpop.permute.xlu0 %2852
    %2854 = vrot.lane.b32.xlu0 %v2696, 64
    %v2855 = vpop.permute.xlu0 %2854
    %2856 = vrot.lane.b32.xlu0 %v2697, 64
    %v2857 = vpop.permute.xlu0 %2856
    %2858 = vrot.lane.b32.xlu0 %v2698, 64
    %v2859 = vpop.permute.xlu0 %2858
    %2860 = vrot.lane.b32.xlu0 %v2699, 64
    %v2861 = vpop.permute.xlu0 %2860
    %2862 = vrot.lane.b32.xlu0 %v2700, 64
    %v2863 = vpop.permute.xlu0 %2862
    %2864 = vrot.lane.b32.xlu0 %v2701, 64
    %v2865 = vpop.permute.xlu0 %2864
    %2866 = vrot.lane.b32.xlu0 %v2702, 64
    %v2867 = vpop.permute.xlu0 %2866
    %2868 = vrot.lane.b32.xlu0 %v2703, 64
    %v2869 = vpop.permute.xlu0 %2868
    %2870 = vrot.lane.b32.xlu0 %v2704, 64
    %v2871 = vpop.permute.xlu0 %2870
    %2872 = vrot.lane.b32.xlu0 %v2705, 64
    %v2873 = vpop.permute.xlu0 %2872
    %vm2874 = vcmask 523264
    %v2875 = vsel %vm2874, %v2763, %v2765
    %v2876 = vsel %vm2874, %v2765, %v2767
    %v2877 = vsel %vm2874, %v2767, %v2769
    %v2878 = vsel %vm2874, %v2771, %v2773
    %v2879 = vsel %vm2874, %v2773, %v2775
    %v2880 = vsel %vm2874, %v2775, %v2777
    %v2881 = vsel %vm2874, %v2779, %v2781
    %v2882 = vsel %vm2874, %v2781, %v2783
    %v2883 = vsel %vm2874, %v2783, %v2785
    %v2884 = vsel %vm2874, %v2787, %v2789
    %v2885 = vsel %vm2874, %v2789, %v2791
    %v2886 = vsel %vm2874, %v2791, %v2793
    %v2887 = vsel %vm2874, %v2795, %v2797
    %v2888 = vsel %vm2874, %v2797, %v2799
    %v2889 = vsel %vm2874, %v2799, %v2801
    %v2890 = vsel %vm2874, %v2803, %v2805
    %v2891 = vsel %vm2874, %v2805, %v2807
    %v2892 = vsel %vm2874, %v2807, %v2809
    %v2893 = vsel %vm2874, %v2811, %v2813
    %v2894 = vsel %vm2874, %v2813, %v2815
    %v2895 = vsel %vm2874, %v2815, %v2817
    %v2896 = vsel %vm2874, %v2819, %v2821
    %v2897 = vsel %vm2874, %v2821, %v2823
    %v2898 = vsel %vm2874, %v2823, %v2825
    %v2899 = vsel %vm2874, %v2827, %v2829
    %v2900 = vsel %vm2874, %v2829, %v2831
    %v2901 = vsel %vm2874, %v2831, %v2833
    %v2902 = vsel %vm2874, %v2835, %v2837
    %v2903 = vsel %vm2874, %v2837, %v2839
    %v2904 = vsel %vm2874, %v2839, %v2841
    %v2905 = vsel %vm2874, %v2843, %v2845
    %v2906 = vsel %vm2874, %v2845, %v2847
    %v2907 = vsel %vm2874, %v2847, %v2849
    %v2908 = vsel %vm2874, %v2851, %v2853
    %v2909 = vsel %vm2874, %v2853, %v2855
    %v2910 = vsel %vm2874, %v2855, %v2857
    %v2911 = vsel %vm2874, %v2859, %v2861
    %v2912 = vsel %vm2874, %v2861, %v2863
    %v2913 = vsel %vm2874, %v2863, %v2865
    %v2914 = vsel %vm2874, %v2867, %v2869
    %v2915 = vsel %vm2874, %v2869, %v2871
    %v2916 = vsel %vm2874, %v2871, %v2873
    %v2961 = vsel %vm2238, 0, %v2763
    %v2965 = vsel %vm2238, %v2653, %v2771
    %v2969 = vsel %vm2238, %v2657, %v2779
    %v2973 = vsel %vm2238, %v2661, %v2787
    %v2977 = vsel %vm2238, %v2665, %v2795
    %v2981 = vsel %vm2238, %v2669, %v2803
    %v2985 = vsel %vm2238, %v2673, %v2811
    %v2989 = vsel %vm2238, %v2677, %v2819
    %v2993 = vsel %vm2238, %v2681, %v2827
    %v2997 = vsel %vm2238, %v2685, %v2835
    %v3001 = vsel %vm2238, %v2689, %v2843
    %v3005 = vsel %vm2238, %v2693, %v2851
    %v3009 = vsel %vm2238, %v2697, %v2859
    %v3013 = vsel %vm2238, %v2701, %v2867
    %v3015 = vld [vmem:[%s4] sm:$0xff]
    %v3016 = vld [vmem:[%s4 + $0x8] sm:$0xff]
    %v3017 = vld [vmem:[%s4 + $0x10] sm:$0xff]
    %v3018 = vld [vmem:[%s4 + $0x18] sm:$0xff]
    %v3019 = vld [vmem:[%s4 + $0x20] sm:$0xff]
    %v3020 = vld [vmem:[%s4 + $0x28] sm:$0xff]
    %v3021 = vld [vmem:[%s4 + $0x30] sm:$0xff]
    %v3022 = vld [vmem:[%s4 + $0x38] sm:$0xff]
    %v3023 = vld [vmem:[%s4 + $0x40] sm:$0xff]
    %v3024 = vld [vmem:[%s4 + $0x48] sm:$0xff]
    %v3025 = vld [vmem:[%s4 + $0x50] sm:$0xff]
    %v3026 = vld [vmem:[%s4 + $0x58] sm:$0xff]
    %v3027 = vld [vmem:[%s4 + $0x60] sm:$0xff]
    %v3028 = vld [vmem:[%s4 + $0x68] sm:$0xff]
    %v3029 = vld [vmem:[%s4 + $0x70] sm:$0xff]
    %v3030 = vld [vmem:[%s4 + $0x78] sm:$0xff]
    %v3031 = vld [vmem:[%s4 + $0x80] sm:$0xff]
    %v3032 = vld [vmem:[%s4 + $0x88] sm:$0xff]
    %v3033 = vld [vmem:[%s4 + $0x90] sm:$0xff]
    %v3034 = vld [vmem:[%s4 + $0x98] sm:$0xff]
    %v3035 = vld [vmem:[%s4 + $0xa0] sm:$0xff]
    %v3036 = vld [vmem:[%s4 + $0xa8] sm:$0xff]
    %v3037 = vld [vmem:[%s4 + $0xb0] sm:$0xff]
    %v3038 = vld [vmem:[%s4 + $0xb8] sm:$0xff]
    %v3039 = vld [vmem:[%s4 + $0xc0] sm:$0xff]
    %v3040 = vld [vmem:[%s4 + $0xc8] sm:$0xff]
    %v3041 = vld [vmem:[%s4 + $0xd0] sm:$0xff]
    %v3042 = vld [vmem:[%s4 + $0xd8] sm:$0xff]
    %v3043 = vld [vmem:[%s4 + $0xe0] sm:$0xff]
    %v3044 = vld [vmem:[%s4 + $0xe8] sm:$0xff]
    %v3045 = vld [vmem:[%s4 + $0xf0] sm:$0xff]
    %v3046 = vld [vmem:[%s4 + $0xf8] sm:$0xff]
    %v3047 = vld [vmem:[%s4 + $0x100] sm:$0xff]
    %v3048 = vld [vmem:[%s4 + $0x108] sm:$0xff]
    %v3049 = vld [vmem:[%s4 + $0x110] sm:$0xff]
    %v3050 = vld [vmem:[%s4 + $0x118] sm:$0xff]
    %v3051 = vld [vmem:[%s4 + $0x120] sm:$0xff]
    %v3052 = vld [vmem:[%s4 + $0x128] sm:$0xff]
    %v3053 = vld [vmem:[%s4 + $0x130] sm:$0xff]
    %v3054 = vld [vmem:[%s4 + $0x138] sm:$0xff]
    %v3055 = vld [vmem:[%s4 + $0x140] sm:$0xff]
    %v3056 = vld [vmem:[%s4 + $0x148] sm:$0xff]
    %v3057 = vld [vmem:[%s4 + $0x150] sm:$0xff]
    %v3058 = vld [vmem:[%s4 + $0x158] sm:$0xff]
    %v3059 = vld [vmem:[%s4 + $0x160] sm:$0xff]
    %v3060 = vld [vmem:[%s4 + $0x168] sm:$0xff]
    %v3061 = vld [vmem:[%s4 + $0x170] sm:$0xff]
    %v3062 = vld [vmem:[%s4 + $0x178] sm:$0xff]
    %v3063 = vld [vmem:[%s4 + $0x180] sm:$0xff]
    %v3064 = vld [vmem:[%s4 + $0x188] sm:$0xff]
    %v3065 = vld [vmem:[%s4 + $0x190] sm:$0xff]
    %v3066 = vld [vmem:[%s4 + $0x198] sm:$0xff]
    %v3067 = vld [vmem:[%s4 + $0x1a0] sm:$0xff]
    %v3068 = vld [vmem:[%s4 + $0x1a8] sm:$0xff]
    %v3069 = vld [vmem:[%s4 + $0x1b0] sm:$0xff]
    %v3070 = vld [vmem:[%s4 + $0x1b8] sm:$0xff]
    %v3071 = vld [vmem:[%s4 + $0x1c0] sm:$0xff]
    %v3072 = vld [vmem:[%s4 + $0x1c8] sm:$0xff]
    %v3073 = vld [vmem:[%s4 + $0x1d0] sm:$0xff]
    %v3074 = vld [vmem:[%s4 + $0x1d8] sm:$0xff]
    %v3075 = vld [vmem:[%s4 + $0x1e0] sm:$0xff]
    %v3076 = vld [vmem:[%s4 + $0x1e8] sm:$0xff]
    %v3077 = vld [vmem:[%s4 + $0x1f0] sm:$0xff]
    %v3078 = vld [vmem:[%s4 + $0x1f8] sm:$0xff]
    %v3079 = vld [vmem:[%s4 + $0x200] sm:$0xff]
    %v3080 = vld [vmem:[%s4 + $0x208] sm:$0xff]
    %v3081 = vld [vmem:[%s4 + $0x210] sm:$0xff]
    %v3082 = vld [vmem:[%s4 + $0x218] sm:$0xff]
    %v3083 = vld [vmem:[%s4 + $0x220] sm:$0xff]
    %v3084 = vld [vmem:[%s4 + $0x228] sm:$0xff]
    %v3085 = vld [vmem:[%s4 + $0x230] sm:$0xff]
    %v3086 = vld [vmem:[%s4 + $0x238] sm:$0xff]
    %v3087 = vld [vmem:[%s4 + $0x240] sm:$0xff]
    %v3088 = vld [vmem:[%s4 + $0x248] sm:$0xff]
    %v3089 = vld [vmem:[%s4 + $0x250] sm:$0xff]
    %v3090 = vld [vmem:[%s4 + $0x258] sm:$0xff]
    %v3091 = vld [vmem:[%s4 + $0x260] sm:$0xff]
    %v3092 = vld [vmem:[%s4 + $0x268] sm:$0xff]
    %v3093 = vld [vmem:[%s4 + $0x270] sm:$0xff]
    %v3094 = vld [vmem:[%s4 + $0x278] sm:$0xff]
    %v3095 = vld [vmem:[%s4 + $0x280] sm:$0xff]
    %v3096 = vld [vmem:[%s4 + $0x288] sm:$0xff]
    %v3097 = vld [vmem:[%s4 + $0x290] sm:$0xff]
    %v3098 = vld [vmem:[%s4 + $0x298] sm:$0xff]
    %v3099 = vld [vmem:[%s4 + $0x2a0] sm:$0xff]
    %v3100 = vld [vmem:[%s4 + $0x2a8] sm:$0xff]
    %v3101 = vld [vmem:[%s4 + $0x2b0] sm:$0xff]
    %v3102 = vld [vmem:[%s4 + $0x2b8] sm:$0xff]
    %v3103 = vld [vmem:[%s4 + $0x2c0] sm:$0xff]
    %v3104 = vld [vmem:[%s4 + $0x2c8] sm:$0xff]
    %v3105 = vld [vmem:[%s4 + $0x2d0] sm:$0xff]
    %v3106 = vld [vmem:[%s4 + $0x2d8] sm:$0xff]
    %v3107 = vld [vmem:[%s4 + $0x2e0] sm:$0xff]
    %v3108 = vld [vmem:[%s4 + $0x2e8] sm:$0xff]
    %v3109 = vld [vmem:[%s4 + $0x2f0] sm:$0xff]
    %v3110 = vld [vmem:[%s4 + $0x2f8] sm:$0xff]
    %v3111 = vld [vmem:[%s4 + $0x300] sm:$0xff]
    %v3112 = vld [vmem:[%s4 + $0x308] sm:$0xff]
    %v3113 = vld [vmem:[%s4 + $0x310] sm:$0xff]
    %v3114 = vld [vmem:[%s4 + $0x318] sm:$0xff]
    %v3115 = vld [vmem:[%s4 + $0x320] sm:$0xff]
    %v3116 = vld [vmem:[%s4 + $0x328] sm:$0xff]
    %v3117 = vld [vmem:[%s4 + $0x330] sm:$0xff]
    %v3118 = vld [vmem:[%s4 + $0x338] sm:$0xff]
    %v3119 = vld [vmem:[%s4 + $0x340] sm:$0xff]
    %v3120 = vld [vmem:[%s4 + $0x348] sm:$0xff]
    %v3121 = vld [vmem:[%s4 + $0x350] sm:$0xff]
    %v3122 = vld [vmem:[%s4 + $0x358] sm:$0xff]
    %v3123 = vld [vmem:[%s4 + $0x360] sm:$0xff]
    %v3124 = vld [vmem:[%s4 + $0x368] sm:$0xff]
    %v3125 = vld [vmem:[%s4 + $0x370] sm:$0xff]
    %v3126 = vld [vmem:[%s4 + $0x378] sm:$0xff]
    %v3127 = vld [vmem:[%s4 + $0x380] sm:$0xff]
    %v3128 = vld [vmem:[%s4 + $0x388] sm:$0xff]
    %v3129 = vld [vmem:[%s4 + $0x390] sm:$0xff]
    %v3130 = vld [vmem:[%s4 + $0x398] sm:$0xff]
    %v3131 = vld [vmem:[%s4 + $0x3a0] sm:$0xff]
    %v3132 = vld [vmem:[%s4 + $0x3a8] sm:$0xff]
    %v3133 = vld [vmem:[%s4 + $0x3b0] sm:$0xff]
    %v3134 = vld [vmem:[%s4 + $0x3b8] sm:$0xff]
    %v3135 = vld [vmem:[%s4 + $0x3c0] sm:$0xff]
    %v3136 = vld [vmem:[%s4 + $0x3c8] sm:$0xff]
    %v3137 = vld [vmem:[%s4 + $0x3d0] sm:$0xff]
    %v3138 = vld [vmem:[%s4 + $0x3d8] sm:$0xff]
    %v3139 = vld [vmem:[%s4 + $0x3e0] sm:$0xff]
    %v3140 = vld [vmem:[%s4 + $0x3e8] sm:$0xff]
    %v3141 = vld [vmem:[%s4 + $0x3f0] sm:$0xff]
    %v3142 = vld [vmem:[%s4 + $0x3f8] sm:$0xff]
    %v3143 = vld [vmem:[%s4 + $0x400] sm:$0xff]
    %v3144 = vld [vmem:[%s4 + $0x408] sm:$0xff]
    %v3145 = vld [vmem:[%s4 + $0x410] sm:$0xff]
    %v3146 = vld [vmem:[%s4 + $0x418] sm:$0xff]
    %v3147 = vld [vmem:[%s4 + $0x420] sm:$0xff]
    %v3148 = vld [vmem:[%s4 + $0x428] sm:$0xff]
    %v3149 = vld [vmem:[%s4 + $0x430] sm:$0xff]
    %v3150 = vld [vmem:[%s4 + $0x438] sm:$0xff]
    %v3151 = vld [vmem:[%s4 + $0x440] sm:$0xff]
    %v3152 = vld [vmem:[%s4 + $0x448] sm:$0xff]
    %v3153 = vld [vmem:[%s4 + $0x450] sm:$0xff]
    %v3154 = vld [vmem:[%s4 + $0x458] sm:$0xff]
    %v3155 = vld [vmem:[%s4 + $0x460] sm:$0xff]
    %v3156 = vld [vmem:[%s4 + $0x468] sm:$0xff]
    %v3157 = vld [vmem:[%s4 + $0x470] sm:$0xff]
    %v3158 = vld [vmem:[%s4 + $0x478] sm:$0xff]
    %v3159 = vld [vmem:[%s4 + $0x480] sm:$0xff]
    %v3160 = vld [vmem:[%s4 + $0x488] sm:$0xff]
    %v3161 = vld [vmem:[%s4 + $0x490] sm:$0xff]
    %v3162 = vld [vmem:[%s4 + $0x498] sm:$0xff]
    %v3163 = vld [vmem:[%s4 + $0x4a0] sm:$0xff]
    %v3164 = vld [vmem:[%s4 + $0x4a8] sm:$0xff]
    %v3165 = vld [vmem:[%s4 + $0x4b0] sm:$0xff]
    %v3166 = vld [vmem:[%s4 + $0x4b8] sm:$0xff]
    %v3167 = vld [vmem:[%s4 + $0x4c0] sm:$0xff]
    %v3168 = vld [vmem:[%s4 + $0x4c8] sm:$0xff]
    %v3169 = vld [vmem:[%s4 + $0x4d0] sm:$0xff]
    %v3170 = vld [vmem:[%s4 + $0x4d8] sm:$0xff]
    %v3171 = vld [vmem:[%s4 + $0x4e0] sm:$0xff]
    %v3172 = vld [vmem:[%s4 + $0x4e8] sm:$0xff]
    %v3173 = vld [vmem:[%s4 + $0x4f0] sm:$0xff]
    %v3174 = vld [vmem:[%s4 + $0x4f8] sm:$0xff]
    %v3175 = vld [vmem:[%s4 + $0x500] sm:$0xff]
    %v3176 = vld [vmem:[%s4 + $0x508] sm:$0xff]
    %v3177 = vld [vmem:[%s4 + $0x510] sm:$0xff]
    %v3178 = vld [vmem:[%s4 + $0x518] sm:$0xff]
    %v3179 = vld [vmem:[%s4 + $0x520] sm:$0xff]
    %v3180 = vld [vmem:[%s4 + $0x528] sm:$0xff]
    %v3181 = vld [vmem:[%s4 + $0x530] sm:$0xff]
    %v3182 = vld [vmem:[%s4 + $0x538] sm:$0xff]
    %v3183 = vld [vmem:[%s4 + $0x540] sm:$0xff]
    %v3184 = vld [vmem:[%s4 + $0x548] sm:$0xff]
    %v3185 = vld [vmem:[%s4 + $0x550] sm:$0xff]
    %v3186 = vld [vmem:[%s4 + $0x558] sm:$0xff]
    %v3187 = vld [vmem:[%s4 + $0x560] sm:$0xff]
    %v3188 = vld [vmem:[%s4 + $0x568] sm:$0xff]
    %v3189 = vld [vmem:[%s4 + $0x570] sm:$0xff]
    %v3190 = vld [vmem:[%s4 + $0x578] sm:$0xff]
    %v3191 = vld [vmem:[%s4 + $0x580] sm:$0xff]
    %v3192 = vld [vmem:[%s4 + $0x588] sm:$0xff]
    %v3193 = vld [vmem:[%s4 + $0x590] sm:$0xff]
    %v3194 = vld [vmem:[%s4 + $0x598] sm:$0xff]
    %v3195 = vld [vmem:[%s4 + $0x5a0] sm:$0xff]
    %v3196 = vld [vmem:[%s4 + $0x5a8] sm:$0xff]
    %v3197 = vld [vmem:[%s4 + $0x5b0] sm:$0xff]
    %v3198 = vld [vmem:[%s4 + $0x5b8] sm:$0xff]
    %v3199 = vld [vmem:[%s4 + $0x5c0] sm:$0xff]
    %v3200 = vld [vmem:[%s4 + $0x5c8] sm:$0xff]
    %v3201 = vld [vmem:[%s4 + $0x5d0] sm:$0xff]
    %v3202 = vld [vmem:[%s4 + $0x5d8] sm:$0xff]
    %v3203 = vld [vmem:[%s4 + $0x5e0] sm:$0xff]
    %v3204 = vld [vmem:[%s4 + $0x5e8] sm:$0xff]
    %v3205 = vld [vmem:[%s4 + $0x5f0] sm:$0xff]
    %v3206 = vld [vmem:[%s4 + $0x5f8] sm:$0xff]
    %v3207 = vld [vmem:[%s4 + $0x600] sm:$0xff]
    %v3208 = vld [vmem:[%s4 + $0x608] sm:$0xff]
    %v3209 = vld [vmem:[%s4 + $0x610] sm:$0xff]
    %v3210 = vld [vmem:[%s4 + $0x618] sm:$0xff]
    %v3211 = vld [vmem:[%s4 + $0x620] sm:$0xff]
    %v3212 = vld [vmem:[%s4 + $0x628] sm:$0xff]
    %v3213 = vld [vmem:[%s4 + $0x630] sm:$0xff]
    %v3214 = vld [vmem:[%s4 + $0x638] sm:$0xff]
    %v3215 = vld [vmem:[%s4 + $0x640] sm:$0xff]
    %v3216 = vld [vmem:[%s4 + $0x648] sm:$0xff]
    %v3217 = vld [vmem:[%s4 + $0x650] sm:$0xff]
    %v3218 = vld [vmem:[%s4 + $0x658] sm:$0xff]
    %v3219 = vld [vmem:[%s4 + $0x660] sm:$0xff]
    %v3220 = vld [vmem:[%s4 + $0x668] sm:$0xff]
    %v3221 = vld [vmem:[%s4 + $0x670] sm:$0xff]
    %v3222 = vld [vmem:[%s4 + $0x678] sm:$0xff]
    %v3223 = vld [vmem:[%s4 + $0x680] sm:$0xff]
    %v3224 = vld [vmem:[%s4 + $0x688] sm:$0xff]
    %v3225 = vld [vmem:[%s4 + $0x690] sm:$0xff]
    %v3226 = vld [vmem:[%s4 + $0x698] sm:$0xff]
    %v3227 = vld [vmem:[%s4 + $0x6a0] sm:$0xff]
    %v3228 = vld [vmem:[%s4 + $0x6a8] sm:$0xff]
    %v3229 = vld [vmem:[%s4 + $0x6b0] sm:$0xff]
    %v3230 = vld [vmem:[%s4 + $0x6b8] sm:$0xff]
    %v3231 = vld [vmem:[%s4 + $0x6c0] sm:$0xff]
    %v3232 = vld [vmem:[%s4 + $0x6c8] sm:$0xff]
    %v3233 = vld [vmem:[%s4 + $0x6d0] sm:$0xff]
    %v3234 = vld [vmem:[%s4 + $0x6d8] sm:$0xff]
    %v3235 = vld [vmem:[%s4 + $0x6e0] sm:$0xff]
    %v3236 = vld [vmem:[%s4 + $0x6e8] sm:$0xff]
    %v3237 = vld [vmem:[%s4 + $0x6f0] sm:$0xff]
    %v3238 = vld [vmem:[%s4 + $0x6f8] sm:$0xff]
    %v3239 = vld [vmem:[%s4 + $0x700] sm:$0xff]
    %v3240 = vld [vmem:[%s4 + $0x708] sm:$0xff]
    %v3241 = vld [vmem:[%s4 + $0x710] sm:$0xff]
    %v3242 = vld [vmem:[%s4 + $0x718] sm:$0xff]
    %v3243 = vld [vmem:[%s4 + $0x720] sm:$0xff]
    %v3244 = vld [vmem:[%s4 + $0x728] sm:$0xff]
    %v3245 = vld [vmem:[%s4 + $0x730] sm:$0xff]
    %v3246 = vld [vmem:[%s4 + $0x738] sm:$0xff]
    %v3247 = vld [vmem:[%s4 + $0x740] sm:$0xff]
    %v3248 = vld [vmem:[%s4 + $0x748] sm:$0xff]
    %v3249 = vld [vmem:[%s4 + $0x750] sm:$0xff]
    %v3250 = vld [vmem:[%s4 + $0x758] sm:$0xff]
    %v3251 = vld [vmem:[%s4 + $0x760] sm:$0xff]
    %v3252 = vld [vmem:[%s4 + $0x768] sm:$0xff]
    %v3253 = vld [vmem:[%s4 + $0x770] sm:$0xff]
    %v3254 = vld [vmem:[%s4 + $0x778] sm:$0xff]
    %v3255 = vld [vmem:[%s4 + $0x780] sm:$0xff]
    %v3256 = vld [vmem:[%s4 + $0x788] sm:$0xff]
    %v3257 = vld [vmem:[%s4 + $0x790] sm:$0xff]
    %v3258 = vld [vmem:[%s4 + $0x798] sm:$0xff]
    %v3259 = vld [vmem:[%s4 + $0x7a0] sm:$0xff]
    %v3260 = vld [vmem:[%s4 + $0x7a8] sm:$0xff]
    %v3261 = vld [vmem:[%s4 + $0x7b0] sm:$0xff]
    %v3262 = vld [vmem:[%s4 + $0x7b8] sm:$0xff]
    %v3263 = vld [vmem:[%s4 + $0x7c0] sm:$0xff]
    %v3264 = vld [vmem:[%s4 + $0x7c8] sm:$0xff]
    %v3265 = vld [vmem:[%s4 + $0x7d0] sm:$0xff]
    %v3266 = vld [vmem:[%s4 + $0x7d8] sm:$0xff]
    %v3267 = vld [vmem:[%s4 + $0x7e0] sm:$0xff]
    %v3268 = vld [vmem:[%s4 + $0x7e8] sm:$0xff]
    %v3269 = vld [vmem:[%s4 + $0x7f0] sm:$0xff]
    %v3270 = vld [vmem:[%s4 + $0x7f8] sm:$0xff]
    %v3271 = vld [vmem:[%s4 + $0x800] sm:$0xff]
    %v3272 = vld [vmem:[%s4 + $0x808] sm:$0xff]
    %v3273 = vld [vmem:[%s4 + $0x810] sm:$0xff]
    %v3274 = vld [vmem:[%s4 + $0x818] sm:$0xff]
    %v3275 = vld [vmem:[%s4 + $0x820] sm:$0xff]
    %v3276 = vld [vmem:[%s4 + $0x828] sm:$0xff]
    %v3277 = vld [vmem:[%s4 + $0x830] sm:$0xff]
    %v3278 = vld [vmem:[%s4 + $0x838] sm:$0xff]
    %v3279 = vld [vmem:[%s4 + $0x840] sm:$0xff]
    %v3280 = vld [vmem:[%s4 + $0x848] sm:$0xff]
    %v3281 = vld [vmem:[%s4 + $0x850] sm:$0xff]
    %v3282 = vld [vmem:[%s4 + $0x858] sm:$0xff]
    %v3283 = vld [vmem:[%s4 + $0x860] sm:$0xff]
    %v3284 = vld [vmem:[%s4 + $0x868] sm:$0xff]
    %v3285 = vld [vmem:[%s4 + $0x870] sm:$0xff]
    %v3286 = vld [vmem:[%s4 + $0x878] sm:$0xff]
    %v3287 = vld [vmem:[%s4 + $0x880] sm:$0xff]
    %v3288 = vld [vmem:[%s4 + $0x888] sm:$0xff]
    %v3289 = vld [vmem:[%s4 + $0x890] sm:$0xff]
    %v3290 = vld [vmem:[%s4 + $0x898] sm:$0xff]
    %v3291 = vld [vmem:[%s4 + $0x8a0] sm:$0xff]
    %v3292 = vld [vmem:[%s4 + $0x8a8] sm:$0xff]
    %v3293 = vld [vmem:[%s4 + $0x8b0] sm:$0xff]
    %v3294 = vld [vmem:[%s4 + $0x8b8] sm:$0xff]
    %v3295 = vld [vmem:[%s4 + $0x8c0] sm:$0xff]
    %v3296 = vld [vmem:[%s4 + $0x8c8] sm:$0xff]
    %v3297 = vld [vmem:[%s4 + $0x8d0] sm:$0xff]
    %v3298 = vld [vmem:[%s4 + $0x8d8] sm:$0xff]
    %v3299 = vld [vmem:[%s4 + $0x8e0] sm:$0xff]
    %v3300 = vld [vmem:[%s4 + $0x8e8] sm:$0xff]
    %v3301 = vld [vmem:[%s4 + $0x8f0] sm:$0xff]
    %v3302 = vld [vmem:[%s4 + $0x8f8] sm:$0xff]
    %v3303 = vld [vmem:[%s4 + $0x900] sm:$0xff]
    %v3304 = vld [vmem:[%s4 + $0x908] sm:$0xff]
    %v3305 = vld [vmem:[%s4 + $0x910] sm:$0xff]
    %v3306 = vld [vmem:[%s4 + $0x918] sm:$0xff]
    %v3307 = vld [vmem:[%s4 + $0x920] sm:$0xff]
    %v3308 = vld [vmem:[%s4 + $0x928] sm:$0xff]
    %v3309 = vld [vmem:[%s4 + $0x930] sm:$0xff]
    %v3310 = vld [vmem:[%s4 + $0x938] sm:$0xff]
    %v3311 = vld [vmem:[%s4 + $0x940] sm:$0xff]
    %v3312 = vld [vmem:[%s4 + $0x948] sm:$0xff]
    %v3313 = vld [vmem:[%s4 + $0x950] sm:$0xff]
    %v3314 = vld [vmem:[%s4 + $0x958] sm:$0xff]
    %v3315 = vld [vmem:[%s4 + $0x960] sm:$0xff]
    %v3316 = vld [vmem:[%s4 + $0x968] sm:$0xff]
    %v3317 = vld [vmem:[%s4 + $0x970] sm:$0xff]
    %v3318 = vld [vmem:[%s4 + $0x978] sm:$0xff]
    %v3319 = vld [vmem:[%s4 + $0x980] sm:$0xff]
    %v3320 = vld [vmem:[%s4 + $0x988] sm:$0xff]
    %v3321 = vld [vmem:[%s4 + $0x990] sm:$0xff]
    %v3322 = vld [vmem:[%s4 + $0x998] sm:$0xff]
    %v3323 = vld [vmem:[%s4 + $0x9a0] sm:$0xff]
    %v3324 = vld [vmem:[%s4 + $0x9a8] sm:$0xff]
    %v3325 = vld [vmem:[%s4 + $0x9b0] sm:$0xff]
    %v3326 = vld [vmem:[%s4 + $0x9b8] sm:$0xff]
    %v3327 = vld [vmem:[%s4 + $0x9c0] sm:$0xff]
    %v3328 = vld [vmem:[%s4 + $0x9c8] sm:$0xff]
    %v3329 = vld [vmem:[%s4 + $0x9d0] sm:$0xff]
    %v3330 = vld [vmem:[%s4 + $0x9d8] sm:$0xff]
    %v3331 = vld [vmem:[%s4 + $0x9e0] sm:$0xff]
    %v3332 = vld [vmem:[%s4 + $0x9e8] sm:$0xff]
    %v3333 = vld [vmem:[%s4 + $0x9f0] sm:$0xff]
    %v3334 = vld [vmem:[%s4 + $0x9f8] sm:$0xff]
    %v3335 = vld [vmem:[%s4 + $0xa00] sm:$0xff]
    %v3336 = vld [vmem:[%s4 + $0xa08] sm:$0xff]
    %v3337 = vld [vmem:[%s4 + $0xa10] sm:$0xff]
    %v3338 = vld [vmem:[%s4 + $0xa18] sm:$0xff]
    %v3339 = vld [vmem:[%s4 + $0xa20] sm:$0xff]
    %v3340 = vld [vmem:[%s4 + $0xa28] sm:$0xff]
    %v3341 = vld [vmem:[%s4 + $0xa30] sm:$0xff]
    %v3342 = vld [vmem:[%s4 + $0xa38] sm:$0xff]
    %v3343 = vld [vmem:[%s4 + $0xa40] sm:$0xff]
    %v3344 = vld [vmem:[%s4 + $0xa48] sm:$0xff]
    %v3345 = vld [vmem:[%s4 + $0xa50] sm:$0xff]
    %v3346 = vld [vmem:[%s4 + $0xa58] sm:$0xff]
    %v3347 = vld [vmem:[%s4 + $0xa60] sm:$0xff]
    %v3348 = vld [vmem:[%s4 + $0xa68] sm:$0xff]
    %v3349 = vld [vmem:[%s4 + $0xa70] sm:$0xff]
    %v3350 = vld [vmem:[%s4 + $0xa78] sm:$0xff]
    %v3687 = vunpack.c.l.b16 %v3015
    %v3688 = vunpack.c.h.b16 %v3015
    %v3689 = vunpack.c.l.b16 %v3016
    %v3690 = vunpack.c.h.b16 %v3016
    %v3691 = vunpack.c.l.b16 %v3017
    %v3692 = vunpack.c.h.b16 %v3017
    %v3693 = vunpack.c.l.b16 %v3018
    %v3694 = vunpack.c.h.b16 %v3018
    %v3695 = vunpack.c.l.b16 %v3019
    %v3696 = vunpack.c.h.b16 %v3019
    %v3697 = vunpack.c.l.b16 %v3020
    %v3698 = vunpack.c.h.b16 %v3020
    %v3699 = vunpack.c.l.b16 %v3021
    %v3700 = vunpack.c.h.b16 %v3021
    %v3701 = vunpack.c.l.b16 %v3022
    %v3702 = vunpack.c.h.b16 %v3022
    %v3703 = vunpack.c.l.b16 %v3023
    %v3704 = vunpack.c.h.b16 %v3023
    %v3705 = vunpack.c.l.b16 %v3024
    %v3706 = vunpack.c.h.b16 %v3024
    %v3707 = vunpack.c.l.b16 %v3025
    %v3708 = vunpack.c.h.b16 %v3025
    %v3709 = vunpack.c.l.b16 %v3026
    %v3710 = vunpack.c.h.b16 %v3026
    %v3711 = vunpack.c.l.b16 %v3027
    %v3712 = vunpack.c.h.b16 %v3027
    %v3713 = vunpack.c.l.b16 %v3028
    %v3714 = vunpack.c.h.b16 %v3028
    %v3715 = vunpack.c.l.b16 %v3029
    %v3716 = vunpack.c.h.b16 %v3029
    %v3717 = vunpack.c.l.b16 %v3030
    %v3718 = vunpack.c.h.b16 %v3030
    %v3719 = vunpack.c.l.b16 %v3031
    %v3720 = vunpack.c.h.b16 %v3031
    %v3721 = vunpack.c.l.b16 %v3032
    %v3722 = vunpack.c.h.b16 %v3032
    %v3723 = vunpack.c.l.b16 %v3033
    %v3724 = vunpack.c.h.b16 %v3033
    %v3725 = vunpack.c.l.b16 %v3034
    %v3726 = vunpack.c.h.b16 %v3034
    %v3727 = vunpack.c.l.b16 %v3035
    %v3728 = vunpack.c.h.b16 %v3035
    %v3729 = vunpack.c.l.b16 %v3036
    %v3730 = vunpack.c.h.b16 %v3036
    %v3731 = vunpack.c.l.b16 %v3037
    %v3732 = vunpack.c.h.b16 %v3037
    %v3733 = vunpack.c.l.b16 %v3038
    %v3734 = vunpack.c.h.b16 %v3038
    %v3735 = vunpack.c.l.b16 %v3039
    %v3736 = vunpack.c.h.b16 %v3039
    %v3737 = vunpack.c.l.b16 %v3040
    %v3738 = vunpack.c.h.b16 %v3040
    %v3739 = vunpack.c.l.b16 %v3041
    %v3740 = vunpack.c.h.b16 %v3041
    %v3741 = vunpack.c.l.b16 %v3042
    %v3742 = vunpack.c.h.b16 %v3042
    %v3743 = vunpack.c.l.b16 %v3043
    %v3744 = vunpack.c.h.b16 %v3043
    %v3745 = vunpack.c.l.b16 %v3044
    %v3746 = vunpack.c.h.b16 %v3044
    %v3747 = vunpack.c.l.b16 %v3045
    %v3748 = vunpack.c.h.b16 %v3045
    %v3749 = vunpack.c.l.b16 %v3046
    %v3750 = vunpack.c.h.b16 %v3046
    %v3751 = vunpack.c.l.b16 %v3047
    %v3752 = vunpack.c.h.b16 %v3047
    %v3753 = vunpack.c.l.b16 %v3048
    %v3754 = vunpack.c.h.b16 %v3048
    %v3755 = vunpack.c.l.b16 %v3049
    %v3756 = vunpack.c.h.b16 %v3049
    %v3757 = vunpack.c.l.b16 %v3050
    %v3758 = vunpack.c.h.b16 %v3050
    %v3759 = vunpack.c.l.b16 %v3051
    %v3760 = vunpack.c.h.b16 %v3051
    %v3761 = vunpack.c.l.b16 %v3052
    %v3762 = vunpack.c.h.b16 %v3052
    %v3763 = vunpack.c.l.b16 %v3053
    %v3764 = vunpack.c.h.b16 %v3053
    %v3765 = vunpack.c.l.b16 %v3054
    %v3766 = vunpack.c.h.b16 %v3054
    %v3767 = vunpack.c.l.b16 %v3055
    %v3768 = vunpack.c.h.b16 %v3055
    %v3769 = vunpack.c.l.b16 %v3056
    %v3770 = vunpack.c.h.b16 %v3056
    %v3771 = vunpack.c.l.b16 %v3057
    %v3772 = vunpack.c.h.b16 %v3057
    %v3773 = vunpack.c.l.b16 %v3058
    %v3774 = vunpack.c.h.b16 %v3058
    %v3775 = vunpack.c.l.b16 %v3059
    %v3776 = vunpack.c.h.b16 %v3059
    %v3777 = vunpack.c.l.b16 %v3060
    %v3778 = vunpack.c.h.b16 %v3060
    %v3779 = vunpack.c.l.b16 %v3061
    %v3780 = vunpack.c.h.b16 %v3061
    %v3781 = vunpack.c.l.b16 %v3062
    %v3782 = vunpack.c.h.b16 %v3062
    %v3783 = vunpack.c.l.b16 %v3063
    %v3784 = vunpack.c.h.b16 %v3063
    %v3785 = vunpack.c.l.b16 %v3064
    %v3786 = vunpack.c.h.b16 %v3064
    %v3787 = vunpack.c.l.b16 %v3065
    %v3788 = vunpack.c.h.b16 %v3065
    %v3789 = vunpack.c.l.b16 %v3066
    %v3790 = vunpack.c.h.b16 %v3066
    %v3791 = vunpack.c.l.b16 %v3067
    %v3792 = vunpack.c.h.b16 %v3067
    %v3793 = vunpack.c.l.b16 %v3068
    %v3794 = vunpack.c.h.b16 %v3068
    %v3795 = vunpack.c.l.b16 %v3069
    %v3796 = vunpack.c.h.b16 %v3069
    %v3797 = vunpack.c.l.b16 %v3070
    %v3798 = vunpack.c.h.b16 %v3070
    %v3799 = vunpack.c.l.b16 %v3071
    %v3800 = vunpack.c.h.b16 %v3071
    %v3801 = vunpack.c.l.b16 %v3072
    %v3802 = vunpack.c.h.b16 %v3072
    %v3803 = vunpack.c.l.b16 %v3073
    %v3804 = vunpack.c.h.b16 %v3073
    %v3805 = vunpack.c.l.b16 %v3074
    %v3806 = vunpack.c.h.b16 %v3074
    %v3807 = vunpack.c.l.b16 %v3075
    %v3808 = vunpack.c.h.b16 %v3075
    %v3809 = vunpack.c.l.b16 %v3076
    %v3810 = vunpack.c.h.b16 %v3076
    %v3811 = vunpack.c.l.b16 %v3077
    %v3812 = vunpack.c.h.b16 %v3077
    %v3813 = vunpack.c.l.b16 %v3078
    %v3814 = vunpack.c.h.b16 %v3078
    %v3815 = vunpack.c.l.b16 %v3079
    %v3816 = vunpack.c.h.b16 %v3079
    %v3817 = vunpack.c.l.b16 %v3080
    %v3818 = vunpack.c.h.b16 %v3080
    %v3819 = vunpack.c.l.b16 %v3081
    %v3820 = vunpack.c.h.b16 %v3081
    %v3821 = vunpack.c.l.b16 %v3082
    %v3822 = vunpack.c.h.b16 %v3082
    %v3823 = vunpack.c.l.b16 %v3083
    %v3824 = vunpack.c.h.b16 %v3083
    %v3825 = vunpack.c.l.b16 %v3084
    %v3826 = vunpack.c.h.b16 %v3084
    %v3827 = vunpack.c.l.b16 %v3085
    %v3828 = vunpack.c.h.b16 %v3085
    %v3829 = vunpack.c.l.b16 %v3086
    %v3830 = vunpack.c.h.b16 %v3086
    %v3831 = vunpack.c.l.b16 %v3087
    %v3832 = vunpack.c.h.b16 %v3087
    %v3833 = vunpack.c.l.b16 %v3088
    %v3834 = vunpack.c.h.b16 %v3088
    %v3835 = vunpack.c.l.b16 %v3089
    %v3836 = vunpack.c.h.b16 %v3089
    %v3837 = vunpack.c.l.b16 %v3090
    %v3838 = vunpack.c.h.b16 %v3090
    %v3839 = vunpack.c.l.b16 %v3091
    %v3840 = vunpack.c.h.b16 %v3091
    %v3841 = vunpack.c.l.b16 %v3092
    %v3842 = vunpack.c.h.b16 %v3092
    %v3843 = vunpack.c.l.b16 %v3093
    %v3844 = vunpack.c.h.b16 %v3093
    %v3845 = vunpack.c.l.b16 %v3094
    %v3846 = vunpack.c.h.b16 %v3094
    %v3847 = vunpack.c.l.b16 %v3095
    %v3848 = vunpack.c.h.b16 %v3095
    %v3849 = vunpack.c.l.b16 %v3096
    %v3850 = vunpack.c.h.b16 %v3096
    %v3851 = vunpack.c.l.b16 %v3097
    %v3852 = vunpack.c.h.b16 %v3097
    %v3853 = vunpack.c.l.b16 %v3098
    %v3854 = vunpack.c.h.b16 %v3098
    %v3855 = vunpack.c.l.b16 %v3099
    %v3856 = vunpack.c.h.b16 %v3099
    %v3857 = vunpack.c.l.b16 %v3100
    %v3858 = vunpack.c.h.b16 %v3100
    %v3859 = vunpack.c.l.b16 %v3101
    %v3860 = vunpack.c.h.b16 %v3101
    %v3861 = vunpack.c.l.b16 %v3102
    %v3862 = vunpack.c.h.b16 %v3102
    %v3863 = vunpack.c.l.b16 %v3103
    %v3864 = vunpack.c.h.b16 %v3103
    %v3865 = vunpack.c.l.b16 %v3104
    %v3866 = vunpack.c.h.b16 %v3104
    %v3867 = vunpack.c.l.b16 %v3105
    %v3868 = vunpack.c.h.b16 %v3105
    %v3869 = vunpack.c.l.b16 %v3106
    %v3870 = vunpack.c.h.b16 %v3106
    %v3871 = vunpack.c.l.b16 %v3107
    %v3872 = vunpack.c.h.b16 %v3107
    %v3873 = vunpack.c.l.b16 %v3108
    %v3874 = vunpack.c.h.b16 %v3108
    %v3875 = vunpack.c.l.b16 %v3109
    %v3876 = vunpack.c.h.b16 %v3109
    %v3877 = vunpack.c.l.b16 %v3110
    %v3878 = vunpack.c.h.b16 %v3110
    %v3879 = vunpack.c.l.b16 %v3111
    %v3880 = vunpack.c.h.b16 %v3111
    %v3881 = vunpack.c.l.b16 %v3112
    %v3882 = vunpack.c.h.b16 %v3112
    %v3883 = vunpack.c.l.b16 %v3113
    %v3884 = vunpack.c.h.b16 %v3113
    %v3885 = vunpack.c.l.b16 %v3114
    %v3886 = vunpack.c.h.b16 %v3114
    %v3887 = vunpack.c.l.b16 %v3115
    %v3888 = vunpack.c.h.b16 %v3115
    %v3889 = vunpack.c.l.b16 %v3116
    %v3890 = vunpack.c.h.b16 %v3116
    %v3891 = vunpack.c.l.b16 %v3117
    %v3892 = vunpack.c.h.b16 %v3117
    %v3893 = vunpack.c.l.b16 %v3118
    %v3894 = vunpack.c.h.b16 %v3118
    %v3895 = vunpack.c.l.b16 %v3119
    %v3896 = vunpack.c.h.b16 %v3119
    %v3897 = vunpack.c.l.b16 %v3120
    %v3898 = vunpack.c.h.b16 %v3120
    %v3899 = vunpack.c.l.b16 %v3121
    %v3900 = vunpack.c.h.b16 %v3121
    %v3901 = vunpack.c.l.b16 %v3122
    %v3902 = vunpack.c.h.b16 %v3122
    %v3903 = vunpack.c.l.b16 %v3123
    %v3904 = vunpack.c.h.b16 %v3123
    %v3905 = vunpack.c.l.b16 %v3124
    %v3906 = vunpack.c.h.b16 %v3124
    %v3907 = vunpack.c.l.b16 %v3125
    %v3908 = vunpack.c.h.b16 %v3125
    %v3909 = vunpack.c.l.b16 %v3126
    %v3910 = vunpack.c.h.b16 %v3126
    %v3911 = vunpack.c.l.b16 %v3127
    %v3912 = vunpack.c.h.b16 %v3127
    %v3913 = vunpack.c.l.b16 %v3128
    %v3914 = vunpack.c.h.b16 %v3128
    %v3915 = vunpack.c.l.b16 %v3129
    %v3916 = vunpack.c.h.b16 %v3129
    %v3917 = vunpack.c.l.b16 %v3130
    %v3918 = vunpack.c.h.b16 %v3130
    %v3919 = vunpack.c.l.b16 %v3131
    %v3920 = vunpack.c.h.b16 %v3131
    %v3921 = vunpack.c.l.b16 %v3132
    %v3922 = vunpack.c.h.b16 %v3132
    %v3923 = vunpack.c.l.b16 %v3133
    %v3924 = vunpack.c.h.b16 %v3133
    %v3925 = vunpack.c.l.b16 %v3134
    %v3926 = vunpack.c.h.b16 %v3134
    %v3927 = vunpack.c.l.b16 %v3135
    %v3928 = vunpack.c.h.b16 %v3135
    %v3929 = vunpack.c.l.b16 %v3136
    %v3930 = vunpack.c.h.b16 %v3136
    %v3931 = vunpack.c.l.b16 %v3137
    %v3932 = vunpack.c.h.b16 %v3137
    %v3933 = vunpack.c.l.b16 %v3138
    %v3934 = vunpack.c.h.b16 %v3138
    %v3935 = vunpack.c.l.b16 %v3139
    %v3936 = vunpack.c.h.b16 %v3139
    %v3937 = vunpack.c.l.b16 %v3140
    %v3938 = vunpack.c.h.b16 %v3140
    %v3939 = vunpack.c.l.b16 %v3141
    %v3940 = vunpack.c.h.b16 %v3141
    %v3941 = vunpack.c.l.b16 %v3142
    %v3942 = vunpack.c.h.b16 %v3142
    %v3943 = vunpack.c.l.b16 %v3143
    %v3944 = vunpack.c.h.b16 %v3143
    %v3945 = vunpack.c.l.b16 %v3144
    %v3946 = vunpack.c.h.b16 %v3144
    %v3947 = vunpack.c.l.b16 %v3145
    %v3948 = vunpack.c.h.b16 %v3145
    %v3949 = vunpack.c.l.b16 %v3146
    %v3950 = vunpack.c.h.b16 %v3146
    %v3951 = vunpack.c.l.b16 %v3147
    %v3952 = vunpack.c.h.b16 %v3147
    %v3953 = vunpack.c.l.b16 %v3148
    %v3954 = vunpack.c.h.b16 %v3148
    %v3955 = vunpack.c.l.b16 %v3149
    %v3956 = vunpack.c.h.b16 %v3149
    %v3957 = vunpack.c.l.b16 %v3150
    %v3958 = vunpack.c.h.b16 %v3150
    %v3959 = vunpack.c.l.b16 %v3151
    %v3960 = vunpack.c.h.b16 %v3151
    %v3961 = vunpack.c.l.b16 %v3152
    %v3962 = vunpack.c.h.b16 %v3152
    %v3963 = vunpack.c.l.b16 %v3153
    %v3964 = vunpack.c.h.b16 %v3153
    %v3965 = vunpack.c.l.b16 %v3154
    %v3966 = vunpack.c.h.b16 %v3154
    %v3967 = vunpack.c.l.b16 %v3155
    %v3968 = vunpack.c.h.b16 %v3155
    %v3969 = vunpack.c.l.b16 %v3156
    %v3970 = vunpack.c.h.b16 %v3156
    %v3971 = vunpack.c.l.b16 %v3157
    %v3972 = vunpack.c.h.b16 %v3157
    %v3973 = vunpack.c.l.b16 %v3158
    %v3974 = vunpack.c.h.b16 %v3158
    %v3975 = vunpack.c.l.b16 %v3159
    %v3976 = vunpack.c.h.b16 %v3159
    %v3977 = vunpack.c.l.b16 %v3160
    %v3978 = vunpack.c.h.b16 %v3160
    %v3979 = vunpack.c.l.b16 %v3161
    %v3980 = vunpack.c.h.b16 %v3161
    %v3981 = vunpack.c.l.b16 %v3162
    %v3982 = vunpack.c.h.b16 %v3162
    %v3983 = vunpack.c.l.b16 %v3163
    %v3984 = vunpack.c.h.b16 %v3163
    %v3985 = vunpack.c.l.b16 %v3164
    %v3986 = vunpack.c.h.b16 %v3164
    %v3987 = vunpack.c.l.b16 %v3165
    %v3988 = vunpack.c.h.b16 %v3165
    %v3989 = vunpack.c.l.b16 %v3166
    %v3990 = vunpack.c.h.b16 %v3166
    %v3991 = vunpack.c.l.b16 %v3167
    %v3992 = vunpack.c.h.b16 %v3167
    %v3993 = vunpack.c.l.b16 %v3168
    %v3994 = vunpack.c.h.b16 %v3168
    %v3995 = vunpack.c.l.b16 %v3169
    %v3996 = vunpack.c.h.b16 %v3169
    %v3997 = vunpack.c.l.b16 %v3170
    %v3998 = vunpack.c.h.b16 %v3170
    %v3999 = vunpack.c.l.b16 %v3171
    %v4000 = vunpack.c.h.b16 %v3171
    %v4001 = vunpack.c.l.b16 %v3172
    %v4002 = vunpack.c.h.b16 %v3172
    %v4003 = vunpack.c.l.b16 %v3173
    %v4004 = vunpack.c.h.b16 %v3173
    %v4005 = vunpack.c.l.b16 %v3174
    %v4006 = vunpack.c.h.b16 %v3174
    %v4007 = vunpack.c.l.b16 %v3175
    %v4008 = vunpack.c.h.b16 %v3175
    %v4009 = vunpack.c.l.b16 %v3176
    %v4010 = vunpack.c.h.b16 %v3176
    %v4011 = vunpack.c.l.b16 %v3177
    %v4012 = vunpack.c.h.b16 %v3177
    %v4013 = vunpack.c.l.b16 %v3178
    %v4014 = vunpack.c.h.b16 %v3178
    %v4015 = vunpack.c.l.b16 %v3179
    %v4016 = vunpack.c.h.b16 %v3179
    %v4017 = vunpack.c.l.b16 %v3180
    %v4018 = vunpack.c.h.b16 %v3180
    %v4019 = vunpack.c.l.b16 %v3181
    %v4020 = vunpack.c.h.b16 %v3181
    %v4021 = vunpack.c.l.b16 %v3182
    %v4022 = vunpack.c.h.b16 %v3182
    %v4023 = vunpack.c.l.b16 %v3183
    %v4024 = vunpack.c.h.b16 %v3183
    %v4025 = vunpack.c.l.b16 %v3184
    %v4026 = vunpack.c.h.b16 %v3184
    %v4027 = vunpack.c.l.b16 %v3185
    %v4028 = vunpack.c.h.b16 %v3185
    %v4029 = vunpack.c.l.b16 %v3186
    %v4030 = vunpack.c.h.b16 %v3186
    %v4031 = vunpack.c.l.b16 %v3187
    %v4032 = vunpack.c.h.b16 %v3187
    %v4033 = vunpack.c.l.b16 %v3188
    %v4034 = vunpack.c.h.b16 %v3188
    %v4035 = vunpack.c.l.b16 %v3189
    %v4036 = vunpack.c.h.b16 %v3189
    %v4037 = vunpack.c.l.b16 %v3190
    %v4038 = vunpack.c.h.b16 %v3190
    %v4039 = vunpack.c.l.b16 %v3191
    %v4040 = vunpack.c.h.b16 %v3191
    %v4041 = vunpack.c.l.b16 %v3192
    %v4042 = vunpack.c.h.b16 %v3192
    %v4043 = vunpack.c.l.b16 %v3193
    %v4044 = vunpack.c.h.b16 %v3193
    %v4045 = vunpack.c.l.b16 %v3194
    %v4046 = vunpack.c.h.b16 %v3194
    %v4047 = vunpack.c.l.b16 %v3195
    %v4048 = vunpack.c.h.b16 %v3195
    %v4049 = vunpack.c.l.b16 %v3196
    %v4050 = vunpack.c.h.b16 %v3196
    %v4051 = vunpack.c.l.b16 %v3197
    %v4052 = vunpack.c.h.b16 %v3197
    %v4053 = vunpack.c.l.b16 %v3198
    %v4054 = vunpack.c.h.b16 %v3198
    %v4055 = vunpack.c.l.b16 %v3199
    %v4056 = vunpack.c.h.b16 %v3199
    %v4057 = vunpack.c.l.b16 %v3200
    %v4058 = vunpack.c.h.b16 %v3200
    %v4059 = vunpack.c.l.b16 %v3201
    %v4060 = vunpack.c.h.b16 %v3201
    %v4061 = vunpack.c.l.b16 %v3202
    %v4062 = vunpack.c.h.b16 %v3202
    %v4063 = vunpack.c.l.b16 %v3203
    %v4064 = vunpack.c.h.b16 %v3203
    %v4065 = vunpack.c.l.b16 %v3204
    %v4066 = vunpack.c.h.b16 %v3204
    %v4067 = vunpack.c.l.b16 %v3205
    %v4068 = vunpack.c.h.b16 %v3205
    %v4069 = vunpack.c.l.b16 %v3206
    %v4070 = vunpack.c.h.b16 %v3206
    %v4071 = vunpack.c.l.b16 %v3207
    %v4072 = vunpack.c.h.b16 %v3207
    %v4073 = vunpack.c.l.b16 %v3208
    %v4074 = vunpack.c.h.b16 %v3208
    %v4075 = vunpack.c.l.b16 %v3209
    %v4076 = vunpack.c.h.b16 %v3209
    %v4077 = vunpack.c.l.b16 %v3210
    %v4078 = vunpack.c.h.b16 %v3210
    %v4079 = vunpack.c.l.b16 %v3211
    %v4080 = vunpack.c.h.b16 %v3211
    %v4081 = vunpack.c.l.b16 %v3212
    %v4082 = vunpack.c.h.b16 %v3212
    %v4083 = vunpack.c.l.b16 %v3213
    %v4084 = vunpack.c.h.b16 %v3213
    %v4085 = vunpack.c.l.b16 %v3214
    %v4086 = vunpack.c.h.b16 %v3214
    %v4087 = vunpack.c.l.b16 %v3215
    %v4088 = vunpack.c.h.b16 %v3215
    %v4089 = vunpack.c.l.b16 %v3216
    %v4090 = vunpack.c.h.b16 %v3216
    %v4091 = vunpack.c.l.b16 %v3217
    %v4092 = vunpack.c.h.b16 %v3217
    %v4093 = vunpack.c.l.b16 %v3218
    %v4094 = vunpack.c.h.b16 %v3218
    %v4095 = vunpack.c.l.b16 %v3219
    %v4096 = vunpack.c.h.b16 %v3219
    %v4097 = vunpack.c.l.b16 %v3220
    %v4098 = vunpack.c.h.b16 %v3220
    %v4099 = vunpack.c.l.b16 %v3221
    %v4100 = vunpack.c.h.b16 %v3221
    %v4101 = vunpack.c.l.b16 %v3222
    %v4102 = vunpack.c.h.b16 %v3222
    %v4103 = vunpack.c.l.b16 %v3223
    %v4104 = vunpack.c.h.b16 %v3223
    %v4105 = vunpack.c.l.b16 %v3224
    %v4106 = vunpack.c.h.b16 %v3224
    %v4107 = vunpack.c.l.b16 %v3225
    %v4108 = vunpack.c.h.b16 %v3225
    %v4109 = vunpack.c.l.b16 %v3226
    %v4110 = vunpack.c.h.b16 %v3226
    %v4111 = vunpack.c.l.b16 %v3227
    %v4112 = vunpack.c.h.b16 %v3227
    %v4113 = vunpack.c.l.b16 %v3228
    %v4114 = vunpack.c.h.b16 %v3228
    %v4115 = vunpack.c.l.b16 %v3229
    %v4116 = vunpack.c.h.b16 %v3229
    %v4117 = vunpack.c.l.b16 %v3230
    %v4118 = vunpack.c.h.b16 %v3230
    %v4119 = vunpack.c.l.b16 %v3231
    %v4120 = vunpack.c.h.b16 %v3231
    %v4121 = vunpack.c.l.b16 %v3232
    %v4122 = vunpack.c.h.b16 %v3232
    %v4123 = vunpack.c.l.b16 %v3233
    %v4124 = vunpack.c.h.b16 %v3233
    %v4125 = vunpack.c.l.b16 %v3234
    %v4126 = vunpack.c.h.b16 %v3234
    %v4127 = vunpack.c.l.b16 %v3235
    %v4128 = vunpack.c.h.b16 %v3235
    %v4129 = vunpack.c.l.b16 %v3236
    %v4130 = vunpack.c.h.b16 %v3236
    %v4131 = vunpack.c.l.b16 %v3237
    %v4132 = vunpack.c.h.b16 %v3237
    %v4133 = vunpack.c.l.b16 %v3238
    %v4134 = vunpack.c.h.b16 %v3238
    %v4135 = vunpack.c.l.b16 %v3239
    %v4136 = vunpack.c.h.b16 %v3239
    %v4137 = vunpack.c.l.b16 %v3240
    %v4138 = vunpack.c.h.b16 %v3240
    %v4139 = vunpack.c.l.b16 %v3241
    %v4140 = vunpack.c.h.b16 %v3241
    %v4141 = vunpack.c.l.b16 %v3242
    %v4142 = vunpack.c.h.b16 %v3242
    %v4143 = vunpack.c.l.b16 %v3243
    %v4144 = vunpack.c.h.b16 %v3243
    %v4145 = vunpack.c.l.b16 %v3244
    %v4146 = vunpack.c.h.b16 %v3244
    %v4147 = vunpack.c.l.b16 %v3245
    %v4148 = vunpack.c.h.b16 %v3245
    %v4149 = vunpack.c.l.b16 %v3246
    %v4150 = vunpack.c.h.b16 %v3246
    %v4151 = vunpack.c.l.b16 %v3247
    %v4152 = vunpack.c.h.b16 %v3247
    %v4153 = vunpack.c.l.b16 %v3248
    %v4154 = vunpack.c.h.b16 %v3248
    %v4155 = vunpack.c.l.b16 %v3249
    %v4156 = vunpack.c.h.b16 %v3249
    %v4157 = vunpack.c.l.b16 %v3250
    %v4158 = vunpack.c.h.b16 %v3250
    %v4159 = vunpack.c.l.b16 %v3251
    %v4160 = vunpack.c.h.b16 %v3251
    %v4161 = vunpack.c.l.b16 %v3252
    %v4162 = vunpack.c.h.b16 %v3252
    %v4163 = vunpack.c.l.b16 %v3253
    %v4164 = vunpack.c.h.b16 %v3253
    %v4165 = vunpack.c.l.b16 %v3254
    %v4166 = vunpack.c.h.b16 %v3254
    %v4167 = vunpack.c.l.b16 %v3255
    %v4168 = vunpack.c.h.b16 %v3255
    %v4169 = vunpack.c.l.b16 %v3256
    %v4170 = vunpack.c.h.b16 %v3256
    %v4171 = vunpack.c.l.b16 %v3257
    %v4172 = vunpack.c.h.b16 %v3257
    %v4173 = vunpack.c.l.b16 %v3258
    %v4174 = vunpack.c.h.b16 %v3258
    %v4175 = vunpack.c.l.b16 %v3259
    %v4176 = vunpack.c.h.b16 %v3259
    %v4177 = vunpack.c.l.b16 %v3260
    %v4178 = vunpack.c.h.b16 %v3260
    %v4179 = vunpack.c.l.b16 %v3261
    %v4180 = vunpack.c.h.b16 %v3261
    %v4181 = vunpack.c.l.b16 %v3262
    %v4182 = vunpack.c.h.b16 %v3262
    %v4183 = vunpack.c.l.b16 %v3263
    %v4184 = vunpack.c.h.b16 %v3263
    %v4185 = vunpack.c.l.b16 %v3264
    %v4186 = vunpack.c.h.b16 %v3264
    %v4187 = vunpack.c.l.b16 %v3265
    %v4188 = vunpack.c.h.b16 %v3265
    %v4189 = vunpack.c.l.b16 %v3266
    %v4190 = vunpack.c.h.b16 %v3266
    %v4191 = vunpack.c.l.b16 %v3267
    %v4192 = vunpack.c.h.b16 %v3267
    %v4193 = vunpack.c.l.b16 %v3268
    %v4194 = vunpack.c.h.b16 %v3268
    %v4195 = vunpack.c.l.b16 %v3269
    %v4196 = vunpack.c.h.b16 %v3269
    %v4197 = vunpack.c.l.b16 %v3270
    %v4198 = vunpack.c.h.b16 %v3270
    %v4199 = vunpack.c.l.b16 %v3271
    %v4200 = vunpack.c.h.b16 %v3271
    %v4201 = vunpack.c.l.b16 %v3272
    %v4202 = vunpack.c.h.b16 %v3272
    %v4203 = vunpack.c.l.b16 %v3273
    %v4204 = vunpack.c.h.b16 %v3273
    %v4205 = vunpack.c.l.b16 %v3274
    %v4206 = vunpack.c.h.b16 %v3274
    %v4207 = vunpack.c.l.b16 %v3275
    %v4208 = vunpack.c.h.b16 %v3275
    %v4209 = vunpack.c.l.b16 %v3276
    %v4210 = vunpack.c.h.b16 %v3276
    %v4211 = vunpack.c.l.b16 %v3277
    %v4212 = vunpack.c.h.b16 %v3277
    %v4213 = vunpack.c.l.b16 %v3278
    %v4214 = vunpack.c.h.b16 %v3278
    %v4215 = vunpack.c.l.b16 %v3279
    %v4216 = vunpack.c.h.b16 %v3279
    %v4217 = vunpack.c.l.b16 %v3280
    %v4218 = vunpack.c.h.b16 %v3280
    %v4219 = vunpack.c.l.b16 %v3281
    %v4220 = vunpack.c.h.b16 %v3281
    %v4221 = vunpack.c.l.b16 %v3282
    %v4222 = vunpack.c.h.b16 %v3282
    %v4223 = vunpack.c.l.b16 %v3283
    %v4224 = vunpack.c.h.b16 %v3283
    %v4225 = vunpack.c.l.b16 %v3284
    %v4226 = vunpack.c.h.b16 %v3284
    %v4227 = vunpack.c.l.b16 %v3285
    %v4228 = vunpack.c.h.b16 %v3285
    %v4229 = vunpack.c.l.b16 %v3286
    %v4230 = vunpack.c.h.b16 %v3286
    %v4231 = vunpack.c.l.b16 %v3287
    %v4232 = vunpack.c.h.b16 %v3287
    %v4233 = vunpack.c.l.b16 %v3288
    %v4234 = vunpack.c.h.b16 %v3288
    %v4235 = vunpack.c.l.b16 %v3289
    %v4236 = vunpack.c.h.b16 %v3289
    %v4237 = vunpack.c.l.b16 %v3290
    %v4238 = vunpack.c.h.b16 %v3290
    %v4239 = vunpack.c.l.b16 %v3291
    %v4240 = vunpack.c.h.b16 %v3291
    %v4241 = vunpack.c.l.b16 %v3292
    %v4242 = vunpack.c.h.b16 %v3292
    %v4243 = vunpack.c.l.b16 %v3293
    %v4244 = vunpack.c.h.b16 %v3293
    %v4245 = vunpack.c.l.b16 %v3294
    %v4246 = vunpack.c.h.b16 %v3294
    %v4247 = vunpack.c.l.b16 %v3295
    %v4248 = vunpack.c.h.b16 %v3295
    %v4249 = vunpack.c.l.b16 %v3296
    %v4250 = vunpack.c.h.b16 %v3296
    %v4251 = vunpack.c.l.b16 %v3297
    %v4252 = vunpack.c.h.b16 %v3297
    %v4253 = vunpack.c.l.b16 %v3298
    %v4254 = vunpack.c.h.b16 %v3298
    %v4255 = vunpack.c.l.b16 %v3299
    %v4256 = vunpack.c.h.b16 %v3299
    %v4257 = vunpack.c.l.b16 %v3300
    %v4258 = vunpack.c.h.b16 %v3300
    %v4259 = vunpack.c.l.b16 %v3301
    %v4260 = vunpack.c.h.b16 %v3301
    %v4261 = vunpack.c.l.b16 %v3302
    %v4262 = vunpack.c.h.b16 %v3302
    %v4263 = vunpack.c.l.b16 %v3303
    %v4264 = vunpack.c.h.b16 %v3303
    %v4265 = vunpack.c.l.b16 %v3304
    %v4266 = vunpack.c.h.b16 %v3304
    %v4267 = vunpack.c.l.b16 %v3305
    %v4268 = vunpack.c.h.b16 %v3305
    %v4269 = vunpack.c.l.b16 %v3306
    %v4270 = vunpack.c.h.b16 %v3306
    %v4271 = vunpack.c.l.b16 %v3307
    %v4272 = vunpack.c.h.b16 %v3307
    %v4273 = vunpack.c.l.b16 %v3308
    %v4274 = vunpack.c.h.b16 %v3308
    %v4275 = vunpack.c.l.b16 %v3309
    %v4276 = vunpack.c.h.b16 %v3309
    %v4277 = vunpack.c.l.b16 %v3310
    %v4278 = vunpack.c.h.b16 %v3310
    %v4279 = vunpack.c.l.b16 %v3311
    %v4280 = vunpack.c.h.b16 %v3311
    %v4281 = vunpack.c.l.b16 %v3312
    %v4282 = vunpack.c.h.b16 %v3312
    %v4283 = vunpack.c.l.b16 %v3313
    %v4284 = vunpack.c.h.b16 %v3313
    %v4285 = vunpack.c.l.b16 %v3314
    %v4286 = vunpack.c.h.b16 %v3314
    %v4287 = vunpack.c.l.b16 %v3315
    %v4288 = vunpack.c.h.b16 %v3315
    %v4289 = vunpack.c.l.b16 %v3316
    %v4290 = vunpack.c.h.b16 %v3316
    %v4291 = vunpack.c.l.b16 %v3317
    %v4292 = vunpack.c.h.b16 %v3317
    %v4293 = vunpack.c.l.b16 %v3318
    %v4294 = vunpack.c.h.b16 %v3318
    %v4295 = vunpack.c.l.b16 %v3319
    %v4296 = vunpack.c.h.b16 %v3319
    %v4297 = vunpack.c.l.b16 %v3320
    %v4298 = vunpack.c.h.b16 %v3320
    %v4299 = vunpack.c.l.b16 %v3321
    %v4300 = vunpack.c.h.b16 %v3321
    %v4301 = vunpack.c.l.b16 %v3322
    %v4302 = vunpack.c.h.b16 %v3322
    %v4303 = vunpack.c.l.b16 %v3323
    %v4304 = vunpack.c.h.b16 %v3323
    %v4305 = vunpack.c.l.b16 %v3324
    %v4306 = vunpack.c.h.b16 %v3324
    %v4307 = vunpack.c.l.b16 %v3325
    %v4308 = vunpack.c.h.b16 %v3325
    %v4309 = vunpack.c.l.b16 %v3326
    %v4310 = vunpack.c.h.b16 %v3326
    %v4311 = vunpack.c.l.b16 %v3327
    %v4312 = vunpack.c.h.b16 %v3327
    %v4313 = vunpack.c.l.b16 %v3328
    %v4314 = vunpack.c.h.b16 %v3328
    %v4315 = vunpack.c.l.b16 %v3329
    %v4316 = vunpack.c.h.b16 %v3329
    %v4317 = vunpack.c.l.b16 %v3330
    %v4318 = vunpack.c.h.b16 %v3330
    %v4319 = vunpack.c.l.b16 %v3331
    %v4320 = vunpack.c.h.b16 %v3331
    %v4321 = vunpack.c.l.b16 %v3332
    %v4322 = vunpack.c.h.b16 %v3332
    %v4323 = vunpack.c.l.b16 %v3333
    %v4324 = vunpack.c.h.b16 %v3333
    %v4325 = vunpack.c.l.b16 %v3334
    %v4326 = vunpack.c.h.b16 %v3334
    %v4327 = vunpack.c.l.b16 %v3335
    %v4328 = vunpack.c.h.b16 %v3335
    %v4329 = vunpack.c.l.b16 %v3336
    %v4330 = vunpack.c.h.b16 %v3336
    %v4331 = vunpack.c.l.b16 %v3337
    %v4332 = vunpack.c.h.b16 %v3337
    %v4333 = vunpack.c.l.b16 %v3338
    %v4334 = vunpack.c.h.b16 %v3338
    %v4335 = vunpack.c.l.b16 %v3339
    %v4336 = vunpack.c.h.b16 %v3339
    %v4337 = vunpack.c.l.b16 %v3340
    %v4338 = vunpack.c.h.b16 %v3340
    %v4339 = vunpack.c.l.b16 %v3341
    %v4340 = vunpack.c.h.b16 %v3341
    %v4341 = vunpack.c.l.b16 %v3342
    %v4342 = vunpack.c.h.b16 %v3342
    %v4343 = vunpack.c.l.b16 %v3343
    %v4344 = vunpack.c.h.b16 %v3343
    %v4345 = vunpack.c.l.b16 %v3344
    %v4346 = vunpack.c.h.b16 %v3344
    %v4347 = vunpack.c.l.b16 %v3345
    %v4348 = vunpack.c.h.b16 %v3345
    %v4349 = vunpack.c.l.b16 %v3346
    %v4350 = vunpack.c.h.b16 %v3346
    %v4351 = vunpack.c.l.b16 %v3347
    %v4352 = vunpack.c.h.b16 %v3347
    %v4353 = vunpack.c.l.b16 %v3348
    %v4354 = vunpack.c.h.b16 %v3348
    %v4355 = vunpack.c.l.b16 %v3349
    %v4356 = vunpack.c.h.b16 %v3349
    %v4357 = vunpack.c.l.b16 %v3350
    %v4358 = vunpack.c.h.b16 %v3350
    %v4359 = vpack.c.b16 %v3691, %v3687
    %v4360 = vpack.c.b16 %v3692, %v3688
    %v4361 = vpack.c.b16 %v3693, %v3689
    %v4362 = vpack.c.b16 %v3694, %v3690
    %v4363 = vpack.c.b16 %v3699, %v3695
    %v4364 = vpack.c.b16 %v3700, %v3696
    %v4365 = vpack.c.b16 %v3701, %v3697
    %v4366 = vpack.c.b16 %v3702, %v3698
    %v4367 = vpack.c.b16 %v3707, %v3703
    %v4368 = vpack.c.b16 %v3708, %v3704
    %v4369 = vpack.c.b16 %v3709, %v3705
    %v4370 = vpack.c.b16 %v3710, %v3706
    %v4371 = vpack.c.b16 %v3715, %v3711
    %v4372 = vpack.c.b16 %v3716, %v3712
    %v4373 = vpack.c.b16 %v3717, %v3713
    %v4374 = vpack.c.b16 %v3718, %v3714
    %v4375 = vpack.c.b16 %v3723, %v3719
    %v4376 = vpack.c.b16 %v3724, %v3720
    %v4377 = vpack.c.b16 %v3725, %v3721
    %v4378 = vpack.c.b16 %v3726, %v3722
    %v4379 = vpack.c.b16 %v3731, %v3727
    %v4380 = vpack.c.b16 %v3732, %v3728
    %v4381 = vpack.c.b16 %v3733, %v3729
    %v4382 = vpack.c.b16 %v3734, %v3730
    %v4383 = vpack.c.b16 %v3739, %v3735
    %v4384 = vpack.c.b16 %v3740, %v3736
    %v4385 = vpack.c.b16 %v3741, %v3737
    %v4386 = vpack.c.b16 %v3742, %v3738
    %v4387 = vpack.c.b16 %v3747, %v3743
    %v4388 = vpack.c.b16 %v3748, %v3744
    %v4389 = vpack.c.b16 %v3749, %v3745
    %v4390 = vpack.c.b16 %v3750, %v3746
    %v4391 = vpack.c.b16 %v3755, %v3751
    %v4392 = vpack.c.b16 %v3756, %v3752
    %v4393 = vpack.c.b16 %v3757, %v3753
    %v4394 = vpack.c.b16 %v3758, %v3754
    %v4395 = vpack.c.b16 %v3763, %v3759
    %v4396 = vpack.c.b16 %v3764, %v3760
    %v4397 = vpack.c.b16 %v3765, %v3761
    %v4398 = vpack.c.b16 %v3766, %v3762
    %v4399 = vpack.c.b16 %v3771, %v3767
    %v4400 = vpack.c.b16 %v3772, %v3768
    %v4401 = vpack.c.b16 %v3773, %v3769
    %v4402 = vpack.c.b16 %v3774, %v3770
    %v4403 = vpack.c.b16 %v3779, %v3775
    %v4404 = vpack.c.b16 %v3780, %v3776
    %v4405 = vpack.c.b16 %v3781, %v3777
    %v4406 = vpack.c.b16 %v3782, %v3778
    %v4407 = vpack.c.b16 %v3787, %v3783
    %v4408 = vpack.c.b16 %v3788, %v3784
    %v4409 = vpack.c.b16 %v3789, %v3785
    %v4410 = vpack.c.b16 %v3790, %v3786
    %v4411 = vpack.c.b16 %v3795, %v3791
    %v4412 = vpack.c.b16 %v3796, %v3792
    %v4413 = vpack.c.b16 %v3797, %v3793
    %v4414 = vpack.c.b16 %v3798, %v3794
    %v4415 = vpack.c.b16 %v3803, %v3799
    %v4416 = vpack.c.b16 %v3804, %v3800
    %v4417 = vpack.c.b16 %v3805, %v3801
    %v4418 = vpack.c.b16 %v3806, %v3802
    %v4419 = vpack.c.b16 %v3811, %v3807
    %v4420 = vpack.c.b16 %v3812, %v3808
    %v4421 = vpack.c.b16 %v3813, %v3809
    %v4422 = vpack.c.b16 %v3814, %v3810
    %v4423 = vpack.c.b16 %v3819, %v3815
    %v4424 = vpack.c.b16 %v3820, %v3816
    %v4425 = vpack.c.b16 %v3821, %v3817
    %v4426 = vpack.c.b16 %v3822, %v3818
    %v4427 = vpack.c.b16 %v3827, %v3823
    %v4428 = vpack.c.b16 %v3828, %v3824
    %v4429 = vpack.c.b16 %v3829, %v3825
    %v4430 = vpack.c.b16 %v3830, %v3826
    %v4431 = vpack.c.b16 %v3835, %v3831
    %v4432 = vpack.c.b16 %v3836, %v3832
    %v4433 = vpack.c.b16 %v3837, %v3833
    %v4434 = vpack.c.b16 %v3838, %v3834
    %v4435 = vpack.c.b16 %v3843, %v3839
    %v4436 = vpack.c.b16 %v3844, %v3840
    %v4437 = vpack.c.b16 %v3845, %v3841
    %v4438 = vpack.c.b16 %v3846, %v3842
    %v4439 = vpack.c.b16 %v3851, %v3847
    %v4440 = vpack.c.b16 %v3852, %v3848
    %v4441 = vpack.c.b16 %v3853, %v3849
    %v4442 = vpack.c.b16 %v3854, %v3850
    %v4443 = vpack.c.b16 %v3859, %v3855
    %v4444 = vpack.c.b16 %v3860, %v3856
    %v4445 = vpack.c.b16 %v3861, %v3857
    %v4446 = vpack.c.b16 %v3862, %v3858
    %v4447 = vpack.c.b16 %v3867, %v3863
    %v4448 = vpack.c.b16 %v3868, %v3864
    %v4449 = vpack.c.b16 %v3869, %v3865
    %v4450 = vpack.c.b16 %v3870, %v3866
    %v4451 = vpack.c.b16 %v3875, %v3871
    %v4452 = vpack.c.b16 %v3876, %v3872
    %v4453 = vpack.c.b16 %v3877, %v3873
    %v4454 = vpack.c.b16 %v3878, %v3874
    %v4455 = vpack.c.b16 %v3883, %v3879
    %v4456 = vpack.c.b16 %v3884, %v3880
    %v4457 = vpack.c.b16 %v3885, %v3881
    %v4458 = vpack.c.b16 %v3886, %v3882
    %v4459 = vpack.c.b16 %v3891, %v3887
    %v4460 = vpack.c.b16 %v3892, %v3888
    %v4461 = vpack.c.b16 %v3893, %v3889
    %v4462 = vpack.c.b16 %v3894, %v3890
    %v4463 = vpack.c.b16 %v3899, %v3895
    %v4464 = vpack.c.b16 %v3900, %v3896
    %v4465 = vpack.c.b16 %v3901, %v3897
    %v4466 = vpack.c.b16 %v3902, %v3898
    %v4467 = vpack.c.b16 %v3907, %v3903
    %v4468 = vpack.c.b16 %v3908, %v3904
    %v4469 = vpack.c.b16 %v3909, %v3905
    %v4470 = vpack.c.b16 %v3910, %v3906
    %v4471 = vpack.c.b16 %v3915, %v3911
    %v4472 = vpack.c.b16 %v3916, %v3912
    %v4473 = vpack.c.b16 %v3917, %v3913
    %v4474 = vpack.c.b16 %v3918, %v3914
    %v4475 = vpack.c.b16 %v3923, %v3919
    %v4476 = vpack.c.b16 %v3924, %v3920
    %v4477 = vpack.c.b16 %v3925, %v3921
    %v4478 = vpack.c.b16 %v3926, %v3922
    %v4479 = vpack.c.b16 %v3931, %v3927
    %v4480 = vpack.c.b16 %v3932, %v3928
    %v4481 = vpack.c.b16 %v3933, %v3929
    %v4482 = vpack.c.b16 %v3934, %v3930
    %v4483 = vpack.c.b16 %v3939, %v3935
    %v4484 = vpack.c.b16 %v3940, %v3936
    %v4485 = vpack.c.b16 %v3941, %v3937
    %v4486 = vpack.c.b16 %v3942, %v3938
    %v4487 = vpack.c.b16 %v3947, %v3943
    %v4488 = vpack.c.b16 %v3948, %v3944
    %v4489 = vpack.c.b16 %v3949, %v3945
    %v4490 = vpack.c.b16 %v3950, %v3946
    %v4491 = vpack.c.b16 %v3955, %v3951
    %v4492 = vpack.c.b16 %v3956, %v3952
    %v4493 = vpack.c.b16 %v3957, %v3953
    %v4494 = vpack.c.b16 %v3958, %v3954
    %v4495 = vpack.c.b16 %v3963, %v3959
    %v4496 = vpack.c.b16 %v3964, %v3960
    %v4497 = vpack.c.b16 %v3965, %v3961
    %v4498 = vpack.c.b16 %v3966, %v3962
    %v4499 = vpack.c.b16 %v3971, %v3967
    %v4500 = vpack.c.b16 %v3972, %v3968
    %v4501 = vpack.c.b16 %v3973, %v3969
    %v4502 = vpack.c.b16 %v3974, %v3970
    %v4503 = vpack.c.b16 %v3979, %v3975
    %v4504 = vpack.c.b16 %v3980, %v3976
    %v4505 = vpack.c.b16 %v3981, %v3977
    %v4506 = vpack.c.b16 %v3982, %v3978
    %v4507 = vpack.c.b16 %v3987, %v3983
    %v4508 = vpack.c.b16 %v3988, %v3984
    %v4509 = vpack.c.b16 %v3989, %v3985
    %v4510 = vpack.c.b16 %v3990, %v3986
    %v4511 = vpack.c.b16 %v3995, %v3991
    %v4512 = vpack.c.b16 %v3996, %v3992
    %v4513 = vpack.c.b16 %v3997, %v3993
    %v4514 = vpack.c.b16 %v3998, %v3994
    %v4515 = vpack.c.b16 %v4003, %v3999
    %v4516 = vpack.c.b16 %v4004, %v4000
    %v4517 = vpack.c.b16 %v4005, %v4001
    %v4518 = vpack.c.b16 %v4006, %v4002
    %v4519 = vpack.c.b16 %v4011, %v4007
    %v4520 = vpack.c.b16 %v4012, %v4008
    %v4521 = vpack.c.b16 %v4013, %v4009
    %v4522 = vpack.c.b16 %v4014, %v4010
    %v4523 = vpack.c.b16 %v4019, %v4015
    %v4524 = vpack.c.b16 %v4020, %v4016
    %v4525 = vpack.c.b16 %v4021, %v4017
    %v4526 = vpack.c.b16 %v4022, %v4018
    %v4527 = vpack.c.b16 %v4027, %v4023
    %v4528 = vpack.c.b16 %v4028, %v4024
    %v4529 = vpack.c.b16 %v4029, %v4025
    %v4530 = vpack.c.b16 %v4030, %v4026
    %v4531 = vpack.c.b16 %v4035, %v4031
    %v4532 = vpack.c.b16 %v4036, %v4032
    %v4533 = vpack.c.b16 %v4037, %v4033
    %v4534 = vpack.c.b16 %v4038, %v4034
    %v4535 = vpack.c.b16 %v4043, %v4039
    %v4536 = vpack.c.b16 %v4044, %v4040
    %v4537 = vpack.c.b16 %v4045, %v4041
    %v4538 = vpack.c.b16 %v4046, %v4042
    %v4539 = vpack.c.b16 %v4051, %v4047
    %v4540 = vpack.c.b16 %v4052, %v4048
    %v4541 = vpack.c.b16 %v4053, %v4049
    %v4542 = vpack.c.b16 %v4054, %v4050
    %v4543 = vpack.c.b16 %v4059, %v4055
    %v4544 = vpack.c.b16 %v4060, %v4056
    %v4545 = vpack.c.b16 %v4061, %v4057
    %v4546 = vpack.c.b16 %v4062, %v4058
    %v4547 = vpack.c.b16 %v4067, %v4063
    %v4548 = vpack.c.b16 %v4068, %v4064
    %v4549 = vpack.c.b16 %v4069, %v4065
    %v4550 = vpack.c.b16 %v4070, %v4066
    %v4551 = vpack.c.b16 %v4075, %v4071
    %v4552 = vpack.c.b16 %v4076, %v4072
    %v4553 = vpack.c.b16 %v4077, %v4073
    %v4554 = vpack.c.b16 %v4078, %v4074
    %v4555 = vpack.c.b16 %v4083, %v4079
    %v4556 = vpack.c.b16 %v4084, %v4080
    %v4557 = vpack.c.b16 %v4085, %v4081
    %v4558 = vpack.c.b16 %v4086, %v4082
    %v4559 = vpack.c.b16 %v4091, %v4087
    %v4560 = vpack.c.b16 %v4092, %v4088
    %v4561 = vpack.c.b16 %v4093, %v4089
    %v4562 = vpack.c.b16 %v4094, %v4090
    %v4563 = vpack.c.b16 %v4099, %v4095
    %v4564 = vpack.c.b16 %v4100, %v4096
    %v4565 = vpack.c.b16 %v4101, %v4097
    %v4566 = vpack.c.b16 %v4102, %v4098
    %v4567 = vpack.c.b16 %v4107, %v4103
    %v4568 = vpack.c.b16 %v4108, %v4104
    %v4569 = vpack.c.b16 %v4109, %v4105
    %v4570 = vpack.c.b16 %v4110, %v4106
    %v4571 = vpack.c.b16 %v4115, %v4111
    %v4572 = vpack.c.b16 %v4116, %v4112
    %v4573 = vpack.c.b16 %v4117, %v4113
    %v4574 = vpack.c.b16 %v4118, %v4114
    %v4575 = vpack.c.b16 %v4123, %v4119
    %v4576 = vpack.c.b16 %v4124, %v4120
    %v4577 = vpack.c.b16 %v4125, %v4121
    %v4578 = vpack.c.b16 %v4126, %v4122
    %v4579 = vpack.c.b16 %v4131, %v4127
    %v4580 = vpack.c.b16 %v4132, %v4128
    %v4581 = vpack.c.b16 %v4133, %v4129
    %v4582 = vpack.c.b16 %v4134, %v4130
    %v4583 = vpack.c.b16 %v4139, %v4135
    %v4584 = vpack.c.b16 %v4140, %v4136
    %v4585 = vpack.c.b16 %v4141, %v4137
    %v4586 = vpack.c.b16 %v4142, %v4138
    %v4587 = vpack.c.b16 %v4147, %v4143
    %v4588 = vpack.c.b16 %v4148, %v4144
    %v4589 = vpack.c.b16 %v4149, %v4145
    %v4590 = vpack.c.b16 %v4150, %v4146
    %v4591 = vpack.c.b16 %v4155, %v4151
    %v4592 = vpack.c.b16 %v4156, %v4152
    %v4593 = vpack.c.b16 %v4157, %v4153
    %v4594 = vpack.c.b16 %v4158, %v4154
    %v4595 = vpack.c.b16 %v4163, %v4159
    %v4596 = vpack.c.b16 %v4164, %v4160
    %v4597 = vpack.c.b16 %v4165, %v4161
    %v4598 = vpack.c.b16 %v4166, %v4162
    %v4599 = vpack.c.b16 %v4171, %v4167
    %v4600 = vpack.c.b16 %v4172, %v4168
    %v4601 = vpack.c.b16 %v4173, %v4169
    %v4602 = vpack.c.b16 %v4174, %v4170
    %v4603 = vpack.c.b16 %v4179, %v4175
    %v4604 = vpack.c.b16 %v4180, %v4176
    %v4605 = vpack.c.b16 %v4181, %v4177
    %v4606 = vpack.c.b16 %v4182, %v4178
    %v4607 = vpack.c.b16 %v4187, %v4183
    %v4608 = vpack.c.b16 %v4188, %v4184
    %v4609 = vpack.c.b16 %v4189, %v4185
    %v4610 = vpack.c.b16 %v4190, %v4186
    %v4611 = vpack.c.b16 %v4195, %v4191
    %v4612 = vpack.c.b16 %v4196, %v4192
    %v4613 = vpack.c.b16 %v4197, %v4193
    %v4614 = vpack.c.b16 %v4198, %v4194
    %v4615 = vpack.c.b16 %v4203, %v4199
    %v4616 = vpack.c.b16 %v4204, %v4200
    %v4617 = vpack.c.b16 %v4205, %v4201
    %v4618 = vpack.c.b16 %v4206, %v4202
    %v4619 = vpack.c.b16 %v4211, %v4207
    %v4620 = vpack.c.b16 %v4212, %v4208
    %v4621 = vpack.c.b16 %v4213, %v4209
    %v4622 = vpack.c.b16 %v4214, %v4210
    %v4623 = vpack.c.b16 %v4219, %v4215
    %v4624 = vpack.c.b16 %v4220, %v4216
    %v4625 = vpack.c.b16 %v4221, %v4217
    %v4626 = vpack.c.b16 %v4222, %v4218
    %v4627 = vpack.c.b16 %v4227, %v4223
    %v4628 = vpack.c.b16 %v4228, %v4224
    %v4629 = vpack.c.b16 %v4229, %v4225
    %v4630 = vpack.c.b16 %v4230, %v4226
    %v4631 = vpack.c.b16 %v4235, %v4231
    %v4632 = vpack.c.b16 %v4236, %v4232
    %v4633 = vpack.c.b16 %v4237, %v4233
    %v4634 = vpack.c.b16 %v4238, %v4234
    %v4635 = vpack.c.b16 %v4243, %v4239
    %v4636 = vpack.c.b16 %v4244, %v4240
    %v4637 = vpack.c.b16 %v4245, %v4241
    %v4638 = vpack.c.b16 %v4246, %v4242
    %v4639 = vpack.c.b16 %v4251, %v4247
    %v4640 = vpack.c.b16 %v4252, %v4248
    %v4641 = vpack.c.b16 %v4253, %v4249
    %v4642 = vpack.c.b16 %v4254, %v4250
    %v4643 = vpack.c.b16 %v4259, %v4255
    %v4644 = vpack.c.b16 %v4260, %v4256
    %v4645 = vpack.c.b16 %v4261, %v4257
    %v4646 = vpack.c.b16 %v4262, %v4258
    %v4647 = vpack.c.b16 %v4267, %v4263
    %v4648 = vpack.c.b16 %v4268, %v4264
    %v4649 = vpack.c.b16 %v4269, %v4265
    %v4650 = vpack.c.b16 %v4270, %v4266
    %v4651 = vpack.c.b16 %v4275, %v4271
    %v4652 = vpack.c.b16 %v4276, %v4272
    %v4653 = vpack.c.b16 %v4277, %v4273
    %v4654 = vpack.c.b16 %v4278, %v4274
    %v4655 = vpack.c.b16 %v4283, %v4279
    %v4656 = vpack.c.b16 %v4284, %v4280
    %v4657 = vpack.c.b16 %v4285, %v4281
    %v4658 = vpack.c.b16 %v4286, %v4282
    %v4659 = vpack.c.b16 %v4291, %v4287
    %v4660 = vpack.c.b16 %v4292, %v4288
    %v4661 = vpack.c.b16 %v4293, %v4289
    %v4662 = vpack.c.b16 %v4294, %v4290
    %v4663 = vpack.c.b16 %v4299, %v4295
    %v4664 = vpack.c.b16 %v4300, %v4296
    %v4665 = vpack.c.b16 %v4301, %v4297
    %v4666 = vpack.c.b16 %v4302, %v4298
    %v4667 = vpack.c.b16 %v4307, %v4303
    %v4668 = vpack.c.b16 %v4308, %v4304
    %v4669 = vpack.c.b16 %v4309, %v4305
    %v4670 = vpack.c.b16 %v4310, %v4306
    %v4671 = vpack.c.b16 %v4315, %v4311
    %v4672 = vpack.c.b16 %v4316, %v4312
    %v4673 = vpack.c.b16 %v4317, %v4313
    %v4674 = vpack.c.b16 %v4318, %v4314
    %v4675 = vpack.c.b16 %v4323, %v4319
    %v4676 = vpack.c.b16 %v4324, %v4320
    %v4677 = vpack.c.b16 %v4325, %v4321
    %v4678 = vpack.c.b16 %v4326, %v4322
    %v4679 = vpack.c.b16 %v4331, %v4327
    %v4680 = vpack.c.b16 %v4332, %v4328
    %v4681 = vpack.c.b16 %v4333, %v4329
    %v4682 = vpack.c.b16 %v4334, %v4330
    %v4683 = vpack.c.b16 %v4339, %v4335
    %v4684 = vpack.c.b16 %v4340, %v4336
    %v4685 = vpack.c.b16 %v4341, %v4337
    %v4686 = vpack.c.b16 %v4342, %v4338
    %v4687 = vpack.c.b16 %v4347, %v4343
    %v4688 = vpack.c.b16 %v4348, %v4344
    %v4689 = vpack.c.b16 %v4349, %v4345
    %v4690 = vpack.c.b16 %v4350, %v4346
    %v4691 = vpack.c.b16 %v4355, %v4351
    %v4692 = vpack.c.b16 %v4356, %v4352
    %v4693 = vpack.c.b16 %v4357, %v4353
    %v4694 = vpack.c.b16 %v4358, %v4354
    %v5031 = vsel %vm2238, %v2657, 0
    %v5033 = vsel %vm2238, %v2661, 0
    %v5035 = vsel %vm2238, %v2665, 0
    %v5037 = vsel %vm2238, %v2669, 0
    %v5039 = vsel %vm2238, %v2673, 0
    %v5041 = vsel %vm2238, %v2677, 0
    %v5043 = vsel %vm2238, %v2681, 0
    %v5045 = vsel %vm2238, %v2685, 0
    %v5047 = vsel %vm2238, %v2689, 0
    %v5049 = vsel %vm2238, %v2693, 0
    %v5051 = vsel %vm2238, %v2697, 0
    %v5053 = vsel %vm2238, %v2701, 0
    %v5056 = vsel %vm2238, %v2705, 0
    %v5058 = vsel %vm2238, 0, 0
    %5060 = vmatprep.subr.bf16.mxu0 %v4388
    %5061 = vmatpush1.bf16.msra.mxu0 %v4387
    %5062 = vmatprep.subr.bf16.mxu0 %v4384
    %5063 = vmatpush1.bf16.msra.mxu0 %v4383
    %5064 = vmatprep.subr.bf16.mxu0 %v4380
    %5065 = vmatpush1.bf16.msra.mxu0 %v4379
    %5066 = vmatprep.subr.bf16.mxu0 %v4376
    %5067 = vmatpush1.bf16.msra.mxu0 %v4375
    %5068 = vmatprep.subr.bf16.mxu0 %v4372
    %5069 = vmatpush1.bf16.msra.mxu0 %v4371
    %5070 = vmatprep.subr.bf16.mxu0 %v4368
    %5071 = vmatpush1.bf16.msra.mxu0 %v4367
    %5072 = vmatprep.subr.bf16.mxu0 %v4364
    %5073 = vmatpush1.bf16.msra.mxu0 %v4363
    %5074 = vmatprep.subr.bf16.mxu0 %v4360
    %5075 = vmatpush1.bf16.msra.mxu0 %v4359
    %5076 = vmatprep.subr.bf16.mxu0 %v4420
    %5077 = vmatpush2.bf16.msra.mxu0 %v4419
    %5078 = vmatprep.subr.bf16.mxu0 %v4416
    %5079 = vmatpush2.bf16.msra.mxu0 %v4415
    %5080 = vmatprep.subr.bf16.mxu0 %v4412
    %5081 = vmatpush2.bf16.msra.mxu0 %v4411
    %5082 = vmatprep.subr.bf16.mxu0 %v4408
    %5083 = vmatpush2.bf16.msra.mxu0 %v4407
    %5084 = vmatprep.subr.bf16.mxu0 %v4404
    %5085 = vmatpush2.bf16.msra.mxu0 %v4403
    %5086 = vmatprep.subr.bf16.mxu0 %v4400
    %5087 = vmatpush2.bf16.msra.mxu0 %v4399
    %5088 = vmatprep.subr.bf16.mxu0 %v4396
    %5089 = vmatpush2.bf16.msra.mxu0 %v4395
    %5090 = vmatprep.subr.bf16.mxu0 %v4392
    %5091 = vmatpush2.bf16.msra.mxu0 %v4391
    %5092 = vmatprep.mubr.bf16.mxu0 0
    %5093 = vmatmul.mubr.bf16.gmra.mxu0 0
    %v5094 = vpop.f32.mrf.mxu0
    %v5095 = vadd.f32 0.0, %v5094
    %v5096 = vpop.f32.mrf.mxu0
    %v5097 = vadd.f32 0.0, %v5096
    %v5098 = vpop.f32.mrf.mxu0
    %v5099 = vadd.f32 0.0, %v5098
    %v5100 = vpop.f32.mrf.mxu0
    %v5101 = vadd.f32 0.0, %v5100
    %5102 = vmatprep.mubr.bf16.mxu0 %v2651
    %5103 = vmatmul.mubr.bf16.gmra.mxu0 %v2650
    %v5104 = vpop.f32.mrf.mxu0
    %v5105 = vadd.f32 0.0, %v5104
    %v5106 = vpop.f32.mrf.mxu0
    %v5107 = vadd.f32 0.0, %v5106
    %v5108 = vpop.f32.mrf.mxu0
    %v5109 = vadd.f32 0.0, %v5108
    %v5110 = vpop.f32.mrf.mxu0
    %v5111 = vadd.f32 0.0, %v5110
    %5112 = vmatprep.mubr.bf16.mxu0 %v2655
    %5113 = vmatmul.mubr.bf16.gmra.mxu0 %v2654
    %v5114 = vpop.f32.mrf.mxu0
    %v5115 = vadd.f32 0.0, %v5114
    %v5116 = vpop.f32.mrf.mxu0
    %v5117 = vadd.f32 0.0, %v5116
    %v5118 = vpop.f32.mrf.mxu0
    %v5119 = vadd.f32 0.0, %v5118
    %v5120 = vpop.f32.mrf.mxu0
    %v5121 = vadd.f32 0.0, %v5120
    %5122 = vmatprep.mubr.bf16.mxu0 %v2659
    %5123 = vmatmul.mubr.bf16.gmra.mxu0 %v2658
    %v5124 = vpop.f32.mrf.mxu0
    %v5125 = vadd.f32 0.0, %v5124
    %v5126 = vpop.f32.mrf.mxu0
    %v5127 = vadd.f32 0.0, %v5126
    %v5128 = vpop.f32.mrf.mxu0
    %v5129 = vadd.f32 0.0, %v5128
    %v5130 = vpop.f32.mrf.mxu0
    %v5131 = vadd.f32 0.0, %v5130
    %5132 = vmatprep.mubr.bf16.mxu0 %v2663
    %5133 = vmatmul.mubr.bf16.gmra.mxu0 %v2662
    %v5134 = vpop.f32.mrf.mxu0
    %v5135 = vadd.f32 0.0, %v5134
    %v5136 = vpop.f32.mrf.mxu0
    %v5137 = vadd.f32 0.0, %v5136
    %v5138 = vpop.f32.mrf.mxu0
    %v5139 = vadd.f32 0.0, %v5138
    %v5140 = vpop.f32.mrf.mxu0
    %v5141 = vadd.f32 0.0, %v5140
    %5142 = vmatprep.mubr.bf16.mxu0 %v2667
    %5143 = vmatmul.mubr.bf16.gmra.mxu0 %v2666
    %v5144 = vpop.f32.mrf.mxu0
    %v5145 = vadd.f32 0.0, %v5144
    %v5146 = vpop.f32.mrf.mxu0
    %v5147 = vadd.f32 0.0, %v5146
    %v5148 = vpop.f32.mrf.mxu0
    %v5149 = vadd.f32 0.0, %v5148
    %v5150 = vpop.f32.mrf.mxu0
    %v5151 = vadd.f32 0.0, %v5150
    %5152 = vmatprep.mubr.bf16.mxu0 %v2671
    %5153 = vmatmul.mubr.bf16.gmra.mxu0 %v2670
    %v5154 = vpop.f32.mrf.mxu0
    %v5155 = vadd.f32 0.0, %v5154
    %v5156 = vpop.f32.mrf.mxu0
    %v5157 = vadd.f32 0.0, %v5156
    %v5158 = vpop.f32.mrf.mxu0
    %v5159 = vadd.f32 0.0, %v5158
    %v5160 = vpop.f32.mrf.mxu0
    %v5161 = vadd.f32 0.0, %v5160
    %5162 = vmatprep.mubr.bf16.mxu0 %v2675
    %5163 = vmatmul.mubr.bf16.gmra.mxu0 %v2674
    %v5164 = vpop.f32.mrf.mxu0
    %v5165 = vadd.f32 0.0, %v5164
    %v5166 = vpop.f32.mrf.mxu0
    %v5167 = vadd.f32 0.0, %v5166
    %v5168 = vpop.f32.mrf.mxu0
    %v5169 = vadd.f32 0.0, %v5168
    %v5170 = vpop.f32.mrf.mxu0
    %v5171 = vadd.f32 0.0, %v5170
    %5172 = vmatprep.mubr.bf16.mxu0 %v2679
    %5173 = vmatmul.mubr.bf16.gmra.mxu0 %v2678
    %v5174 = vpop.f32.mrf.mxu0
    %v5175 = vadd.f32 0.0, %v5174
    %v5176 = vpop.f32.mrf.mxu0
    %v5177 = vadd.f32 0.0, %v5176
    %v5178 = vpop.f32.mrf.mxu0
    %v5179 = vadd.f32 0.0, %v5178
    %v5180 = vpop.f32.mrf.mxu0
    %v5181 = vadd.f32 0.0, %v5180
    %5182 = vmatprep.mubr.bf16.mxu0 %v2683
    %5183 = vmatmul.mubr.bf16.gmra.mxu0 %v2682
    %v5184 = vpop.f32.mrf.mxu0
    %v5185 = vadd.f32 0.0, %v5184
    %v5186 = vpop.f32.mrf.mxu0
    %v5187 = vadd.f32 0.0, %v5186
    %v5188 = vpop.f32.mrf.mxu0
    %v5189 = vadd.f32 0.0, %v5188
    %v5190 = vpop.f32.mrf.mxu0
    %v5191 = vadd.f32 0.0, %v5190
    %5192 = vmatprep.mubr.bf16.mxu0 %v2687
    %5193 = vmatmul.mubr.bf16.gmra.mxu0 %v2686
    %v5194 = vpop.f32.mrf.mxu0
    %v5195 = vadd.f32 0.0, %v5194
    %v5196 = vpop.f32.mrf.mxu0
    %v5197 = vadd.f32 0.0, %v5196
    %v5198 = vpop.f32.mrf.mxu0
    %v5199 = vadd.f32 0.0, %v5198
    %v5200 = vpop.f32.mrf.mxu0
    %v5201 = vadd.f32 0.0, %v5200
    %5202 = vmatprep.mubr.bf16.mxu0 %v2691
    %5203 = vmatmul.mubr.bf16.gmra.mxu0 %v2690
    %v5204 = vpop.f32.mrf.mxu0
    %v5205 = vadd.f32 0.0, %v5204
    %v5206 = vpop.f32.mrf.mxu0
    %v5207 = vadd.f32 0.0, %v5206
    %v5208 = vpop.f32.mrf.mxu0
    %v5209 = vadd.f32 0.0, %v5208
    %v5210 = vpop.f32.mrf.mxu0
    %v5211 = vadd.f32 0.0, %v5210
    %5212 = vmatprep.mubr.bf16.mxu0 %v2695
    %5213 = vmatmul.mubr.bf16.gmra.mxu0 %v2694
    %v5214 = vpop.f32.mrf.mxu0
    %v5215 = vadd.f32 0.0, %v5214
    %v5216 = vpop.f32.mrf.mxu0
    %v5217 = vadd.f32 0.0, %v5216
    %v5218 = vpop.f32.mrf.mxu0
    %v5219 = vadd.f32 0.0, %v5218
    %v5220 = vpop.f32.mrf.mxu0
    %v5221 = vadd.f32 0.0, %v5220
    %5222 = vmatprep.mubr.bf16.mxu0 %v2699
    %5223 = vmatmul.mubr.bf16.gmra.mxu0 %v2698
    %v5224 = vpop.f32.mrf.mxu0
    %v5225 = vadd.f32 0.0, %v5224
    %v5226 = vpop.f32.mrf.mxu0
    %v5227 = vadd.f32 0.0, %v5226
    %v5228 = vpop.f32.mrf.mxu0
    %v5229 = vadd.f32 0.0, %v5228
    %v5230 = vpop.f32.mrf.mxu0
    %v5231 = vadd.f32 0.0, %v5230
    %5232 = vdwg.mxu0
    %5233 = vmatprep.subr.bf16.mxu0 %v4452
    %5234 = vmatpush1.bf16.msra.mxu0 %v4451
    %5235 = vmatprep.subr.bf16.mxu0 %v4448
    %5236 = vmatpush1.bf16.msra.mxu0 %v4447
    %5237 = vmatprep.subr.bf16.mxu0 %v4444
    %5238 = vmatpush1.bf16.msra.mxu0 %v4443
    %5239 = vmatprep.subr.bf16.mxu0 %v4440
    %5240 = vmatpush1.bf16.msra.mxu0 %v4439
    %5241 = vmatprep.subr.bf16.mxu0 %v4436
    %5242 = vmatpush1.bf16.msra.mxu0 %v4435
    %5243 = vmatprep.subr.bf16.mxu0 %v4432
    %5244 = vmatpush1.bf16.msra.mxu0 %v4431
    %5245 = vmatprep.subr.bf16.mxu0 %v4428
    %5246 = vmatpush1.bf16.msra.mxu0 %v4427
    %5247 = vmatprep.subr.bf16.mxu0 %v4424
    %5248 = vmatpush1.bf16.msra.mxu0 %v4423
    %5249 = vmatprep.subr.bf16.mxu0 %v4484
    %5250 = vmatpush2.bf16.msra.mxu0 %v4483
    %5251 = vmatprep.subr.bf16.mxu0 %v4480
    %5252 = vmatpush2.bf16.msra.mxu0 %v4479
    %5253 = vmatprep.subr.bf16.mxu0 %v4476
    %5254 = vmatpush2.bf16.msra.mxu0 %v4475
    %5255 = vmatprep.subr.bf16.mxu0 %v4472
    %5256 = vmatpush2.bf16.msra.mxu0 %v4471
    %5257 = vmatprep.subr.bf16.mxu0 %v4468
    %5258 = vmatpush2.bf16.msra.mxu0 %v4467
    %5259 = vmatprep.subr.bf16.mxu0 %v4464
    %5260 = vmatpush2.bf16.msra.mxu0 %v4463
    %5261 = vmatprep.subr.bf16.mxu0 %v4460
    %5262 = vmatpush2.bf16.msra.mxu0 %v4459
    %5263 = vmatprep.subr.bf16.mxu0 %v4456
    %5264 = vmatpush2.bf16.msra.mxu0 %v4455
    %5265 = vmatprep.mubr.bf16.mxu0 %v2961
    %5266 = vmatmul.mubr.bf16.gmra.mxu0 0
    %v5267 = vpop.f32.mrf.mxu0
    %v5268 = vadd.f32 %v5095, %v5267
    %v5269 = vpop.f32.mrf.mxu0
    %v5270 = vadd.f32 %v5097, %v5269
    %v5271 = vpop.f32.mrf.mxu0
    %v5272 = vadd.f32 %v5099, %v5271
    %v5273 = vpop.f32.mrf.mxu0
    %v5274 = vadd.f32 %v5101, %v5273
    %5275 = vmatprep.mubr.bf16.mxu0 %v2965
    %5276 = vmatmul.mubr.bf16.gmra.mxu0 %v2652
    %v5277 = vpop.f32.mrf.mxu0
    %v5278 = vadd.f32 %v5105, %v5277
    %v5279 = vpop.f32.mrf.mxu0
    %v5280 = vadd.f32 %v5107, %v5279
    %v5281 = vpop.f32.mrf.mxu0
    %v5282 = vadd.f32 %v5109, %v5281
    %v5283 = vpop.f32.mrf.mxu0
    %v5284 = vadd.f32 %v5111, %v5283
    %5285 = vmatprep.mubr.bf16.mxu0 %v2969
    %5286 = vmatmul.mubr.bf16.gmra.mxu0 %v2656
    %v5287 = vpop.f32.mrf.mxu0
    %v5288 = vadd.f32 %v5115, %v5287
    %v5289 = vpop.f32.mrf.mxu0
    %v5290 = vadd.f32 %v5117, %v5289
    %v5291 = vpop.f32.mrf.mxu0
    %v5292 = vadd.f32 %v5119, %v5291
    %v5293 = vpop.f32.mrf.mxu0
    %v5294 = vadd.f32 %v5121, %v5293
    %5295 = vmatprep.mubr.bf16.mxu0 %v2973
    %5296 = vmatmul.mubr.bf16.gmra.mxu0 %v2660
    %v5297 = vpop.f32.mrf.mxu0
    %v5298 = vadd.f32 %v5125, %v5297
    %v5299 = vpop.f32.mrf.mxu0
    %v5300 = vadd.f32 %v5127, %v5299
    %v5301 = vpop.f32.mrf.mxu0
    %v5302 = vadd.f32 %v5129, %v5301
    %v5303 = vpop.f32.mrf.mxu0
    %v5304 = vadd.f32 %v5131, %v5303
    %5305 = vmatprep.mubr.bf16.mxu0 %v2977
    %5306 = vmatmul.mubr.bf16.gmra.mxu0 %v2664
    %v5307 = vpop.f32.mrf.mxu0
    %v5308 = vadd.f32 %v5135, %v5307
    %v5309 = vpop.f32.mrf.mxu0
    %v5310 = vadd.f32 %v5137, %v5309
    %v5311 = vpop.f32.mrf.mxu0
    %v5312 = vadd.f32 %v5139, %v5311
    %v5313 = vpop.f32.mrf.mxu0
    %v5314 = vadd.f32 %v5141, %v5313
    %5315 = vmatprep.mubr.bf16.mxu0 %v2981
    %5316 = vmatmul.mubr.bf16.gmra.mxu0 %v2668
    %v5317 = vpop.f32.mrf.mxu0
    %v5318 = vadd.f32 %v5145, %v5317
    %v5319 = vpop.f32.mrf.mxu0
    %v5320 = vadd.f32 %v5147, %v5319
    %v5321 = vpop.f32.mrf.mxu0
    %v5322 = vadd.f32 %v5149, %v5321
    %v5323 = vpop.f32.mrf.mxu0
    %v5324 = vadd.f32 %v5151, %v5323
    %5325 = vmatprep.mubr.bf16.mxu0 %v2985
    %5326 = vmatmul.mubr.bf16.gmra.mxu0 %v2672
    %v5327 = vpop.f32.mrf.mxu0
    %v5328 = vadd.f32 %v5155, %v5327
    %v5329 = vpop.f32.mrf.mxu0
    %v5330 = vadd.f32 %v5157, %v5329
    %v5331 = vpop.f32.mrf.mxu0
    %v5332 = vadd.f32 %v5159, %v5331
    %v5333 = vpop.f32.mrf.mxu0
    %v5334 = vadd.f32 %v5161, %v5333
    %5335 = vmatprep.mubr.bf16.mxu0 %v2989
    %5336 = vmatmul.mubr.bf16.gmra.mxu0 %v2676
    %v5337 = vpop.f32.mrf.mxu0
    %v5338 = vadd.f32 %v5165, %v5337
    %v5339 = vpop.f32.mrf.mxu0
    %v5340 = vadd.f32 %v5167, %v5339
    %v5341 = vpop.f32.mrf.mxu0
    %v5342 = vadd.f32 %v5169, %v5341
    %v5343 = vpop.f32.mrf.mxu0
    %v5344 = vadd.f32 %v5171, %v5343
    %5345 = vmatprep.mubr.bf16.mxu0 %v2993
    %5346 = vmatmul.mubr.bf16.gmra.mxu0 %v2680
    %v5347 = vpop.f32.mrf.mxu0
    %v5348 = vadd.f32 %v5175, %v5347
    %v5349 = vpop.f32.mrf.mxu0
    %v5350 = vadd.f32 %v5177, %v5349
    %v5351 = vpop.f32.mrf.mxu0
    %v5352 = vadd.f32 %v5179, %v5351
    %v5353 = vpop.f32.mrf.mxu0
    %v5354 = vadd.f32 %v5181, %v5353
    %5355 = vmatprep.mubr.bf16.mxu0 %v2997
    %5356 = vmatmul.mubr.bf16.gmra.mxu0 %v2684
    %v5357 = vpop.f32.mrf.mxu0
    %v5358 = vadd.f32 %v5185, %v5357
    %v5359 = vpop.f32.mrf.mxu0
    %v5360 = vadd.f32 %v5187, %v5359
    %v5361 = vpop.f32.mrf.mxu0
    %v5362 = vadd.f32 %v5189, %v5361
    %v5363 = vpop.f32.mrf.mxu0
    %v5364 = vadd.f32 %v5191, %v5363
    %5365 = vmatprep.mubr.bf16.mxu0 %v3001
    %5366 = vmatmul.mubr.bf16.gmra.mxu0 %v2688
    %v5367 = vpop.f32.mrf.mxu0
    %v5368 = vadd.f32 %v5195, %v5367
    %v5369 = vpop.f32.mrf.mxu0
    %v5370 = vadd.f32 %v5197, %v5369
    %v5371 = vpop.f32.mrf.mxu0
    %v5372 = vadd.f32 %v5199, %v5371
    %v5373 = vpop.f32.mrf.mxu0
    %v5374 = vadd.f32 %v5201, %v5373
    %5375 = vmatprep.mubr.bf16.mxu0 %v3005
    %5376 = vmatmul.mubr.bf16.gmra.mxu0 %v2692
    %v5377 = vpop.f32.mrf.mxu0
    %v5378 = vadd.f32 %v5205, %v5377
    %v5379 = vpop.f32.mrf.mxu0
    %v5380 = vadd.f32 %v5207, %v5379
    %v5381 = vpop.f32.mrf.mxu0
    %v5382 = vadd.f32 %v5209, %v5381
    %v5383 = vpop.f32.mrf.mxu0
    %v5384 = vadd.f32 %v5211, %v5383
    %5385 = vmatprep.mubr.bf16.mxu0 %v3009
    %5386 = vmatmul.mubr.bf16.gmra.mxu0 %v2696
    %v5387 = vpop.f32.mrf.mxu0
    %v5388 = vadd.f32 %v5215, %v5387
    %v5389 = vpop.f32.mrf.mxu0
    %v5390 = vadd.f32 %v5217, %v5389
    %v5391 = vpop.f32.mrf.mxu0
    %v5392 = vadd.f32 %v5219, %v5391
    %v5393 = vpop.f32.mrf.mxu0
    %v5394 = vadd.f32 %v5221, %v5393
    %5395 = vmatprep.mubr.bf16.mxu0 %v3013
    %5396 = vmatmul.mubr.bf16.gmra.mxu0 %v2700
    %v5397 = vpop.f32.mrf.mxu0
    %v5398 = vadd.f32 %v5225, %v5397
    %v5399 = vpop.f32.mrf.mxu0
    %v5400 = vadd.f32 %v5227, %v5399
    %v5401 = vpop.f32.mrf.mxu0
    %v5402 = vadd.f32 %v5229, %v5401
    %v5403 = vpop.f32.mrf.mxu0
    %v5404 = vadd.f32 %v5231, %v5403
    %5405 = vdwg.mxu0
    %5406 = vmatprep.subr.bf16.mxu0 %v4516
    %5407 = vmatpush1.bf16.msra.mxu0 %v4515
    %5408 = vmatprep.subr.bf16.mxu0 %v4512
    %5409 = vmatpush1.bf16.msra.mxu0 %v4511
    %5410 = vmatprep.subr.bf16.mxu0 %v4508
    %5411 = vmatpush1.bf16.msra.mxu0 %v4507
    %5412 = vmatprep.subr.bf16.mxu0 %v4504
    %5413 = vmatpush1.bf16.msra.mxu0 %v4503
    %5414 = vmatprep.subr.bf16.mxu0 %v4500
    %5415 = vmatpush1.bf16.msra.mxu0 %v4499
    %5416 = vmatprep.subr.bf16.mxu0 %v4496
    %5417 = vmatpush1.bf16.msra.mxu0 %v4495
    %5418 = vmatprep.subr.bf16.mxu0 %v4492
    %5419 = vmatpush1.bf16.msra.mxu0 %v4491
    %5420 = vmatprep.subr.bf16.mxu0 %v4488
    %5421 = vmatpush1.bf16.msra.mxu0 %v4487
    %5422 = vmatprep.subr.bf16.mxu0 %v4548
    %5423 = vmatpush2.bf16.msra.mxu0 %v4547
    %5424 = vmatprep.subr.bf16.mxu0 %v4544
    %5425 = vmatpush2.bf16.msra.mxu0 %v4543
    %5426 = vmatprep.subr.bf16.mxu0 %v4540
    %5427 = vmatpush2.bf16.msra.mxu0 %v4539
    %5428 = vmatprep.subr.bf16.mxu0 %v4536
    %5429 = vmatpush2.bf16.msra.mxu0 %v4535
    %5430 = vmatprep.subr.bf16.mxu0 %v4532
    %5431 = vmatpush2.bf16.msra.mxu0 %v4531
    %5432 = vmatprep.subr.bf16.mxu0 %v4528
    %5433 = vmatpush2.bf16.msra.mxu0 %v4527
    %5434 = vmatprep.subr.bf16.mxu0 %v4524
    %5435 = vmatpush2.bf16.msra.mxu0 %v4523
    %5436 = vmatprep.subr.bf16.mxu0 %v4520
    %5437 = vmatpush2.bf16.msra.mxu0 %v4519
    %5438 = vmatprep.mubr.bf16.mxu0 %v2876
    %5439 = vmatmul.mubr.bf16.gmra.mxu0 %v2875
    %v5440 = vpop.f32.mrf.mxu0
    %v5441 = vadd.f32 %v5268, %v5440
    %v5442 = vpop.f32.mrf.mxu0
    %v5443 = vadd.f32 %v5270, %v5442
    %v5444 = vpop.f32.mrf.mxu0
    %v5445 = vadd.f32 %v5272, %v5444
    %v5446 = vpop.f32.mrf.mxu0
    %v5447 = vadd.f32 %v5274, %v5446
    %5448 = vmatprep.mubr.bf16.mxu0 %v2879
    %5449 = vmatmul.mubr.bf16.gmra.mxu0 %v2878
    %v5450 = vpop.f32.mrf.mxu0
    %v5451 = vadd.f32 %v5278, %v5450
    %v5452 = vpop.f32.mrf.mxu0
    %v5453 = vadd.f32 %v5280, %v5452
    %v5454 = vpop.f32.mrf.mxu0
    %v5455 = vadd.f32 %v5282, %v5454
    %v5456 = vpop.f32.mrf.mxu0
    %v5457 = vadd.f32 %v5284, %v5456
    %5458 = vmatprep.mubr.bf16.mxu0 %v2882
    %5459 = vmatmul.mubr.bf16.gmra.mxu0 %v2881
    %v5460 = vpop.f32.mrf.mxu0
    %v5461 = vadd.f32 %v5288, %v5460
    %v5462 = vpop.f32.mrf.mxu0
    %v5463 = vadd.f32 %v5290, %v5462
    %v5464 = vpop.f32.mrf.mxu0
    %v5465 = vadd.f32 %v5292, %v5464
    %v5466 = vpop.f32.mrf.mxu0
    %v5467 = vadd.f32 %v5294, %v5466
    %5468 = vmatprep.mubr.bf16.mxu0 %v2885
    %5469 = vmatmul.mubr.bf16.gmra.mxu0 %v2884
    %v5470 = vpop.f32.mrf.mxu0
    %v5471 = vadd.f32 %v5298, %v5470
    %v5472 = vpop.f32.mrf.mxu0
    %v5473 = vadd.f32 %v5300, %v5472
    %v5474 = vpop.f32.mrf.mxu0
    %v5475 = vadd.f32 %v5302, %v5474
    %v5476 = vpop.f32.mrf.mxu0
    %v5477 = vadd.f32 %v5304, %v5476
    %5478 = vmatprep.mubr.bf16.mxu0 %v2888
    %5479 = vmatmul.mubr.bf16.gmra.mxu0 %v2887
    %v5480 = vpop.f32.mrf.mxu0
    %v5481 = vadd.f32 %v5308, %v5480
    %v5482 = vpop.f32.mrf.mxu0
    %v5483 = vadd.f32 %v5310, %v5482
    %v5484 = vpop.f32.mrf.mxu0
    %v5485 = vadd.f32 %v5312, %v5484
    %v5486 = vpop.f32.mrf.mxu0
    %v5487 = vadd.f32 %v5314, %v5486
    %5488 = vmatprep.mubr.bf16.mxu0 %v2891
    %5489 = vmatmul.mubr.bf16.gmra.mxu0 %v2890
    %v5490 = vpop.f32.mrf.mxu0
    %v5491 = vadd.f32 %v5318, %v5490
    %v5492 = vpop.f32.mrf.mxu0
    %v5493 = vadd.f32 %v5320, %v5492
    %v5494 = vpop.f32.mrf.mxu0
    %v5495 = vadd.f32 %v5322, %v5494
    %v5496 = vpop.f32.mrf.mxu0
    %v5497 = vadd.f32 %v5324, %v5496
    %5498 = vmatprep.mubr.bf16.mxu0 %v2894
    %5499 = vmatmul.mubr.bf16.gmra.mxu0 %v2893
    %v5500 = vpop.f32.mrf.mxu0
    %v5501 = vadd.f32 %v5328, %v5500
    %v5502 = vpop.f32.mrf.mxu0
    %v5503 = vadd.f32 %v5330, %v5502
    %v5504 = vpop.f32.mrf.mxu0
    %v5505 = vadd.f32 %v5332, %v5504
    %v5506 = vpop.f32.mrf.mxu0
    %v5507 = vadd.f32 %v5334, %v5506
    %5508 = vmatprep.mubr.bf16.mxu0 %v2897
    %5509 = vmatmul.mubr.bf16.gmra.mxu0 %v2896
    %v5510 = vpop.f32.mrf.mxu0
    %v5511 = vadd.f32 %v5338, %v5510
    %v5512 = vpop.f32.mrf.mxu0
    %v5513 = vadd.f32 %v5340, %v5512
    %v5514 = vpop.f32.mrf.mxu0
    %v5515 = vadd.f32 %v5342, %v5514
    %v5516 = vpop.f32.mrf.mxu0
    %v5517 = vadd.f32 %v5344, %v5516
    %5518 = vmatprep.mubr.bf16.mxu0 %v2900
    %5519 = vmatmul.mubr.bf16.gmra.mxu0 %v2899
    %v5520 = vpop.f32.mrf.mxu0
    %v5521 = vadd.f32 %v5348, %v5520
    %v5522 = vpop.f32.mrf.mxu0
    %v5523 = vadd.f32 %v5350, %v5522
    %v5524 = vpop.f32.mrf.mxu0
    %v5525 = vadd.f32 %v5352, %v5524
    %v5526 = vpop.f32.mrf.mxu0
    %v5527 = vadd.f32 %v5354, %v5526
    %5528 = vmatprep.mubr.bf16.mxu0 %v2903
    %5529 = vmatmul.mubr.bf16.gmra.mxu0 %v2902
    %v5530 = vpop.f32.mrf.mxu0
    %v5531 = vadd.f32 %v5358, %v5530
    %v5532 = vpop.f32.mrf.mxu0
    %v5533 = vadd.f32 %v5360, %v5532
    %v5534 = vpop.f32.mrf.mxu0
    %v5535 = vadd.f32 %v5362, %v5534
    %v5536 = vpop.f32.mrf.mxu0
    %v5537 = vadd.f32 %v5364, %v5536
    %5538 = vmatprep.mubr.bf16.mxu0 %v2906
    %5539 = vmatmul.mubr.bf16.gmra.mxu0 %v2905
    %v5540 = vpop.f32.mrf.mxu0
    %v5541 = vadd.f32 %v5368, %v5540
    %v5542 = vpop.f32.mrf.mxu0
    %v5543 = vadd.f32 %v5370, %v5542
    %v5544 = vpop.f32.mrf.mxu0
    %v5545 = vadd.f32 %v5372, %v5544
    %v5546 = vpop.f32.mrf.mxu0
    %v5547 = vadd.f32 %v5374, %v5546
    %5548 = vmatprep.mubr.bf16.mxu0 %v2909
    %5549 = vmatmul.mubr.bf16.gmra.mxu0 %v2908
    %v5550 = vpop.f32.mrf.mxu0
    %v5551 = vadd.f32 %v5378, %v5550
    %v5552 = vpop.f32.mrf.mxu0
    %v5553 = vadd.f32 %v5380, %v5552
    %v5554 = vpop.f32.mrf.mxu0
    %v5555 = vadd.f32 %v5382, %v5554
    %v5556 = vpop.f32.mrf.mxu0
    %v5557 = vadd.f32 %v5384, %v5556
    %5558 = vmatprep.mubr.bf16.mxu0 %v2912
    %5559 = vmatmul.mubr.bf16.gmra.mxu0 %v2911
    %v5560 = vpop.f32.mrf.mxu0
    %v5561 = vadd.f32 %v5388, %v5560
    %v5562 = vpop.f32.mrf.mxu0
    %v5563 = vadd.f32 %v5390, %v5562
    %v5564 = vpop.f32.mrf.mxu0
    %v5565 = vadd.f32 %v5392, %v5564
    %v5566 = vpop.f32.mrf.mxu0
    %v5567 = vadd.f32 %v5394, %v5566
    %5568 = vmatprep.mubr.bf16.mxu0 %v2915
    %5569 = vmatmul.mubr.bf16.gmra.mxu0 %v2914
    %v5570 = vpop.f32.mrf.mxu0
    %v5571 = vadd.f32 %v5398, %v5570
    %v5572 = vpop.f32.mrf.mxu0
    %v5573 = vadd.f32 %v5400, %v5572
    %v5574 = vpop.f32.mrf.mxu0
    %v5575 = vadd.f32 %v5402, %v5574
    %v5576 = vpop.f32.mrf.mxu0
    %v5577 = vadd.f32 %v5404, %v5576
    %5578 = vdwg.mxu0
    %5579 = vmatprep.subr.bf16.mxu0 %v4580
    %5580 = vmatpush1.bf16.msra.mxu0 %v4579
    %5581 = vmatprep.subr.bf16.mxu0 %v4576
    %5582 = vmatpush1.bf16.msra.mxu0 %v4575
    %5583 = vmatprep.subr.bf16.mxu0 %v4572
    %5584 = vmatpush1.bf16.msra.mxu0 %v4571
    %5585 = vmatprep.subr.bf16.mxu0 %v4568
    %5586 = vmatpush1.bf16.msra.mxu0 %v4567
    %5587 = vmatprep.subr.bf16.mxu0 %v4564
    %5588 = vmatpush1.bf16.msra.mxu0 %v4563
    %5589 = vmatprep.subr.bf16.mxu0 %v4560
    %5590 = vmatpush1.bf16.msra.mxu0 %v4559
    %5591 = vmatprep.subr.bf16.mxu0 %v4556
    %5592 = vmatpush1.bf16.msra.mxu0 %v4555
    %5593 = vmatprep.subr.bf16.mxu0 %v4552
    %5594 = vmatpush1.bf16.msra.mxu0 %v4551
    %5595 = vmatprep.subr.bf16.mxu0 %v4612
    %5596 = vmatpush2.bf16.msra.mxu0 %v4611
    %5597 = vmatprep.subr.bf16.mxu0 %v4608
    %5598 = vmatpush2.bf16.msra.mxu0 %v4607
    %5599 = vmatprep.subr.bf16.mxu0 %v4604
    %5600 = vmatpush2.bf16.msra.mxu0 %v4603
    %5601 = vmatprep.subr.bf16.mxu0 %v4600
    %5602 = vmatpush2.bf16.msra.mxu0 %v4599
    %5603 = vmatprep.subr.bf16.mxu0 %v4596
    %5604 = vmatpush2.bf16.msra.mxu0 %v4595
    %5605 = vmatprep.subr.bf16.mxu0 %v4592
    %5606 = vmatpush2.bf16.msra.mxu0 %v4591
    %5607 = vmatprep.subr.bf16.mxu0 %v4588
    %5608 = vmatpush2.bf16.msra.mxu0 %v4587
    %5609 = vmatprep.subr.bf16.mxu0 %v4584
    %5610 = vmatpush2.bf16.msra.mxu0 %v4583
    %5611 = vmatprep.mubr.bf16.mxu0 %v2654
    %5612 = vmatmul.mubr.bf16.gmra.mxu0 %v2877
    %v5613 = vpop.f32.mrf.mxu0
    %v5614 = vadd.f32 %v5441, %v5613
    %v5615 = vpop.f32.mrf.mxu0
    %v5616 = vadd.f32 %v5443, %v5615
    %v5617 = vpop.f32.mrf.mxu0
    %v5618 = vadd.f32 %v5445, %v5617
    %v5619 = vpop.f32.mrf.mxu0
    %v5620 = vadd.f32 %v5447, %v5619
    %5621 = vmatprep.mubr.bf16.mxu0 %v2658
    %5622 = vmatmul.mubr.bf16.gmra.mxu0 %v2880
    %v5623 = vpop.f32.mrf.mxu0
    %v5624 = vadd.f32 %v5451, %v5623
    %v5625 = vpop.f32.mrf.mxu0
    %v5626 = vadd.f32 %v5453, %v5625
    %v5627 = vpop.f32.mrf.mxu0
    %v5628 = vadd.f32 %v5455, %v5627
    %v5629 = vpop.f32.mrf.mxu0
    %v5630 = vadd.f32 %v5457, %v5629
    %5631 = vmatprep.mubr.bf16.mxu0 %v2662
    %5632 = vmatmul.mubr.bf16.gmra.mxu0 %v2883
    %v5633 = vpop.f32.mrf.mxu0
    %v5634 = vadd.f32 %v5461, %v5633
    %v5635 = vpop.f32.mrf.mxu0
    %v5636 = vadd.f32 %v5463, %v5635
    %v5637 = vpop.f32.mrf.mxu0
    %v5638 = vadd.f32 %v5465, %v5637
    %v5639 = vpop.f32.mrf.mxu0
    %v5640 = vadd.f32 %v5467, %v5639
    %5641 = vmatprep.mubr.bf16.mxu0 %v2666
    %5642 = vmatmul.mubr.bf16.gmra.mxu0 %v2886
    %v5643 = vpop.f32.mrf.mxu0
    %v5644 = vadd.f32 %v5471, %v5643
    %v5645 = vpop.f32.mrf.mxu0
    %v5646 = vadd.f32 %v5473, %v5645
    %v5647 = vpop.f32.mrf.mxu0
    %v5648 = vadd.f32 %v5475, %v5647
    %v5649 = vpop.f32.mrf.mxu0
    %v5650 = vadd.f32 %v5477, %v5649
    %5651 = vmatprep.mubr.bf16.mxu0 %v2670
    %5652 = vmatmul.mubr.bf16.gmra.mxu0 %v2889
    %v5653 = vpop.f32.mrf.mxu0
    %v5654 = vadd.f32 %v5481, %v5653
    %v5655 = vpop.f32.mrf.mxu0
    %v5656 = vadd.f32 %v5483, %v5655
    %v5657 = vpop.f32.mrf.mxu0
    %v5658 = vadd.f32 %v5485, %v5657
    %v5659 = vpop.f32.mrf.mxu0
    %v5660 = vadd.f32 %v5487, %v5659
    %5661 = vmatprep.mubr.bf16.mxu0 %v2674
    %5662 = vmatmul.mubr.bf16.gmra.mxu0 %v2892
    %v5663 = vpop.f32.mrf.mxu0
    %v5664 = vadd.f32 %v5491, %v5663
    %v5665 = vpop.f32.mrf.mxu0
    %v5666 = vadd.f32 %v5493, %v5665
    %v5667 = vpop.f32.mrf.mxu0
    %v5668 = vadd.f32 %v5495, %v5667
    %v5669 = vpop.f32.mrf.mxu0
    %v5670 = vadd.f32 %v5497, %v5669
    %5671 = vmatprep.mubr.bf16.mxu0 %v2678
    %5672 = vmatmul.mubr.bf16.gmra.mxu0 %v2895
    %v5673 = vpop.f32.mrf.mxu0
    %v5674 = vadd.f32 %v5501, %v5673
    %v5675 = vpop.f32.mrf.mxu0
    %v5676 = vadd.f32 %v5503, %v5675
    %v5677 = vpop.f32.mrf.mxu0
    %v5678 = vadd.f32 %v5505, %v5677
    %v5679 = vpop.f32.mrf.mxu0
    %v5680 = vadd.f32 %v5507, %v5679
    %5681 = vmatprep.mubr.bf16.mxu0 %v2682
    %5682 = vmatmul.mubr.bf16.gmra.mxu0 %v2898
    %v5683 = vpop.f32.mrf.mxu0
    %v5684 = vadd.f32 %v5511, %v5683
    %v5685 = vpop.f32.mrf.mxu0
    %v5686 = vadd.f32 %v5513, %v5685
    %v5687 = vpop.f32.mrf.mxu0
    %v5688 = vadd.f32 %v5515, %v5687
    %v5689 = vpop.f32.mrf.mxu0
    %v5690 = vadd.f32 %v5517, %v5689
    %5691 = vmatprep.mubr.bf16.mxu0 %v2686
    %5692 = vmatmul.mubr.bf16.gmra.mxu0 %v2901
    %v5693 = vpop.f32.mrf.mxu0
    %v5694 = vadd.f32 %v5521, %v5693
    %v5695 = vpop.f32.mrf.mxu0
    %v5696 = vadd.f32 %v5523, %v5695
    %v5697 = vpop.f32.mrf.mxu0
    %v5698 = vadd.f32 %v5525, %v5697
    %v5699 = vpop.f32.mrf.mxu0
    %v5700 = vadd.f32 %v5527, %v5699
    %5701 = vmatprep.mubr.bf16.mxu0 %v2690
    %5702 = vmatmul.mubr.bf16.gmra.mxu0 %v2904
    %v5703 = vpop.f32.mrf.mxu0
    %v5704 = vadd.f32 %v5531, %v5703
    %v5705 = vpop.f32.mrf.mxu0
    %v5706 = vadd.f32 %v5533, %v5705
    %v5707 = vpop.f32.mrf.mxu0
    %v5708 = vadd.f32 %v5535, %v5707
    %v5709 = vpop.f32.mrf.mxu0
    %v5710 = vadd.f32 %v5537, %v5709
    %5711 = vmatprep.mubr.bf16.mxu0 %v2694
    %5712 = vmatmul.mubr.bf16.gmra.mxu0 %v2907
    %v5713 = vpop.f32.mrf.mxu0
    %v5714 = vadd.f32 %v5541, %v5713
    %v5715 = vpop.f32.mrf.mxu0
    %v5716 = vadd.f32 %v5543, %v5715
    %v5717 = vpop.f32.mrf.mxu0
    %v5718 = vadd.f32 %v5545, %v5717
    %v5719 = vpop.f32.mrf.mxu0
    %v5720 = vadd.f32 %v5547, %v5719
    %5721 = vmatprep.mubr.bf16.mxu0 %v2698
    %5722 = vmatmul.mubr.bf16.gmra.mxu0 %v2910
    %v5723 = vpop.f32.mrf.mxu0
    %v5724 = vadd.f32 %v5551, %v5723
    %v5725 = vpop.f32.mrf.mxu0
    %v5726 = vadd.f32 %v5553, %v5725
    %v5727 = vpop.f32.mrf.mxu0
    %v5728 = vadd.f32 %v5555, %v5727
    %v5729 = vpop.f32.mrf.mxu0
    %v5730 = vadd.f32 %v5557, %v5729
    %5731 = vmatprep.mubr.bf16.mxu0 %v2702
    %5732 = vmatmul.mubr.bf16.gmra.mxu0 %v2913
    %v5733 = vpop.f32.mrf.mxu0
    %v5734 = vadd.f32 %v5561, %v5733
    %v5735 = vpop.f32.mrf.mxu0
    %v5736 = vadd.f32 %v5563, %v5735
    %v5737 = vpop.f32.mrf.mxu0
    %v5738 = vadd.f32 %v5565, %v5737
    %v5739 = vpop.f32.mrf.mxu0
    %v5740 = vadd.f32 %v5567, %v5739
    %5741 = vmatprep.mubr.bf16.mxu0 0
    %5742 = vmatmul.mubr.bf16.gmra.mxu0 %v2916
    %v5743 = vpop.f32.mrf.mxu0
    %v5744 = vadd.f32 %v5571, %v5743
    %v5745 = vpop.f32.mrf.mxu0
    %v5746 = vadd.f32 %v5573, %v5745
    %v5747 = vpop.f32.mrf.mxu0
    %v5748 = vadd.f32 %v5575, %v5747
    %v5749 = vpop.f32.mrf.mxu0
    %v5750 = vadd.f32 %v5577, %v5749
    %5751 = vdwg.mxu0
    %5752 = vmatprep.subr.bf16.mxu0 %v4644
    %5753 = vmatpush1.bf16.msra.mxu0 %v4643
    %5754 = vmatprep.subr.bf16.mxu0 %v4640
    %5755 = vmatpush1.bf16.msra.mxu0 %v4639
    %5756 = vmatprep.subr.bf16.mxu0 %v4636
    %5757 = vmatpush1.bf16.msra.mxu0 %v4635
    %5758 = vmatprep.subr.bf16.mxu0 %v4632
    %5759 = vmatpush1.bf16.msra.mxu0 %v4631
    %5760 = vmatprep.subr.bf16.mxu0 %v4628
    %5761 = vmatpush1.bf16.msra.mxu0 %v4627
    %5762 = vmatprep.subr.bf16.mxu0 %v4624
    %5763 = vmatpush1.bf16.msra.mxu0 %v4623
    %5764 = vmatprep.subr.bf16.mxu0 %v4620
    %5765 = vmatpush1.bf16.msra.mxu0 %v4619
    %5766 = vmatprep.subr.bf16.mxu0 %v4616
    %5767 = vmatpush1.bf16.msra.mxu0 %v4615
    %5768 = vmatprep.subr.bf16.mxu0 %v4676
    %5769 = vmatpush2.bf16.msra.mxu0 %v4675
    %5770 = vmatprep.subr.bf16.mxu0 %v4672
    %5771 = vmatpush2.bf16.msra.mxu0 %v4671
    %5772 = vmatprep.subr.bf16.mxu0 %v4668
    %5773 = vmatpush2.bf16.msra.mxu0 %v4667
    %5774 = vmatprep.subr.bf16.mxu0 %v4664
    %5775 = vmatpush2.bf16.msra.mxu0 %v4663
    %5776 = vmatprep.subr.bf16.mxu0 %v4660
    %5777 = vmatpush2.bf16.msra.mxu0 %v4659
    %5778 = vmatprep.subr.bf16.mxu0 %v4656
    %5779 = vmatpush2.bf16.msra.mxu0 %v4655
    %5780 = vmatprep.subr.bf16.mxu0 %v4652
    %5781 = vmatpush2.bf16.msra.mxu0 %v4651
    %5782 = vmatprep.subr.bf16.mxu0 %v4648
    %5783 = vmatpush2.bf16.msra.mxu0 %v4647
    %5784 = vmatprep.mubr.bf16.mxu0 %v2656
    %5785 = vmatmul.mubr.bf16.gmra.mxu0 %v2655
    %v5786 = vpop.f32.mrf.mxu0
    %v5787 = vadd.f32 %v5614, %v5786
    %v5788 = vpop.f32.mrf.mxu0
    %v5789 = vadd.f32 %v5616, %v5788
    %v5790 = vpop.f32.mrf.mxu0
    %v5791 = vadd.f32 %v5618, %v5790
    %v5792 = vpop.f32.mrf.mxu0
    %v5793 = vadd.f32 %v5620, %v5792
    %5794 = vmatprep.mubr.bf16.mxu0 %v2660
    %5795 = vmatmul.mubr.bf16.gmra.mxu0 %v2659
    %v5796 = vpop.f32.mrf.mxu0
    %v5797 = vadd.f32 %v5624, %v5796
    %v5798 = vpop.f32.mrf.mxu0
    %v5799 = vadd.f32 %v5626, %v5798
    %v5800 = vpop.f32.mrf.mxu0
    %v5801 = vadd.f32 %v5628, %v5800
    %v5802 = vpop.f32.mrf.mxu0
    %v5803 = vadd.f32 %v5630, %v5802
    %5804 = vmatprep.mubr.bf16.mxu0 %v2664
    %5805 = vmatmul.mubr.bf16.gmra.mxu0 %v2663
    %v5806 = vpop.f32.mrf.mxu0
    %v5807 = vadd.f32 %v5634, %v5806
    %v5808 = vpop.f32.mrf.mxu0
    %v5809 = vadd.f32 %v5636, %v5808
    %v5810 = vpop.f32.mrf.mxu0
    %v5811 = vadd.f32 %v5638, %v5810
    %v5812 = vpop.f32.mrf.mxu0
    %v5813 = vadd.f32 %v5640, %v5812
    %5814 = vmatprep.mubr.bf16.mxu0 %v2668
    %5815 = vmatmul.mubr.bf16.gmra.mxu0 %v2667
    %v5816 = vpop.f32.mrf.mxu0
    %v5817 = vadd.f32 %v5644, %v5816
    %v5818 = vpop.f32.mrf.mxu0
    %v5819 = vadd.f32 %v5646, %v5818
    %v5820 = vpop.f32.mrf.mxu0
    %v5821 = vadd.f32 %v5648, %v5820
    %v5822 = vpop.f32.mrf.mxu0
    %v5823 = vadd.f32 %v5650, %v5822
    %5824 = vmatprep.mubr.bf16.mxu0 %v2672
    %5825 = vmatmul.mubr.bf16.gmra.mxu0 %v2671
    %v5826 = vpop.f32.mrf.mxu0
    %v5827 = vadd.f32 %v5654, %v5826
    %v5828 = vpop.f32.mrf.mxu0
    %v5829 = vadd.f32 %v5656, %v5828
    %v5830 = vpop.f32.mrf.mxu0
    %v5831 = vadd.f32 %v5658, %v5830
    %v5832 = vpop.f32.mrf.mxu0
    %v5833 = vadd.f32 %v5660, %v5832
    %5834 = vmatprep.mubr.bf16.mxu0 %v2676
    %5835 = vmatmul.mubr.bf16.gmra.mxu0 %v2675
    %v5836 = vpop.f32.mrf.mxu0
    %v5837 = vadd.f32 %v5664, %v5836
    %v5838 = vpop.f32.mrf.mxu0
    %v5839 = vadd.f32 %v5666, %v5838
    %v5840 = vpop.f32.mrf.mxu0
    %v5841 = vadd.f32 %v5668, %v5840
    %v5842 = vpop.f32.mrf.mxu0
    %v5843 = vadd.f32 %v5670, %v5842
    %5844 = vmatprep.mubr.bf16.mxu0 %v2680
    %5845 = vmatmul.mubr.bf16.gmra.mxu0 %v2679
    %v5846 = vpop.f32.mrf.mxu0
    %v5847 = vadd.f32 %v5674, %v5846
    %v5848 = vpop.f32.mrf.mxu0
    %v5849 = vadd.f32 %v5676, %v5848
    %v5850 = vpop.f32.mrf.mxu0
    %v5851 = vadd.f32 %v5678, %v5850
    %v5852 = vpop.f32.mrf.mxu0
    %v5853 = vadd.f32 %v5680, %v5852
    %5854 = vmatprep.mubr.bf16.mxu0 %v2684
    %5855 = vmatmul.mubr.bf16.gmra.mxu0 %v2683
    %v5856 = vpop.f32.mrf.mxu0
    %v5857 = vadd.f32 %v5684, %v5856
    %v5858 = vpop.f32.mrf.mxu0
    %v5859 = vadd.f32 %v5686, %v5858
    %v5860 = vpop.f32.mrf.mxu0
    %v5861 = vadd.f32 %v5688, %v5860
    %v5862 = vpop.f32.mrf.mxu0
    %v5863 = vadd.f32 %v5690, %v5862
    %5864 = vmatprep.mubr.bf16.mxu0 %v2688
    %5865 = vmatmul.mubr.bf16.gmra.mxu0 %v2687
    %v5866 = vpop.f32.mrf.mxu0
    %v5867 = vadd.f32 %v5694, %v5866
    %v5868 = vpop.f32.mrf.mxu0
    %v5869 = vadd.f32 %v5696, %v5868
    %v5870 = vpop.f32.mrf.mxu0
    %v5871 = vadd.f32 %v5698, %v5870
    %v5872 = vpop.f32.mrf.mxu0
    %v5873 = vadd.f32 %v5700, %v5872
    %5874 = vmatprep.mubr.bf16.mxu0 %v2692
    %5875 = vmatmul.mubr.bf16.gmra.mxu0 %v2691
    %v5876 = vpop.f32.mrf.mxu0
    %v5877 = vadd.f32 %v5704, %v5876
    %v5878 = vpop.f32.mrf.mxu0
    %v5879 = vadd.f32 %v5706, %v5878
    %v5880 = vpop.f32.mrf.mxu0
    %v5881 = vadd.f32 %v5708, %v5880
    %v5882 = vpop.f32.mrf.mxu0
    %v5883 = vadd.f32 %v5710, %v5882
    %5884 = vmatprep.mubr.bf16.mxu0 %v2696
    %5885 = vmatmul.mubr.bf16.gmra.mxu0 %v2695
    %v5886 = vpop.f32.mrf.mxu0
    %v5887 = vadd.f32 %v5714, %v5886
    %v5888 = vpop.f32.mrf.mxu0
    %v5889 = vadd.f32 %v5716, %v5888
    %v5890 = vpop.f32.mrf.mxu0
    %v5891 = vadd.f32 %v5718, %v5890
    %v5892 = vpop.f32.mrf.mxu0
    %v5893 = vadd.f32 %v5720, %v5892
    %5894 = vmatprep.mubr.bf16.mxu0 %v2700
    %5895 = vmatmul.mubr.bf16.gmra.mxu0 %v2699
    %v5896 = vpop.f32.mrf.mxu0
    %v5897 = vadd.f32 %v5724, %v5896
    %v5898 = vpop.f32.mrf.mxu0
    %v5899 = vadd.f32 %v5726, %v5898
    %v5900 = vpop.f32.mrf.mxu0
    %v5901 = vadd.f32 %v5728, %v5900
    %v5902 = vpop.f32.mrf.mxu0
    %v5903 = vadd.f32 %v5730, %v5902
    %5904 = vmatprep.mubr.bf16.mxu0 %v2704
    %5905 = vmatmul.mubr.bf16.gmra.mxu0 %v2703
    %v5906 = vpop.f32.mrf.mxu0
    %v5907 = vadd.f32 %v5734, %v5906
    %v5908 = vpop.f32.mrf.mxu0
    %v5909 = vadd.f32 %v5736, %v5908
    %v5910 = vpop.f32.mrf.mxu0
    %v5911 = vadd.f32 %v5738, %v5910
    %v5912 = vpop.f32.mrf.mxu0
    %v5913 = vadd.f32 %v5740, %v5912
    %5914 = vmatprep.mubr.bf16.mxu0 0
    %5915 = vmatmul.mubr.bf16.gmra.mxu0 0
    %v5916 = vpop.f32.mrf.mxu0
    %v5917 = vadd.f32 %v5744, %v5916
    %v5918 = vpop.f32.mrf.mxu0
    %v5919 = vadd.f32 %v5746, %v5918
    %v5920 = vpop.f32.mrf.mxu0
    %v5921 = vadd.f32 %v5748, %v5920
    %v5922 = vpop.f32.mrf.mxu0
    %v5923 = vadd.f32 %v5750, %v5922
    %5924 = vdwg.mxu0
    %5925 = vmatprep.subr.bf16.mxu0 0
    %5926 = vmatpush1.bf16.msra.mxu0 0
    %5927 = vmatprep.subr.bf16.mxu0 0
    %5928 = vmatpush1.bf16.msra.mxu0 0
    %5929 = vmatprep.subr.bf16.mxu0 0
    %5930 = vmatpush1.bf16.msra.mxu0 0
    %5931 = vmatprep.subr.bf16.mxu0 0
    %5932 = vmatpush1.bf16.msra.mxu0 0
    %5933 = vmatprep.subr.bf16.mxu0 %v4692
    %5934 = vmatpush1.bf16.msra.mxu0 %v4691
    %5935 = vmatprep.subr.bf16.mxu0 %v4688
    %5936 = vmatpush1.bf16.msra.mxu0 %v4687
    %5937 = vmatprep.subr.bf16.mxu0 %v4684
    %5938 = vmatpush1.bf16.msra.mxu0 %v4683
    %5939 = vmatprep.subr.bf16.mxu0 %v4680
    %5940 = vmatpush1.bf16.msra.mxu0 %v4679
    %5941 = vmatprep.subr.bf16.mxu0 0
    %5942 = vmatpush2.bf16.msra.mxu0 0
    %5943 = vmatprep.subr.bf16.mxu0 0
    %5944 = vmatpush2.bf16.msra.mxu0 0
    %5945 = vmatprep.subr.bf16.mxu0 0
    %5946 = vmatpush2.bf16.msra.mxu0 0
    %5947 = vmatprep.subr.bf16.mxu0 0
    %5948 = vmatpush2.bf16.msra.mxu0 0
    %5949 = vmatprep.subr.bf16.mxu0 0
    %5950 = vmatpush2.bf16.msra.mxu0 0
    %5951 = vmatprep.subr.bf16.mxu0 0
    %5952 = vmatpush2.bf16.msra.mxu0 0
    %5953 = vmatprep.subr.bf16.mxu0 0
    %5954 = vmatpush2.bf16.msra.mxu0 0
    %5955 = vmatprep.subr.bf16.mxu0 0
    %5956 = vmatpush2.bf16.msra.mxu0 0
    %5957 = vmatprep.mubr.bf16.mxu0 0
    %5958 = vmatmul.mubr.bf16.gmra.mxu0 %v5031
    %v5959 = vpop.f32.mrf.mxu0
    %v5960 = vadd.f32 %v5787, %v5959
    %v5961 = vpop.f32.mrf.mxu0
    %v5962 = vadd.f32 %v5789, %v5961
    %v5963 = vpop.f32.mrf.mxu0
    %v5964 = vadd.f32 %v5791, %v5963
    %v5965 = vpop.f32.mrf.mxu0
    %v5966 = vadd.f32 %v5793, %v5965
    %5967 = vmatprep.mubr.bf16.mxu0 0
    %5968 = vmatmul.mubr.bf16.gmra.mxu0 %v5033
    %v5969 = vpop.f32.mrf.mxu0
    %v5970 = vadd.f32 %v5797, %v5969
    %v5971 = vpop.f32.mrf.mxu0
    %v5972 = vadd.f32 %v5799, %v5971
    %v5973 = vpop.f32.mrf.mxu0
    %v5974 = vadd.f32 %v5801, %v5973
    %v5975 = vpop.f32.mrf.mxu0
    %v5976 = vadd.f32 %v5803, %v5975
    %5977 = vmatprep.mubr.bf16.mxu0 0
    %5978 = vmatmul.mubr.bf16.gmra.mxu0 %v5035
    %v5979 = vpop.f32.mrf.mxu0
    %v5980 = vadd.f32 %v5807, %v5979
    %v5981 = vpop.f32.mrf.mxu0
    %v5982 = vadd.f32 %v5809, %v5981
    %v5983 = vpop.f32.mrf.mxu0
    %v5984 = vadd.f32 %v5811, %v5983
    %v5985 = vpop.f32.mrf.mxu0
    %v5986 = vadd.f32 %v5813, %v5985
    %5987 = vmatprep.mubr.bf16.mxu0 0
    %5988 = vmatmul.mubr.bf16.gmra.mxu0 %v5037
    %v5989 = vpop.f32.mrf.mxu0
    %v5990 = vadd.f32 %v5817, %v5989
    %v5991 = vpop.f32.mrf.mxu0
    %v5992 = vadd.f32 %v5819, %v5991
    %v5993 = vpop.f32.mrf.mxu0
    %v5994 = vadd.f32 %v5821, %v5993
    %v5995 = vpop.f32.mrf.mxu0
    %v5996 = vadd.f32 %v5823, %v5995
    %5997 = vmatprep.mubr.bf16.mxu0 0
    %5998 = vmatmul.mubr.bf16.gmra.mxu0 %v5039
    %v5999 = vpop.f32.mrf.mxu0
    %v6000 = vadd.f32 %v5827, %v5999
    %v6001 = vpop.f32.mrf.mxu0
    %v6002 = vadd.f32 %v5829, %v6001
    %v6003 = vpop.f32.mrf.mxu0
    %v6004 = vadd.f32 %v5831, %v6003
    %v6005 = vpop.f32.mrf.mxu0
    %v6006 = vadd.f32 %v5833, %v6005
    %6007 = vmatprep.mubr.bf16.mxu0 0
    %6008 = vmatmul.mubr.bf16.gmra.mxu0 %v5041
    %v6009 = vpop.f32.mrf.mxu0
    %v6010 = vadd.f32 %v5837, %v6009
    %v6011 = vpop.f32.mrf.mxu0
    %v6012 = vadd.f32 %v5839, %v6011
    %v6013 = vpop.f32.mrf.mxu0
    %v6014 = vadd.f32 %v5841, %v6013
    %v6015 = vpop.f32.mrf.mxu0
    %v6016 = vadd.f32 %v5843, %v6015
    %6017 = vmatprep.mubr.bf16.mxu0 0
    %6018 = vmatmul.mubr.bf16.gmra.mxu0 %v5043
    %v6019 = vpop.f32.mrf.mxu0
    %v6020 = vadd.f32 %v5847, %v6019
    %v6021 = vpop.f32.mrf.mxu0
    %v6022 = vadd.f32 %v5849, %v6021
    %v6023 = vpop.f32.mrf.mxu0
    %v6024 = vadd.f32 %v5851, %v6023
    %v6025 = vpop.f32.mrf.mxu0
    %v6026 = vadd.f32 %v5853, %v6025
    %6027 = vmatprep.mubr.bf16.mxu0 0
    %6028 = vmatmul.mubr.bf16.gmra.mxu0 %v5045
    %v6029 = vpop.f32.mrf.mxu0
    %v6030 = vadd.f32 %v5857, %v6029
    %v6031 = vpop.f32.mrf.mxu0
    %v6032 = vadd.f32 %v5859, %v6031
    %v6033 = vpop.f32.mrf.mxu0
    %v6034 = vadd.f32 %v5861, %v6033
    %v6035 = vpop.f32.mrf.mxu0
    %v6036 = vadd.f32 %v5863, %v6035
    %6037 = vmatprep.mubr.bf16.mxu0 0
    %6038 = vmatmul.mubr.bf16.gmra.mxu0 %v5047
    %v6039 = vpop.f32.mrf.mxu0
    %v6040 = vadd.f32 %v5867, %v6039
    %v6041 = vpop.f32.mrf.mxu0
    %v6042 = vadd.f32 %v5869, %v6041
    %v6043 = vpop.f32.mrf.mxu0
    %v6044 = vadd.f32 %v5871, %v6043
    %v6045 = vpop.f32.mrf.mxu0
    %v6046 = vadd.f32 %v5873, %v6045
    %6047 = vmatprep.mubr.bf16.mxu0 0
    %6048 = vmatmul.mubr.bf16.gmra.mxu0 %v5049
    %v6049 = vpop.f32.mrf.mxu0
    %v6050 = vadd.f32 %v5877, %v6049
    %v6051 = vpop.f32.mrf.mxu0
    %v6052 = vadd.f32 %v5879, %v6051
    %v6053 = vpop.f32.mrf.mxu0
    %v6054 = vadd.f32 %v5881, %v6053
    %v6055 = vpop.f32.mrf.mxu0
    %v6056 = vadd.f32 %v5883, %v6055
    %6057 = vmatprep.mubr.bf16.mxu0 0
    %6058 = vmatmul.mubr.bf16.gmra.mxu0 %v5051
    %v6059 = vpop.f32.mrf.mxu0
    %v6060 = vadd.f32 %v5887, %v6059
    %v6061 = vpop.f32.mrf.mxu0
    %v6062 = vadd.f32 %v5889, %v6061
    %v6063 = vpop.f32.mrf.mxu0
    %v6064 = vadd.f32 %v5891, %v6063
    %v6065 = vpop.f32.mrf.mxu0
    %v6066 = vadd.f32 %v5893, %v6065
    %6067 = vmatprep.mubr.bf16.mxu0 0
    %6068 = vmatmul.mubr.bf16.gmra.mxu0 %v5053
    %v6069 = vpop.f32.mrf.mxu0
    %v6070 = vadd.f32 %v5897, %v6069
    %v6071 = vpop.f32.mrf.mxu0
    %v6072 = vadd.f32 %v5899, %v6071
    %v6073 = vpop.f32.mrf.mxu0
    %v6074 = vadd.f32 %v5901, %v6073
    %v6075 = vpop.f32.mrf.mxu0
    %v6076 = vadd.f32 %v5903, %v6075
    %6077 = vmatprep.mubr.bf16.mxu0 0
    %6078 = vmatmul.mubr.bf16.gmra.mxu0 %v5056
    %v6079 = vpop.f32.mrf.mxu0
    %v6080 = vadd.f32 %v5907, %v6079
    %v6081 = vpop.f32.mrf.mxu0
    %v6082 = vadd.f32 %v5909, %v6081
    %v6083 = vpop.f32.mrf.mxu0
    %v6084 = vadd.f32 %v5911, %v6083
    %v6085 = vpop.f32.mrf.mxu0
    %v6086 = vadd.f32 %v5913, %v6085
    %6087 = vmatprep.mubr.bf16.mxu0 0
    %6088 = vmatmul.mubr.bf16.gmra.mxu0 %v5058
    %v6089 = vpop.f32.mrf.mxu0
    %v6090 = vadd.f32 %v5917, %v6089
    %v6091 = vpop.f32.mrf.mxu0
    %v6092 = vadd.f32 %v5919, %v6091
    %v6093 = vpop.f32.mrf.mxu0
    %v6094 = vadd.f32 %v5921, %v6093
    %v6095 = vpop.f32.mrf.mxu0
    %v6096 = vadd.f32 %v5923, %v6095
    %6097 = vdwg.mxu0
    %6098 = vmatprep.subr.bf16.mxu0 %v4390
    %6099 = vmatpush1.bf16.msra.mxu0 %v4389
    %6100 = vmatprep.subr.bf16.mxu0 %v4386
    %6101 = vmatpush1.bf16.msra.mxu0 %v4385
    %6102 = vmatprep.subr.bf16.mxu0 %v4382
    %6103 = vmatpush1.bf16.msra.mxu0 %v4381
    %6104 = vmatprep.subr.bf16.mxu0 %v4378
    %6105 = vmatpush1.bf16.msra.mxu0 %v4377
    %6106 = vmatprep.subr.bf16.mxu0 %v4374
    %6107 = vmatpush1.bf16.msra.mxu0 %v4373
    %6108 = vmatprep.subr.bf16.mxu0 %v4370
    %6109 = vmatpush1.bf16.msra.mxu0 %v4369
    %6110 = vmatprep.subr.bf16.mxu0 %v4366
    %6111 = vmatpush1.bf16.msra.mxu0 %v4365
    %6112 = vmatprep.subr.bf16.mxu0 %v4362
    %6113 = vmatpush1.bf16.msra.mxu0 %v4361
    %6114 = vmatprep.subr.bf16.mxu0 %v4422
    %6115 = vmatpush2.bf16.msra.mxu0 %v4421
    %6116 = vmatprep.subr.bf16.mxu0 %v4418
    %6117 = vmatpush2.bf16.msra.mxu0 %v4417
    %6118 = vmatprep.subr.bf16.mxu0 %v4414
    %6119 = vmatpush2.bf16.msra.mxu0 %v4413
    %6120 = vmatprep.subr.bf16.mxu0 %v4410
    %6121 = vmatpush2.bf16.msra.mxu0 %v4409
    %6122 = vmatprep.subr.bf16.mxu0 %v4406
    %6123 = vmatpush2.bf16.msra.mxu0 %v4405
    %6124 = vmatprep.subr.bf16.mxu0 %v4402
    %6125 = vmatpush2.bf16.msra.mxu0 %v4401
    %6126 = vmatprep.subr.bf16.mxu0 %v4398
    %6127 = vmatpush2.bf16.msra.mxu0 %v4397
    %6128 = vmatprep.subr.bf16.mxu0 %v4394
    %6129 = vmatpush2.bf16.msra.mxu0 %v4393
    %6130 = vmatprep.mubr.bf16.mxu0 0
    %6131 = vmatmul.mubr.bf16.gmra.mxu0 0
    %v6132 = vpop.f32.mrf.mxu0
    %v6133 = vadd.f32 0.0, %v6132
    %v6134 = vpop.f32.mrf.mxu0
    %v6135 = vadd.f32 0.0, %v6134
    %v6136 = vpop.f32.mrf.mxu0
    %v6137 = vadd.f32 0.0, %v6136
    %v6138 = vpop.f32.mrf.mxu0
    %v6139 = vadd.f32 0.0, %v6138
    %6140 = vmatprep.mubr.bf16.mxu0 %v2651
    %6141 = vmatmul.mubr.bf16.gmra.mxu0 %v2650
    %v6142 = vpop.f32.mrf.mxu0
    %v6143 = vadd.f32 0.0, %v6142
    %v6144 = vpop.f32.mrf.mxu0
    %v6145 = vadd.f32 0.0, %v6144
    %v6146 = vpop.f32.mrf.mxu0
    %v6147 = vadd.f32 0.0, %v6146
    %v6148 = vpop.f32.mrf.mxu0
    %v6149 = vadd.f32 0.0, %v6148
    %6150 = vmatprep.mubr.bf16.mxu0 %v2655
    %6151 = vmatmul.mubr.bf16.gmra.mxu0 %v2654
    %v6152 = vpop.f32.mrf.mxu0
    %v6153 = vadd.f32 0.0, %v6152
    %v6154 = vpop.f32.mrf.mxu0
    %v6155 = vadd.f32 0.0, %v6154
    %v6156 = vpop.f32.mrf.mxu0
    %v6157 = vadd.f32 0.0, %v6156
    %v6158 = vpop.f32.mrf.mxu0
    %v6159 = vadd.f32 0.0, %v6158
    %6160 = vmatprep.mubr.bf16.mxu0 %v2659
    %6161 = vmatmul.mubr.bf16.gmra.mxu0 %v2658
    %v6162 = vpop.f32.mrf.mxu0
    %v6163 = vadd.f32 0.0, %v6162
    %v6164 = vpop.f32.mrf.mxu0
    %v6165 = vadd.f32 0.0, %v6164
    %v6166 = vpop.f32.mrf.mxu0
    %v6167 = vadd.f32 0.0, %v6166
    %v6168 = vpop.f32.mrf.mxu0
    %v6169 = vadd.f32 0.0, %v6168
    %6170 = vmatprep.mubr.bf16.mxu0 %v2663
    %6171 = vmatmul.mubr.bf16.gmra.mxu0 %v2662
    %v6172 = vpop.f32.mrf.mxu0
    %v6173 = vadd.f32 0.0, %v6172
    %v6174 = vpop.f32.mrf.mxu0
    %v6175 = vadd.f32 0.0, %v6174
    %v6176 = vpop.f32.mrf.mxu0
    %v6177 = vadd.f32 0.0, %v6176
    %v6178 = vpop.f32.mrf.mxu0
    %v6179 = vadd.f32 0.0, %v6178
    %6180 = vmatprep.mubr.bf16.mxu0 %v2667
    %6181 = vmatmul.mubr.bf16.gmra.mxu0 %v2666
    %v6182 = vpop.f32.mrf.mxu0
    %v6183 = vadd.f32 0.0, %v6182
    %v6184 = vpop.f32.mrf.mxu0
    %v6185 = vadd.f32 0.0, %v6184
    %v6186 = vpop.f32.mrf.mxu0
    %v6187 = vadd.f32 0.0, %v6186
    %v6188 = vpop.f32.mrf.mxu0
    %v6189 = vadd.f32 0.0, %v6188
    %6190 = vmatprep.mubr.bf16.mxu0 %v2671
    %6191 = vmatmul.mubr.bf16.gmra.mxu0 %v2670
    %v6192 = vpop.f32.mrf.mxu0
    %v6193 = vadd.f32 0.0, %v6192
    %v6194 = vpop.f32.mrf.mxu0
    %v6195 = vadd.f32 0.0, %v6194
    %v6196 = vpop.f32.mrf.mxu0
    %v6197 = vadd.f32 0.0, %v6196
    %v6198 = vpop.f32.mrf.mxu0
    %v6199 = vadd.f32 0.0, %v6198
    %6200 = vmatprep.mubr.bf16.mxu0 %v2675
    %6201 = vmatmul.mubr.bf16.gmra.mxu0 %v2674
    %v6202 = vpop.f32.mrf.mxu0
    %v6203 = vadd.f32 0.0, %v6202
    %v6204 = vpop.f32.mrf.mxu0
    %v6205 = vadd.f32 0.0, %v6204
    %v6206 = vpop.f32.mrf.mxu0
    %v6207 = vadd.f32 0.0, %v6206
    %v6208 = vpop.f32.mrf.mxu0
    %v6209 = vadd.f32 0.0, %v6208
    %6210 = vmatprep.mubr.bf16.mxu0 %v2679
    %6211 = vmatmul.mubr.bf16.gmra.mxu0 %v2678
    %v6212 = vpop.f32.mrf.mxu0
    %v6213 = vadd.f32 0.0, %v6212
    %v6214 = vpop.f32.mrf.mxu0
    %v6215 = vadd.f32 0.0, %v6214
    %v6216 = vpop.f32.mrf.mxu0
    %v6217 = vadd.f32 0.0, %v6216
    %v6218 = vpop.f32.mrf.mxu0
    %v6219 = vadd.f32 0.0, %v6218
    %6220 = vmatprep.mubr.bf16.mxu0 %v2683
    %6221 = vmatmul.mubr.bf16.gmra.mxu0 %v2682
    %v6222 = vpop.f32.mrf.mxu0
    %v6223 = vadd.f32 0.0, %v6222
    %v6224 = vpop.f32.mrf.mxu0
    %v6225 = vadd.f32 0.0, %v6224
    %v6226 = vpop.f32.mrf.mxu0
    %v6227 = vadd.f32 0.0, %v6226
    %v6228 = vpop.f32.mrf.mxu0
    %v6229 = vadd.f32 0.0, %v6228
    %6230 = vmatprep.mubr.bf16.mxu0 %v2687
    %6231 = vmatmul.mubr.bf16.gmra.mxu0 %v2686
    %v6232 = vpop.f32.mrf.mxu0
    %v6233 = vadd.f32 0.0, %v6232
    %v6234 = vpop.f32.mrf.mxu0
    %v6235 = vadd.f32 0.0, %v6234
    %v6236 = vpop.f32.mrf.mxu0
    %v6237 = vadd.f32 0.0, %v6236
    %v6238 = vpop.f32.mrf.mxu0
    %v6239 = vadd.f32 0.0, %v6238
    %6240 = vmatprep.mubr.bf16.mxu0 %v2691
    %6241 = vmatmul.mubr.bf16.gmra.mxu0 %v2690
    %v6242 = vpop.f32.mrf.mxu0
    %v6243 = vadd.f32 0.0, %v6242
    %v6244 = vpop.f32.mrf.mxu0
    %v6245 = vadd.f32 0.0, %v6244
    %v6246 = vpop.f32.mrf.mxu0
    %v6247 = vadd.f32 0.0, %v6246
    %v6248 = vpop.f32.mrf.mxu0
    %v6249 = vadd.f32 0.0, %v6248
    %6250 = vmatprep.mubr.bf16.mxu0 %v2695
    %6251 = vmatmul.mubr.bf16.gmra.mxu0 %v2694
    %v6252 = vpop.f32.mrf.mxu0
    %v6253 = vadd.f32 0.0, %v6252
    %v6254 = vpop.f32.mrf.mxu0
    %v6255 = vadd.f32 0.0, %v6254
    %v6256 = vpop.f32.mrf.mxu0
    %v6257 = vadd.f32 0.0, %v6256
    %v6258 = vpop.f32.mrf.mxu0
    %v6259 = vadd.f32 0.0, %v6258
    %6260 = vmatprep.mubr.bf16.mxu0 %v2699
    %6261 = vmatmul.mubr.bf16.gmra.mxu0 %v2698
    %v6262 = vpop.f32.mrf.mxu0
    %v6263 = vadd.f32 0.0, %v6262
    %v6264 = vpop.f32.mrf.mxu0
    %v6265 = vadd.f32 0.0, %v6264
    %v6266 = vpop.f32.mrf.mxu0
    %v6267 = vadd.f32 0.0, %v6266
    %v6268 = vpop.f32.mrf.mxu0
    %v6269 = vadd.f32 0.0, %v6268
    %6270 = vdwg.mxu0
    %6271 = vmatprep.subr.bf16.mxu0 %v4454
    %6272 = vmatpush1.bf16.msra.mxu0 %v4453
    %6273 = vmatprep.subr.bf16.mxu0 %v4450
    %6274 = vmatpush1.bf16.msra.mxu0 %v4449
    %6275 = vmatprep.subr.bf16.mxu0 %v4446
    %6276 = vmatpush1.bf16.msra.mxu0 %v4445
    %6277 = vmatprep.subr.bf16.mxu0 %v4442
    %6278 = vmatpush1.bf16.msra.mxu0 %v4441
    %6279 = vmatprep.subr.bf16.mxu0 %v4438
    %6280 = vmatpush1.bf16.msra.mxu0 %v4437
    %6281 = vmatprep.subr.bf16.mxu0 %v4434
    %6282 = vmatpush1.bf16.msra.mxu0 %v4433
    %6283 = vmatprep.subr.bf16.mxu0 %v4430
    %6284 = vmatpush1.bf16.msra.mxu0 %v4429
    %6285 = vmatprep.subr.bf16.mxu0 %v4426
    %6286 = vmatpush1.bf16.msra.mxu0 %v4425
    %6287 = vmatprep.subr.bf16.mxu0 %v4486
    %6288 = vmatpush2.bf16.msra.mxu0 %v4485
    %6289 = vmatprep.subr.bf16.mxu0 %v4482
    %6290 = vmatpush2.bf16.msra.mxu0 %v4481
    %6291 = vmatprep.subr.bf16.mxu0 %v4478
    %6292 = vmatpush2.bf16.msra.mxu0 %v4477
    %6293 = vmatprep.subr.bf16.mxu0 %v4474
    %6294 = vmatpush2.bf16.msra.mxu0 %v4473
    %6295 = vmatprep.subr.bf16.mxu0 %v4470
    %6296 = vmatpush2.bf16.msra.mxu0 %v4469
    %6297 = vmatprep.subr.bf16.mxu0 %v4466
    %6298 = vmatpush2.bf16.msra.mxu0 %v4465
    %6299 = vmatprep.subr.bf16.mxu0 %v4462
    %6300 = vmatpush2.bf16.msra.mxu0 %v4461
    %6301 = vmatprep.subr.bf16.mxu0 %v4458
    %6302 = vmatpush2.bf16.msra.mxu0 %v4457
    %6303 = vmatprep.mubr.bf16.mxu0 %v2961
    %6304 = vmatmul.mubr.bf16.gmra.mxu0 0
    %v6305 = vpop.f32.mrf.mxu0
    %v6306 = vadd.f32 %v6133, %v6305
    %v6307 = vpop.f32.mrf.mxu0
    %v6308 = vadd.f32 %v6135, %v6307
    %v6309 = vpop.f32.mrf.mxu0
    %v6310 = vadd.f32 %v6137, %v6309
    %v6311 = vpop.f32.mrf.mxu0
    %v6312 = vadd.f32 %v6139, %v6311
    %6313 = vmatprep.mubr.bf16.mxu0 %v2965
    %6314 = vmatmul.mubr.bf16.gmra.mxu0 %v2652
    %v6315 = vpop.f32.mrf.mxu0
    %v6316 = vadd.f32 %v6143, %v6315
    %v6317 = vpop.f32.mrf.mxu0
    %v6318 = vadd.f32 %v6145, %v6317
    %v6319 = vpop.f32.mrf.mxu0
    %v6320 = vadd.f32 %v6147, %v6319
    %v6321 = vpop.f32.mrf.mxu0
    %v6322 = vadd.f32 %v6149, %v6321
    %6323 = vmatprep.mubr.bf16.mxu0 %v2969
    %6324 = vmatmul.mubr.bf16.gmra.mxu0 %v2656
    %v6325 = vpop.f32.mrf.mxu0
    %v6326 = vadd.f32 %v6153, %v6325
    %v6327 = vpop.f32.mrf.mxu0
    %v6328 = vadd.f32 %v6155, %v6327
    %v6329 = vpop.f32.mrf.mxu0
    %v6330 = vadd.f32 %v6157, %v6329
    %v6331 = vpop.f32.mrf.mxu0
    %v6332 = vadd.f32 %v6159, %v6331
    %6333 = vmatprep.mubr.bf16.mxu0 %v2973
    %6334 = vmatmul.mubr.bf16.gmra.mxu0 %v2660
    %v6335 = vpop.f32.mrf.mxu0
    %v6336 = vadd.f32 %v6163, %v6335
    %v6337 = vpop.f32.mrf.mxu0
    %v6338 = vadd.f32 %v6165, %v6337
    %v6339 = vpop.f32.mrf.mxu0
    %v6340 = vadd.f32 %v6167, %v6339
    %v6341 = vpop.f32.mrf.mxu0
    %v6342 = vadd.f32 %v6169, %v6341
    %6343 = vmatprep.mubr.bf16.mxu0 %v2977
    %6344 = vmatmul.mubr.bf16.gmra.mxu0 %v2664
    %v6345 = vpop.f32.mrf.mxu0
    %v6346 = vadd.f32 %v6173, %v6345
    %v6347 = vpop.f32.mrf.mxu0
    %v6348 = vadd.f32 %v6175, %v6347
    %v6349 = vpop.f32.mrf.mxu0
    %v6350 = vadd.f32 %v6177, %v6349
    %v6351 = vpop.f32.mrf.mxu0
    %v6352 = vadd.f32 %v6179, %v6351
    %6353 = vmatprep.mubr.bf16.mxu0 %v2981
    %6354 = vmatmul.mubr.bf16.gmra.mxu0 %v2668
    %v6355 = vpop.f32.mrf.mxu0
    %v6356 = vadd.f32 %v6183, %v6355
    %v6357 = vpop.f32.mrf.mxu0
    %v6358 = vadd.f32 %v6185, %v6357
    %v6359 = vpop.f32.mrf.mxu0
    %v6360 = vadd.f32 %v6187, %v6359
    %v6361 = vpop.f32.mrf.mxu0
    %v6362 = vadd.f32 %v6189, %v6361
    %6363 = vmatprep.mubr.bf16.mxu0 %v2985
    %6364 = vmatmul.mubr.bf16.gmra.mxu0 %v2672
    %v6365 = vpop.f32.mrf.mxu0
    %v6366 = vadd.f32 %v6193, %v6365
    %v6367 = vpop.f32.mrf.mxu0
    %v6368 = vadd.f32 %v6195, %v6367
    %v6369 = vpop.f32.mrf.mxu0
    %v6370 = vadd.f32 %v6197, %v6369
    %v6371 = vpop.f32.mrf.mxu0
    %v6372 = vadd.f32 %v6199, %v6371
    %6373 = vmatprep.mubr.bf16.mxu0 %v2989
    %6374 = vmatmul.mubr.bf16.gmra.mxu0 %v2676
    %v6375 = vpop.f32.mrf.mxu0
    %v6376 = vadd.f32 %v6203, %v6375
    %v6377 = vpop.f32.mrf.mxu0
    %v6378 = vadd.f32 %v6205, %v6377
    %v6379 = vpop.f32.mrf.mxu0
    %v6380 = vadd.f32 %v6207, %v6379
    %v6381 = vpop.f32.mrf.mxu0
    %v6382 = vadd.f32 %v6209, %v6381
    %6383 = vmatprep.mubr.bf16.mxu0 %v2993
    %6384 = vmatmul.mubr.bf16.gmra.mxu0 %v2680
    %v6385 = vpop.f32.mrf.mxu0
    %v6386 = vadd.f32 %v6213, %v6385
    %v6387 = vpop.f32.mrf.mxu0
    %v6388 = vadd.f32 %v6215, %v6387
    %v6389 = vpop.f32.mrf.mxu0
    %v6390 = vadd.f32 %v6217, %v6389
    %v6391 = vpop.f32.mrf.mxu0
    %v6392 = vadd.f32 %v6219, %v6391
    %6393 = vmatprep.mubr.bf16.mxu0 %v2997
    %6394 = vmatmul.mubr.bf16.gmra.mxu0 %v2684
    %v6395 = vpop.f32.mrf.mxu0
    %v6396 = vadd.f32 %v6223, %v6395
    %v6397 = vpop.f32.mrf.mxu0
    %v6398 = vadd.f32 %v6225, %v6397
    %v6399 = vpop.f32.mrf.mxu0
    %v6400 = vadd.f32 %v6227, %v6399
    %v6401 = vpop.f32.mrf.mxu0
    %v6402 = vadd.f32 %v6229, %v6401
    %6403 = vmatprep.mubr.bf16.mxu0 %v3001
    %6404 = vmatmul.mubr.bf16.gmra.mxu0 %v2688
    %v6405 = vpop.f32.mrf.mxu0
    %v6406 = vadd.f32 %v6233, %v6405
    %v6407 = vpop.f32.mrf.mxu0
    %v6408 = vadd.f32 %v6235, %v6407
    %v6409 = vpop.f32.mrf.mxu0
    %v6410 = vadd.f32 %v6237, %v6409
    %v6411 = vpop.f32.mrf.mxu0
    %v6412 = vadd.f32 %v6239, %v6411
    %6413 = vmatprep.mubr.bf16.mxu0 %v3005
    %6414 = vmatmul.mubr.bf16.gmra.mxu0 %v2692
    %v6415 = vpop.f32.mrf.mxu0
    %v6416 = vadd.f32 %v6243, %v6415
    %v6417 = vpop.f32.mrf.mxu0
    %v6418 = vadd.f32 %v6245, %v6417
    %v6419 = vpop.f32.mrf.mxu0
    %v6420 = vadd.f32 %v6247, %v6419
    %v6421 = vpop.f32.mrf.mxu0
    %v6422 = vadd.f32 %v6249, %v6421
    %6423 = vmatprep.mubr.bf16.mxu0 %v3009
    %6424 = vmatmul.mubr.bf16.gmra.mxu0 %v2696
    %v6425 = vpop.f32.mrf.mxu0
    %v6426 = vadd.f32 %v6253, %v6425
    %v6427 = vpop.f32.mrf.mxu0
    %v6428 = vadd.f32 %v6255, %v6427
    %v6429 = vpop.f32.mrf.mxu0
    %v6430 = vadd.f32 %v6257, %v6429
    %v6431 = vpop.f32.mrf.mxu0
    %v6432 = vadd.f32 %v6259, %v6431
    %6433 = vmatprep.mubr.bf16.mxu0 %v3013
    %6434 = vmatmul.mubr.bf16.gmra.mxu0 %v2700
    %v6435 = vpop.f32.mrf.mxu0
    %v6436 = vadd.f32 %v6263, %v6435
    %v6437 = vpop.f32.mrf.mxu0
    %v6438 = vadd.f32 %v6265, %v6437
    %v6439 = vpop.f32.mrf.mxu0
    %v6440 = vadd.f32 %v6267, %v6439
    %v6441 = vpop.f32.mrf.mxu0
    %v6442 = vadd.f32 %v6269, %v6441
    %6443 = vdwg.mxu0
    %6444 = vmatprep.subr.bf16.mxu0 %v4518
    %6445 = vmatpush1.bf16.msra.mxu0 %v4517
    %6446 = vmatprep.subr.bf16.mxu0 %v4514
    %6447 = vmatpush1.bf16.msra.mxu0 %v4513
    %6448 = vmatprep.subr.bf16.mxu0 %v4510
    %6449 = vmatpush1.bf16.msra.mxu0 %v4509
    %6450 = vmatprep.subr.bf16.mxu0 %v4506
    %6451 = vmatpush1.bf16.msra.mxu0 %v4505
    %6452 = vmatprep.subr.bf16.mxu0 %v4502
    %6453 = vmatpush1.bf16.msra.mxu0 %v4501
    %6454 = vmatprep.subr.bf16.mxu0 %v4498
    %6455 = vmatpush1.bf16.msra.mxu0 %v4497
    %6456 = vmatprep.subr.bf16.mxu0 %v4494
    %6457 = vmatpush1.bf16.msra.mxu0 %v4493
    %6458 = vmatprep.subr.bf16.mxu0 %v4490
    %6459 = vmatpush1.bf16.msra.mxu0 %v4489
    %6460 = vmatprep.subr.bf16.mxu0 %v4550
    %6461 = vmatpush2.bf16.msra.mxu0 %v4549
    %6462 = vmatprep.subr.bf16.mxu0 %v4546
    %6463 = vmatpush2.bf16.msra.mxu0 %v4545
    %6464 = vmatprep.subr.bf16.mxu0 %v4542
    %6465 = vmatpush2.bf16.msra.mxu0 %v4541
    %6466 = vmatprep.subr.bf16.mxu0 %v4538
    %6467 = vmatpush2.bf16.msra.mxu0 %v4537
    %6468 = vmatprep.subr.bf16.mxu0 %v4534
    %6469 = vmatpush2.bf16.msra.mxu0 %v4533
    %6470 = vmatprep.subr.bf16.mxu0 %v4530
    %6471 = vmatpush2.bf16.msra.mxu0 %v4529
    %6472 = vmatprep.subr.bf16.mxu0 %v4526
    %6473 = vmatpush2.bf16.msra.mxu0 %v4525
    %6474 = vmatprep.subr.bf16.mxu0 %v4522
    %6475 = vmatpush2.bf16.msra.mxu0 %v4521
    %6476 = vmatprep.mubr.bf16.mxu0 %v2876
    %6477 = vmatmul.mubr.bf16.gmra.mxu0 %v2875
    %v6478 = vpop.f32.mrf.mxu0
    %v6479 = vadd.f32 %v6306, %v6478
    %v6480 = vpop.f32.mrf.mxu0
    %v6481 = vadd.f32 %v6308, %v6480
    %v6482 = vpop.f32.mrf.mxu0
    %v6483 = vadd.f32 %v6310, %v6482
    %v6484 = vpop.f32.mrf.mxu0
    %v6485 = vadd.f32 %v6312, %v6484
    %6486 = vmatprep.mubr.bf16.mxu0 %v2879
    %6487 = vmatmul.mubr.bf16.gmra.mxu0 %v2878
    %v6488 = vpop.f32.mrf.mxu0
    %v6489 = vadd.f32 %v6316, %v6488
    %v6490 = vpop.f32.mrf.mxu0
    %v6491 = vadd.f32 %v6318, %v6490
    %v6492 = vpop.f32.mrf.mxu0
    %v6493 = vadd.f32 %v6320, %v6492
    %v6494 = vpop.f32.mrf.mxu0
    %v6495 = vadd.f32 %v6322, %v6494
    %6496 = vmatprep.mubr.bf16.mxu0 %v2882
    %6497 = vmatmul.mubr.bf16.gmra.mxu0 %v2881
    %v6498 = vpop.f32.mrf.mxu0
    %v6499 = vadd.f32 %v6326, %v6498
    %v6500 = vpop.f32.mrf.mxu0
    %v6501 = vadd.f32 %v6328, %v6500
    %v6502 = vpop.f32.mrf.mxu0
    %v6503 = vadd.f32 %v6330, %v6502
    %v6504 = vpop.f32.mrf.mxu0
    %v6505 = vadd.f32 %v6332, %v6504
    %6506 = vmatprep.mubr.bf16.mxu0 %v2885
    %6507 = vmatmul.mubr.bf16.gmra.mxu0 %v2884
    %v6508 = vpop.f32.mrf.mxu0
    %v6509 = vadd.f32 %v6336, %v6508
    %v6510 = vpop.f32.mrf.mxu0
    %v6511 = vadd.f32 %v6338, %v6510
    %v6512 = vpop.f32.mrf.mxu0
    %v6513 = vadd.f32 %v6340, %v6512
    %v6514 = vpop.f32.mrf.mxu0
    %v6515 = vadd.f32 %v6342, %v6514
    %6516 = vmatprep.mubr.bf16.mxu0 %v2888
    %6517 = vmatmul.mubr.bf16.gmra.mxu0 %v2887
    %v6518 = vpop.f32.mrf.mxu0
    %v6519 = vadd.f32 %v6346, %v6518
    %v6520 = vpop.f32.mrf.mxu0
    %v6521 = vadd.f32 %v6348, %v6520
    %v6522 = vpop.f32.mrf.mxu0
    %v6523 = vadd.f32 %v6350, %v6522
    %v6524 = vpop.f32.mrf.mxu0
    %v6525 = vadd.f32 %v6352, %v6524
    %6526 = vmatprep.mubr.bf16.mxu0 %v2891
    %6527 = vmatmul.mubr.bf16.gmra.mxu0 %v2890
    %v6528 = vpop.f32.mrf.mxu0
    %v6529 = vadd.f32 %v6356, %v6528
    %v6530 = vpop.f32.mrf.mxu0
    %v6531 = vadd.f32 %v6358, %v6530
    %v6532 = vpop.f32.mrf.mxu0
    %v6533 = vadd.f32 %v6360, %v6532
    %v6534 = vpop.f32.mrf.mxu0
    %v6535 = vadd.f32 %v6362, %v6534
    %6536 = vmatprep.mubr.bf16.mxu0 %v2894
    %6537 = vmatmul.mubr.bf16.gmra.mxu0 %v2893
    %v6538 = vpop.f32.mrf.mxu0
    %v6539 = vadd.f32 %v6366, %v6538
    %v6540 = vpop.f32.mrf.mxu0
    %v6541 = vadd.f32 %v6368, %v6540
    %v6542 = vpop.f32.mrf.mxu0
    %v6543 = vadd.f32 %v6370, %v6542
    %v6544 = vpop.f32.mrf.mxu0
    %v6545 = vadd.f32 %v6372, %v6544
    %6546 = vmatprep.mubr.bf16.mxu0 %v2897
    %6547 = vmatmul.mubr.bf16.gmra.mxu0 %v2896
    %v6548 = vpop.f32.mrf.mxu0
    %v6549 = vadd.f32 %v6376, %v6548
    %v6550 = vpop.f32.mrf.mxu0
    %v6551 = vadd.f32 %v6378, %v6550
    %v6552 = vpop.f32.mrf.mxu0
    %v6553 = vadd.f32 %v6380, %v6552
    %v6554 = vpop.f32.mrf.mxu0
    %v6555 = vadd.f32 %v6382, %v6554
    %6556 = vmatprep.mubr.bf16.mxu0 %v2900
    %6557 = vmatmul.mubr.bf16.gmra.mxu0 %v2899
    %v6558 = vpop.f32.mrf.mxu0
    %v6559 = vadd.f32 %v6386, %v6558
    %v6560 = vpop.f32.mrf.mxu0
    %v6561 = vadd.f32 %v6388, %v6560
    %v6562 = vpop.f32.mrf.mxu0
    %v6563 = vadd.f32 %v6390, %v6562
    %v6564 = vpop.f32.mrf.mxu0
    %v6565 = vadd.f32 %v6392, %v6564
    %6566 = vmatprep.mubr.bf16.mxu0 %v2903
    %6567 = vmatmul.mubr.bf16.gmra.mxu0 %v2902
    %v6568 = vpop.f32.mrf.mxu0
    %v6569 = vadd.f32 %v6396, %v6568
    %v6570 = vpop.f32.mrf.mxu0
    %v6571 = vadd.f32 %v6398, %v6570
    %v6572 = vpop.f32.mrf.mxu0
    %v6573 = vadd.f32 %v6400, %v6572
    %v6574 = vpop.f32.mrf.mxu0
    %v6575 = vadd.f32 %v6402, %v6574
    %6576 = vmatprep.mubr.bf16.mxu0 %v2906
    %6577 = vmatmul.mubr.bf16.gmra.mxu0 %v2905
    %v6578 = vpop.f32.mrf.mxu0
    %v6579 = vadd.f32 %v6406, %v6578
    %v6580 = vpop.f32.mrf.mxu0
    %v6581 = vadd.f32 %v6408, %v6580
    %v6582 = vpop.f32.mrf.mxu0
    %v6583 = vadd.f32 %v6410, %v6582
    %v6584 = vpop.f32.mrf.mxu0
    %v6585 = vadd.f32 %v6412, %v6584
    %6586 = vmatprep.mubr.bf16.mxu0 %v2909
    %6587 = vmatmul.mubr.bf16.gmra.mxu0 %v2908
    %v6588 = vpop.f32.mrf.mxu0
    %v6589 = vadd.f32 %v6416, %v6588
    %v6590 = vpop.f32.mrf.mxu0
    %v6591 = vadd.f32 %v6418, %v6590
    %v6592 = vpop.f32.mrf.mxu0
    %v6593 = vadd.f32 %v6420, %v6592
    %v6594 = vpop.f32.mrf.mxu0
    %v6595 = vadd.f32 %v6422, %v6594
    %6596 = vmatprep.mubr.bf16.mxu0 %v2912
    %6597 = vmatmul.mubr.bf16.gmra.mxu0 %v2911
    %v6598 = vpop.f32.mrf.mxu0
    %v6599 = vadd.f32 %v6426, %v6598
    %v6600 = vpop.f32.mrf.mxu0
    %v6601 = vadd.f32 %v6428, %v6600
    %v6602 = vpop.f32.mrf.mxu0
    %v6603 = vadd.f32 %v6430, %v6602
    %v6604 = vpop.f32.mrf.mxu0
    %v6605 = vadd.f32 %v6432, %v6604
    %6606 = vmatprep.mubr.bf16.mxu0 %v2915
    %6607 = vmatmul.mubr.bf16.gmra.mxu0 %v2914
    %v6608 = vpop.f32.mrf.mxu0
    %v6609 = vadd.f32 %v6436, %v6608
    %v6610 = vpop.f32.mrf.mxu0
    %v6611 = vadd.f32 %v6438, %v6610
    %v6612 = vpop.f32.mrf.mxu0
    %v6613 = vadd.f32 %v6440, %v6612
    %v6614 = vpop.f32.mrf.mxu0
    %v6615 = vadd.f32 %v6442, %v6614
    %6616 = vdwg.mxu0
    %6617 = vmatprep.subr.bf16.mxu0 %v4582
    %6618 = vmatpush1.bf16.msra.mxu0 %v4581
    %6619 = vmatprep.subr.bf16.mxu0 %v4578
    %6620 = vmatpush1.bf16.msra.mxu0 %v4577
    %6621 = vmatprep.subr.bf16.mxu0 %v4574
    %6622 = vmatpush1.bf16.msra.mxu0 %v4573
    %6623 = vmatprep.subr.bf16.mxu0 %v4570
    %6624 = vmatpush1.bf16.msra.mxu0 %v4569
    %6625 = vmatprep.subr.bf16.mxu0 %v4566
    %6626 = vmatpush1.bf16.msra.mxu0 %v4565
    %6627 = vmatprep.subr.bf16.mxu0 %v4562
    %6628 = vmatpush1.bf16.msra.mxu0 %v4561
    %6629 = vmatprep.subr.bf16.mxu0 %v4558
    %6630 = vmatpush1.bf16.msra.mxu0 %v4557
    %6631 = vmatprep.subr.bf16.mxu0 %v4554
    %6632 = vmatpush1.bf16.msra.mxu0 %v4553
    %6633 = vmatprep.subr.bf16.mxu0 %v4614
    %6634 = vmatpush2.bf16.msra.mxu0 %v4613
    %6635 = vmatprep.subr.bf16.mxu0 %v4610
    %6636 = vmatpush2.bf16.msra.mxu0 %v4609
    %6637 = vmatprep.subr.bf16.mxu0 %v4606
    %6638 = vmatpush2.bf16.msra.mxu0 %v4605
    %6639 = vmatprep.subr.bf16.mxu0 %v4602
    %6640 = vmatpush2.bf16.msra.mxu0 %v4601
    %6641 = vmatprep.subr.bf16.mxu0 %v4598
    %6642 = vmatpush2.bf16.msra.mxu0 %v4597
    %6643 = vmatprep.subr.bf16.mxu0 %v4594
    %6644 = vmatpush2.bf16.msra.mxu0 %v4593
    %6645 = vmatprep.subr.bf16.mxu0 %v4590
    %6646 = vmatpush2.bf16.msra.mxu0 %v4589
    %6647 = vmatprep.subr.bf16.mxu0 %v4586
    %6648 = vmatpush2.bf16.msra.mxu0 %v4585
    %6649 = vmatprep.mubr.bf16.mxu0 %v2654
    %6650 = vmatmul.mubr.bf16.gmra.mxu0 %v2877
    %v6651 = vpop.f32.mrf.mxu0
    %v6652 = vadd.f32 %v6479, %v6651
    %v6653 = vpop.f32.mrf.mxu0
    %v6654 = vadd.f32 %v6481, %v6653
    %v6655 = vpop.f32.mrf.mxu0
    %v6656 = vadd.f32 %v6483, %v6655
    %v6657 = vpop.f32.mrf.mxu0
    %v6658 = vadd.f32 %v6485, %v6657
    %6659 = vmatprep.mubr.bf16.mxu0 %v2658
    %6660 = vmatmul.mubr.bf16.gmra.mxu0 %v2880
    %v6661 = vpop.f32.mrf.mxu0
    %v6662 = vadd.f32 %v6489, %v6661
    %v6663 = vpop.f32.mrf.mxu0
    %v6664 = vadd.f32 %v6491, %v6663
    %v6665 = vpop.f32.mrf.mxu0
    %v6666 = vadd.f32 %v6493, %v6665
    %v6667 = vpop.f32.mrf.mxu0
    %v6668 = vadd.f32 %v6495, %v6667
    %6669 = vmatprep.mubr.bf16.mxu0 %v2662
    %6670 = vmatmul.mubr.bf16.gmra.mxu0 %v2883
    %v6671 = vpop.f32.mrf.mxu0
    %v6672 = vadd.f32 %v6499, %v6671
    %v6673 = vpop.f32.mrf.mxu0
    %v6674 = vadd.f32 %v6501, %v6673
    %v6675 = vpop.f32.mrf.mxu0
    %v6676 = vadd.f32 %v6503, %v6675
    %v6677 = vpop.f32.mrf.mxu0
    %v6678 = vadd.f32 %v6505, %v6677
    %6679 = vmatprep.mubr.bf16.mxu0 %v2666
    %6680 = vmatmul.mubr.bf16.gmra.mxu0 %v2886
    %v6681 = vpop.f32.mrf.mxu0
    %v6682 = vadd.f32 %v6509, %v6681
    %v6683 = vpop.f32.mrf.mxu0
    %v6684 = vadd.f32 %v6511, %v6683
    %v6685 = vpop.f32.mrf.mxu0
    %v6686 = vadd.f32 %v6513, %v6685
    %v6687 = vpop.f32.mrf.mxu0
    %v6688 = vadd.f32 %v6515, %v6687
    %6689 = vmatprep.mubr.bf16.mxu0 %v2670
    %6690 = vmatmul.mubr.bf16.gmra.mxu0 %v2889
    %v6691 = vpop.f32.mrf.mxu0
    %v6692 = vadd.f32 %v6519, %v6691
    %v6693 = vpop.f32.mrf.mxu0
    %v6694 = vadd.f32 %v6521, %v6693
    %v6695 = vpop.f32.mrf.mxu0
    %v6696 = vadd.f32 %v6523, %v6695
    %v6697 = vpop.f32.mrf.mxu0
    %v6698 = vadd.f32 %v6525, %v6697
    %6699 = vmatprep.mubr.bf16.mxu0 %v2674
    %6700 = vmatmul.mubr.bf16.gmra.mxu0 %v2892
    %v6701 = vpop.f32.mrf.mxu0
    %v6702 = vadd.f32 %v6529, %v6701
    %v6703 = vpop.f32.mrf.mxu0
    %v6704 = vadd.f32 %v6531, %v6703
    %v6705 = vpop.f32.mrf.mxu0
    %v6706 = vadd.f32 %v6533, %v6705
    %v6707 = vpop.f32.mrf.mxu0
    %v6708 = vadd.f32 %v6535, %v6707
    %6709 = vmatprep.mubr.bf16.mxu0 %v2678
    %6710 = vmatmul.mubr.bf16.gmra.mxu0 %v2895
    %v6711 = vpop.f32.mrf.mxu0
    %v6712 = vadd.f32 %v6539, %v6711
    %v6713 = vpop.f32.mrf.mxu0
    %v6714 = vadd.f32 %v6541, %v6713
    %v6715 = vpop.f32.mrf.mxu0
    %v6716 = vadd.f32 %v6543, %v6715
    %v6717 = vpop.f32.mrf.mxu0
    %v6718 = vadd.f32 %v6545, %v6717
    %6719 = vmatprep.mubr.bf16.mxu0 %v2682
    %6720 = vmatmul.mubr.bf16.gmra.mxu0 %v2898
    %v6721 = vpop.f32.mrf.mxu0
    %v6722 = vadd.f32 %v6549, %v6721
    %v6723 = vpop.f32.mrf.mxu0
    %v6724 = vadd.f32 %v6551, %v6723
    %v6725 = vpop.f32.mrf.mxu0
    %v6726 = vadd.f32 %v6553, %v6725
    %v6727 = vpop.f32.mrf.mxu0
    %v6728 = vadd.f32 %v6555, %v6727
    %6729 = vmatprep.mubr.bf16.mxu0 %v2686
    %6730 = vmatmul.mubr.bf16.gmra.mxu0 %v2901
    %v6731 = vpop.f32.mrf.mxu0
    %v6732 = vadd.f32 %v6559, %v6731
    %v6733 = vpop.f32.mrf.mxu0
    %v6734 = vadd.f32 %v6561, %v6733
    %v6735 = vpop.f32.mrf.mxu0
    %v6736 = vadd.f32 %v6563, %v6735
    %v6737 = vpop.f32.mrf.mxu0
    %v6738 = vadd.f32 %v6565, %v6737
    %6739 = vmatprep.mubr.bf16.mxu0 %v2690
    %6740 = vmatmul.mubr.bf16.gmra.mxu0 %v2904
    %v6741 = vpop.f32.mrf.mxu0
    %v6742 = vadd.f32 %v6569, %v6741
    %v6743 = vpop.f32.mrf.mxu0
    %v6744 = vadd.f32 %v6571, %v6743
    %v6745 = vpop.f32.mrf.mxu0
    %v6746 = vadd.f32 %v6573, %v6745
    %v6747 = vpop.f32.mrf.mxu0
    %v6748 = vadd.f32 %v6575, %v6747
    %6749 = vmatprep.mubr.bf16.mxu0 %v2694
    %6750 = vmatmul.mubr.bf16.gmra.mxu0 %v2907
    %v6751 = vpop.f32.mrf.mxu0
    %v6752 = vadd.f32 %v6579, %v6751
    %v6753 = vpop.f32.mrf.mxu0
    %v6754 = vadd.f32 %v6581, %v6753
    %v6755 = vpop.f32.mrf.mxu0
    %v6756 = vadd.f32 %v6583, %v6755
    %v6757 = vpop.f32.mrf.mxu0
    %v6758 = vadd.f32 %v6585, %v6757
    %6759 = vmatprep.mubr.bf16.mxu0 %v2698
    %6760 = vmatmul.mubr.bf16.gmra.mxu0 %v2910
    %v6761 = vpop.f32.mrf.mxu0
    %v6762 = vadd.f32 %v6589, %v6761
    %v6763 = vpop.f32.mrf.mxu0
    %v6764 = vadd.f32 %v6591, %v6763
    %v6765 = vpop.f32.mrf.mxu0
    %v6766 = vadd.f32 %v6593, %v6765
    %v6767 = vpop.f32.mrf.mxu0
    %v6768 = vadd.f32 %v6595, %v6767
    %6769 = vmatprep.mubr.bf16.mxu0 %v2702
    %6770 = vmatmul.mubr.bf16.gmra.mxu0 %v2913
    %v6771 = vpop.f32.mrf.mxu0
    %v6772 = vadd.f32 %v6599, %v6771
    %v6773 = vpop.f32.mrf.mxu0
    %v6774 = vadd.f32 %v6601, %v6773
    %v6775 = vpop.f32.mrf.mxu0
    %v6776 = vadd.f32 %v6603, %v6775
    %v6777 = vpop.f32.mrf.mxu0
    %v6778 = vadd.f32 %v6605, %v6777
    %6779 = vmatprep.mubr.bf16.mxu0 0
    %6780 = vmatmul.mubr.bf16.gmra.mxu0 %v2916
    %v6781 = vpop.f32.mrf.mxu0
    %v6782 = vadd.f32 %v6609, %v6781
    %v6783 = vpop.f32.mrf.mxu0
    %v6784 = vadd.f32 %v6611, %v6783
    %v6785 = vpop.f32.mrf.mxu0
    %v6786 = vadd.f32 %v6613, %v6785
    %v6787 = vpop.f32.mrf.mxu0
    %v6788 = vadd.f32 %v6615, %v6787
    %6789 = vdwg.mxu0
    %6790 = vmatprep.subr.bf16.mxu0 %v4646
    %6791 = vmatpush1.bf16.msra.mxu0 %v4645
    %6792 = vmatprep.subr.bf16.mxu0 %v4642
    %6793 = vmatpush1.bf16.msra.mxu0 %v4641
    %6794 = vmatprep.subr.bf16.mxu0 %v4638
    %6795 = vmatpush1.bf16.msra.mxu0 %v4637
    %6796 = vmatprep.subr.bf16.mxu0 %v4634
    %6797 = vmatpush1.bf16.msra.mxu0 %v4633
    %6798 = vmatprep.subr.bf16.mxu0 %v4630
    %6799 = vmatpush1.bf16.msra.mxu0 %v4629
    %6800 = vmatprep.subr.bf16.mxu0 %v4626
    %6801 = vmatpush1.bf16.msra.mxu0 %v4625
    %6802 = vmatprep.subr.bf16.mxu0 %v4622
    %6803 = vmatpush1.bf16.msra.mxu0 %v4621
    %6804 = vmatprep.subr.bf16.mxu0 %v4618
    %6805 = vmatpush1.bf16.msra.mxu0 %v4617
    %6806 = vmatprep.subr.bf16.mxu0 %v4678
    %6807 = vmatpush2.bf16.msra.mxu0 %v4677
    %6808 = vmatprep.subr.bf16.mxu0 %v4674
    %6809 = vmatpush2.bf16.msra.mxu0 %v4673
    %6810 = vmatprep.subr.bf16.mxu0 %v4670
    %6811 = vmatpush2.bf16.msra.mxu0 %v4669
    %6812 = vmatprep.subr.bf16.mxu0 %v4666
    %6813 = vmatpush2.bf16.msra.mxu0 %v4665
    %6814 = vmatprep.subr.bf16.mxu0 %v4662
    %6815 = vmatpush2.bf16.msra.mxu0 %v4661
    %6816 = vmatprep.subr.bf16.mxu0 %v4658
    %6817 = vmatpush2.bf16.msra.mxu0 %v4657
    %6818 = vmatprep.subr.bf16.mxu0 %v4654
    %6819 = vmatpush2.bf16.msra.mxu0 %v4653
    %6820 = vmatprep.subr.bf16.mxu0 %v4650
    %6821 = vmatpush2.bf16.msra.mxu0 %v4649
    %6822 = vmatprep.mubr.bf16.mxu0 %v2656
    %6823 = vmatmul.mubr.bf16.gmra.mxu0 %v2655
    %v6824 = vpop.f32.mrf.mxu0
    %v6825 = vadd.f32 %v6652, %v6824
    %v6826 = vpop.f32.mrf.mxu0
    %v6827 = vadd.f32 %v6654, %v6826
    %v6828 = vpop.f32.mrf.mxu0
    %v6829 = vadd.f32 %v6656, %v6828
    %v6830 = vpop.f32.mrf.mxu0
    %v6831 = vadd.f32 %v6658, %v6830
    %6832 = vmatprep.mubr.bf16.mxu0 %v2660
    %6833 = vmatmul.mubr.bf16.gmra.mxu0 %v2659
    %v6834 = vpop.f32.mrf.mxu0
    %v6835 = vadd.f32 %v6662, %v6834
    %v6836 = vpop.f32.mrf.mxu0
    %v6837 = vadd.f32 %v6664, %v6836
    %v6838 = vpop.f32.mrf.mxu0
    %v6839 = vadd.f32 %v6666, %v6838
    %v6840 = vpop.f32.mrf.mxu0
    %v6841 = vadd.f32 %v6668, %v6840
    %6842 = vmatprep.mubr.bf16.mxu0 %v2664
    %6843 = vmatmul.mubr.bf16.gmra.mxu0 %v2663
    %v6844 = vpop.f32.mrf.mxu0
    %v6845 = vadd.f32 %v6672, %v6844
    %v6846 = vpop.f32.mrf.mxu0
    %v6847 = vadd.f32 %v6674, %v6846
    %v6848 = vpop.f32.mrf.mxu0
    %v6849 = vadd.f32 %v6676, %v6848
    %v6850 = vpop.f32.mrf.mxu0
    %v6851 = vadd.f32 %v6678, %v6850
    %6852 = vmatprep.mubr.bf16.mxu0 %v2668
    %6853 = vmatmul.mubr.bf16.gmra.mxu0 %v2667
    %v6854 = vpop.f32.mrf.mxu0
    %v6855 = vadd.f32 %v6682, %v6854
    %v6856 = vpop.f32.mrf.mxu0
    %v6857 = vadd.f32 %v6684, %v6856
    %v6858 = vpop.f32.mrf.mxu0
    %v6859 = vadd.f32 %v6686, %v6858
    %v6860 = vpop.f32.mrf.mxu0
    %v6861 = vadd.f32 %v6688, %v6860
    %6862 = vmatprep.mubr.bf16.mxu0 %v2672
    %6863 = vmatmul.mubr.bf16.gmra.mxu0 %v2671
    %v6864 = vpop.f32.mrf.mxu0
    %v6865 = vadd.f32 %v6692, %v6864
    %v6866 = vpop.f32.mrf.mxu0
    %v6867 = vadd.f32 %v6694, %v6866
    %v6868 = vpop.f32.mrf.mxu0
    %v6869 = vadd.f32 %v6696, %v6868
    %v6870 = vpop.f32.mrf.mxu0
    %v6871 = vadd.f32 %v6698, %v6870
    %6872 = vmatprep.mubr.bf16.mxu0 %v2676
    %6873 = vmatmul.mubr.bf16.gmra.mxu0 %v2675
    %v6874 = vpop.f32.mrf.mxu0
    %v6875 = vadd.f32 %v6702, %v6874
    %v6876 = vpop.f32.mrf.mxu0
    %v6877 = vadd.f32 %v6704, %v6876
    %v6878 = vpop.f32.mrf.mxu0
    %v6879 = vadd.f32 %v6706, %v6878
    %v6880 = vpop.f32.mrf.mxu0
    %v6881 = vadd.f32 %v6708, %v6880
    %6882 = vmatprep.mubr.bf16.mxu0 %v2680
    %6883 = vmatmul.mubr.bf16.gmra.mxu0 %v2679
    %v6884 = vpop.f32.mrf.mxu0
    %v6885 = vadd.f32 %v6712, %v6884
    %v6886 = vpop.f32.mrf.mxu0
    %v6887 = vadd.f32 %v6714, %v6886
    %v6888 = vpop.f32.mrf.mxu0
    %v6889 = vadd.f32 %v6716, %v6888
    %v6890 = vpop.f32.mrf.mxu0
    %v6891 = vadd.f32 %v6718, %v6890
    %6892 = vmatprep.mubr.bf16.mxu0 %v2684
    %6893 = vmatmul.mubr.bf16.gmra.mxu0 %v2683
    %v6894 = vpop.f32.mrf.mxu0
    %v6895 = vadd.f32 %v6722, %v6894
    %v6896 = vpop.f32.mrf.mxu0
    %v6897 = vadd.f32 %v6724, %v6896
    %v6898 = vpop.f32.mrf.mxu0
    %v6899 = vadd.f32 %v6726, %v6898
    %v6900 = vpop.f32.mrf.mxu0
    %v6901 = vadd.f32 %v6728, %v6900
    %6902 = vmatprep.mubr.bf16.mxu0 %v2688
    %6903 = vmatmul.mubr.bf16.gmra.mxu0 %v2687
    %v6904 = vpop.f32.mrf.mxu0
    %v6905 = vadd.f32 %v6732, %v6904
    %v6906 = vpop.f32.mrf.mxu0
    %v6907 = vadd.f32 %v6734, %v6906
    %v6908 = vpop.f32.mrf.mxu0
    %v6909 = vadd.f32 %v6736, %v6908
    %v6910 = vpop.f32.mrf.mxu0
    %v6911 = vadd.f32 %v6738, %v6910
    %6912 = vmatprep.mubr.bf16.mxu0 %v2692
    %6913 = vmatmul.mubr.bf16.gmra.mxu0 %v2691
    %v6914 = vpop.f32.mrf.mxu0
    %v6915 = vadd.f32 %v6742, %v6914
    %v6916 = vpop.f32.mrf.mxu0
    %v6917 = vadd.f32 %v6744, %v6916
    %v6918 = vpop.f32.mrf.mxu0
    %v6919 = vadd.f32 %v6746, %v6918
    %v6920 = vpop.f32.mrf.mxu0
    %v6921 = vadd.f32 %v6748, %v6920
    %6922 = vmatprep.mubr.bf16.mxu0 %v2696
    %6923 = vmatmul.mubr.bf16.gmra.mxu0 %v2695
    %v6924 = vpop.f32.mrf.mxu0
    %v6925 = vadd.f32 %v6752, %v6924
    %v6926 = vpop.f32.mrf.mxu0
    %v6927 = vadd.f32 %v6754, %v6926
    %v6928 = vpop.f32.mrf.mxu0
    %v6929 = vadd.f32 %v6756, %v6928
    %v6930 = vpop.f32.mrf.mxu0
    %v6931 = vadd.f32 %v6758, %v6930
    %6932 = vmatprep.mubr.bf16.mxu0 %v2700
    %6933 = vmatmul.mubr.bf16.gmra.mxu0 %v2699
    %v6934 = vpop.f32.mrf.mxu0
    %v6935 = vadd.f32 %v6762, %v6934
    %v6936 = vpop.f32.mrf.mxu0
    %v6937 = vadd.f32 %v6764, %v6936
    %v6938 = vpop.f32.mrf.mxu0
    %v6939 = vadd.f32 %v6766, %v6938
    %v6940 = vpop.f32.mrf.mxu0
    %v6941 = vadd.f32 %v6768, %v6940
    %6942 = vmatprep.mubr.bf16.mxu0 %v2704
    %6943 = vmatmul.mubr.bf16.gmra.mxu0 %v2703
    %v6944 = vpop.f32.mrf.mxu0
    %v6945 = vadd.f32 %v6772, %v6944
    %v6946 = vpop.f32.mrf.mxu0
    %v6947 = vadd.f32 %v6774, %v6946
    %v6948 = vpop.f32.mrf.mxu0
    %v6949 = vadd.f32 %v6776, %v6948
    %v6950 = vpop.f32.mrf.mxu0
    %v6951 = vadd.f32 %v6778, %v6950
    %6952 = vmatprep.mubr.bf16.mxu0 0
    %6953 = vmatmul.mubr.bf16.gmra.mxu0 0
    %v6954 = vpop.f32.mrf.mxu0
    %v6955 = vadd.f32 %v6782, %v6954
    %v6956 = vpop.f32.mrf.mxu0
    %v6957 = vadd.f32 %v6784, %v6956
    %v6958 = vpop.f32.mrf.mxu0
    %v6959 = vadd.f32 %v6786, %v6958
    %v6960 = vpop.f32.mrf.mxu0
    %v6961 = vadd.f32 %v6788, %v6960
    %6962 = vdwg.mxu0
    %6963 = vmatprep.subr.bf16.mxu0 0
    %6964 = vmatpush1.bf16.msra.mxu0 0
    %6965 = vmatprep.subr.bf16.mxu0 0
    %6966 = vmatpush1.bf16.msra.mxu0 0
    %6967 = vmatprep.subr.bf16.mxu0 0
    %6968 = vmatpush1.bf16.msra.mxu0 0
    %6969 = vmatprep.subr.bf16.mxu0 0
    %6970 = vmatpush1.bf16.msra.mxu0 0
    %6971 = vmatprep.subr.bf16.mxu0 %v4694
    %6972 = vmatpush1.bf16.msra.mxu0 %v4693
    %6973 = vmatprep.subr.bf16.mxu0 %v4690
    %6974 = vmatpush1.bf16.msra.mxu0 %v4689
    %6975 = vmatprep.subr.bf16.mxu0 %v4686
    %6976 = vmatpush1.bf16.msra.mxu0 %v4685
    %6977 = vmatprep.subr.bf16.mxu0 %v4682
    %6978 = vmatpush1.bf16.msra.mxu0 %v4681
    %6979 = vmatprep.subr.bf16.mxu0 0
    %6980 = vmatpush2.bf16.msra.mxu0 0
    %6981 = vmatprep.subr.bf16.mxu0 0
    %6982 = vmatpush2.bf16.msra.mxu0 0
    %6983 = vmatprep.subr.bf16.mxu0 0
    %6984 = vmatpush2.bf16.msra.mxu0 0
    %6985 = vmatprep.subr.bf16.mxu0 0
    %6986 = vmatpush2.bf16.msra.mxu0 0
    %6987 = vmatprep.subr.bf16.mxu0 0
    %6988 = vmatpush2.bf16.msra.mxu0 0
    %6989 = vmatprep.subr.bf16.mxu0 0
    %6990 = vmatpush2.bf16.msra.mxu0 0
    %6991 = vmatprep.subr.bf16.mxu0 0
    %6992 = vmatpush2.bf16.msra.mxu0 0
    %6993 = vmatprep.subr.bf16.mxu0 0
    %6994 = vmatpush2.bf16.msra.mxu0 0
    %6995 = vmatprep.mubr.bf16.mxu0 0
    %6996 = vmatmul.mubr.bf16.gmra.mxu0 %v5031
    %v6997 = vpop.f32.mrf.mxu0
    %v6998 = vadd.f32 %v6825, %v6997
    %v6999 = vpop.f32.mrf.mxu0
    %v7000 = vadd.f32 %v6827, %v6999
    %v7001 = vpop.f32.mrf.mxu0
    %v7002 = vadd.f32 %v6829, %v7001
    %v7003 = vpop.f32.mrf.mxu0
    %v7004 = vadd.f32 %v6831, %v7003
    %7005 = vmatprep.mubr.bf16.mxu0 0
    %7006 = vmatmul.mubr.bf16.gmra.mxu0 %v5033
    %v7007 = vpop.f32.mrf.mxu0
    %v7008 = vadd.f32 %v6835, %v7007
    %v7009 = vpop.f32.mrf.mxu0
    %v7010 = vadd.f32 %v6837, %v7009
    %v7011 = vpop.f32.mrf.mxu0
    %v7012 = vadd.f32 %v6839, %v7011
    %v7013 = vpop.f32.mrf.mxu0
    %v7014 = vadd.f32 %v6841, %v7013
    %7015 = vmatprep.mubr.bf16.mxu0 0
    %7016 = vmatmul.mubr.bf16.gmra.mxu0 %v5035
    %v7017 = vpop.f32.mrf.mxu0
    %v7018 = vadd.f32 %v6845, %v7017
    %v7019 = vpop.f32.mrf.mxu0
    %v7020 = vadd.f32 %v6847, %v7019
    %v7021 = vpop.f32.mrf.mxu0
    %v7022 = vadd.f32 %v6849, %v7021
    %v7023 = vpop.f32.mrf.mxu0
    %v7024 = vadd.f32 %v6851, %v7023
    %7025 = vmatprep.mubr.bf16.mxu0 0
    %7026 = vmatmul.mubr.bf16.gmra.mxu0 %v5037
    %v7027 = vpop.f32.mrf.mxu0
    %v7028 = vadd.f32 %v6855, %v7027
    %v7029 = vpop.f32.mrf.mxu0
    %v7030 = vadd.f32 %v6857, %v7029
    %v7031 = vpop.f32.mrf.mxu0
    %v7032 = vadd.f32 %v6859, %v7031
    %v7033 = vpop.f32.mrf.mxu0
    %v7034 = vadd.f32 %v6861, %v7033
    %7035 = vmatprep.mubr.bf16.mxu0 0
    %7036 = vmatmul.mubr.bf16.gmra.mxu0 %v5039
    %v7037 = vpop.f32.mrf.mxu0
    %v7038 = vadd.f32 %v6865, %v7037
    %v7039 = vpop.f32.mrf.mxu0
    %v7040 = vadd.f32 %v6867, %v7039
    %v7041 = vpop.f32.mrf.mxu0
    %v7042 = vadd.f32 %v6869, %v7041
    %v7043 = vpop.f32.mrf.mxu0
    %v7044 = vadd.f32 %v6871, %v7043
    %7045 = vmatprep.mubr.bf16.mxu0 0
    %7046 = vmatmul.mubr.bf16.gmra.mxu0 %v5041
    %v7047 = vpop.f32.mrf.mxu0
    %v7048 = vadd.f32 %v6875, %v7047
    %v7049 = vpop.f32.mrf.mxu0
    %v7050 = vadd.f32 %v6877, %v7049
    %v7051 = vpop.f32.mrf.mxu0
    %v7052 = vadd.f32 %v6879, %v7051
    %v7053 = vpop.f32.mrf.mxu0
    %v7054 = vadd.f32 %v6881, %v7053
    %7055 = vmatprep.mubr.bf16.mxu0 0
    %7056 = vmatmul.mubr.bf16.gmra.mxu0 %v5043
    %v7057 = vpop.f32.mrf.mxu0
    %v7058 = vadd.f32 %v6885, %v7057
    %v7059 = vpop.f32.mrf.mxu0
    %v7060 = vadd.f32 %v6887, %v7059
    %v7061 = vpop.f32.mrf.mxu0
    %v7062 = vadd.f32 %v6889, %v7061
    %v7063 = vpop.f32.mrf.mxu0
    %v7064 = vadd.f32 %v6891, %v7063
    %7065 = vmatprep.mubr.bf16.mxu0 0
    %7066 = vmatmul.mubr.bf16.gmra.mxu0 %v5045
    %v7067 = vpop.f32.mrf.mxu0
    %v7068 = vadd.f32 %v6895, %v7067
    %v7069 = vpop.f32.mrf.mxu0
    %v7070 = vadd.f32 %v6897, %v7069
    %v7071 = vpop.f32.mrf.mxu0
    %v7072 = vadd.f32 %v6899, %v7071
    %v7073 = vpop.f32.mrf.mxu0
    %v7074 = vadd.f32 %v6901, %v7073
    %7075 = vmatprep.mubr.bf16.mxu0 0
    %7076 = vmatmul.mubr.bf16.gmra.mxu0 %v5047
    %v7077 = vpop.f32.mrf.mxu0
    %v7078 = vadd.f32 %v6905, %v7077
    %v7079 = vpop.f32.mrf.mxu0
    %v7080 = vadd.f32 %v6907, %v7079
    %v7081 = vpop.f32.mrf.mxu0
    %v7082 = vadd.f32 %v6909, %v7081
    %v7083 = vpop.f32.mrf.mxu0
    %v7084 = vadd.f32 %v6911, %v7083
    %7085 = vmatprep.mubr.bf16.mxu0 0
    %7086 = vmatmul.mubr.bf16.gmra.mxu0 %v5049
    %v7087 = vpop.f32.mrf.mxu0
    %v7088 = vadd.f32 %v6915, %v7087
    %v7089 = vpop.f32.mrf.mxu0
    %v7090 = vadd.f32 %v6917, %v7089
    %v7091 = vpop.f32.mrf.mxu0
    %v7092 = vadd.f32 %v6919, %v7091
    %v7093 = vpop.f32.mrf.mxu0
    %v7094 = vadd.f32 %v6921, %v7093
    %7095 = vmatprep.mubr.bf16.mxu0 0
    %7096 = vmatmul.mubr.bf16.gmra.mxu0 %v5051
    %v7097 = vpop.f32.mrf.mxu0
    %v7098 = vadd.f32 %v6925, %v7097
    %v7099 = vpop.f32.mrf.mxu0
    %v7100 = vadd.f32 %v6927, %v7099
    %v7101 = vpop.f32.mrf.mxu0
    %v7102 = vadd.f32 %v6929, %v7101
    %v7103 = vpop.f32.mrf.mxu0
    %v7104 = vadd.f32 %v6931, %v7103
    %7105 = vmatprep.mubr.bf16.mxu0 0
    %7106 = vmatmul.mubr.bf16.gmra.mxu0 %v5053
    %v7107 = vpop.f32.mrf.mxu0
    %v7108 = vadd.f32 %v6935, %v7107
    %v7109 = vpop.f32.mrf.mxu0
    %v7110 = vadd.f32 %v6937, %v7109
    %v7111 = vpop.f32.mrf.mxu0
    %v7112 = vadd.f32 %v6939, %v7111
    %v7113 = vpop.f32.mrf.mxu0
    %v7114 = vadd.f32 %v6941, %v7113
    %7115 = vmatprep.mubr.bf16.mxu0 0
    %7116 = vmatmul.mubr.bf16.gmra.mxu0 %v5056
    %v7117 = vpop.f32.mrf.mxu0
    %v7118 = vadd.f32 %v6945, %v7117
    %v7119 = vpop.f32.mrf.mxu0
    %v7120 = vadd.f32 %v6947, %v7119
    %v7121 = vpop.f32.mrf.mxu0
    %v7122 = vadd.f32 %v6949, %v7121
    %v7123 = vpop.f32.mrf.mxu0
    %v7124 = vadd.f32 %v6951, %v7123
    %7125 = vmatprep.mubr.bf16.mxu0 0
    %7126 = vmatmul.mubr.bf16.gmra.mxu0 %v5058
    %v7127 = vpop.f32.mrf.mxu0
    %v7128 = vadd.f32 %v6955, %v7127
    %v7129 = vpop.f32.mrf.mxu0
    %v7130 = vadd.f32 %v6957, %v7129
    %v7131 = vpop.f32.mrf.mxu0
    %v7132 = vadd.f32 %v6959, %v7131
    %v7133 = vpop.f32.mrf.mxu0
    %v7134 = vadd.f32 %v6961, %v7133
    %7135 = vdwg.mxu0
    %v7136 = vld [vmem:[%s5] sm:$0xff]
    %v7137 = vld [vmem:[%s5 + $0x8] sm:$0xff]
    %v7138 = vld [vmem:[%s5 + $0x10] sm:$0xff]
    %v7139 = vld [vmem:[%s5 + $0x18] sm:$0xff]
    %v7140 = vld [vmem:[%s5 + $0x20] sm:$0xff]
    %v7141 = vld [vmem:[%s5 + $0x28] sm:$0xff]
    %v7142 = vld [vmem:[%s5 + $0x30] sm:$0xff]
    %v7143 = vld [vmem:[%s5 + $0x38] sm:$0xff]
    %v7144 = vld [vmem:[%s5 + $0x40] sm:$0xff]
    %v7145 = vld [vmem:[%s5 + $0x48] sm:$0xff]
    %v7146 = vld [vmem:[%s5 + $0x50] sm:$0xff]
    %v7147 = vld [vmem:[%s5 + $0x58] sm:$0xff]
    %v7148 = vld [vmem:[%s5 + $0x60] sm:$0xff]
    %v7149 = vld [vmem:[%s5 + $0x68] sm:$0xff]
    %v7150 = vld [vmem:[%s5 + $0x70] sm:$0xff]
    %v7151 = vld [vmem:[%s5 + $0x78] sm:$0xff]
    %v7152 = vld [vmem:[%s5 + $0x80] sm:$0xff]
    %v7153 = vld [vmem:[%s5 + $0x88] sm:$0xff]
    %v7154 = vld [vmem:[%s5 + $0x90] sm:$0xff]
    %v7155 = vld [vmem:[%s5 + $0x98] sm:$0xff]
    %v7156 = vld [vmem:[%s5 + $0xa0] sm:$0xff]
    %v7157 = vld [vmem:[%s5 + $0xa8] sm:$0xff]
    %v7158 = vld [vmem:[%s5 + $0xb0] sm:$0xff]
    %v7159 = vld [vmem:[%s5 + $0xb8] sm:$0xff]
    %v7160 = vld [vmem:[%s5 + $0xc0] sm:$0xff]
    %v7161 = vld [vmem:[%s5 + $0xc8] sm:$0xff]
    %v7162 = vld [vmem:[%s5 + $0xd0] sm:$0xff]
    %v7163 = vld [vmem:[%s5 + $0xd8] sm:$0xff]
    %v7164 = vld [vmem:[%s5 + $0xe0] sm:$0xff]
    %v7165 = vld [vmem:[%s5 + $0xe8] sm:$0xff]
    %v7166 = vld [vmem:[%s5 + $0xf0] sm:$0xff]
    %v7167 = vld [vmem:[%s5 + $0xf8] sm:$0xff]
    %v7168 = vld [vmem:[%s5 + $0x100] sm:$0xff]
    %v7169 = vld [vmem:[%s5 + $0x108] sm:$0xff]
    %v7170 = vld [vmem:[%s5 + $0x110] sm:$0xff]
    %v7171 = vld [vmem:[%s5 + $0x118] sm:$0xff]
    %v7172 = vld [vmem:[%s5 + $0x120] sm:$0xff]
    %v7173 = vld [vmem:[%s5 + $0x128] sm:$0xff]
    %v7174 = vld [vmem:[%s5 + $0x130] sm:$0xff]
    %v7175 = vld [vmem:[%s5 + $0x138] sm:$0xff]
    %v7176 = vld [vmem:[%s5 + $0x140] sm:$0xff]
    %v7177 = vld [vmem:[%s5 + $0x148] sm:$0xff]
    %v7178 = vld [vmem:[%s5 + $0x150] sm:$0xff]
    %v7179 = vld [vmem:[%s5 + $0x158] sm:$0xff]
    %v7180 = vld [vmem:[%s5 + $0x160] sm:$0xff]
    %v7181 = vld [vmem:[%s5 + $0x168] sm:$0xff]
    %v7182 = vld [vmem:[%s5 + $0x170] sm:$0xff]
    %v7183 = vld [vmem:[%s5 + $0x178] sm:$0xff]
    %v7184 = vld [vmem:[%s5 + $0x180] sm:$0xff]
    %v7185 = vld [vmem:[%s5 + $0x188] sm:$0xff]
    %v7186 = vld [vmem:[%s5 + $0x190] sm:$0xff]
    %v7187 = vld [vmem:[%s5 + $0x198] sm:$0xff]
    %v7188 = vld [vmem:[%s5 + $0x1a0] sm:$0xff]
    %v7189 = vld [vmem:[%s5 + $0x1a8] sm:$0xff]
    %v7190 = vld [vmem:[%s5 + $0x1b0] sm:$0xff]
    %v7191 = vld [vmem:[%s5 + $0x1b8] sm:$0xff]
    %v7192 = vld [vmem:[%s5 + $0x1c0] sm:$0xff]
    %v7193 = vld [vmem:[%s5 + $0x1c8] sm:$0xff]
    %v7194 = vld [vmem:[%s5 + $0x1d0] sm:$0xff]
    %v7195 = vld [vmem:[%s5 + $0x1d8] sm:$0xff]
    %v7196 = vld [vmem:[%s5 + $0x1e0] sm:$0xff]
    %v7197 = vld [vmem:[%s5 + $0x1e8] sm:$0xff]
    %v7198 = vld [vmem:[%s5 + $0x1f0] sm:$0xff]
    %v7199 = vld [vmem:[%s5 + $0x1f8] sm:$0xff]
    %v7200 = vld [vmem:[%s5 + $0x200] sm:$0xff]
    %v7201 = vld [vmem:[%s5 + $0x208] sm:$0xff]
    %v7202 = vld [vmem:[%s5 + $0x210] sm:$0xff]
    %v7203 = vld [vmem:[%s5 + $0x218] sm:$0xff]
    %v7204 = vld [vmem:[%s5 + $0x220] sm:$0xff]
    %v7205 = vld [vmem:[%s5 + $0x228] sm:$0xff]
    %v7206 = vld [vmem:[%s5 + $0x230] sm:$0xff]
    %v7207 = vld [vmem:[%s5 + $0x238] sm:$0xff]
    %v7208 = vld [vmem:[%s5 + $0x240] sm:$0xff]
    %v7209 = vld [vmem:[%s5 + $0x248] sm:$0xff]
    %v7210 = vld [vmem:[%s5 + $0x250] sm:$0xff]
    %v7211 = vld [vmem:[%s5 + $0x258] sm:$0xff]
    %v7212 = vld [vmem:[%s5 + $0x260] sm:$0xff]
    %v7213 = vld [vmem:[%s5 + $0x268] sm:$0xff]
    %v7214 = vld [vmem:[%s5 + $0x270] sm:$0xff]
    %v7215 = vld [vmem:[%s5 + $0x278] sm:$0xff]
    %v7216 = vld [vmem:[%s5 + $0x280] sm:$0xff]
    %v7217 = vld [vmem:[%s5 + $0x288] sm:$0xff]
    %v7218 = vld [vmem:[%s5 + $0x290] sm:$0xff]
    %v7219 = vld [vmem:[%s5 + $0x298] sm:$0xff]
    %v7220 = vld [vmem:[%s5 + $0x2a0] sm:$0xff]
    %v7221 = vld [vmem:[%s5 + $0x2a8] sm:$0xff]
    %v7222 = vld [vmem:[%s5 + $0x2b0] sm:$0xff]
    %v7223 = vld [vmem:[%s5 + $0x2b8] sm:$0xff]
    %v7224 = vld [vmem:[%s5 + $0x2c0] sm:$0xff]
    %v7225 = vld [vmem:[%s5 + $0x2c8] sm:$0xff]
    %v7226 = vld [vmem:[%s5 + $0x2d0] sm:$0xff]
    %v7227 = vld [vmem:[%s5 + $0x2d8] sm:$0xff]
    %v7228 = vld [vmem:[%s5 + $0x2e0] sm:$0xff]
    %v7229 = vld [vmem:[%s5 + $0x2e8] sm:$0xff]
    %v7230 = vld [vmem:[%s5 + $0x2f0] sm:$0xff]
    %v7231 = vld [vmem:[%s5 + $0x2f8] sm:$0xff]
    %v7232 = vld [vmem:[%s5 + $0x300] sm:$0xff]
    %v7233 = vld [vmem:[%s5 + $0x308] sm:$0xff]
    %v7234 = vld [vmem:[%s5 + $0x310] sm:$0xff]
    %v7235 = vld [vmem:[%s5 + $0x318] sm:$0xff]
    %v7236 = vld [vmem:[%s5 + $0x320] sm:$0xff]
    %v7237 = vld [vmem:[%s5 + $0x328] sm:$0xff]
    %v7238 = vld [vmem:[%s5 + $0x330] sm:$0xff]
    %v7239 = vld [vmem:[%s5 + $0x338] sm:$0xff]
    %v7240 = vld [vmem:[%s5 + $0x340] sm:$0xff]
    %v7241 = vld [vmem:[%s5 + $0x348] sm:$0xff]
    %v7242 = vld [vmem:[%s5 + $0x350] sm:$0xff]
    %v7243 = vld [vmem:[%s5 + $0x358] sm:$0xff]
    %v7244 = vld [vmem:[%s5 + $0x360] sm:$0xff]
    %v7245 = vld [vmem:[%s5 + $0x368] sm:$0xff]
    %v7246 = vld [vmem:[%s5 + $0x370] sm:$0xff]
    %v7247 = vld [vmem:[%s5 + $0x378] sm:$0xff]
    %v7248 = vld [vmem:[%s5 + $0x380] sm:$0xff]
    %v7249 = vld [vmem:[%s5 + $0x388] sm:$0xff]
    %v7250 = vld [vmem:[%s5 + $0x390] sm:$0xff]
    %v7251 = vld [vmem:[%s5 + $0x398] sm:$0xff]
    %v7252 = vld [vmem:[%s5 + $0x3a0] sm:$0xff]
    %v7253 = vld [vmem:[%s5 + $0x3a8] sm:$0xff]
    %v7254 = vld [vmem:[%s5 + $0x3b0] sm:$0xff]
    %v7255 = vld [vmem:[%s5 + $0x3b8] sm:$0xff]
    %v7256 = vld [vmem:[%s5 + $0x3c0] sm:$0xff]
    %v7257 = vld [vmem:[%s5 + $0x3c8] sm:$0xff]
    %v7258 = vld [vmem:[%s5 + $0x3d0] sm:$0xff]
    %v7259 = vld [vmem:[%s5 + $0x3d8] sm:$0xff]
    %v7260 = vld [vmem:[%s5 + $0x3e0] sm:$0xff]
    %v7261 = vld [vmem:[%s5 + $0x3e8] sm:$0xff]
    %v7262 = vld [vmem:[%s5 + $0x3f0] sm:$0xff]
    %v7263 = vld [vmem:[%s5 + $0x3f8] sm:$0xff]
    %v7264 = vld [vmem:[%s5 + $0x400] sm:$0xff]
    %v7265 = vld [vmem:[%s5 + $0x408] sm:$0xff]
    %v7266 = vld [vmem:[%s5 + $0x410] sm:$0xff]
    %v7267 = vld [vmem:[%s5 + $0x418] sm:$0xff]
    %v7268 = vld [vmem:[%s5 + $0x420] sm:$0xff]
    %v7269 = vld [vmem:[%s5 + $0x428] sm:$0xff]
    %v7270 = vld [vmem:[%s5 + $0x430] sm:$0xff]
    %v7271 = vld [vmem:[%s5 + $0x438] sm:$0xff]
    %v7272 = vld [vmem:[%s5 + $0x440] sm:$0xff]
    %v7273 = vld [vmem:[%s5 + $0x448] sm:$0xff]
    %v7274 = vld [vmem:[%s5 + $0x450] sm:$0xff]
    %v7275 = vld [vmem:[%s5 + $0x458] sm:$0xff]
    %v7276 = vld [vmem:[%s5 + $0x460] sm:$0xff]
    %v7277 = vld [vmem:[%s5 + $0x468] sm:$0xff]
    %v7278 = vld [vmem:[%s5 + $0x470] sm:$0xff]
    %v7279 = vld [vmem:[%s5 + $0x478] sm:$0xff]
    %v7280 = vld [vmem:[%s5 + $0x480] sm:$0xff]
    %v7281 = vld [vmem:[%s5 + $0x488] sm:$0xff]
    %v7282 = vld [vmem:[%s5 + $0x490] sm:$0xff]
    %v7283 = vld [vmem:[%s5 + $0x498] sm:$0xff]
    %v7284 = vld [vmem:[%s5 + $0x4a0] sm:$0xff]
    %v7285 = vld [vmem:[%s5 + $0x4a8] sm:$0xff]
    %v7286 = vld [vmem:[%s5 + $0x4b0] sm:$0xff]
    %v7287 = vld [vmem:[%s5 + $0x4b8] sm:$0xff]
    %v7288 = vld [vmem:[%s5 + $0x4c0] sm:$0xff]
    %v7289 = vld [vmem:[%s5 + $0x4c8] sm:$0xff]
    %v7290 = vld [vmem:[%s5 + $0x4d0] sm:$0xff]
    %v7291 = vld [vmem:[%s5 + $0x4d8] sm:$0xff]
    %v7292 = vld [vmem:[%s5 + $0x4e0] sm:$0xff]
    %v7293 = vld [vmem:[%s5 + $0x4e8] sm:$0xff]
    %v7294 = vld [vmem:[%s5 + $0x4f0] sm:$0xff]
    %v7295 = vld [vmem:[%s5 + $0x4f8] sm:$0xff]
    %v7296 = vld [vmem:[%s5 + $0x500] sm:$0xff]
    %v7297 = vld [vmem:[%s5 + $0x508] sm:$0xff]
    %v7298 = vld [vmem:[%s5 + $0x510] sm:$0xff]
    %v7299 = vld [vmem:[%s5 + $0x518] sm:$0xff]
    %v7300 = vld [vmem:[%s5 + $0x520] sm:$0xff]
    %v7301 = vld [vmem:[%s5 + $0x528] sm:$0xff]
    %v7302 = vld [vmem:[%s5 + $0x530] sm:$0xff]
    %v7303 = vld [vmem:[%s5 + $0x538] sm:$0xff]
    %v7304 = vld [vmem:[%s5 + $0x540] sm:$0xff]
    %v7305 = vld [vmem:[%s5 + $0x548] sm:$0xff]
    %v7306 = vld [vmem:[%s5 + $0x550] sm:$0xff]
    %v7307 = vld [vmem:[%s5 + $0x558] sm:$0xff]
    %v7308 = vld [vmem:[%s5 + $0x560] sm:$0xff]
    %v7309 = vld [vmem:[%s5 + $0x568] sm:$0xff]
    %v7310 = vld [vmem:[%s5 + $0x570] sm:$0xff]
    %v7311 = vld [vmem:[%s5 + $0x578] sm:$0xff]
    %v7312 = vld [vmem:[%s5 + $0x580] sm:$0xff]
    %v7313 = vld [vmem:[%s5 + $0x588] sm:$0xff]
    %v7314 = vld [vmem:[%s5 + $0x590] sm:$0xff]
    %v7315 = vld [vmem:[%s5 + $0x598] sm:$0xff]
    %v7316 = vld [vmem:[%s5 + $0x5a0] sm:$0xff]
    %v7317 = vld [vmem:[%s5 + $0x5a8] sm:$0xff]
    %v7318 = vld [vmem:[%s5 + $0x5b0] sm:$0xff]
    %v7319 = vld [vmem:[%s5 + $0x5b8] sm:$0xff]
    %v7320 = vld [vmem:[%s5 + $0x5c0] sm:$0xff]
    %v7321 = vld [vmem:[%s5 + $0x5c8] sm:$0xff]
    %v7322 = vld [vmem:[%s5 + $0x5d0] sm:$0xff]
    %v7323 = vld [vmem:[%s5 + $0x5d8] sm:$0xff]
    %v7324 = vld [vmem:[%s5 + $0x5e0] sm:$0xff]
    %v7325 = vld [vmem:[%s5 + $0x5e8] sm:$0xff]
    %v7326 = vld [vmem:[%s5 + $0x5f0] sm:$0xff]
    %v7327 = vld [vmem:[%s5 + $0x5f8] sm:$0xff]
    %v7328 = vld [vmem:[%s5 + $0x600] sm:$0xff]
    %v7329 = vld [vmem:[%s5 + $0x608] sm:$0xff]
    %v7330 = vld [vmem:[%s5 + $0x610] sm:$0xff]
    %v7331 = vld [vmem:[%s5 + $0x618] sm:$0xff]
    %v7332 = vld [vmem:[%s5 + $0x620] sm:$0xff]
    %v7333 = vld [vmem:[%s5 + $0x628] sm:$0xff]
    %v7334 = vld [vmem:[%s5 + $0x630] sm:$0xff]
    %v7335 = vld [vmem:[%s5 + $0x638] sm:$0xff]
    %v7336 = vld [vmem:[%s5 + $0x640] sm:$0xff]
    %v7337 = vld [vmem:[%s5 + $0x648] sm:$0xff]
    %v7338 = vld [vmem:[%s5 + $0x650] sm:$0xff]
    %v7339 = vld [vmem:[%s5 + $0x658] sm:$0xff]
    %v7340 = vld [vmem:[%s5 + $0x660] sm:$0xff]
    %v7341 = vld [vmem:[%s5 + $0x668] sm:$0xff]
    %v7342 = vld [vmem:[%s5 + $0x670] sm:$0xff]
    %v7343 = vld [vmem:[%s5 + $0x678] sm:$0xff]
    %v7344 = vld [vmem:[%s5 + $0x680] sm:$0xff]
    %v7345 = vld [vmem:[%s5 + $0x688] sm:$0xff]
    %v7346 = vld [vmem:[%s5 + $0x690] sm:$0xff]
    %v7347 = vld [vmem:[%s5 + $0x698] sm:$0xff]
    %v7348 = vld [vmem:[%s5 + $0x6a0] sm:$0xff]
    %v7349 = vld [vmem:[%s5 + $0x6a8] sm:$0xff]
    %v7350 = vld [vmem:[%s5 + $0x6b0] sm:$0xff]
    %v7351 = vld [vmem:[%s5 + $0x6b8] sm:$0xff]
    %v7352 = vld [vmem:[%s5 + $0x6c0] sm:$0xff]
    %v7353 = vld [vmem:[%s5 + $0x6c8] sm:$0xff]
    %v7354 = vld [vmem:[%s5 + $0x6d0] sm:$0xff]
    %v7355 = vld [vmem:[%s5 + $0x6d8] sm:$0xff]
    %v7356 = vld [vmem:[%s5 + $0x6e0] sm:$0xff]
    %v7357 = vld [vmem:[%s5 + $0x6e8] sm:$0xff]
    %v7358 = vld [vmem:[%s5 + $0x6f0] sm:$0xff]
    %v7359 = vld [vmem:[%s5 + $0x6f8] sm:$0xff]
    %v7360 = vld [vmem:[%s5 + $0x700] sm:$0xff]
    %v7361 = vld [vmem:[%s5 + $0x708] sm:$0xff]
    %v7362 = vld [vmem:[%s5 + $0x710] sm:$0xff]
    %v7363 = vld [vmem:[%s5 + $0x718] sm:$0xff]
    %v7364 = vld [vmem:[%s5 + $0x720] sm:$0xff]
    %v7365 = vld [vmem:[%s5 + $0x728] sm:$0xff]
    %v7366 = vld [vmem:[%s5 + $0x730] sm:$0xff]
    %v7367 = vld [vmem:[%s5 + $0x738] sm:$0xff]
    %v7368 = vld [vmem:[%s5 + $0x740] sm:$0xff]
    %v7369 = vld [vmem:[%s5 + $0x748] sm:$0xff]
    %v7370 = vld [vmem:[%s5 + $0x750] sm:$0xff]
    %v7371 = vld [vmem:[%s5 + $0x758] sm:$0xff]
    %v7372 = vld [vmem:[%s5 + $0x760] sm:$0xff]
    %v7373 = vld [vmem:[%s5 + $0x768] sm:$0xff]
    %v7374 = vld [vmem:[%s5 + $0x770] sm:$0xff]
    %v7375 = vld [vmem:[%s5 + $0x778] sm:$0xff]
    %v7376 = vld [vmem:[%s5 + $0x780] sm:$0xff]
    %v7377 = vld [vmem:[%s5 + $0x788] sm:$0xff]
    %v7378 = vld [vmem:[%s5 + $0x790] sm:$0xff]
    %v7379 = vld [vmem:[%s5 + $0x798] sm:$0xff]
    %v7380 = vld [vmem:[%s5 + $0x7a0] sm:$0xff]
    %v7381 = vld [vmem:[%s5 + $0x7a8] sm:$0xff]
    %v7382 = vld [vmem:[%s5 + $0x7b0] sm:$0xff]
    %v7383 = vld [vmem:[%s5 + $0x7b8] sm:$0xff]
    %v7384 = vld [vmem:[%s5 + $0x7c0] sm:$0xff]
    %v7385 = vld [vmem:[%s5 + $0x7c8] sm:$0xff]
    %v7386 = vld [vmem:[%s5 + $0x7d0] sm:$0xff]
    %v7387 = vld [vmem:[%s5 + $0x7d8] sm:$0xff]
    %v7388 = vld [vmem:[%s5 + $0x7e0] sm:$0xff]
    %v7389 = vld [vmem:[%s5 + $0x7e8] sm:$0xff]
    %v7390 = vld [vmem:[%s5 + $0x7f0] sm:$0xff]
    %v7391 = vld [vmem:[%s5 + $0x7f8] sm:$0xff]
    %v7392 = vld [vmem:[%s5 + $0x800] sm:$0xff]
    %v7393 = vld [vmem:[%s5 + $0x808] sm:$0xff]
    %v7394 = vld [vmem:[%s5 + $0x810] sm:$0xff]
    %v7395 = vld [vmem:[%s5 + $0x818] sm:$0xff]
    %v7396 = vld [vmem:[%s5 + $0x820] sm:$0xff]
    %v7397 = vld [vmem:[%s5 + $0x828] sm:$0xff]
    %v7398 = vld [vmem:[%s5 + $0x830] sm:$0xff]
    %v7399 = vld [vmem:[%s5 + $0x838] sm:$0xff]
    %v7400 = vld [vmem:[%s5 + $0x840] sm:$0xff]
    %v7401 = vld [vmem:[%s5 + $0x848] sm:$0xff]
    %v7402 = vld [vmem:[%s5 + $0x850] sm:$0xff]
    %v7403 = vld [vmem:[%s5 + $0x858] sm:$0xff]
    %v7404 = vld [vmem:[%s5 + $0x860] sm:$0xff]
    %v7405 = vld [vmem:[%s5 + $0x868] sm:$0xff]
    %v7406 = vld [vmem:[%s5 + $0x870] sm:$0xff]
    %v7407 = vld [vmem:[%s5 + $0x878] sm:$0xff]
    %v7408 = vld [vmem:[%s5 + $0x880] sm:$0xff]
    %v7409 = vld [vmem:[%s5 + $0x888] sm:$0xff]
    %v7410 = vld [vmem:[%s5 + $0x890] sm:$0xff]
    %v7411 = vld [vmem:[%s5 + $0x898] sm:$0xff]
    %v7412 = vld [vmem:[%s5 + $0x8a0] sm:$0xff]
    %v7413 = vld [vmem:[%s5 + $0x8a8] sm:$0xff]
    %v7414 = vld [vmem:[%s5 + $0x8b0] sm:$0xff]
    %v7415 = vld [vmem:[%s5 + $0x8b8] sm:$0xff]
    %v7416 = vld [vmem:[%s5 + $0x8c0] sm:$0xff]
    %v7417 = vld [vmem:[%s5 + $0x8c8] sm:$0xff]
    %v7418 = vld [vmem:[%s5 + $0x8d0] sm:$0xff]
    %v7419 = vld [vmem:[%s5 + $0x8d8] sm:$0xff]
    %v7420 = vld [vmem:[%s5 + $0x8e0] sm:$0xff]
    %v7421 = vld [vmem:[%s5 + $0x8e8] sm:$0xff]
    %v7422 = vld [vmem:[%s5 + $0x8f0] sm:$0xff]
    %v7423 = vld [vmem:[%s5 + $0x8f8] sm:$0xff]
    %v7424 = vld [vmem:[%s5 + $0x900] sm:$0xff]
    %v7425 = vld [vmem:[%s5 + $0x908] sm:$0xff]
    %v7426 = vld [vmem:[%s5 + $0x910] sm:$0xff]
    %v7427 = vld [vmem:[%s5 + $0x918] sm:$0xff]
    %v7428 = vld [vmem:[%s5 + $0x920] sm:$0xff]
    %v7429 = vld [vmem:[%s5 + $0x928] sm:$0xff]
    %v7430 = vld [vmem:[%s5 + $0x930] sm:$0xff]
    %v7431 = vld [vmem:[%s5 + $0x938] sm:$0xff]
    %v7432 = vld [vmem:[%s5 + $0x940] sm:$0xff]
    %v7433 = vld [vmem:[%s5 + $0x948] sm:$0xff]
    %v7434 = vld [vmem:[%s5 + $0x950] sm:$0xff]
    %v7435 = vld [vmem:[%s5 + $0x958] sm:$0xff]
    %v7436 = vld [vmem:[%s5 + $0x960] sm:$0xff]
    %v7437 = vld [vmem:[%s5 + $0x968] sm:$0xff]
    %v7438 = vld [vmem:[%s5 + $0x970] sm:$0xff]
    %v7439 = vld [vmem:[%s5 + $0x978] sm:$0xff]
    %v7440 = vld [vmem:[%s5 + $0x980] sm:$0xff]
    %v7441 = vld [vmem:[%s5 + $0x988] sm:$0xff]
    %v7442 = vld [vmem:[%s5 + $0x990] sm:$0xff]
    %v7443 = vld [vmem:[%s5 + $0x998] sm:$0xff]
    %v7444 = vld [vmem:[%s5 + $0x9a0] sm:$0xff]
    %v7445 = vld [vmem:[%s5 + $0x9a8] sm:$0xff]
    %v7446 = vld [vmem:[%s5 + $0x9b0] sm:$0xff]
    %v7447 = vld [vmem:[%s5 + $0x9b8] sm:$0xff]
    %v7448 = vld [vmem:[%s5 + $0x9c0] sm:$0xff]
    %v7449 = vld [vmem:[%s5 + $0x9c8] sm:$0xff]
    %v7450 = vld [vmem:[%s5 + $0x9d0] sm:$0xff]
    %v7451 = vld [vmem:[%s5 + $0x9d8] sm:$0xff]
    %v7452 = vld [vmem:[%s5 + $0x9e0] sm:$0xff]
    %v7453 = vld [vmem:[%s5 + $0x9e8] sm:$0xff]
    %v7454 = vld [vmem:[%s5 + $0x9f0] sm:$0xff]
    %v7455 = vld [vmem:[%s5 + $0x9f8] sm:$0xff]
    %v7456 = vld [vmem:[%s5 + $0xa00] sm:$0xff]
    %v7457 = vld [vmem:[%s5 + $0xa08] sm:$0xff]
    %v7458 = vld [vmem:[%s5 + $0xa10] sm:$0xff]
    %v7459 = vld [vmem:[%s5 + $0xa18] sm:$0xff]
    %v7460 = vld [vmem:[%s5 + $0xa20] sm:$0xff]
    %v7461 = vld [vmem:[%s5 + $0xa28] sm:$0xff]
    %v7462 = vld [vmem:[%s5 + $0xa30] sm:$0xff]
    %v7463 = vld [vmem:[%s5 + $0xa38] sm:$0xff]
    %v7464 = vld [vmem:[%s5 + $0xa40] sm:$0xff]
    %v7465 = vld [vmem:[%s5 + $0xa48] sm:$0xff]
    %v7466 = vld [vmem:[%s5 + $0xa50] sm:$0xff]
    %v7467 = vld [vmem:[%s5 + $0xa58] sm:$0xff]
    %v7468 = vld [vmem:[%s5 + $0xa60] sm:$0xff]
    %v7469 = vld [vmem:[%s5 + $0xa68] sm:$0xff]
    %v7470 = vld [vmem:[%s5 + $0xa70] sm:$0xff]
    %v7471 = vld [vmem:[%s5 + $0xa78] sm:$0xff]
    %v7808 = vunpack.c.l.b16 %v7136
    %v7809 = vunpack.c.h.b16 %v7136
    %v7810 = vunpack.c.l.b16 %v7137
    %v7811 = vunpack.c.h.b16 %v7137
    %v7812 = vunpack.c.l.b16 %v7138
    %v7813 = vunpack.c.h.b16 %v7138
    %v7814 = vunpack.c.l.b16 %v7139
    %v7815 = vunpack.c.h.b16 %v7139
    %v7816 = vunpack.c.l.b16 %v7140
    %v7817 = vunpack.c.h.b16 %v7140
    %v7818 = vunpack.c.l.b16 %v7141
    %v7819 = vunpack.c.h.b16 %v7141
    %v7820 = vunpack.c.l.b16 %v7142
    %v7821 = vunpack.c.h.b16 %v7142
    %v7822 = vunpack.c.l.b16 %v7143
    %v7823 = vunpack.c.h.b16 %v7143
    %v7824 = vunpack.c.l.b16 %v7144
    %v7825 = vunpack.c.h.b16 %v7144
    %v7826 = vunpack.c.l.b16 %v7145
    %v7827 = vunpack.c.h.b16 %v7145
    %v7828 = vunpack.c.l.b16 %v7146
    %v7829 = vunpack.c.h.b16 %v7146
    %v7830 = vunpack.c.l.b16 %v7147
    %v7831 = vunpack.c.h.b16 %v7147
    %v7832 = vunpack.c.l.b16 %v7148
    %v7833 = vunpack.c.h.b16 %v7148
    %v7834 = vunpack.c.l.b16 %v7149
    %v7835 = vunpack.c.h.b16 %v7149
    %v7836 = vunpack.c.l.b16 %v7150
    %v7837 = vunpack.c.h.b16 %v7150
    %v7838 = vunpack.c.l.b16 %v7151
    %v7839 = vunpack.c.h.b16 %v7151
    %v7840 = vunpack.c.l.b16 %v7152
    %v7841 = vunpack.c.h.b16 %v7152
    %v7842 = vunpack.c.l.b16 %v7153
    %v7843 = vunpack.c.h.b16 %v7153
    %v7844 = vunpack.c.l.b16 %v7154
    %v7845 = vunpack.c.h.b16 %v7154
    %v7846 = vunpack.c.l.b16 %v7155
    %v7847 = vunpack.c.h.b16 %v7155
    %v7848 = vunpack.c.l.b16 %v7156
    %v7849 = vunpack.c.h.b16 %v7156
    %v7850 = vunpack.c.l.b16 %v7157
    %v7851 = vunpack.c.h.b16 %v7157
    %v7852 = vunpack.c.l.b16 %v7158
    %v7853 = vunpack.c.h.b16 %v7158
    %v7854 = vunpack.c.l.b16 %v7159
    %v7855 = vunpack.c.h.b16 %v7159
    %v7856 = vunpack.c.l.b16 %v7160
    %v7857 = vunpack.c.h.b16 %v7160
    %v7858 = vunpack.c.l.b16 %v7161
    %v7859 = vunpack.c.h.b16 %v7161
    %v7860 = vunpack.c.l.b16 %v7162
    %v7861 = vunpack.c.h.b16 %v7162
    %v7862 = vunpack.c.l.b16 %v7163
    %v7863 = vunpack.c.h.b16 %v7163
    %v7864 = vunpack.c.l.b16 %v7164
    %v7865 = vunpack.c.h.b16 %v7164
    %v7866 = vunpack.c.l.b16 %v7165
    %v7867 = vunpack.c.h.b16 %v7165
    %v7868 = vunpack.c.l.b16 %v7166
    %v7869 = vunpack.c.h.b16 %v7166
    %v7870 = vunpack.c.l.b16 %v7167
    %v7871 = vunpack.c.h.b16 %v7167
    %v7872 = vunpack.c.l.b16 %v7168
    %v7873 = vunpack.c.h.b16 %v7168
    %v7874 = vunpack.c.l.b16 %v7169
    %v7875 = vunpack.c.h.b16 %v7169
    %v7876 = vunpack.c.l.b16 %v7170
    %v7877 = vunpack.c.h.b16 %v7170
    %v7878 = vunpack.c.l.b16 %v7171
    %v7879 = vunpack.c.h.b16 %v7171
    %v7880 = vunpack.c.l.b16 %v7172
    %v7881 = vunpack.c.h.b16 %v7172
    %v7882 = vunpack.c.l.b16 %v7173
    %v7883 = vunpack.c.h.b16 %v7173
    %v7884 = vunpack.c.l.b16 %v7174
    %v7885 = vunpack.c.h.b16 %v7174
    %v7886 = vunpack.c.l.b16 %v7175
    %v7887 = vunpack.c.h.b16 %v7175
    %v7888 = vunpack.c.l.b16 %v7176
    %v7889 = vunpack.c.h.b16 %v7176
    %v7890 = vunpack.c.l.b16 %v7177
    %v7891 = vunpack.c.h.b16 %v7177
    %v7892 = vunpack.c.l.b16 %v7178
    %v7893 = vunpack.c.h.b16 %v7178
    %v7894 = vunpack.c.l.b16 %v7179
    %v7895 = vunpack.c.h.b16 %v7179
    %v7896 = vunpack.c.l.b16 %v7180
    %v7897 = vunpack.c.h.b16 %v7180
    %v7898 = vunpack.c.l.b16 %v7181
    %v7899 = vunpack.c.h.b16 %v7181
    %v7900 = vunpack.c.l.b16 %v7182
    %v7901 = vunpack.c.h.b16 %v7182
    %v7902 = vunpack.c.l.b16 %v7183
    %v7903 = vunpack.c.h.b16 %v7183
    %v7904 = vunpack.c.l.b16 %v7184
    %v7905 = vunpack.c.h.b16 %v7184
    %v7906 = vunpack.c.l.b16 %v7185
    %v7907 = vunpack.c.h.b16 %v7185
    %v7908 = vunpack.c.l.b16 %v7186
    %v7909 = vunpack.c.h.b16 %v7186
    %v7910 = vunpack.c.l.b16 %v7187
    %v7911 = vunpack.c.h.b16 %v7187
    %v7912 = vunpack.c.l.b16 %v7188
    %v7913 = vunpack.c.h.b16 %v7188
    %v7914 = vunpack.c.l.b16 %v7189
    %v7915 = vunpack.c.h.b16 %v7189
    %v7916 = vunpack.c.l.b16 %v7190
    %v7917 = vunpack.c.h.b16 %v7190
    %v7918 = vunpack.c.l.b16 %v7191
    %v7919 = vunpack.c.h.b16 %v7191
    %v7920 = vunpack.c.l.b16 %v7192
    %v7921 = vunpack.c.h.b16 %v7192
    %v7922 = vunpack.c.l.b16 %v7193
    %v7923 = vunpack.c.h.b16 %v7193
    %v7924 = vunpack.c.l.b16 %v7194
    %v7925 = vunpack.c.h.b16 %v7194
    %v7926 = vunpack.c.l.b16 %v7195
    %v7927 = vunpack.c.h.b16 %v7195
    %v7928 = vunpack.c.l.b16 %v7196
    %v7929 = vunpack.c.h.b16 %v7196
    %v7930 = vunpack.c.l.b16 %v7197
    %v7931 = vunpack.c.h.b16 %v7197
    %v7932 = vunpack.c.l.b16 %v7198
    %v7933 = vunpack.c.h.b16 %v7198
    %v7934 = vunpack.c.l.b16 %v7199
    %v7935 = vunpack.c.h.b16 %v7199
    %v7936 = vunpack.c.l.b16 %v7200
    %v7937 = vunpack.c.h.b16 %v7200
    %v7938 = vunpack.c.l.b16 %v7201
    %v7939 = vunpack.c.h.b16 %v7201
    %v7940 = vunpack.c.l.b16 %v7202
    %v7941 = vunpack.c.h.b16 %v7202
    %v7942 = vunpack.c.l.b16 %v7203
    %v7943 = vunpack.c.h.b16 %v7203
    %v7944 = vunpack.c.l.b16 %v7204
    %v7945 = vunpack.c.h.b16 %v7204
    %v7946 = vunpack.c.l.b16 %v7205
    %v7947 = vunpack.c.h.b16 %v7205
    %v7948 = vunpack.c.l.b16 %v7206
    %v7949 = vunpack.c.h.b16 %v7206
    %v7950 = vunpack.c.l.b16 %v7207
    %v7951 = vunpack.c.h.b16 %v7207
    %v7952 = vunpack.c.l.b16 %v7208
    %v7953 = vunpack.c.h.b16 %v7208
    %v7954 = vunpack.c.l.b16 %v7209
    %v7955 = vunpack.c.h.b16 %v7209
    %v7956 = vunpack.c.l.b16 %v7210
    %v7957 = vunpack.c.h.b16 %v7210
    %v7958 = vunpack.c.l.b16 %v7211
    %v7959 = vunpack.c.h.b16 %v7211
    %v7960 = vunpack.c.l.b16 %v7212
    %v7961 = vunpack.c.h.b16 %v7212
    %v7962 = vunpack.c.l.b16 %v7213
    %v7963 = vunpack.c.h.b16 %v7213
    %v7964 = vunpack.c.l.b16 %v7214
    %v7965 = vunpack.c.h.b16 %v7214
    %v7966 = vunpack.c.l.b16 %v7215
    %v7967 = vunpack.c.h.b16 %v7215
    %v7968 = vunpack.c.l.b16 %v7216
    %v7969 = vunpack.c.h.b16 %v7216
    %v7970 = vunpack.c.l.b16 %v7217
    %v7971 = vunpack.c.h.b16 %v7217
    %v7972 = vunpack.c.l.b16 %v7218
    %v7973 = vunpack.c.h.b16 %v7218
    %v7974 = vunpack.c.l.b16 %v7219
    %v7975 = vunpack.c.h.b16 %v7219
    %v7976 = vunpack.c.l.b16 %v7220
    %v7977 = vunpack.c.h.b16 %v7220
    %v7978 = vunpack.c.l.b16 %v7221
    %v7979 = vunpack.c.h.b16 %v7221
    %v7980 = vunpack.c.l.b16 %v7222
    %v7981 = vunpack.c.h.b16 %v7222
    %v7982 = vunpack.c.l.b16 %v7223
    %v7983 = vunpack.c.h.b16 %v7223
    %v7984 = vunpack.c.l.b16 %v7224
    %v7985 = vunpack.c.h.b16 %v7224
    %v7986 = vunpack.c.l.b16 %v7225
    %v7987 = vunpack.c.h.b16 %v7225
    %v7988 = vunpack.c.l.b16 %v7226
    %v7989 = vunpack.c.h.b16 %v7226
    %v7990 = vunpack.c.l.b16 %v7227
    %v7991 = vunpack.c.h.b16 %v7227
    %v7992 = vunpack.c.l.b16 %v7228
    %v7993 = vunpack.c.h.b16 %v7228
    %v7994 = vunpack.c.l.b16 %v7229
    %v7995 = vunpack.c.h.b16 %v7229
    %v7996 = vunpack.c.l.b16 %v7230
    %v7997 = vunpack.c.h.b16 %v7230
    %v7998 = vunpack.c.l.b16 %v7231
    %v7999 = vunpack.c.h.b16 %v7231
    %v8000 = vunpack.c.l.b16 %v7232
    %v8001 = vunpack.c.h.b16 %v7232
    %v8002 = vunpack.c.l.b16 %v7233
    %v8003 = vunpack.c.h.b16 %v7233
    %v8004 = vunpack.c.l.b16 %v7234
    %v8005 = vunpack.c.h.b16 %v7234
    %v8006 = vunpack.c.l.b16 %v7235
    %v8007 = vunpack.c.h.b16 %v7235
    %v8008 = vunpack.c.l.b16 %v7236
    %v8009 = vunpack.c.h.b16 %v7236
    %v8010 = vunpack.c.l.b16 %v7237
    %v8011 = vunpack.c.h.b16 %v7237
    %v8012 = vunpack.c.l.b16 %v7238
    %v8013 = vunpack.c.h.b16 %v7238
    %v8014 = vunpack.c.l.b16 %v7239
    %v8015 = vunpack.c.h.b16 %v7239
    %v8016 = vunpack.c.l.b16 %v7240
    %v8017 = vunpack.c.h.b16 %v7240
    %v8018 = vunpack.c.l.b16 %v7241
    %v8019 = vunpack.c.h.b16 %v7241
    %v8020 = vunpack.c.l.b16 %v7242
    %v8021 = vunpack.c.h.b16 %v7242
    %v8022 = vunpack.c.l.b16 %v7243
    %v8023 = vunpack.c.h.b16 %v7243
    %v8024 = vunpack.c.l.b16 %v7244
    %v8025 = vunpack.c.h.b16 %v7244
    %v8026 = vunpack.c.l.b16 %v7245
    %v8027 = vunpack.c.h.b16 %v7245
    %v8028 = vunpack.c.l.b16 %v7246
    %v8029 = vunpack.c.h.b16 %v7246
    %v8030 = vunpack.c.l.b16 %v7247
    %v8031 = vunpack.c.h.b16 %v7247
    %v8032 = vunpack.c.l.b16 %v7248
    %v8033 = vunpack.c.h.b16 %v7248
    %v8034 = vunpack.c.l.b16 %v7249
    %v8035 = vunpack.c.h.b16 %v7249
    %v8036 = vunpack.c.l.b16 %v7250
    %v8037 = vunpack.c.h.b16 %v7250
    %v8038 = vunpack.c.l.b16 %v7251
    %v8039 = vunpack.c.h.b16 %v7251
    %v8040 = vunpack.c.l.b16 %v7252
    %v8041 = vunpack.c.h.b16 %v7252
    %v8042 = vunpack.c.l.b16 %v7253
    %v8043 = vunpack.c.h.b16 %v7253
    %v8044 = vunpack.c.l.b16 %v7254
    %v8045 = vunpack.c.h.b16 %v7254
    %v8046 = vunpack.c.l.b16 %v7255
    %v8047 = vunpack.c.h.b16 %v7255
    %v8048 = vunpack.c.l.b16 %v7256
    %v8049 = vunpack.c.h.b16 %v7256
    %v8050 = vunpack.c.l.b16 %v7257
    %v8051 = vunpack.c.h.b16 %v7257
    %v8052 = vunpack.c.l.b16 %v7258
    %v8053 = vunpack.c.h.b16 %v7258
    %v8054 = vunpack.c.l.b16 %v7259
    %v8055 = vunpack.c.h.b16 %v7259
    %v8056 = vunpack.c.l.b16 %v7260
    %v8057 = vunpack.c.h.b16 %v7260
    %v8058 = vunpack.c.l.b16 %v7261
    %v8059 = vunpack.c.h.b16 %v7261
    %v8060 = vunpack.c.l.b16 %v7262
    %v8061 = vunpack.c.h.b16 %v7262
    %v8062 = vunpack.c.l.b16 %v7263
    %v8063 = vunpack.c.h.b16 %v7263
    %v8064 = vunpack.c.l.b16 %v7264
    %v8065 = vunpack.c.h.b16 %v7264
    %v8066 = vunpack.c.l.b16 %v7265
    %v8067 = vunpack.c.h.b16 %v7265
    %v8068 = vunpack.c.l.b16 %v7266
    %v8069 = vunpack.c.h.b16 %v7266
    %v8070 = vunpack.c.l.b16 %v7267
    %v8071 = vunpack.c.h.b16 %v7267
    %v8072 = vunpack.c.l.b16 %v7268
    %v8073 = vunpack.c.h.b16 %v7268
    %v8074 = vunpack.c.l.b16 %v7269
    %v8075 = vunpack.c.h.b16 %v7269
    %v8076 = vunpack.c.l.b16 %v7270
    %v8077 = vunpack.c.h.b16 %v7270
    %v8078 = vunpack.c.l.b16 %v7271
    %v8079 = vunpack.c.h.b16 %v7271
    %v8080 = vunpack.c.l.b16 %v7272
    %v8081 = vunpack.c.h.b16 %v7272
    %v8082 = vunpack.c.l.b16 %v7273
    %v8083 = vunpack.c.h.b16 %v7273
    %v8084 = vunpack.c.l.b16 %v7274
    %v8085 = vunpack.c.h.b16 %v7274
    %v8086 = vunpack.c.l.b16 %v7275
    %v8087 = vunpack.c.h.b16 %v7275
    %v8088 = vunpack.c.l.b16 %v7276
    %v8089 = vunpack.c.h.b16 %v7276
    %v8090 = vunpack.c.l.b16 %v7277
    %v8091 = vunpack.c.h.b16 %v7277
    %v8092 = vunpack.c.l.b16 %v7278
    %v8093 = vunpack.c.h.b16 %v7278
    %v8094 = vunpack.c.l.b16 %v7279
    %v8095 = vunpack.c.h.b16 %v7279
    %v8096 = vunpack.c.l.b16 %v7280
    %v8097 = vunpack.c.h.b16 %v7280
    %v8098 = vunpack.c.l.b16 %v7281
    %v8099 = vunpack.c.h.b16 %v7281
    %v8100 = vunpack.c.l.b16 %v7282
    %v8101 = vunpack.c.h.b16 %v7282
    %v8102 = vunpack.c.l.b16 %v7283
    %v8103 = vunpack.c.h.b16 %v7283
    %v8104 = vunpack.c.l.b16 %v7284
    %v8105 = vunpack.c.h.b16 %v7284
    %v8106 = vunpack.c.l.b16 %v7285
    %v8107 = vunpack.c.h.b16 %v7285
    %v8108 = vunpack.c.l.b16 %v7286
    %v8109 = vunpack.c.h.b16 %v7286
    %v8110 = vunpack.c.l.b16 %v7287
    %v8111 = vunpack.c.h.b16 %v7287
    %v8112 = vunpack.c.l.b16 %v7288
    %v8113 = vunpack.c.h.b16 %v7288
    %v8114 = vunpack.c.l.b16 %v7289
    %v8115 = vunpack.c.h.b16 %v7289
    %v8116 = vunpack.c.l.b16 %v7290
    %v8117 = vunpack.c.h.b16 %v7290
    %v8118 = vunpack.c.l.b16 %v7291
    %v8119 = vunpack.c.h.b16 %v7291
    %v8120 = vunpack.c.l.b16 %v7292
    %v8121 = vunpack.c.h.b16 %v7292
    %v8122 = vunpack.c.l.b16 %v7293
    %v8123 = vunpack.c.h.b16 %v7293
    %v8124 = vunpack.c.l.b16 %v7294
    %v8125 = vunpack.c.h.b16 %v7294
    %v8126 = vunpack.c.l.b16 %v7295
    %v8127 = vunpack.c.h.b16 %v7295
    %v8128 = vunpack.c.l.b16 %v7296
    %v8129 = vunpack.c.h.b16 %v7296
    %v8130 = vunpack.c.l.b16 %v7297
    %v8131 = vunpack.c.h.b16 %v7297
    %v8132 = vunpack.c.l.b16 %v7298
    %v8133 = vunpack.c.h.b16 %v7298
    %v8134 = vunpack.c.l.b16 %v7299
    %v8135 = vunpack.c.h.b16 %v7299
    %v8136 = vunpack.c.l.b16 %v7300
    %v8137 = vunpack.c.h.b16 %v7300
    %v8138 = vunpack.c.l.b16 %v7301
    %v8139 = vunpack.c.h.b16 %v7301
    %v8140 = vunpack.c.l.b16 %v7302
    %v8141 = vunpack.c.h.b16 %v7302
    %v8142 = vunpack.c.l.b16 %v7303
    %v8143 = vunpack.c.h.b16 %v7303
    %v8144 = vunpack.c.l.b16 %v7304
    %v8145 = vunpack.c.h.b16 %v7304
    %v8146 = vunpack.c.l.b16 %v7305
    %v8147 = vunpack.c.h.b16 %v7305
    %v8148 = vunpack.c.l.b16 %v7306
    %v8149 = vunpack.c.h.b16 %v7306
    %v8150 = vunpack.c.l.b16 %v7307
    %v8151 = vunpack.c.h.b16 %v7307
    %v8152 = vunpack.c.l.b16 %v7308
    %v8153 = vunpack.c.h.b16 %v7308
    %v8154 = vunpack.c.l.b16 %v7309
    %v8155 = vunpack.c.h.b16 %v7309
    %v8156 = vunpack.c.l.b16 %v7310
    %v8157 = vunpack.c.h.b16 %v7310
    %v8158 = vunpack.c.l.b16 %v7311
    %v8159 = vunpack.c.h.b16 %v7311
    %v8160 = vunpack.c.l.b16 %v7312
    %v8161 = vunpack.c.h.b16 %v7312
    %v8162 = vunpack.c.l.b16 %v7313
    %v8163 = vunpack.c.h.b16 %v7313
    %v8164 = vunpack.c.l.b16 %v7314
    %v8165 = vunpack.c.h.b16 %v7314
    %v8166 = vunpack.c.l.b16 %v7315
    %v8167 = vunpack.c.h.b16 %v7315
    %v8168 = vunpack.c.l.b16 %v7316
    %v8169 = vunpack.c.h.b16 %v7316
    %v8170 = vunpack.c.l.b16 %v7317
    %v8171 = vunpack.c.h.b16 %v7317
    %v8172 = vunpack.c.l.b16 %v7318
    %v8173 = vunpack.c.h.b16 %v7318
    %v8174 = vunpack.c.l.b16 %v7319
    %v8175 = vunpack.c.h.b16 %v7319
    %v8176 = vunpack.c.l.b16 %v7320
    %v8177 = vunpack.c.h.b16 %v7320
    %v8178 = vunpack.c.l.b16 %v7321
    %v8179 = vunpack.c.h.b16 %v7321
    %v8180 = vunpack.c.l.b16 %v7322
    %v8181 = vunpack.c.h.b16 %v7322
    %v8182 = vunpack.c.l.b16 %v7323
    %v8183 = vunpack.c.h.b16 %v7323
    %v8184 = vunpack.c.l.b16 %v7324
    %v8185 = vunpack.c.h.b16 %v7324
    %v8186 = vunpack.c.l.b16 %v7325
    %v8187 = vunpack.c.h.b16 %v7325
    %v8188 = vunpack.c.l.b16 %v7326
    %v8189 = vunpack.c.h.b16 %v7326
    %v8190 = vunpack.c.l.b16 %v7327
    %v8191 = vunpack.c.h.b16 %v7327
    %v8192 = vunpack.c.l.b16 %v7328
    %v8193 = vunpack.c.h.b16 %v7328
    %v8194 = vunpack.c.l.b16 %v7329
    %v8195 = vunpack.c.h.b16 %v7329
    %v8196 = vunpack.c.l.b16 %v7330
    %v8197 = vunpack.c.h.b16 %v7330
    %v8198 = vunpack.c.l.b16 %v7331
    %v8199 = vunpack.c.h.b16 %v7331
    %v8200 = vunpack.c.l.b16 %v7332
    %v8201 = vunpack.c.h.b16 %v7332
    %v8202 = vunpack.c.l.b16 %v7333
    %v8203 = vunpack.c.h.b16 %v7333
    %v8204 = vunpack.c.l.b16 %v7334
    %v8205 = vunpack.c.h.b16 %v7334
    %v8206 = vunpack.c.l.b16 %v7335
    %v8207 = vunpack.c.h.b16 %v7335
    %v8208 = vunpack.c.l.b16 %v7336
    %v8209 = vunpack.c.h.b16 %v7336
    %v8210 = vunpack.c.l.b16 %v7337
    %v8211 = vunpack.c.h.b16 %v7337
    %v8212 = vunpack.c.l.b16 %v7338
    %v8213 = vunpack.c.h.b16 %v7338
    %v8214 = vunpack.c.l.b16 %v7339
    %v8215 = vunpack.c.h.b16 %v7339
    %v8216 = vunpack.c.l.b16 %v7340
    %v8217 = vunpack.c.h.b16 %v7340
    %v8218 = vunpack.c.l.b16 %v7341
    %v8219 = vunpack.c.h.b16 %v7341
    %v8220 = vunpack.c.l.b16 %v7342
    %v8221 = vunpack.c.h.b16 %v7342
    %v8222 = vunpack.c.l.b16 %v7343
    %v8223 = vunpack.c.h.b16 %v7343
    %v8224 = vunpack.c.l.b16 %v7344
    %v8225 = vunpack.c.h.b16 %v7344
    %v8226 = vunpack.c.l.b16 %v7345
    %v8227 = vunpack.c.h.b16 %v7345
    %v8228 = vunpack.c.l.b16 %v7346
    %v8229 = vunpack.c.h.b16 %v7346
    %v8230 = vunpack.c.l.b16 %v7347
    %v8231 = vunpack.c.h.b16 %v7347
    %v8232 = vunpack.c.l.b16 %v7348
    %v8233 = vunpack.c.h.b16 %v7348
    %v8234 = vunpack.c.l.b16 %v7349
    %v8235 = vunpack.c.h.b16 %v7349
    %v8236 = vunpack.c.l.b16 %v7350
    %v8237 = vunpack.c.h.b16 %v7350
    %v8238 = vunpack.c.l.b16 %v7351
    %v8239 = vunpack.c.h.b16 %v7351
    %v8240 = vunpack.c.l.b16 %v7352
    %v8241 = vunpack.c.h.b16 %v7352
    %v8242 = vunpack.c.l.b16 %v7353
    %v8243 = vunpack.c.h.b16 %v7353
    %v8244 = vunpack.c.l.b16 %v7354
    %v8245 = vunpack.c.h.b16 %v7354
    %v8246 = vunpack.c.l.b16 %v7355
    %v8247 = vunpack.c.h.b16 %v7355
    %v8248 = vunpack.c.l.b16 %v7356
    %v8249 = vunpack.c.h.b16 %v7356
    %v8250 = vunpack.c.l.b16 %v7357
    %v8251 = vunpack.c.h.b16 %v7357
    %v8252 = vunpack.c.l.b16 %v7358
    %v8253 = vunpack.c.h.b16 %v7358
    %v8254 = vunpack.c.l.b16 %v7359
    %v8255 = vunpack.c.h.b16 %v7359
    %v8256 = vunpack.c.l.b16 %v7360
    %v8257 = vunpack.c.h.b16 %v7360
    %v8258 = vunpack.c.l.b16 %v7361
    %v8259 = vunpack.c.h.b16 %v7361
    %v8260 = vunpack.c.l.b16 %v7362
    %v8261 = vunpack.c.h.b16 %v7362
    %v8262 = vunpack.c.l.b16 %v7363
    %v8263 = vunpack.c.h.b16 %v7363
    %v8264 = vunpack.c.l.b16 %v7364
    %v8265 = vunpack.c.h.b16 %v7364
    %v8266 = vunpack.c.l.b16 %v7365
    %v8267 = vunpack.c.h.b16 %v7365
    %v8268 = vunpack.c.l.b16 %v7366
    %v8269 = vunpack.c.h.b16 %v7366
    %v8270 = vunpack.c.l.b16 %v7367
    %v8271 = vunpack.c.h.b16 %v7367
    %v8272 = vunpack.c.l.b16 %v7368
    %v8273 = vunpack.c.h.b16 %v7368
    %v8274 = vunpack.c.l.b16 %v7369
    %v8275 = vunpack.c.h.b16 %v7369
    %v8276 = vunpack.c.l.b16 %v7370
    %v8277 = vunpack.c.h.b16 %v7370
    %v8278 = vunpack.c.l.b16 %v7371
    %v8279 = vunpack.c.h.b16 %v7371
    %v8280 = vunpack.c.l.b16 %v7372
    %v8281 = vunpack.c.h.b16 %v7372
    %v8282 = vunpack.c.l.b16 %v7373
    %v8283 = vunpack.c.h.b16 %v7373
    %v8284 = vunpack.c.l.b16 %v7374
    %v8285 = vunpack.c.h.b16 %v7374
    %v8286 = vunpack.c.l.b16 %v7375
    %v8287 = vunpack.c.h.b16 %v7375
    %v8288 = vunpack.c.l.b16 %v7376
    %v8289 = vunpack.c.h.b16 %v7376
    %v8290 = vunpack.c.l.b16 %v7377
    %v8291 = vunpack.c.h.b16 %v7377
    %v8292 = vunpack.c.l.b16 %v7378
    %v8293 = vunpack.c.h.b16 %v7378
    %v8294 = vunpack.c.l.b16 %v7379
    %v8295 = vunpack.c.h.b16 %v7379
    %v8296 = vunpack.c.l.b16 %v7380
    %v8297 = vunpack.c.h.b16 %v7380
    %v8298 = vunpack.c.l.b16 %v7381
    %v8299 = vunpack.c.h.b16 %v7381
    %v8300 = vunpack.c.l.b16 %v7382
    %v8301 = vunpack.c.h.b16 %v7382
    %v8302 = vunpack.c.l.b16 %v7383
    %v8303 = vunpack.c.h.b16 %v7383
    %v8304 = vunpack.c.l.b16 %v7384
    %v8305 = vunpack.c.h.b16 %v7384
    %v8306 = vunpack.c.l.b16 %v7385
    %v8307 = vunpack.c.h.b16 %v7385
    %v8308 = vunpack.c.l.b16 %v7386
    %v8309 = vunpack.c.h.b16 %v7386
    %v8310 = vunpack.c.l.b16 %v7387
    %v8311 = vunpack.c.h.b16 %v7387
    %v8312 = vunpack.c.l.b16 %v7388
    %v8313 = vunpack.c.h.b16 %v7388
    %v8314 = vunpack.c.l.b16 %v7389
    %v8315 = vunpack.c.h.b16 %v7389
    %v8316 = vunpack.c.l.b16 %v7390
    %v8317 = vunpack.c.h.b16 %v7390
    %v8318 = vunpack.c.l.b16 %v7391
    %v8319 = vunpack.c.h.b16 %v7391
    %v8320 = vunpack.c.l.b16 %v7392
    %v8321 = vunpack.c.h.b16 %v7392
    %v8322 = vunpack.c.l.b16 %v7393
    %v8323 = vunpack.c.h.b16 %v7393
    %v8324 = vunpack.c.l.b16 %v7394
    %v8325 = vunpack.c.h.b16 %v7394
    %v8326 = vunpack.c.l.b16 %v7395
    %v8327 = vunpack.c.h.b16 %v7395
    %v8328 = vunpack.c.l.b16 %v7396
    %v8329 = vunpack.c.h.b16 %v7396
    %v8330 = vunpack.c.l.b16 %v7397
    %v8331 = vunpack.c.h.b16 %v7397
    %v8332 = vunpack.c.l.b16 %v7398
    %v8333 = vunpack.c.h.b16 %v7398
    %v8334 = vunpack.c.l.b16 %v7399
    %v8335 = vunpack.c.h.b16 %v7399
    %v8336 = vunpack.c.l.b16 %v7400
    %v8337 = vunpack.c.h.b16 %v7400
    %v8338 = vunpack.c.l.b16 %v7401
    %v8339 = vunpack.c.h.b16 %v7401
    %v8340 = vunpack.c.l.b16 %v7402
    %v8341 = vunpack.c.h.b16 %v7402
    %v8342 = vunpack.c.l.b16 %v7403
    %v8343 = vunpack.c.h.b16 %v7403
    %v8344 = vunpack.c.l.b16 %v7404
    %v8345 = vunpack.c.h.b16 %v7404
    %v8346 = vunpack.c.l.b16 %v7405
    %v8347 = vunpack.c.h.b16 %v7405
    %v8348 = vunpack.c.l.b16 %v7406
    %v8349 = vunpack.c.h.b16 %v7406
    %v8350 = vunpack.c.l.b16 %v7407
    %v8351 = vunpack.c.h.b16 %v7407
    %v8352 = vunpack.c.l.b16 %v7408
    %v8353 = vunpack.c.h.b16 %v7408
    %v8354 = vunpack.c.l.b16 %v7409
    %v8355 = vunpack.c.h.b16 %v7409
    %v8356 = vunpack.c.l.b16 %v7410
    %v8357 = vunpack.c.h.b16 %v7410
    %v8358 = vunpack.c.l.b16 %v7411
    %v8359 = vunpack.c.h.b16 %v7411
    %v8360 = vunpack.c.l.b16 %v7412
    %v8361 = vunpack.c.h.b16 %v7412
    %v8362 = vunpack.c.l.b16 %v7413
    %v8363 = vunpack.c.h.b16 %v7413
    %v8364 = vunpack.c.l.b16 %v7414
    %v8365 = vunpack.c.h.b16 %v7414
    %v8366 = vunpack.c.l.b16 %v7415
    %v8367 = vunpack.c.h.b16 %v7415
    %v8368 = vunpack.c.l.b16 %v7416
    %v8369 = vunpack.c.h.b16 %v7416
    %v8370 = vunpack.c.l.b16 %v7417
    %v8371 = vunpack.c.h.b16 %v7417
    %v8372 = vunpack.c.l.b16 %v7418
    %v8373 = vunpack.c.h.b16 %v7418
    %v8374 = vunpack.c.l.b16 %v7419
    %v8375 = vunpack.c.h.b16 %v7419
    %v8376 = vunpack.c.l.b16 %v7420
    %v8377 = vunpack.c.h.b16 %v7420
    %v8378 = vunpack.c.l.b16 %v7421
    %v8379 = vunpack.c.h.b16 %v7421
    %v8380 = vunpack.c.l.b16 %v7422
    %v8381 = vunpack.c.h.b16 %v7422
    %v8382 = vunpack.c.l.b16 %v7423
    %v8383 = vunpack.c.h.b16 %v7423
    %v8384 = vunpack.c.l.b16 %v7424
    %v8385 = vunpack.c.h.b16 %v7424
    %v8386 = vunpack.c.l.b16 %v7425
    %v8387 = vunpack.c.h.b16 %v7425
    %v8388 = vunpack.c.l.b16 %v7426
    %v8389 = vunpack.c.h.b16 %v7426
    %v8390 = vunpack.c.l.b16 %v7427
    %v8391 = vunpack.c.h.b16 %v7427
    %v8392 = vunpack.c.l.b16 %v7428
    %v8393 = vunpack.c.h.b16 %v7428
    %v8394 = vunpack.c.l.b16 %v7429
    %v8395 = vunpack.c.h.b16 %v7429
    %v8396 = vunpack.c.l.b16 %v7430
    %v8397 = vunpack.c.h.b16 %v7430
    %v8398 = vunpack.c.l.b16 %v7431
    %v8399 = vunpack.c.h.b16 %v7431
    %v8400 = vunpack.c.l.b16 %v7432
    %v8401 = vunpack.c.h.b16 %v7432
    %v8402 = vunpack.c.l.b16 %v7433
    %v8403 = vunpack.c.h.b16 %v7433
    %v8404 = vunpack.c.l.b16 %v7434
    %v8405 = vunpack.c.h.b16 %v7434
    %v8406 = vunpack.c.l.b16 %v7435
    %v8407 = vunpack.c.h.b16 %v7435
    %v8408 = vunpack.c.l.b16 %v7436
    %v8409 = vunpack.c.h.b16 %v7436
    %v8410 = vunpack.c.l.b16 %v7437
    %v8411 = vunpack.c.h.b16 %v7437
    %v8412 = vunpack.c.l.b16 %v7438
    %v8413 = vunpack.c.h.b16 %v7438
    %v8414 = vunpack.c.l.b16 %v7439
    %v8415 = vunpack.c.h.b16 %v7439
    %v8416 = vunpack.c.l.b16 %v7440
    %v8417 = vunpack.c.h.b16 %v7440
    %v8418 = vunpack.c.l.b16 %v7441
    %v8419 = vunpack.c.h.b16 %v7441
    %v8420 = vunpack.c.l.b16 %v7442
    %v8421 = vunpack.c.h.b16 %v7442
    %v8422 = vunpack.c.l.b16 %v7443
    %v8423 = vunpack.c.h.b16 %v7443
    %v8424 = vunpack.c.l.b16 %v7444
    %v8425 = vunpack.c.h.b16 %v7444
    %v8426 = vunpack.c.l.b16 %v7445
    %v8427 = vunpack.c.h.b16 %v7445
    %v8428 = vunpack.c.l.b16 %v7446
    %v8429 = vunpack.c.h.b16 %v7446
    %v8430 = vunpack.c.l.b16 %v7447
    %v8431 = vunpack.c.h.b16 %v7447
    %v8432 = vunpack.c.l.b16 %v7448
    %v8433 = vunpack.c.h.b16 %v7448
    %v8434 = vunpack.c.l.b16 %v7449
    %v8435 = vunpack.c.h.b16 %v7449
    %v8436 = vunpack.c.l.b16 %v7450
    %v8437 = vunpack.c.h.b16 %v7450
    %v8438 = vunpack.c.l.b16 %v7451
    %v8439 = vunpack.c.h.b16 %v7451
    %v8440 = vunpack.c.l.b16 %v7452
    %v8441 = vunpack.c.h.b16 %v7452
    %v8442 = vunpack.c.l.b16 %v7453
    %v8443 = vunpack.c.h.b16 %v7453
    %v8444 = vunpack.c.l.b16 %v7454
    %v8445 = vunpack.c.h.b16 %v7454
    %v8446 = vunpack.c.l.b16 %v7455
    %v8447 = vunpack.c.h.b16 %v7455
    %v8448 = vunpack.c.l.b16 %v7456
    %v8449 = vunpack.c.h.b16 %v7456
    %v8450 = vunpack.c.l.b16 %v7457
    %v8451 = vunpack.c.h.b16 %v7457
    %v8452 = vunpack.c.l.b16 %v7458
    %v8453 = vunpack.c.h.b16 %v7458
    %v8454 = vunpack.c.l.b16 %v7459
    %v8455 = vunpack.c.h.b16 %v7459
    %v8456 = vunpack.c.l.b16 %v7460
    %v8457 = vunpack.c.h.b16 %v7460
    %v8458 = vunpack.c.l.b16 %v7461
    %v8459 = vunpack.c.h.b16 %v7461
    %v8460 = vunpack.c.l.b16 %v7462
    %v8461 = vunpack.c.h.b16 %v7462
    %v8462 = vunpack.c.l.b16 %v7463
    %v8463 = vunpack.c.h.b16 %v7463
    %v8464 = vunpack.c.l.b16 %v7464
    %v8465 = vunpack.c.h.b16 %v7464
    %v8466 = vunpack.c.l.b16 %v7465
    %v8467 = vunpack.c.h.b16 %v7465
    %v8468 = vunpack.c.l.b16 %v7466
    %v8469 = vunpack.c.h.b16 %v7466
    %v8470 = vunpack.c.l.b16 %v7467
    %v8471 = vunpack.c.h.b16 %v7467
    %v8472 = vunpack.c.l.b16 %v7468
    %v8473 = vunpack.c.h.b16 %v7468
    %v8474 = vunpack.c.l.b16 %v7469
    %v8475 = vunpack.c.h.b16 %v7469
    %v8476 = vunpack.c.l.b16 %v7470
    %v8477 = vunpack.c.h.b16 %v7470
    %v8478 = vunpack.c.l.b16 %v7471
    %v8479 = vunpack.c.h.b16 %v7471
    %v8480 = vpack.c.b16 %v7812, %v7808
    %v8481 = vpack.c.b16 %v7813, %v7809
    %v8482 = vpack.c.b16 %v7814, %v7810
    %v8483 = vpack.c.b16 %v7815, %v7811
    %v8484 = vpack.c.b16 %v7820, %v7816
    %v8485 = vpack.c.b16 %v7821, %v7817
    %v8486 = vpack.c.b16 %v7822, %v7818
    %v8487 = vpack.c.b16 %v7823, %v7819
    %v8488 = vpack.c.b16 %v7828, %v7824
    %v8489 = vpack.c.b16 %v7829, %v7825
    %v8490 = vpack.c.b16 %v7830, %v7826
    %v8491 = vpack.c.b16 %v7831, %v7827
    %v8492 = vpack.c.b16 %v7836, %v7832
    %v8493 = vpack.c.b16 %v7837, %v7833
    %v8494 = vpack.c.b16 %v7838, %v7834
    %v8495 = vpack.c.b16 %v7839, %v7835
    %v8496 = vpack.c.b16 %v7844, %v7840
    %v8497 = vpack.c.b16 %v7845, %v7841
    %v8498 = vpack.c.b16 %v7846, %v7842
    %v8499 = vpack.c.b16 %v7847, %v7843
    %v8500 = vpack.c.b16 %v7852, %v7848
    %v8501 = vpack.c.b16 %v7853, %v7849
    %v8502 = vpack.c.b16 %v7854, %v7850
    %v8503 = vpack.c.b16 %v7855, %v7851
    %v8504 = vpack.c.b16 %v7860, %v7856
    %v8505 = vpack.c.b16 %v7861, %v7857
    %v8506 = vpack.c.b16 %v7862, %v7858
    %v8507 = vpack.c.b16 %v7863, %v7859
    %v8508 = vpack.c.b16 %v7868, %v7864
    %v8509 = vpack.c.b16 %v7869, %v7865
    %v8510 = vpack.c.b16 %v7870, %v7866
    %v8511 = vpack.c.b16 %v7871, %v7867
    %v8512 = vpack.c.b16 %v7876, %v7872
    %v8513 = vpack.c.b16 %v7877, %v7873
    %v8514 = vpack.c.b16 %v7878, %v7874
    %v8515 = vpack.c.b16 %v7879, %v7875
    %v8516 = vpack.c.b16 %v7884, %v7880
    %v8517 = vpack.c.b16 %v7885, %v7881
    %v8518 = vpack.c.b16 %v7886, %v7882
    %v8519 = vpack.c.b16 %v7887, %v7883
    %v8520 = vpack.c.b16 %v7892, %v7888
    %v8521 = vpack.c.b16 %v7893, %v7889
    %v8522 = vpack.c.b16 %v7894, %v7890
    %v8523 = vpack.c.b16 %v7895, %v7891
    %v8524 = vpack.c.b16 %v7900, %v7896
    %v8525 = vpack.c.b16 %v7901, %v7897
    %v8526 = vpack.c.b16 %v7902, %v7898
    %v8527 = vpack.c.b16 %v7903, %v7899
    %v8528 = vpack.c.b16 %v7908, %v7904
    %v8529 = vpack.c.b16 %v7909, %v7905
    %v8530 = vpack.c.b16 %v7910, %v7906
    %v8531 = vpack.c.b16 %v7911, %v7907
    %v8532 = vpack.c.b16 %v7916, %v7912
    %v8533 = vpack.c.b16 %v7917, %v7913
    %v8534 = vpack.c.b16 %v7918, %v7914
    %v8535 = vpack.c.b16 %v7919, %v7915
    %v8536 = vpack.c.b16 %v7924, %v7920
    %v8537 = vpack.c.b16 %v7925, %v7921
    %v8538 = vpack.c.b16 %v7926, %v7922
    %v8539 = vpack.c.b16 %v7927, %v7923
    %v8540 = vpack.c.b16 %v7932, %v7928
    %v8541 = vpack.c.b16 %v7933, %v7929
    %v8542 = vpack.c.b16 %v7934, %v7930
    %v8543 = vpack.c.b16 %v7935, %v7931
    %v8544 = vpack.c.b16 %v7940, %v7936
    %v8545 = vpack.c.b16 %v7941, %v7937
    %v8546 = vpack.c.b16 %v7942, %v7938
    %v8547 = vpack.c.b16 %v7943, %v7939
    %v8548 = vpack.c.b16 %v7948, %v7944
    %v8549 = vpack.c.b16 %v7949, %v7945
    %v8550 = vpack.c.b16 %v7950, %v7946
    %v8551 = vpack.c.b16 %v7951, %v7947
    %v8552 = vpack.c.b16 %v7956, %v7952
    %v8553 = vpack.c.b16 %v7957, %v7953
    %v8554 = vpack.c.b16 %v7958, %v7954
    %v8555 = vpack.c.b16 %v7959, %v7955
    %v8556 = vpack.c.b16 %v7964, %v7960
    %v8557 = vpack.c.b16 %v7965, %v7961
    %v8558 = vpack.c.b16 %v7966, %v7962
    %v8559 = vpack.c.b16 %v7967, %v7963
    %v8560 = vpack.c.b16 %v7972, %v7968
    %v8561 = vpack.c.b16 %v7973, %v7969
    %v8562 = vpack.c.b16 %v7974, %v7970
    %v8563 = vpack.c.b16 %v7975, %v7971
    %v8564 = vpack.c.b16 %v7980, %v7976
    %v8565 = vpack.c.b16 %v7981, %v7977
    %v8566 = vpack.c.b16 %v7982, %v7978
    %v8567 = vpack.c.b16 %v7983, %v7979
    %v8568 = vpack.c.b16 %v7988, %v7984
    %v8569 = vpack.c.b16 %v7989, %v7985
    %v8570 = vpack.c.b16 %v7990, %v7986
    %v8571 = vpack.c.b16 %v7991, %v7987
    %v8572 = vpack.c.b16 %v7996, %v7992
    %v8573 = vpack.c.b16 %v7997, %v7993
    %v8574 = vpack.c.b16 %v7998, %v7994
    %v8575 = vpack.c.b16 %v7999, %v7995
    %v8576 = vpack.c.b16 %v8004, %v8000
    %v8577 = vpack.c.b16 %v8005, %v8001
    %v8578 = vpack.c.b16 %v8006, %v8002
    %v8579 = vpack.c.b16 %v8007, %v8003
    %v8580 = vpack.c.b16 %v8012, %v8008
    %v8581 = vpack.c.b16 %v8013, %v8009
    %v8582 = vpack.c.b16 %v8014, %v8010
    %v8583 = vpack.c.b16 %v8015, %v8011
    %v8584 = vpack.c.b16 %v8020, %v8016
    %v8585 = vpack.c.b16 %v8021, %v8017
    %v8586 = vpack.c.b16 %v8022, %v8018
    %v8587 = vpack.c.b16 %v8023, %v8019
    %v8588 = vpack.c.b16 %v8028, %v8024
    %v8589 = vpack.c.b16 %v8029, %v8025
    %v8590 = vpack.c.b16 %v8030, %v8026
    %v8591 = vpack.c.b16 %v8031, %v8027
    %v8592 = vpack.c.b16 %v8036, %v8032
    %v8593 = vpack.c.b16 %v8037, %v8033
    %v8594 = vpack.c.b16 %v8038, %v8034
    %v8595 = vpack.c.b16 %v8039, %v8035
    %v8596 = vpack.c.b16 %v8044, %v8040
    %v8597 = vpack.c.b16 %v8045, %v8041
    %v8598 = vpack.c.b16 %v8046, %v8042
    %v8599 = vpack.c.b16 %v8047, %v8043
    %v8600 = vpack.c.b16 %v8052, %v8048
    %v8601 = vpack.c.b16 %v8053, %v8049
    %v8602 = vpack.c.b16 %v8054, %v8050
    %v8603 = vpack.c.b16 %v8055, %v8051
    %v8604 = vpack.c.b16 %v8060, %v8056
    %v8605 = vpack.c.b16 %v8061, %v8057
    %v8606 = vpack.c.b16 %v8062, %v8058
    %v8607 = vpack.c.b16 %v8063, %v8059
    %v8608 = vpack.c.b16 %v8068, %v8064
    %v8609 = vpack.c.b16 %v8069, %v8065
    %v8610 = vpack.c.b16 %v8070, %v8066
    %v8611 = vpack.c.b16 %v8071, %v8067
    %v8612 = vpack.c.b16 %v8076, %v8072
    %v8613 = vpack.c.b16 %v8077, %v8073
    %v8614 = vpack.c.b16 %v8078, %v8074
    %v8615 = vpack.c.b16 %v8079, %v8075
    %v8616 = vpack.c.b16 %v8084, %v8080
    %v8617 = vpack.c.b16 %v8085, %v8081
    %v8618 = vpack.c.b16 %v8086, %v8082
    %v8619 = vpack.c.b16 %v8087, %v8083
    %v8620 = vpack.c.b16 %v8092, %v8088
    %v8621 = vpack.c.b16 %v8093, %v8089
    %v8622 = vpack.c.b16 %v8094, %v8090
    %v8623 = vpack.c.b16 %v8095, %v8091
    %v8624 = vpack.c.b16 %v8100, %v8096
    %v8625 = vpack.c.b16 %v8101, %v8097
    %v8626 = vpack.c.b16 %v8102, %v8098
    %v8627 = vpack.c.b16 %v8103, %v8099
    %v8628 = vpack.c.b16 %v8108, %v8104
    %v8629 = vpack.c.b16 %v8109, %v8105
    %v8630 = vpack.c.b16 %v8110, %v8106
    %v8631 = vpack.c.b16 %v8111, %v8107
    %v8632 = vpack.c.b16 %v8116, %v8112
    %v8633 = vpack.c.b16 %v8117, %v8113
    %v8634 = vpack.c.b16 %v8118, %v8114
    %v8635 = vpack.c.b16 %v8119, %v8115
    %v8636 = vpack.c.b16 %v8124, %v8120
    %v8637 = vpack.c.b16 %v8125, %v8121
    %v8638 = vpack.c.b16 %v8126, %v8122
    %v8639 = vpack.c.b16 %v8127, %v8123
    %v8640 = vpack.c.b16 %v8132, %v8128
    %v8641 = vpack.c.b16 %v8133, %v8129
    %v8642 = vpack.c.b16 %v8134, %v8130
    %v8643 = vpack.c.b16 %v8135, %v8131
    %v8644 = vpack.c.b16 %v8140, %v8136
    %v8645 = vpack.c.b16 %v8141, %v8137
    %v8646 = vpack.c.b16 %v8142, %v8138
    %v8647 = vpack.c.b16 %v8143, %v8139
    %v8648 = vpack.c.b16 %v8148, %v8144
    %v8649 = vpack.c.b16 %v8149, %v8145
    %v8650 = vpack.c.b16 %v8150, %v8146
    %v8651 = vpack.c.b16 %v8151, %v8147
    %v8652 = vpack.c.b16 %v8156, %v8152
    %v8653 = vpack.c.b16 %v8157, %v8153
    %v8654 = vpack.c.b16 %v8158, %v8154
    %v8655 = vpack.c.b16 %v8159, %v8155
    %v8656 = vpack.c.b16 %v8164, %v8160
    %v8657 = vpack.c.b16 %v8165, %v8161
    %v8658 = vpack.c.b16 %v8166, %v8162
    %v8659 = vpack.c.b16 %v8167, %v8163
    %v8660 = vpack.c.b16 %v8172, %v8168
    %v8661 = vpack.c.b16 %v8173, %v8169
    %v8662 = vpack.c.b16 %v8174, %v8170
    %v8663 = vpack.c.b16 %v8175, %v8171
    %v8664 = vpack.c.b16 %v8180, %v8176
    %v8665 = vpack.c.b16 %v8181, %v8177
    %v8666 = vpack.c.b16 %v8182, %v8178
    %v8667 = vpack.c.b16 %v8183, %v8179
    %v8668 = vpack.c.b16 %v8188, %v8184
    %v8669 = vpack.c.b16 %v8189, %v8185
    %v8670 = vpack.c.b16 %v8190, %v8186
    %v8671 = vpack.c.b16 %v8191, %v8187
    %v8672 = vpack.c.b16 %v8196, %v8192
    %v8673 = vpack.c.b16 %v8197, %v8193
    %v8674 = vpack.c.b16 %v8198, %v8194
    %v8675 = vpack.c.b16 %v8199, %v8195
    %v8676 = vpack.c.b16 %v8204, %v8200
    %v8677 = vpack.c.b16 %v8205, %v8201
    %v8678 = vpack.c.b16 %v8206, %v8202
    %v8679 = vpack.c.b16 %v8207, %v8203
    %v8680 = vpack.c.b16 %v8212, %v8208
    %v8681 = vpack.c.b16 %v8213, %v8209
    %v8682 = vpack.c.b16 %v8214, %v8210
    %v8683 = vpack.c.b16 %v8215, %v8211
    %v8684 = vpack.c.b16 %v8220, %v8216
    %v8685 = vpack.c.b16 %v8221, %v8217
    %v8686 = vpack.c.b16 %v8222, %v8218
    %v8687 = vpack.c.b16 %v8223, %v8219
    %v8688 = vpack.c.b16 %v8228, %v8224
    %v8689 = vpack.c.b16 %v8229, %v8225
    %v8690 = vpack.c.b16 %v8230, %v8226
    %v8691 = vpack.c.b16 %v8231, %v8227
    %v8692 = vpack.c.b16 %v8236, %v8232
    %v8693 = vpack.c.b16 %v8237, %v8233
    %v8694 = vpack.c.b16 %v8238, %v8234
    %v8695 = vpack.c.b16 %v8239, %v8235
    %v8696 = vpack.c.b16 %v8244, %v8240
    %v8697 = vpack.c.b16 %v8245, %v8241
    %v8698 = vpack.c.b16 %v8246, %v8242
    %v8699 = vpack.c.b16 %v8247, %v8243
    %v8700 = vpack.c.b16 %v8252, %v8248
    %v8701 = vpack.c.b16 %v8253, %v8249
    %v8702 = vpack.c.b16 %v8254, %v8250
    %v8703 = vpack.c.b16 %v8255, %v8251
    %v8704 = vpack.c.b16 %v8260, %v8256
    %v8705 = vpack.c.b16 %v8261, %v8257
    %v8706 = vpack.c.b16 %v8262, %v8258
    %v8707 = vpack.c.b16 %v8263, %v8259
    %v8708 = vpack.c.b16 %v8268, %v8264
    %v8709 = vpack.c.b16 %v8269, %v8265
    %v8710 = vpack.c.b16 %v8270, %v8266
    %v8711 = vpack.c.b16 %v8271, %v8267
    %v8712 = vpack.c.b16 %v8276, %v8272
    %v8713 = vpack.c.b16 %v8277, %v8273
    %v8714 = vpack.c.b16 %v8278, %v8274
    %v8715 = vpack.c.b16 %v8279, %v8275
    %v8716 = vpack.c.b16 %v8284, %v8280
    %v8717 = vpack.c.b16 %v8285, %v8281
    %v8718 = vpack.c.b16 %v8286, %v8282
    %v8719 = vpack.c.b16 %v8287, %v8283
    %v8720 = vpack.c.b16 %v8292, %v8288
    %v8721 = vpack.c.b16 %v8293, %v8289
    %v8722 = vpack.c.b16 %v8294, %v8290
    %v8723 = vpack.c.b16 %v8295, %v8291
    %v8724 = vpack.c.b16 %v8300, %v8296
    %v8725 = vpack.c.b16 %v8301, %v8297
    %v8726 = vpack.c.b16 %v8302, %v8298
    %v8727 = vpack.c.b16 %v8303, %v8299
    %v8728 = vpack.c.b16 %v8308, %v8304
    %v8729 = vpack.c.b16 %v8309, %v8305
    %v8730 = vpack.c.b16 %v8310, %v8306
    %v8731 = vpack.c.b16 %v8311, %v8307
    %v8732 = vpack.c.b16 %v8316, %v8312
    %v8733 = vpack.c.b16 %v8317, %v8313
    %v8734 = vpack.c.b16 %v8318, %v8314
    %v8735 = vpack.c.b16 %v8319, %v8315
    %v8736 = vpack.c.b16 %v8324, %v8320
    %v8737 = vpack.c.b16 %v8325, %v8321
    %v8738 = vpack.c.b16 %v8326, %v8322
    %v8739 = vpack.c.b16 %v8327, %v8323
    %v8740 = vpack.c.b16 %v8332, %v8328
    %v8741 = vpack.c.b16 %v8333, %v8329
    %v8742 = vpack.c.b16 %v8334, %v8330
    %v8743 = vpack.c.b16 %v8335, %v8331
    %v8744 = vpack.c.b16 %v8340, %v8336
    %v8745 = vpack.c.b16 %v8341, %v8337
    %v8746 = vpack.c.b16 %v8342, %v8338
    %v8747 = vpack.c.b16 %v8343, %v8339
    %v8748 = vpack.c.b16 %v8348, %v8344
    %v8749 = vpack.c.b16 %v8349, %v8345
    %v8750 = vpack.c.b16 %v8350, %v8346
    %v8751 = vpack.c.b16 %v8351, %v8347
    %v8752 = vpack.c.b16 %v8356, %v8352
    %v8753 = vpack.c.b16 %v8357, %v8353
    %v8754 = vpack.c.b16 %v8358, %v8354
    %v8755 = vpack.c.b16 %v8359, %v8355
    %v8756 = vpack.c.b16 %v8364, %v8360
    %v8757 = vpack.c.b16 %v8365, %v8361
    %v8758 = vpack.c.b16 %v8366, %v8362
    %v8759 = vpack.c.b16 %v8367, %v8363
    %v8760 = vpack.c.b16 %v8372, %v8368
    %v8761 = vpack.c.b16 %v8373, %v8369
    %v8762 = vpack.c.b16 %v8374, %v8370
    %v8763 = vpack.c.b16 %v8375, %v8371
    %v8764 = vpack.c.b16 %v8380, %v8376
    %v8765 = vpack.c.b16 %v8381, %v8377
    %v8766 = vpack.c.b16 %v8382, %v8378
    %v8767 = vpack.c.b16 %v8383, %v8379
    %v8768 = vpack.c.b16 %v8388, %v8384
    %v8769 = vpack.c.b16 %v8389, %v8385
    %v8770 = vpack.c.b16 %v8390, %v8386
    %v8771 = vpack.c.b16 %v8391, %v8387
    %v8772 = vpack.c.b16 %v8396, %v8392
    %v8773 = vpack.c.b16 %v8397, %v8393
    %v8774 = vpack.c.b16 %v8398, %v8394
    %v8775 = vpack.c.b16 %v8399, %v8395
    %v8776 = vpack.c.b16 %v8404, %v8400
    %v8777 = vpack.c.b16 %v8405, %v8401
    %v8778 = vpack.c.b16 %v8406, %v8402
    %v8779 = vpack.c.b16 %v8407, %v8403
    %v8780 = vpack.c.b16 %v8412, %v8408
    %v8781 = vpack.c.b16 %v8413, %v8409
    %v8782 = vpack.c.b16 %v8414, %v8410
    %v8783 = vpack.c.b16 %v8415, %v8411
    %v8784 = vpack.c.b16 %v8420, %v8416
    %v8785 = vpack.c.b16 %v8421, %v8417
    %v8786 = vpack.c.b16 %v8422, %v8418
    %v8787 = vpack.c.b16 %v8423, %v8419
    %v8788 = vpack.c.b16 %v8428, %v8424
    %v8789 = vpack.c.b16 %v8429, %v8425
    %v8790 = vpack.c.b16 %v8430, %v8426
    %v8791 = vpack.c.b16 %v8431, %v8427
    %v8792 = vpack.c.b16 %v8436, %v8432
    %v8793 = vpack.c.b16 %v8437, %v8433
    %v8794 = vpack.c.b16 %v8438, %v8434
    %v8795 = vpack.c.b16 %v8439, %v8435
    %v8796 = vpack.c.b16 %v8444, %v8440
    %v8797 = vpack.c.b16 %v8445, %v8441
    %v8798 = vpack.c.b16 %v8446, %v8442
    %v8799 = vpack.c.b16 %v8447, %v8443
    %v8800 = vpack.c.b16 %v8452, %v8448
    %v8801 = vpack.c.b16 %v8453, %v8449
    %v8802 = vpack.c.b16 %v8454, %v8450
    %v8803 = vpack.c.b16 %v8455, %v8451
    %v8804 = vpack.c.b16 %v8460, %v8456
    %v8805 = vpack.c.b16 %v8461, %v8457
    %v8806 = vpack.c.b16 %v8462, %v8458
    %v8807 = vpack.c.b16 %v8463, %v8459
    %v8808 = vpack.c.b16 %v8468, %v8464
    %v8809 = vpack.c.b16 %v8469, %v8465
    %v8810 = vpack.c.b16 %v8470, %v8466
    %v8811 = vpack.c.b16 %v8471, %v8467
    %v8812 = vpack.c.b16 %v8476, %v8472
    %v8813 = vpack.c.b16 %v8477, %v8473
    %v8814 = vpack.c.b16 %v8478, %v8474
    %v8815 = vpack.c.b16 %v8479, %v8475
    %9152 = vmatprep.subr.bf16.mxu0 %v8509
    %9153 = vmatpush1.bf16.msra.mxu0 %v8508
    %9154 = vmatprep.subr.bf16.mxu0 %v8505
    %9155 = vmatpush1.bf16.msra.mxu0 %v8504
    %9156 = vmatprep.subr.bf16.mxu0 %v8501
    %9157 = vmatpush1.bf16.msra.mxu0 %v8500
    %9158 = vmatprep.subr.bf16.mxu0 %v8497
    %9159 = vmatpush1.bf16.msra.mxu0 %v8496
    %9160 = vmatprep.subr.bf16.mxu0 %v8493
    %9161 = vmatpush1.bf16.msra.mxu0 %v8492
    %9162 = vmatprep.subr.bf16.mxu0 %v8489
    %9163 = vmatpush1.bf16.msra.mxu0 %v8488
    %9164 = vmatprep.subr.bf16.mxu0 %v8485
    %9165 = vmatpush1.bf16.msra.mxu0 %v8484
    %9166 = vmatprep.subr.bf16.mxu0 %v8481
    %9167 = vmatpush1.bf16.msra.mxu0 %v8480
    %9168 = vmatprep.subr.bf16.mxu0 %v8541
    %9169 = vmatpush2.bf16.msra.mxu0 %v8540
    %9170 = vmatprep.subr.bf16.mxu0 %v8537
    %9171 = vmatpush2.bf16.msra.mxu0 %v8536
    %9172 = vmatprep.subr.bf16.mxu0 %v8533
    %9173 = vmatpush2.bf16.msra.mxu0 %v8532
    %9174 = vmatprep.subr.bf16.mxu0 %v8529
    %9175 = vmatpush2.bf16.msra.mxu0 %v8528
    %9176 = vmatprep.subr.bf16.mxu0 %v8525
    %9177 = vmatpush2.bf16.msra.mxu0 %v8524
    %9178 = vmatprep.subr.bf16.mxu0 %v8521
    %9179 = vmatpush2.bf16.msra.mxu0 %v8520
    %9180 = vmatprep.subr.bf16.mxu0 %v8517
    %9181 = vmatpush2.bf16.msra.mxu0 %v8516
    %9182 = vmatprep.subr.bf16.mxu0 %v8513
    %9183 = vmatpush2.bf16.msra.mxu0 %v8512
    %9184 = vmatprep.mubr.bf16.mxu0 0
    %9185 = vmatmul.mubr.bf16.gmra.mxu0 0
    %v9186 = vpop.f32.mrf.mxu0
    %v9187 = vadd.f32 0.0, %v9186
    %v9188 = vpop.f32.mrf.mxu0
    %v9189 = vadd.f32 0.0, %v9188
    %v9190 = vpop.f32.mrf.mxu0
    %v9191 = vadd.f32 0.0, %v9190
    %v9192 = vpop.f32.mrf.mxu0
    %v9193 = vadd.f32 0.0, %v9192
    %9194 = vmatprep.mubr.bf16.mxu0 %v2651
    %9195 = vmatmul.mubr.bf16.gmra.mxu0 %v2650
    %v9196 = vpop.f32.mrf.mxu0
    %v9197 = vadd.f32 0.0, %v9196
    %v9198 = vpop.f32.mrf.mxu0
    %v9199 = vadd.f32 0.0, %v9198
    %v9200 = vpop.f32.mrf.mxu0
    %v9201 = vadd.f32 0.0, %v9200
    %v9202 = vpop.f32.mrf.mxu0
    %v9203 = vadd.f32 0.0, %v9202
    %9204 = vmatprep.mubr.bf16.mxu0 %v2655
    %9205 = vmatmul.mubr.bf16.gmra.mxu0 %v2654
    %v9206 = vpop.f32.mrf.mxu0
    %v9207 = vadd.f32 0.0, %v9206
    %v9208 = vpop.f32.mrf.mxu0
    %v9209 = vadd.f32 0.0, %v9208
    %v9210 = vpop.f32.mrf.mxu0
    %v9211 = vadd.f32 0.0, %v9210
    %v9212 = vpop.f32.mrf.mxu0
    %v9213 = vadd.f32 0.0, %v9212
    %9214 = vmatprep.mubr.bf16.mxu0 %v2659
    %9215 = vmatmul.mubr.bf16.gmra.mxu0 %v2658
    %v9216 = vpop.f32.mrf.mxu0
    %v9217 = vadd.f32 0.0, %v9216
    %v9218 = vpop.f32.mrf.mxu0
    %v9219 = vadd.f32 0.0, %v9218
    %v9220 = vpop.f32.mrf.mxu0
    %v9221 = vadd.f32 0.0, %v9220
    %v9222 = vpop.f32.mrf.mxu0
    %v9223 = vadd.f32 0.0, %v9222
    %9224 = vmatprep.mubr.bf16.mxu0 %v2663
    %9225 = vmatmul.mubr.bf16.gmra.mxu0 %v2662
    %v9226 = vpop.f32.mrf.mxu0
    %v9227 = vadd.f32 0.0, %v9226
    %v9228 = vpop.f32.mrf.mxu0
    %v9229 = vadd.f32 0.0, %v9228
    %v9230 = vpop.f32.mrf.mxu0
    %v9231 = vadd.f32 0.0, %v9230
    %v9232 = vpop.f32.mrf.mxu0
    %v9233 = vadd.f32 0.0, %v9232
    %9234 = vmatprep.mubr.bf16.mxu0 %v2667
    %9235 = vmatmul.mubr.bf16.gmra.mxu0 %v2666
    %v9236 = vpop.f32.mrf.mxu0
    %v9237 = vadd.f32 0.0, %v9236
    %v9238 = vpop.f32.mrf.mxu0
    %v9239 = vadd.f32 0.0, %v9238
    %v9240 = vpop.f32.mrf.mxu0
    %v9241 = vadd.f32 0.0, %v9240
    %v9242 = vpop.f32.mrf.mxu0
    %v9243 = vadd.f32 0.0, %v9242
    %9244 = vmatprep.mubr.bf16.mxu0 %v2671
    %9245 = vmatmul.mubr.bf16.gmra.mxu0 %v2670
    %v9246 = vpop.f32.mrf.mxu0
    %v9247 = vadd.f32 0.0, %v9246
    %v9248 = vpop.f32.mrf.mxu0
    %v9249 = vadd.f32 0.0, %v9248
    %v9250 = vpop.f32.mrf.mxu0
    %v9251 = vadd.f32 0.0, %v9250
    %v9252 = vpop.f32.mrf.mxu0
    %v9253 = vadd.f32 0.0, %v9252
    %9254 = vmatprep.mubr.bf16.mxu0 %v2675
    %9255 = vmatmul.mubr.bf16.gmra.mxu0 %v2674
    %v9256 = vpop.f32.mrf.mxu0
    %v9257 = vadd.f32 0.0, %v9256
    %v9258 = vpop.f32.mrf.mxu0
    %v9259 = vadd.f32 0.0, %v9258
    %v9260 = vpop.f32.mrf.mxu0
    %v9261 = vadd.f32 0.0, %v9260
    %v9262 = vpop.f32.mrf.mxu0
    %v9263 = vadd.f32 0.0, %v9262
    %9264 = vmatprep.mubr.bf16.mxu0 %v2679
    %9265 = vmatmul.mubr.bf16.gmra.mxu0 %v2678
    %v9266 = vpop.f32.mrf.mxu0
    %v9267 = vadd.f32 0.0, %v9266
    %v9268 = vpop.f32.mrf.mxu0
    %v9269 = vadd.f32 0.0, %v9268
    %v9270 = vpop.f32.mrf.mxu0
    %v9271 = vadd.f32 0.0, %v9270
    %v9272 = vpop.f32.mrf.mxu0
    %v9273 = vadd.f32 0.0, %v9272
    %9274 = vmatprep.mubr.bf16.mxu0 %v2683
    %9275 = vmatmul.mubr.bf16.gmra.mxu0 %v2682
    %v9276 = vpop.f32.mrf.mxu0
    %v9277 = vadd.f32 0.0, %v9276
    %v9278 = vpop.f32.mrf.mxu0
    %v9279 = vadd.f32 0.0, %v9278
    %v9280 = vpop.f32.mrf.mxu0
    %v9281 = vadd.f32 0.0, %v9280
    %v9282 = vpop.f32.mrf.mxu0
    %v9283 = vadd.f32 0.0, %v9282
    %9284 = vmatprep.mubr.bf16.mxu0 %v2687
    %9285 = vmatmul.mubr.bf16.gmra.mxu0 %v2686
    %v9286 = vpop.f32.mrf.mxu0
    %v9287 = vadd.f32 0.0, %v9286
    %v9288 = vpop.f32.mrf.mxu0
    %v9289 = vadd.f32 0.0, %v9288
    %v9290 = vpop.f32.mrf.mxu0
    %v9291 = vadd.f32 0.0, %v9290
    %v9292 = vpop.f32.mrf.mxu0
    %v9293 = vadd.f32 0.0, %v9292
    %9294 = vmatprep.mubr.bf16.mxu0 %v2691
    %9295 = vmatmul.mubr.bf16.gmra.mxu0 %v2690
    %v9296 = vpop.f32.mrf.mxu0
    %v9297 = vadd.f32 0.0, %v9296
    %v9298 = vpop.f32.mrf.mxu0
    %v9299 = vadd.f32 0.0, %v9298
    %v9300 = vpop.f32.mrf.mxu0
    %v9301 = vadd.f32 0.0, %v9300
    %v9302 = vpop.f32.mrf.mxu0
    %v9303 = vadd.f32 0.0, %v9302
    %9304 = vmatprep.mubr.bf16.mxu0 %v2695
    %9305 = vmatmul.mubr.bf16.gmra.mxu0 %v2694
    %v9306 = vpop.f32.mrf.mxu0
    %v9307 = vadd.f32 0.0, %v9306
    %v9308 = vpop.f32.mrf.mxu0
    %v9309 = vadd.f32 0.0, %v9308
    %v9310 = vpop.f32.mrf.mxu0
    %v9311 = vadd.f32 0.0, %v9310
    %v9312 = vpop.f32.mrf.mxu0
    %v9313 = vadd.f32 0.0, %v9312
    %9314 = vmatprep.mubr.bf16.mxu0 %v2699
    %9315 = vmatmul.mubr.bf16.gmra.mxu0 %v2698
    %v9316 = vpop.f32.mrf.mxu0
    %v9317 = vadd.f32 0.0, %v9316
    %v9318 = vpop.f32.mrf.mxu0
    %v9319 = vadd.f32 0.0, %v9318
    %v9320 = vpop.f32.mrf.mxu0
    %v9321 = vadd.f32 0.0, %v9320
    %v9322 = vpop.f32.mrf.mxu0
    %v9323 = vadd.f32 0.0, %v9322
    %9324 = vdwg.mxu0
    %9325 = vmatprep.subr.bf16.mxu0 %v8573
    %9326 = vmatpush1.bf16.msra.mxu0 %v8572
    %9327 = vmatprep.subr.bf16.mxu0 %v8569
    %9328 = vmatpush1.bf16.msra.mxu0 %v8568
    %9329 = vmatprep.subr.bf16.mxu0 %v8565
    %9330 = vmatpush1.bf16.msra.mxu0 %v8564
    %9331 = vmatprep.subr.bf16.mxu0 %v8561
    %9332 = vmatpush1.bf16.msra.mxu0 %v8560
    %9333 = vmatprep.subr.bf16.mxu0 %v8557
    %9334 = vmatpush1.bf16.msra.mxu0 %v8556
    %9335 = vmatprep.subr.bf16.mxu0 %v8553
    %9336 = vmatpush1.bf16.msra.mxu0 %v8552
    %9337 = vmatprep.subr.bf16.mxu0 %v8549
    %9338 = vmatpush1.bf16.msra.mxu0 %v8548
    %9339 = vmatprep.subr.bf16.mxu0 %v8545
    %9340 = vmatpush1.bf16.msra.mxu0 %v8544
    %9341 = vmatprep.subr.bf16.mxu0 %v8605
    %9342 = vmatpush2.bf16.msra.mxu0 %v8604
    %9343 = vmatprep.subr.bf16.mxu0 %v8601
    %9344 = vmatpush2.bf16.msra.mxu0 %v8600
    %9345 = vmatprep.subr.bf16.mxu0 %v8597
    %9346 = vmatpush2.bf16.msra.mxu0 %v8596
    %9347 = vmatprep.subr.bf16.mxu0 %v8593
    %9348 = vmatpush2.bf16.msra.mxu0 %v8592
    %9349 = vmatprep.subr.bf16.mxu0 %v8589
    %9350 = vmatpush2.bf16.msra.mxu0 %v8588
    %9351 = vmatprep.subr.bf16.mxu0 %v8585
    %9352 = vmatpush2.bf16.msra.mxu0 %v8584
    %9353 = vmatprep.subr.bf16.mxu0 %v8581
    %9354 = vmatpush2.bf16.msra.mxu0 %v8580
    %9355 = vmatprep.subr.bf16.mxu0 %v8577
    %9356 = vmatpush2.bf16.msra.mxu0 %v8576
    %9357 = vmatprep.mubr.bf16.mxu0 %v2961
    %9358 = vmatmul.mubr.bf16.gmra.mxu0 0
    %v9359 = vpop.f32.mrf.mxu0
    %v9360 = vadd.f32 %v9187, %v9359
    %v9361 = vpop.f32.mrf.mxu0
    %v9362 = vadd.f32 %v9189, %v9361
    %v9363 = vpop.f32.mrf.mxu0
    %v9364 = vadd.f32 %v9191, %v9363
    %v9365 = vpop.f32.mrf.mxu0
    %v9366 = vadd.f32 %v9193, %v9365
    %9367 = vmatprep.mubr.bf16.mxu0 %v2965
    %9368 = vmatmul.mubr.bf16.gmra.mxu0 %v2652
    %v9369 = vpop.f32.mrf.mxu0
    %v9370 = vadd.f32 %v9197, %v9369
    %v9371 = vpop.f32.mrf.mxu0
    %v9372 = vadd.f32 %v9199, %v9371
    %v9373 = vpop.f32.mrf.mxu0
    %v9374 = vadd.f32 %v9201, %v9373
    %v9375 = vpop.f32.mrf.mxu0
    %v9376 = vadd.f32 %v9203, %v9375
    %9377 = vmatprep.mubr.bf16.mxu0 %v2969
    %9378 = vmatmul.mubr.bf16.gmra.mxu0 %v2656
    %v9379 = vpop.f32.mrf.mxu0
    %v9380 = vadd.f32 %v9207, %v9379
    %v9381 = vpop.f32.mrf.mxu0
    %v9382 = vadd.f32 %v9209, %v9381
    %v9383 = vpop.f32.mrf.mxu0
    %v9384 = vadd.f32 %v9211, %v9383
    %v9385 = vpop.f32.mrf.mxu0
    %v9386 = vadd.f32 %v9213, %v9385
    %9387 = vmatprep.mubr.bf16.mxu0 %v2973
    %9388 = vmatmul.mubr.bf16.gmra.mxu0 %v2660
    %v9389 = vpop.f32.mrf.mxu0
    %v9390 = vadd.f32 %v9217, %v9389
    %v9391 = vpop.f32.mrf.mxu0
    %v9392 = vadd.f32 %v9219, %v9391
    %v9393 = vpop.f32.mrf.mxu0
    %v9394 = vadd.f32 %v9221, %v9393
    %v9395 = vpop.f32.mrf.mxu0
    %v9396 = vadd.f32 %v9223, %v9395
    %9397 = vmatprep.mubr.bf16.mxu0 %v2977
    %9398 = vmatmul.mubr.bf16.gmra.mxu0 %v2664
    %v9399 = vpop.f32.mrf.mxu0
    %v9400 = vadd.f32 %v9227, %v9399
    %v9401 = vpop.f32.mrf.mxu0
    %v9402 = vadd.f32 %v9229, %v9401
    %v9403 = vpop.f32.mrf.mxu0
    %v9404 = vadd.f32 %v9231, %v9403
    %v9405 = vpop.f32.mrf.mxu0
    %v9406 = vadd.f32 %v9233, %v9405
    %9407 = vmatprep.mubr.bf16.mxu0 %v2981
    %9408 = vmatmul.mubr.bf16.gmra.mxu0 %v2668
    %v9409 = vpop.f32.mrf.mxu0
    %v9410 = vadd.f32 %v9237, %v9409
    %v9411 = vpop.f32.mrf.mxu0
    %v9412 = vadd.f32 %v9239, %v9411
    %v9413 = vpop.f32.mrf.mxu0
    %v9414 = vadd.f32 %v9241, %v9413
    %v9415 = vpop.f32.mrf.mxu0
    %v9416 = vadd.f32 %v9243, %v9415
    %9417 = vmatprep.mubr.bf16.mxu0 %v2985
    %9418 = vmatmul.mubr.bf16.gmra.mxu0 %v2672
    %v9419 = vpop.f32.mrf.mxu0
    %v9420 = vadd.f32 %v9247, %v9419
    %v9421 = vpop.f32.mrf.mxu0
    %v9422 = vadd.f32 %v9249, %v9421
    %v9423 = vpop.f32.mrf.mxu0
    %v9424 = vadd.f32 %v9251, %v9423
    %v9425 = vpop.f32.mrf.mxu0
    %v9426 = vadd.f32 %v9253, %v9425
    %9427 = vmatprep.mubr.bf16.mxu0 %v2989
    %9428 = vmatmul.mubr.bf16.gmra.mxu0 %v2676
    %v9429 = vpop.f32.mrf.mxu0
    %v9430 = vadd.f32 %v9257, %v9429
    %v9431 = vpop.f32.mrf.mxu0
    %v9432 = vadd.f32 %v9259, %v9431
    %v9433 = vpop.f32.mrf.mxu0
    %v9434 = vadd.f32 %v9261, %v9433
    %v9435 = vpop.f32.mrf.mxu0
    %v9436 = vadd.f32 %v9263, %v9435
    %9437 = vmatprep.mubr.bf16.mxu0 %v2993
    %9438 = vmatmul.mubr.bf16.gmra.mxu0 %v2680
    %v9439 = vpop.f32.mrf.mxu0
    %v9440 = vadd.f32 %v9267, %v9439
    %v9441 = vpop.f32.mrf.mxu0
    %v9442 = vadd.f32 %v9269, %v9441
    %v9443 = vpop.f32.mrf.mxu0
    %v9444 = vadd.f32 %v9271, %v9443
    %v9445 = vpop.f32.mrf.mxu0
    %v9446 = vadd.f32 %v9273, %v9445
    %9447 = vmatprep.mubr.bf16.mxu0 %v2997
    %9448 = vmatmul.mubr.bf16.gmra.mxu0 %v2684
    %v9449 = vpop.f32.mrf.mxu0
    %v9450 = vadd.f32 %v9277, %v9449
    %v9451 = vpop.f32.mrf.mxu0
    %v9452 = vadd.f32 %v9279, %v9451
    %v9453 = vpop.f32.mrf.mxu0
    %v9454 = vadd.f32 %v9281, %v9453
    %v9455 = vpop.f32.mrf.mxu0
    %v9456 = vadd.f32 %v9283, %v9455
    %9457 = vmatprep.mubr.bf16.mxu0 %v3001
    %9458 = vmatmul.mubr.bf16.gmra.mxu0 %v2688
    %v9459 = vpop.f32.mrf.mxu0
    %v9460 = vadd.f32 %v9287, %v9459
    %v9461 = vpop.f32.mrf.mxu0
    %v9462 = vadd.f32 %v9289, %v9461
    %v9463 = vpop.f32.mrf.mxu0
    %v9464 = vadd.f32 %v9291, %v9463
    %v9465 = vpop.f32.mrf.mxu0
    %v9466 = vadd.f32 %v9293, %v9465
    %9467 = vmatprep.mubr.bf16.mxu0 %v3005
    %9468 = vmatmul.mubr.bf16.gmra.mxu0 %v2692
    %v9469 = vpop.f32.mrf.mxu0
    %v9470 = vadd.f32 %v9297, %v9469
    %v9471 = vpop.f32.mrf.mxu0
    %v9472 = vadd.f32 %v9299, %v9471
    %v9473 = vpop.f32.mrf.mxu0
    %v9474 = vadd.f32 %v9301, %v9473
    %v9475 = vpop.f32.mrf.mxu0
    %v9476 = vadd.f32 %v9303, %v9475
    %9477 = vmatprep.mubr.bf16.mxu0 %v3009
    %9478 = vmatmul.mubr.bf16.gmra.mxu0 %v2696
    %v9479 = vpop.f32.mrf.mxu0
    %v9480 = vadd.f32 %v9307, %v9479
    %v9481 = vpop.f32.mrf.mxu0
    %v9482 = vadd.f32 %v9309, %v9481
    %v9483 = vpop.f32.mrf.mxu0
    %v9484 = vadd.f32 %v9311, %v9483
    %v9485 = vpop.f32.mrf.mxu0
    %v9486 = vadd.f32 %v9313, %v9485
    %9487 = vmatprep.mubr.bf16.mxu0 %v3013
    %9488 = vmatmul.mubr.bf16.gmra.mxu0 %v2700
    %v9489 = vpop.f32.mrf.mxu0
    %v9490 = vadd.f32 %v9317, %v9489
    %v9491 = vpop.f32.mrf.mxu0
    %v9492 = vadd.f32 %v9319, %v9491
    %v9493 = vpop.f32.mrf.mxu0
    %v9494 = vadd.f32 %v9321, %v9493
    %v9495 = vpop.f32.mrf.mxu0
    %v9496 = vadd.f32 %v9323, %v9495
    %9497 = vdwg.mxu0
    %9498 = vmatprep.subr.bf16.mxu0 %v8637
    %9499 = vmatpush1.bf16.msra.mxu0 %v8636
    %9500 = vmatprep.subr.bf16.mxu0 %v8633
    %9501 = vmatpush1.bf16.msra.mxu0 %v8632
    %9502 = vmatprep.subr.bf16.mxu0 %v8629
    %9503 = vmatpush1.bf16.msra.mxu0 %v8628
    %9504 = vmatprep.subr.bf16.mxu0 %v8625
    %9505 = vmatpush1.bf16.msra.mxu0 %v8624
    %9506 = vmatprep.subr.bf16.mxu0 %v8621
    %9507 = vmatpush1.bf16.msra.mxu0 %v8620
    %9508 = vmatprep.subr.bf16.mxu0 %v8617
    %9509 = vmatpush1.bf16.msra.mxu0 %v8616
    %9510 = vmatprep.subr.bf16.mxu0 %v8613
    %9511 = vmatpush1.bf16.msra.mxu0 %v8612
    %9512 = vmatprep.subr.bf16.mxu0 %v8609
    %9513 = vmatpush1.bf16.msra.mxu0 %v8608
    %9514 = vmatprep.subr.bf16.mxu0 %v8669
    %9515 = vmatpush2.bf16.msra.mxu0 %v8668
    %9516 = vmatprep.subr.bf16.mxu0 %v8665
    %9517 = vmatpush2.bf16.msra.mxu0 %v8664
    %9518 = vmatprep.subr.bf16.mxu0 %v8661
    %9519 = vmatpush2.bf16.msra.mxu0 %v8660
    %9520 = vmatprep.subr.bf16.mxu0 %v8657
    %9521 = vmatpush2.bf16.msra.mxu0 %v8656
    %9522 = vmatprep.subr.bf16.mxu0 %v8653
    %9523 = vmatpush2.bf16.msra.mxu0 %v8652
    %9524 = vmatprep.subr.bf16.mxu0 %v8649
    %9525 = vmatpush2.bf16.msra.mxu0 %v8648
    %9526 = vmatprep.subr.bf16.mxu0 %v8645
    %9527 = vmatpush2.bf16.msra.mxu0 %v8644
    %9528 = vmatprep.subr.bf16.mxu0 %v8641
    %9529 = vmatpush2.bf16.msra.mxu0 %v8640
    %9530 = vmatprep.mubr.bf16.mxu0 %v2876
    %9531 = vmatmul.mubr.bf16.gmra.mxu0 %v2875
    %v9532 = vpop.f32.mrf.mxu0
    %v9533 = vadd.f32 %v9360, %v9532
    %v9534 = vpop.f32.mrf.mxu0
    %v9535 = vadd.f32 %v9362, %v9534
    %v9536 = vpop.f32.mrf.mxu0
    %v9537 = vadd.f32 %v9364, %v9536
    %v9538 = vpop.f32.mrf.mxu0
    %v9539 = vadd.f32 %v9366, %v9538
    %9540 = vmatprep.mubr.bf16.mxu0 %v2879
    %9541 = vmatmul.mubr.bf16.gmra.mxu0 %v2878
    %v9542 = vpop.f32.mrf.mxu0
    %v9543 = vadd.f32 %v9370, %v9542
    %v9544 = vpop.f32.mrf.mxu0
    %v9545 = vadd.f32 %v9372, %v9544
    %v9546 = vpop.f32.mrf.mxu0
    %v9547 = vadd.f32 %v9374, %v9546
    %v9548 = vpop.f32.mrf.mxu0
    %v9549 = vadd.f32 %v9376, %v9548
    %9550 = vmatprep.mubr.bf16.mxu0 %v2882
    %9551 = vmatmul.mubr.bf16.gmra.mxu0 %v2881
    %v9552 = vpop.f32.mrf.mxu0
    %v9553 = vadd.f32 %v9380, %v9552
    %v9554 = vpop.f32.mrf.mxu0
    %v9555 = vadd.f32 %v9382, %v9554
    %v9556 = vpop.f32.mrf.mxu0
    %v9557 = vadd.f32 %v9384, %v9556
    %v9558 = vpop.f32.mrf.mxu0
    %v9559 = vadd.f32 %v9386, %v9558
    %9560 = vmatprep.mubr.bf16.mxu0 %v2885
    %9561 = vmatmul.mubr.bf16.gmra.mxu0 %v2884
    %v9562 = vpop.f32.mrf.mxu0
    %v9563 = vadd.f32 %v9390, %v9562
    %v9564 = vpop.f32.mrf.mxu0
    %v9565 = vadd.f32 %v9392, %v9564
    %v9566 = vpop.f32.mrf.mxu0
    %v9567 = vadd.f32 %v9394, %v9566
    %v9568 = vpop.f32.mrf.mxu0
    %v9569 = vadd.f32 %v9396, %v9568
    %9570 = vmatprep.mubr.bf16.mxu0 %v2888
    %9571 = vmatmul.mubr.bf16.gmra.mxu0 %v2887
    %v9572 = vpop.f32.mrf.mxu0
    %v9573 = vadd.f32 %v9400, %v9572
    %v9574 = vpop.f32.mrf.mxu0
    %v9575 = vadd.f32 %v9402, %v9574
    %v9576 = vpop.f32.mrf.mxu0
    %v9577 = vadd.f32 %v9404, %v9576
    %v9578 = vpop.f32.mrf.mxu0
    %v9579 = vadd.f32 %v9406, %v9578
    %9580 = vmatprep.mubr.bf16.mxu0 %v2891
    %9581 = vmatmul.mubr.bf16.gmra.mxu0 %v2890
    %v9582 = vpop.f32.mrf.mxu0
    %v9583 = vadd.f32 %v9410, %v9582
    %v9584 = vpop.f32.mrf.mxu0
    %v9585 = vadd.f32 %v9412, %v9584
    %v9586 = vpop.f32.mrf.mxu0
    %v9587 = vadd.f32 %v9414, %v9586
    %v9588 = vpop.f32.mrf.mxu0
    %v9589 = vadd.f32 %v9416, %v9588
    %9590 = vmatprep.mubr.bf16.mxu0 %v2894
    %9591 = vmatmul.mubr.bf16.gmra.mxu0 %v2893
    %v9592 = vpop.f32.mrf.mxu0
    %v9593 = vadd.f32 %v9420, %v9592
    %v9594 = vpop.f32.mrf.mxu0
    %v9595 = vadd.f32 %v9422, %v9594
    %v9596 = vpop.f32.mrf.mxu0
    %v9597 = vadd.f32 %v9424, %v9596
    %v9598 = vpop.f32.mrf.mxu0
    %v9599 = vadd.f32 %v9426, %v9598
    %9600 = vmatprep.mubr.bf16.mxu0 %v2897
    %9601 = vmatmul.mubr.bf16.gmra.mxu0 %v2896
    %v9602 = vpop.f32.mrf.mxu0
    %v9603 = vadd.f32 %v9430, %v9602
    %v9604 = vpop.f32.mrf.mxu0
    %v9605 = vadd.f32 %v9432, %v9604
    %v9606 = vpop.f32.mrf.mxu0
    %v9607 = vadd.f32 %v9434, %v9606
    %v9608 = vpop.f32.mrf.mxu0
    %v9609 = vadd.f32 %v9436, %v9608
    %9610 = vmatprep.mubr.bf16.mxu0 %v2900
    %9611 = vmatmul.mubr.bf16.gmra.mxu0 %v2899
    %v9612 = vpop.f32.mrf.mxu0
    %v9613 = vadd.f32 %v9440, %v9612
    %v9614 = vpop.f32.mrf.mxu0
    %v9615 = vadd.f32 %v9442, %v9614
    %v9616 = vpop.f32.mrf.mxu0
    %v9617 = vadd.f32 %v9444, %v9616
    %v9618 = vpop.f32.mrf.mxu0
    %v9619 = vadd.f32 %v9446, %v9618
    %9620 = vmatprep.mubr.bf16.mxu0 %v2903
    %9621 = vmatmul.mubr.bf16.gmra.mxu0 %v2902
    %v9622 = vpop.f32.mrf.mxu0
    %v9623 = vadd.f32 %v9450, %v9622
    %v9624 = vpop.f32.mrf.mxu0
    %v9625 = vadd.f32 %v9452, %v9624
    %v9626 = vpop.f32.mrf.mxu0
    %v9627 = vadd.f32 %v9454, %v9626
    %v9628 = vpop.f32.mrf.mxu0
    %v9629 = vadd.f32 %v9456, %v9628
    %9630 = vmatprep.mubr.bf16.mxu0 %v2906
    %9631 = vmatmul.mubr.bf16.gmra.mxu0 %v2905
    %v9632 = vpop.f32.mrf.mxu0
    %v9633 = vadd.f32 %v9460, %v9632
    %v9634 = vpop.f32.mrf.mxu0
    %v9635 = vadd.f32 %v9462, %v9634
    %v9636 = vpop.f32.mrf.mxu0
    %v9637 = vadd.f32 %v9464, %v9636
    %v9638 = vpop.f32.mrf.mxu0
    %v9639 = vadd.f32 %v9466, %v9638
    %9640 = vmatprep.mubr.bf16.mxu0 %v2909
    %9641 = vmatmul.mubr.bf16.gmra.mxu0 %v2908
    %v9642 = vpop.f32.mrf.mxu0
    %v9643 = vadd.f32 %v9470, %v9642
    %v9644 = vpop.f32.mrf.mxu0
    %v9645 = vadd.f32 %v9472, %v9644
    %v9646 = vpop.f32.mrf.mxu0
    %v9647 = vadd.f32 %v9474, %v9646
    %v9648 = vpop.f32.mrf.mxu0
    %v9649 = vadd.f32 %v9476, %v9648
    %9650 = vmatprep.mubr.bf16.mxu0 %v2912
    %9651 = vmatmul.mubr.bf16.gmra.mxu0 %v2911
    %v9652 = vpop.f32.mrf.mxu0
    %v9653 = vadd.f32 %v9480, %v9652
    %v9654 = vpop.f32.mrf.mxu0
    %v9655 = vadd.f32 %v9482, %v9654
    %v9656 = vpop.f32.mrf.mxu0
    %v9657 = vadd.f32 %v9484, %v9656
    %v9658 = vpop.f32.mrf.mxu0
    %v9659 = vadd.f32 %v9486, %v9658
    %9660 = vmatprep.mubr.bf16.mxu0 %v2915
    %9661 = vmatmul.mubr.bf16.gmra.mxu0 %v2914
    %v9662 = vpop.f32.mrf.mxu0
    %v9663 = vadd.f32 %v9490, %v9662
    %v9664 = vpop.f32.mrf.mxu0
    %v9665 = vadd.f32 %v9492, %v9664
    %v9666 = vpop.f32.mrf.mxu0
    %v9667 = vadd.f32 %v9494, %v9666
    %v9668 = vpop.f32.mrf.mxu0
    %v9669 = vadd.f32 %v9496, %v9668
    %9670 = vdwg.mxu0
    %9671 = vmatprep.subr.bf16.mxu0 %v8701
    %9672 = vmatpush1.bf16.msra.mxu0 %v8700
    %9673 = vmatprep.subr.bf16.mxu0 %v8697
    %9674 = vmatpush1.bf16.msra.mxu0 %v8696
    %9675 = vmatprep.subr.bf16.mxu0 %v8693
    %9676 = vmatpush1.bf16.msra.mxu0 %v8692
    %9677 = vmatprep.subr.bf16.mxu0 %v8689
    %9678 = vmatpush1.bf16.msra.mxu0 %v8688
    %9679 = vmatprep.subr.bf16.mxu0 %v8685
    %9680 = vmatpush1.bf16.msra.mxu0 %v8684
    %9681 = vmatprep.subr.bf16.mxu0 %v8681
    %9682 = vmatpush1.bf16.msra.mxu0 %v8680
    %9683 = vmatprep.subr.bf16.mxu0 %v8677
    %9684 = vmatpush1.bf16.msra.mxu0 %v8676
    %9685 = vmatprep.subr.bf16.mxu0 %v8673
    %9686 = vmatpush1.bf16.msra.mxu0 %v8672
    %9687 = vmatprep.subr.bf16.mxu0 %v8733
    %9688 = vmatpush2.bf16.msra.mxu0 %v8732
    %9689 = vmatprep.subr.bf16.mxu0 %v8729
    %9690 = vmatpush2.bf16.msra.mxu0 %v8728
    %9691 = vmatprep.subr.bf16.mxu0 %v8725
    %9692 = vmatpush2.bf16.msra.mxu0 %v8724
    %9693 = vmatprep.subr.bf16.mxu0 %v8721
    %9694 = vmatpush2.bf16.msra.mxu0 %v8720
    %9695 = vmatprep.subr.bf16.mxu0 %v8717
    %9696 = vmatpush2.bf16.msra.mxu0 %v8716
    %9697 = vmatprep.subr.bf16.mxu0 %v8713
    %9698 = vmatpush2.bf16.msra.mxu0 %v8712
    %9699 = vmatprep.subr.bf16.mxu0 %v8709
    %9700 = vmatpush2.bf16.msra.mxu0 %v8708
    %9701 = vmatprep.subr.bf16.mxu0 %v8705
    %9702 = vmatpush2.bf16.msra.mxu0 %v8704
    %9703 = vmatprep.mubr.bf16.mxu0 %v2654
    %9704 = vmatmul.mubr.bf16.gmra.mxu0 %v2877
    %v9705 = vpop.f32.mrf.mxu0
    %v9706 = vadd.f32 %v9533, %v9705
    %v9707 = vpop.f32.mrf.mxu0
    %v9708 = vadd.f32 %v9535, %v9707
    %v9709 = vpop.f32.mrf.mxu0
    %v9710 = vadd.f32 %v9537, %v9709
    %v9711 = vpop.f32.mrf.mxu0
    %v9712 = vadd.f32 %v9539, %v9711
    %9713 = vmatprep.mubr.bf16.mxu0 %v2658
    %9714 = vmatmul.mubr.bf16.gmra.mxu0 %v2880
    %v9715 = vpop.f32.mrf.mxu0
    %v9716 = vadd.f32 %v9543, %v9715
    %v9717 = vpop.f32.mrf.mxu0
    %v9718 = vadd.f32 %v9545, %v9717
    %v9719 = vpop.f32.mrf.mxu0
    %v9720 = vadd.f32 %v9547, %v9719
    %v9721 = vpop.f32.mrf.mxu0
    %v9722 = vadd.f32 %v9549, %v9721
    %9723 = vmatprep.mubr.bf16.mxu0 %v2662
    %9724 = vmatmul.mubr.bf16.gmra.mxu0 %v2883
    %v9725 = vpop.f32.mrf.mxu0
    %v9726 = vadd.f32 %v9553, %v9725
    %v9727 = vpop.f32.mrf.mxu0
    %v9728 = vadd.f32 %v9555, %v9727
    %v9729 = vpop.f32.mrf.mxu0
    %v9730 = vadd.f32 %v9557, %v9729
    %v9731 = vpop.f32.mrf.mxu0
    %v9732 = vadd.f32 %v9559, %v9731
    %9733 = vmatprep.mubr.bf16.mxu0 %v2666
    %9734 = vmatmul.mubr.bf16.gmra.mxu0 %v2886
    %v9735 = vpop.f32.mrf.mxu0
    %v9736 = vadd.f32 %v9563, %v9735
    %v9737 = vpop.f32.mrf.mxu0
    %v9738 = vadd.f32 %v9565, %v9737
    %v9739 = vpop.f32.mrf.mxu0
    %v9740 = vadd.f32 %v9567, %v9739
    %v9741 = vpop.f32.mrf.mxu0
    %v9742 = vadd.f32 %v9569, %v9741
    %9743 = vmatprep.mubr.bf16.mxu0 %v2670
    %9744 = vmatmul.mubr.bf16.gmra.mxu0 %v2889
    %v9745 = vpop.f32.mrf.mxu0
    %v9746 = vadd.f32 %v9573, %v9745
    %v9747 = vpop.f32.mrf.mxu0
    %v9748 = vadd.f32 %v9575, %v9747
    %v9749 = vpop.f32.mrf.mxu0
    %v9750 = vadd.f32 %v9577, %v9749
    %v9751 = vpop.f32.mrf.mxu0
    %v9752 = vadd.f32 %v9579, %v9751
    %9753 = vmatprep.mubr.bf16.mxu0 %v2674
    %9754 = vmatmul.mubr.bf16.gmra.mxu0 %v2892
    %v9755 = vpop.f32.mrf.mxu0
    %v9756 = vadd.f32 %v9583, %v9755
    %v9757 = vpop.f32.mrf.mxu0
    %v9758 = vadd.f32 %v9585, %v9757
    %v9759 = vpop.f32.mrf.mxu0
    %v9760 = vadd.f32 %v9587, %v9759
    %v9761 = vpop.f32.mrf.mxu0
    %v9762 = vadd.f32 %v9589, %v9761
    %9763 = vmatprep.mubr.bf16.mxu0 %v2678
    %9764 = vmatmul.mubr.bf16.gmra.mxu0 %v2895
    %v9765 = vpop.f32.mrf.mxu0
    %v9766 = vadd.f32 %v9593, %v9765
    %v9767 = vpop.f32.mrf.mxu0
    %v9768 = vadd.f32 %v9595, %v9767
    %v9769 = vpop.f32.mrf.mxu0
    %v9770 = vadd.f32 %v9597, %v9769
    %v9771 = vpop.f32.mrf.mxu0
    %v9772 = vadd.f32 %v9599, %v9771
    %9773 = vmatprep.mubr.bf16.mxu0 %v2682
    %9774 = vmatmul.mubr.bf16.gmra.mxu0 %v2898
    %v9775 = vpop.f32.mrf.mxu0
    %v9776 = vadd.f32 %v9603, %v9775
    %v9777 = vpop.f32.mrf.mxu0
    %v9778 = vadd.f32 %v9605, %v9777
    %v9779 = vpop.f32.mrf.mxu0
    %v9780 = vadd.f32 %v9607, %v9779
    %v9781 = vpop.f32.mrf.mxu0
    %v9782 = vadd.f32 %v9609, %v9781
    %9783 = vmatprep.mubr.bf16.mxu0 %v2686
    %9784 = vmatmul.mubr.bf16.gmra.mxu0 %v2901
    %v9785 = vpop.f32.mrf.mxu0
    %v9786 = vadd.f32 %v9613, %v9785
    %v9787 = vpop.f32.mrf.mxu0
    %v9788 = vadd.f32 %v9615, %v9787
    %v9789 = vpop.f32.mrf.mxu0
    %v9790 = vadd.f32 %v9617, %v9789
    %v9791 = vpop.f32.mrf.mxu0
    %v9792 = vadd.f32 %v9619, %v9791
    %9793 = vmatprep.mubr.bf16.mxu0 %v2690
    %9794 = vmatmul.mubr.bf16.gmra.mxu0 %v2904
    %v9795 = vpop.f32.mrf.mxu0
    %v9796 = vadd.f32 %v9623, %v9795
    %v9797 = vpop.f32.mrf.mxu0
    %v9798 = vadd.f32 %v9625, %v9797
    %v9799 = vpop.f32.mrf.mxu0
    %v9800 = vadd.f32 %v9627, %v9799
    %v9801 = vpop.f32.mrf.mxu0
    %v9802 = vadd.f32 %v9629, %v9801
    %9803 = vmatprep.mubr.bf16.mxu0 %v2694
    %9804 = vmatmul.mubr.bf16.gmra.mxu0 %v2907
    %v9805 = vpop.f32.mrf.mxu0
    %v9806 = vadd.f32 %v9633, %v9805
    %v9807 = vpop.f32.mrf.mxu0
    %v9808 = vadd.f32 %v9635, %v9807
    %v9809 = vpop.f32.mrf.mxu0
    %v9810 = vadd.f32 %v9637, %v9809
    %v9811 = vpop.f32.mrf.mxu0
    %v9812 = vadd.f32 %v9639, %v9811
    %9813 = vmatprep.mubr.bf16.mxu0 %v2698
    %9814 = vmatmul.mubr.bf16.gmra.mxu0 %v2910
    %v9815 = vpop.f32.mrf.mxu0
    %v9816 = vadd.f32 %v9643, %v9815
    %v9817 = vpop.f32.mrf.mxu0
    %v9818 = vadd.f32 %v9645, %v9817
    %v9819 = vpop.f32.mrf.mxu0
    %v9820 = vadd.f32 %v9647, %v9819
    %v9821 = vpop.f32.mrf.mxu0
    %v9822 = vadd.f32 %v9649, %v9821
    %9823 = vmatprep.mubr.bf16.mxu0 %v2702
    %9824 = vmatmul.mubr.bf16.gmra.mxu0 %v2913
    %v9825 = vpop.f32.mrf.mxu0
    %v9826 = vadd.f32 %v9653, %v9825
    %v9827 = vpop.f32.mrf.mxu0
    %v9828 = vadd.f32 %v9655, %v9827
    %v9829 = vpop.f32.mrf.mxu0
    %v9830 = vadd.f32 %v9657, %v9829
    %v9831 = vpop.f32.mrf.mxu0
    %v9832 = vadd.f32 %v9659, %v9831
    %9833 = vmatprep.mubr.bf16.mxu0 0
    %9834 = vmatmul.mubr.bf16.gmra.mxu0 %v2916
    %v9835 = vpop.f32.mrf.mxu0
    %v9836 = vadd.f32 %v9663, %v9835
    %v9837 = vpop.f32.mrf.mxu0
    %v9838 = vadd.f32 %v9665, %v9837
    %v9839 = vpop.f32.mrf.mxu0
    %v9840 = vadd.f32 %v9667, %v9839
    %v9841 = vpop.f32.mrf.mxu0
    %v9842 = vadd.f32 %v9669, %v9841
    %9843 = vdwg.mxu0
    %9844 = vmatprep.subr.bf16.mxu0 %v8765
    %9845 = vmatpush1.bf16.msra.mxu0 %v8764
    %9846 = vmatprep.subr.bf16.mxu0 %v8761
    %9847 = vmatpush1.bf16.msra.mxu0 %v8760
    %9848 = vmatprep.subr.bf16.mxu0 %v8757
    %9849 = vmatpush1.bf16.msra.mxu0 %v8756
    %9850 = vmatprep.subr.bf16.mxu0 %v8753
    %9851 = vmatpush1.bf16.msra.mxu0 %v8752
    %9852 = vmatprep.subr.bf16.mxu0 %v8749
    %9853 = vmatpush1.bf16.msra.mxu0 %v8748
    %9854 = vmatprep.subr.bf16.mxu0 %v8745
    %9855 = vmatpush1.bf16.msra.mxu0 %v8744
    %9856 = vmatprep.subr.bf16.mxu0 %v8741
    %9857 = vmatpush1.bf16.msra.mxu0 %v8740
    %9858 = vmatprep.subr.bf16.mxu0 %v8737
    %9859 = vmatpush1.bf16.msra.mxu0 %v8736
    %9860 = vmatprep.subr.bf16.mxu0 %v8797
    %9861 = vmatpush2.bf16.msra.mxu0 %v8796
    %9862 = vmatprep.subr.bf16.mxu0 %v8793
    %9863 = vmatpush2.bf16.msra.mxu0 %v8792
    %9864 = vmatprep.subr.bf16.mxu0 %v8789
    %9865 = vmatpush2.bf16.msra.mxu0 %v8788
    %9866 = vmatprep.subr.bf16.mxu0 %v8785
    %9867 = vmatpush2.bf16.msra.mxu0 %v8784
    %9868 = vmatprep.subr.bf16.mxu0 %v8781
    %9869 = vmatpush2.bf16.msra.mxu0 %v8780
    %9870 = vmatprep.subr.bf16.mxu0 %v8777
    %9871 = vmatpush2.bf16.msra.mxu0 %v8776
    %9872 = vmatprep.subr.bf16.mxu0 %v8773
    %9873 = vmatpush2.bf16.msra.mxu0 %v8772
    %9874 = vmatprep.subr.bf16.mxu0 %v8769
    %9875 = vmatpush2.bf16.msra.mxu0 %v8768
    %9876 = vmatprep.mubr.bf16.mxu0 %v2656
    %9877 = vmatmul.mubr.bf16.gmra.mxu0 %v2655
    %v9878 = vpop.f32.mrf.mxu0
    %v9879 = vadd.f32 %v9706, %v9878
    %v9880 = vpop.f32.mrf.mxu0
    %v9881 = vadd.f32 %v9708, %v9880
    %v9882 = vpop.f32.mrf.mxu0
    %v9883 = vadd.f32 %v9710, %v9882
    %v9884 = vpop.f32.mrf.mxu0
    %v9885 = vadd.f32 %v9712, %v9884
    %9886 = vmatprep.mubr.bf16.mxu0 %v2660
    %9887 = vmatmul.mubr.bf16.gmra.mxu0 %v2659
    %v9888 = vpop.f32.mrf.mxu0
    %v9889 = vadd.f32 %v9716, %v9888
    %v9890 = vpop.f32.mrf.mxu0
    %v9891 = vadd.f32 %v9718, %v9890
    %v9892 = vpop.f32.mrf.mxu0
    %v9893 = vadd.f32 %v9720, %v9892
    %v9894 = vpop.f32.mrf.mxu0
    %v9895 = vadd.f32 %v9722, %v9894
    %9896 = vmatprep.mubr.bf16.mxu0 %v2664
    %9897 = vmatmul.mubr.bf16.gmra.mxu0 %v2663
    %v9898 = vpop.f32.mrf.mxu0
    %v9899 = vadd.f32 %v9726, %v9898
    %v9900 = vpop.f32.mrf.mxu0
    %v9901 = vadd.f32 %v9728, %v9900
    %v9902 = vpop.f32.mrf.mxu0
    %v9903 = vadd.f32 %v9730, %v9902
    %v9904 = vpop.f32.mrf.mxu0
    %v9905 = vadd.f32 %v9732, %v9904
    %9906 = vmatprep.mubr.bf16.mxu0 %v2668
    %9907 = vmatmul.mubr.bf16.gmra.mxu0 %v2667
    %v9908 = vpop.f32.mrf.mxu0
    %v9909 = vadd.f32 %v9736, %v9908
    %v9910 = vpop.f32.mrf.mxu0
    %v9911 = vadd.f32 %v9738, %v9910
    %v9912 = vpop.f32.mrf.mxu0
    %v9913 = vadd.f32 %v9740, %v9912
    %v9914 = vpop.f32.mrf.mxu0
    %v9915 = vadd.f32 %v9742, %v9914
    %9916 = vmatprep.mubr.bf16.mxu0 %v2672
    %9917 = vmatmul.mubr.bf16.gmra.mxu0 %v2671
    %v9918 = vpop.f32.mrf.mxu0
    %v9919 = vadd.f32 %v9746, %v9918
    %v9920 = vpop.f32.mrf.mxu0
    %v9921 = vadd.f32 %v9748, %v9920
    %v9922 = vpop.f32.mrf.mxu0
    %v9923 = vadd.f32 %v9750, %v9922
    %v9924 = vpop.f32.mrf.mxu0
    %v9925 = vadd.f32 %v9752, %v9924
    %9926 = vmatprep.mubr.bf16.mxu0 %v2676
    %9927 = vmatmul.mubr.bf16.gmra.mxu0 %v2675
    %v9928 = vpop.f32.mrf.mxu0
    %v9929 = vadd.f32 %v9756, %v9928
    %v9930 = vpop.f32.mrf.mxu0
    %v9931 = vadd.f32 %v9758, %v9930
    %v9932 = vpop.f32.mrf.mxu0
    %v9933 = vadd.f32 %v9760, %v9932
    %v9934 = vpop.f32.mrf.mxu0
    %v9935 = vadd.f32 %v9762, %v9934
    %9936 = vmatprep.mubr.bf16.mxu0 %v2680
    %9937 = vmatmul.mubr.bf16.gmra.mxu0 %v2679
    %v9938 = vpop.f32.mrf.mxu0
    %v9939 = vadd.f32 %v9766, %v9938
    %v9940 = vpop.f32.mrf.mxu0
    %v9941 = vadd.f32 %v9768, %v9940
    %v9942 = vpop.f32.mrf.mxu0
    %v9943 = vadd.f32 %v9770, %v9942
    %v9944 = vpop.f32.mrf.mxu0
    %v9945 = vadd.f32 %v9772, %v9944
    %9946 = vmatprep.mubr.bf16.mxu0 %v2684
    %9947 = vmatmul.mubr.bf16.gmra.mxu0 %v2683
    %v9948 = vpop.f32.mrf.mxu0
    %v9949 = vadd.f32 %v9776, %v9948
    %v9950 = vpop.f32.mrf.mxu0
    %v9951 = vadd.f32 %v9778, %v9950
    %v9952 = vpop.f32.mrf.mxu0
    %v9953 = vadd.f32 %v9780, %v9952
    %v9954 = vpop.f32.mrf.mxu0
    %v9955 = vadd.f32 %v9782, %v9954
    %9956 = vmatprep.mubr.bf16.mxu0 %v2688
    %9957 = vmatmul.mubr.bf16.gmra.mxu0 %v2687
    %v9958 = vpop.f32.mrf.mxu0
    %v9959 = vadd.f32 %v9786, %v9958
    %v9960 = vpop.f32.mrf.mxu0
    %v9961 = vadd.f32 %v9788, %v9960
    %v9962 = vpop.f32.mrf.mxu0
    %v9963 = vadd.f32 %v9790, %v9962
    %v9964 = vpop.f32.mrf.mxu0
    %v9965 = vadd.f32 %v9792, %v9964
    %9966 = vmatprep.mubr.bf16.mxu0 %v2692
    %9967 = vmatmul.mubr.bf16.gmra.mxu0 %v2691
    %v9968 = vpop.f32.mrf.mxu0
    %v9969 = vadd.f32 %v9796, %v9968
    %v9970 = vpop.f32.mrf.mxu0
    %v9971 = vadd.f32 %v9798, %v9970
    %v9972 = vpop.f32.mrf.mxu0
    %v9973 = vadd.f32 %v9800, %v9972
    %v9974 = vpop.f32.mrf.mxu0
    %v9975 = vadd.f32 %v9802, %v9974
    %9976 = vmatprep.mubr.bf16.mxu0 %v2696
    %9977 = vmatmul.mubr.bf16.gmra.mxu0 %v2695
    %v9978 = vpop.f32.mrf.mxu0
    %v9979 = vadd.f32 %v9806, %v9978
    %v9980 = vpop.f32.mrf.mxu0
    %v9981 = vadd.f32 %v9808, %v9980
    %v9982 = vpop.f32.mrf.mxu0
    %v9983 = vadd.f32 %v9810, %v9982
    %v9984 = vpop.f32.mrf.mxu0
    %v9985 = vadd.f32 %v9812, %v9984
    %9986 = vmatprep.mubr.bf16.mxu0 %v2700
    %9987 = vmatmul.mubr.bf16.gmra.mxu0 %v2699
    %v9988 = vpop.f32.mrf.mxu0
    %v9989 = vadd.f32 %v9816, %v9988
    %v9990 = vpop.f32.mrf.mxu0
    %v9991 = vadd.f32 %v9818, %v9990
    %v9992 = vpop.f32.mrf.mxu0
    %v9993 = vadd.f32 %v9820, %v9992
    %v9994 = vpop.f32.mrf.mxu0
    %v9995 = vadd.f32 %v9822, %v9994
    %9996 = vmatprep.mubr.bf16.mxu0 %v2704
    %9997 = vmatmul.mubr.bf16.gmra.mxu0 %v2703
    %v9998 = vpop.f32.mrf.mxu0
    %v9999 = vadd.f32 %v9826, %v9998
    %v10000 = vpop.f32.mrf.mxu0
    %v10001 = vadd.f32 %v9828, %v10000
    %v10002 = vpop.f32.mrf.mxu0
    %v10003 = vadd.f32 %v9830, %v10002
    %v10004 = vpop.f32.mrf.mxu0
    %v10005 = vadd.f32 %v9832, %v10004
    %10006 = vmatprep.mubr.bf16.mxu0 0
    %10007 = vmatmul.mubr.bf16.gmra.mxu0 0
    %v10008 = vpop.f32.mrf.mxu0
    %v10009 = vadd.f32 %v9836, %v10008
    %v10010 = vpop.f32.mrf.mxu0
    %v10011 = vadd.f32 %v9838, %v10010
    %v10012 = vpop.f32.mrf.mxu0
    %v10013 = vadd.f32 %v9840, %v10012
    %v10014 = vpop.f32.mrf.mxu0
    %v10015 = vadd.f32 %v9842, %v10014
    %10016 = vdwg.mxu0
    %10017 = vmatprep.subr.bf16.mxu0 0
    %10018 = vmatpush1.bf16.msra.mxu0 0
    %10019 = vmatprep.subr.bf16.mxu0 0
    %10020 = vmatpush1.bf16.msra.mxu0 0
    %10021 = vmatprep.subr.bf16.mxu0 0
    %10022 = vmatpush1.bf16.msra.mxu0 0
    %10023 = vmatprep.subr.bf16.mxu0 0
    %10024 = vmatpush1.bf16.msra.mxu0 0
    %10025 = vmatprep.subr.bf16.mxu0 %v8813
    %10026 = vmatpush1.bf16.msra.mxu0 %v8812
    %10027 = vmatprep.subr.bf16.mxu0 %v8809
    %10028 = vmatpush1.bf16.msra.mxu0 %v8808
    %10029 = vmatprep.subr.bf16.mxu0 %v8805
    %10030 = vmatpush1.bf16.msra.mxu0 %v8804
    %10031 = vmatprep.subr.bf16.mxu0 %v8801
    %10032 = vmatpush1.bf16.msra.mxu0 %v8800
    %10033 = vmatprep.subr.bf16.mxu0 0
    %10034 = vmatpush2.bf16.msra.mxu0 0
    %10035 = vmatprep.subr.bf16.mxu0 0
    %10036 = vmatpush2.bf16.msra.mxu0 0
    %10037 = vmatprep.subr.bf16.mxu0 0
    %10038 = vmatpush2.bf16.msra.mxu0 0
    %10039 = vmatprep.subr.bf16.mxu0 0
    %10040 = vmatpush2.bf16.msra.mxu0 0
    %10041 = vmatprep.subr.bf16.mxu0 0
    %10042 = vmatpush2.bf16.msra.mxu0 0
    %10043 = vmatprep.subr.bf16.mxu0 0
    %10044 = vmatpush2.bf16.msra.mxu0 0
    %10045 = vmatprep.subr.bf16.mxu0 0
    %10046 = vmatpush2.bf16.msra.mxu0 0
    %10047 = vmatprep.subr.bf16.mxu0 0
    %10048 = vmatpush2.bf16.msra.mxu0 0
    %10049 = vmatprep.mubr.bf16.mxu0 0
    %10050 = vmatmul.mubr.bf16.gmra.mxu0 %v5031
    %v10051 = vpop.f32.mrf.mxu0
    %v10052 = vadd.f32 %v9879, %v10051
    %v10053 = vpop.f32.mrf.mxu0
    %v10054 = vadd.f32 %v9881, %v10053
    %v10055 = vpop.f32.mrf.mxu0
    %v10056 = vadd.f32 %v9883, %v10055
    %v10057 = vpop.f32.mrf.mxu0
    %v10058 = vadd.f32 %v9885, %v10057
    %10059 = vmatprep.mubr.bf16.mxu0 0
    %10060 = vmatmul.mubr.bf16.gmra.mxu0 %v5033
    %v10061 = vpop.f32.mrf.mxu0
    %v10062 = vadd.f32 %v9889, %v10061
    %v10063 = vpop.f32.mrf.mxu0
    %v10064 = vadd.f32 %v9891, %v10063
    %v10065 = vpop.f32.mrf.mxu0
    %v10066 = vadd.f32 %v9893, %v10065
    %v10067 = vpop.f32.mrf.mxu0
    %v10068 = vadd.f32 %v9895, %v10067
    %10069 = vmatprep.mubr.bf16.mxu0 0
    %10070 = vmatmul.mubr.bf16.gmra.mxu0 %v5035
    %v10071 = vpop.f32.mrf.mxu0
    %v10072 = vadd.f32 %v9899, %v10071
    %v10073 = vpop.f32.mrf.mxu0
    %v10074 = vadd.f32 %v9901, %v10073
    %v10075 = vpop.f32.mrf.mxu0
    %v10076 = vadd.f32 %v9903, %v10075
    %v10077 = vpop.f32.mrf.mxu0
    %v10078 = vadd.f32 %v9905, %v10077
    %10079 = vmatprep.mubr.bf16.mxu0 0
    %10080 = vmatmul.mubr.bf16.gmra.mxu0 %v5037
    %v10081 = vpop.f32.mrf.mxu0
    %v10082 = vadd.f32 %v9909, %v10081
    %v10083 = vpop.f32.mrf.mxu0
    %v10084 = vadd.f32 %v9911, %v10083
    %v10085 = vpop.f32.mrf.mxu0
    %v10086 = vadd.f32 %v9913, %v10085
    %v10087 = vpop.f32.mrf.mxu0
    %v10088 = vadd.f32 %v9915, %v10087
    %10089 = vmatprep.mubr.bf16.mxu0 0
    %10090 = vmatmul.mubr.bf16.gmra.mxu0 %v5039
    %v10091 = vpop.f32.mrf.mxu0
    %v10092 = vadd.f32 %v9919, %v10091
    %v10093 = vpop.f32.mrf.mxu0
    %v10094 = vadd.f32 %v9921, %v10093
    %v10095 = vpop.f32.mrf.mxu0
    %v10096 = vadd.f32 %v9923, %v10095
    %v10097 = vpop.f32.mrf.mxu0
    %v10098 = vadd.f32 %v9925, %v10097
    %10099 = vmatprep.mubr.bf16.mxu0 0
    %10100 = vmatmul.mubr.bf16.gmra.mxu0 %v5041
    %v10101 = vpop.f32.mrf.mxu0
    %v10102 = vadd.f32 %v9929, %v10101
    %v10103 = vpop.f32.mrf.mxu0
    %v10104 = vadd.f32 %v9931, %v10103
    %v10105 = vpop.f32.mrf.mxu0
    %v10106 = vadd.f32 %v9933, %v10105
    %v10107 = vpop.f32.mrf.mxu0
    %v10108 = vadd.f32 %v9935, %v10107
    %10109 = vmatprep.mubr.bf16.mxu0 0
    %10110 = vmatmul.mubr.bf16.gmra.mxu0 %v5043
    %v10111 = vpop.f32.mrf.mxu0
    %v10112 = vadd.f32 %v9939, %v10111
    %v10113 = vpop.f32.mrf.mxu0
    %v10114 = vadd.f32 %v9941, %v10113
    %v10115 = vpop.f32.mrf.mxu0
    %v10116 = vadd.f32 %v9943, %v10115
    %v10117 = vpop.f32.mrf.mxu0
    %v10118 = vadd.f32 %v9945, %v10117
    %10119 = vmatprep.mubr.bf16.mxu0 0
    %10120 = vmatmul.mubr.bf16.gmra.mxu0 %v5045
    %v10121 = vpop.f32.mrf.mxu0
    %v10122 = vadd.f32 %v9949, %v10121
    %v10123 = vpop.f32.mrf.mxu0
    %v10124 = vadd.f32 %v9951, %v10123
    %v10125 = vpop.f32.mrf.mxu0
    %v10126 = vadd.f32 %v9953, %v10125
    %v10127 = vpop.f32.mrf.mxu0
    %v10128 = vadd.f32 %v9955, %v10127
    %10129 = vmatprep.mubr.bf16.mxu0 0
    %10130 = vmatmul.mubr.bf16.gmra.mxu0 %v5047
    %v10131 = vpop.f32.mrf.mxu0
    %v10132 = vadd.f32 %v9959, %v10131
    %v10133 = vpop.f32.mrf.mxu0
    %v10134 = vadd.f32 %v9961, %v10133
    %v10135 = vpop.f32.mrf.mxu0
    %v10136 = vadd.f32 %v9963, %v10135
    %v10137 = vpop.f32.mrf.mxu0
    %v10138 = vadd.f32 %v9965, %v10137
    %10139 = vmatprep.mubr.bf16.mxu0 0
    %10140 = vmatmul.mubr.bf16.gmra.mxu0 %v5049
    %v10141 = vpop.f32.mrf.mxu0
    %v10142 = vadd.f32 %v9969, %v10141
    %v10143 = vpop.f32.mrf.mxu0
    %v10144 = vadd.f32 %v9971, %v10143
    %v10145 = vpop.f32.mrf.mxu0
    %v10146 = vadd.f32 %v9973, %v10145
    %v10147 = vpop.f32.mrf.mxu0
    %v10148 = vadd.f32 %v9975, %v10147
    %10149 = vmatprep.mubr.bf16.mxu0 0
    %10150 = vmatmul.mubr.bf16.gmra.mxu0 %v5051
    %v10151 = vpop.f32.mrf.mxu0
    %v10152 = vadd.f32 %v9979, %v10151
    %v10153 = vpop.f32.mrf.mxu0
    %v10154 = vadd.f32 %v9981, %v10153
    %v10155 = vpop.f32.mrf.mxu0
    %v10156 = vadd.f32 %v9983, %v10155
    %v10157 = vpop.f32.mrf.mxu0
    %v10158 = vadd.f32 %v9985, %v10157
    %10159 = vmatprep.mubr.bf16.mxu0 0
    %10160 = vmatmul.mubr.bf16.gmra.mxu0 %v5053
    %v10161 = vpop.f32.mrf.mxu0
    %v10162 = vadd.f32 %v9989, %v10161
    %v10163 = vpop.f32.mrf.mxu0
    %v10164 = vadd.f32 %v9991, %v10163
    %v10165 = vpop.f32.mrf.mxu0
    %v10166 = vadd.f32 %v9993, %v10165
    %v10167 = vpop.f32.mrf.mxu0
    %v10168 = vadd.f32 %v9995, %v10167
    %10169 = vmatprep.mubr.bf16.mxu0 0
    %10170 = vmatmul.mubr.bf16.gmra.mxu0 %v5056
    %v10171 = vpop.f32.mrf.mxu0
    %v10172 = vadd.f32 %v9999, %v10171
    %v10173 = vpop.f32.mrf.mxu0
    %v10174 = vadd.f32 %v10001, %v10173
    %v10175 = vpop.f32.mrf.mxu0
    %v10176 = vadd.f32 %v10003, %v10175
    %v10177 = vpop.f32.mrf.mxu0
    %v10178 = vadd.f32 %v10005, %v10177
    %10179 = vmatprep.mubr.bf16.mxu0 0
    %10180 = vmatmul.mubr.bf16.gmra.mxu0 %v5058
    %v10181 = vpop.f32.mrf.mxu0
    %v10182 = vadd.f32 %v10009, %v10181
    %v10183 = vpop.f32.mrf.mxu0
    %v10184 = vadd.f32 %v10011, %v10183
    %v10185 = vpop.f32.mrf.mxu0
    %v10186 = vadd.f32 %v10013, %v10185
    %v10187 = vpop.f32.mrf.mxu0
    %v10188 = vadd.f32 %v10015, %v10187
    %10189 = vdwg.mxu0
    %10190 = vmatprep.subr.bf16.mxu0 %v8511
    %10191 = vmatpush1.bf16.msra.mxu0 %v8510
    %10192 = vmatprep.subr.bf16.mxu0 %v8507
    %10193 = vmatpush1.bf16.msra.mxu0 %v8506
    %10194 = vmatprep.subr.bf16.mxu0 %v8503
    %10195 = vmatpush1.bf16.msra.mxu0 %v8502
    %10196 = vmatprep.subr.bf16.mxu0 %v8499
    %10197 = vmatpush1.bf16.msra.mxu0 %v8498
    %10198 = vmatprep.subr.bf16.mxu0 %v8495
    %10199 = vmatpush1.bf16.msra.mxu0 %v8494
    %10200 = vmatprep.subr.bf16.mxu0 %v8491
    %10201 = vmatpush1.bf16.msra.mxu0 %v8490
    %10202 = vmatprep.subr.bf16.mxu0 %v8487
    %10203 = vmatpush1.bf16.msra.mxu0 %v8486
    %10204 = vmatprep.subr.bf16.mxu0 %v8483
    %10205 = vmatpush1.bf16.msra.mxu0 %v8482
    %10206 = vmatprep.subr.bf16.mxu0 %v8543
    %10207 = vmatpush2.bf16.msra.mxu0 %v8542
    %10208 = vmatprep.subr.bf16.mxu0 %v8539
    %10209 = vmatpush2.bf16.msra.mxu0 %v8538
    %10210 = vmatprep.subr.bf16.mxu0 %v8535
    %10211 = vmatpush2.bf16.msra.mxu0 %v8534
    %10212 = vmatprep.subr.bf16.mxu0 %v8531
    %10213 = vmatpush2.bf16.msra.mxu0 %v8530
    %10214 = vmatprep.subr.bf16.mxu0 %v8527
    %10215 = vmatpush2.bf16.msra.mxu0 %v8526
    %10216 = vmatprep.subr.bf16.mxu0 %v8523
    %10217 = vmatpush2.bf16.msra.mxu0 %v8522
    %10218 = vmatprep.subr.bf16.mxu0 %v8519
    %10219 = vmatpush2.bf16.msra.mxu0 %v8518
    %10220 = vmatprep.subr.bf16.mxu0 %v8515
    %10221 = vmatpush2.bf16.msra.mxu0 %v8514
    %10222 = vmatprep.mubr.bf16.mxu0 0
    %10223 = vmatmul.mubr.bf16.gmra.mxu0 0
    %v10224 = vpop.f32.mrf.mxu0
    %v10225 = vadd.f32 0.0, %v10224
    %v10226 = vpop.f32.mrf.mxu0
    %v10227 = vadd.f32 0.0, %v10226
    %v10228 = vpop.f32.mrf.mxu0
    %v10229 = vadd.f32 0.0, %v10228
    %v10230 = vpop.f32.mrf.mxu0
    %v10231 = vadd.f32 0.0, %v10230
    %10232 = vmatprep.mubr.bf16.mxu0 %v2651
    %10233 = vmatmul.mubr.bf16.gmra.mxu0 %v2650
    %v10234 = vpop.f32.mrf.mxu0
    %v10235 = vadd.f32 0.0, %v10234
    %v10236 = vpop.f32.mrf.mxu0
    %v10237 = vadd.f32 0.0, %v10236
    %v10238 = vpop.f32.mrf.mxu0
    %v10239 = vadd.f32 0.0, %v10238
    %v10240 = vpop.f32.mrf.mxu0
    %v10241 = vadd.f32 0.0, %v10240
    %10242 = vmatprep.mubr.bf16.mxu0 %v2655
    %10243 = vmatmul.mubr.bf16.gmra.mxu0 %v2654
    %v10244 = vpop.f32.mrf.mxu0
    %v10245 = vadd.f32 0.0, %v10244
    %v10246 = vpop.f32.mrf.mxu0
    %v10247 = vadd.f32 0.0, %v10246
    %v10248 = vpop.f32.mrf.mxu0
    %v10249 = vadd.f32 0.0, %v10248
    %v10250 = vpop.f32.mrf.mxu0
    %v10251 = vadd.f32 0.0, %v10250
    %10252 = vmatprep.mubr.bf16.mxu0 %v2659
    %10253 = vmatmul.mubr.bf16.gmra.mxu0 %v2658
    %v10254 = vpop.f32.mrf.mxu0
    %v10255 = vadd.f32 0.0, %v10254
    %v10256 = vpop.f32.mrf.mxu0
    %v10257 = vadd.f32 0.0, %v10256
    %v10258 = vpop.f32.mrf.mxu0
    %v10259 = vadd.f32 0.0, %v10258
    %v10260 = vpop.f32.mrf.mxu0
    %v10261 = vadd.f32 0.0, %v10260
    %10262 = vmatprep.mubr.bf16.mxu0 %v2663
    %10263 = vmatmul.mubr.bf16.gmra.mxu0 %v2662
    %v10264 = vpop.f32.mrf.mxu0
    %v10265 = vadd.f32 0.0, %v10264
    %v10266 = vpop.f32.mrf.mxu0
    %v10267 = vadd.f32 0.0, %v10266
    %v10268 = vpop.f32.mrf.mxu0
    %v10269 = vadd.f32 0.0, %v10268
    %v10270 = vpop.f32.mrf.mxu0
    %v10271 = vadd.f32 0.0, %v10270
    %10272 = vmatprep.mubr.bf16.mxu0 %v2667
    %10273 = vmatmul.mubr.bf16.gmra.mxu0 %v2666
    %v10274 = vpop.f32.mrf.mxu0
    %v10275 = vadd.f32 0.0, %v10274
    %v10276 = vpop.f32.mrf.mxu0
    %v10277 = vadd.f32 0.0, %v10276
    %v10278 = vpop.f32.mrf.mxu0
    %v10279 = vadd.f32 0.0, %v10278
    %v10280 = vpop.f32.mrf.mxu0
    %v10281 = vadd.f32 0.0, %v10280
    %10282 = vmatprep.mubr.bf16.mxu0 %v2671
    %10283 = vmatmul.mubr.bf16.gmra.mxu0 %v2670
    %v10284 = vpop.f32.mrf.mxu0
    %v10285 = vadd.f32 0.0, %v10284
    %v10286 = vpop.f32.mrf.mxu0
    %v10287 = vadd.f32 0.0, %v10286
    %v10288 = vpop.f32.mrf.mxu0
    %v10289 = vadd.f32 0.0, %v10288
    %v10290 = vpop.f32.mrf.mxu0
    %v10291 = vadd.f32 0.0, %v10290
    %10292 = vmatprep.mubr.bf16.mxu0 %v2675
    %10293 = vmatmul.mubr.bf16.gmra.mxu0 %v2674
    %v10294 = vpop.f32.mrf.mxu0
    %v10295 = vadd.f32 0.0, %v10294
    %v10296 = vpop.f32.mrf.mxu0
    %v10297 = vadd.f32 0.0, %v10296
    %v10298 = vpop.f32.mrf.mxu0
    %v10299 = vadd.f32 0.0, %v10298
    %v10300 = vpop.f32.mrf.mxu0
    %v10301 = vadd.f32 0.0, %v10300
    %10302 = vmatprep.mubr.bf16.mxu0 %v2679
    %10303 = vmatmul.mubr.bf16.gmra.mxu0 %v2678
    %v10304 = vpop.f32.mrf.mxu0
    %v10305 = vadd.f32 0.0, %v10304
    %v10306 = vpop.f32.mrf.mxu0
    %v10307 = vadd.f32 0.0, %v10306
    %v10308 = vpop.f32.mrf.mxu0
    %v10309 = vadd.f32 0.0, %v10308
    %v10310 = vpop.f32.mrf.mxu0
    %v10311 = vadd.f32 0.0, %v10310
    %10312 = vmatprep.mubr.bf16.mxu0 %v2683
    %10313 = vmatmul.mubr.bf16.gmra.mxu0 %v2682
    %v10314 = vpop.f32.mrf.mxu0
    %v10315 = vadd.f32 0.0, %v10314
    %v10316 = vpop.f32.mrf.mxu0
    %v10317 = vadd.f32 0.0, %v10316
    %v10318 = vpop.f32.mrf.mxu0
    %v10319 = vadd.f32 0.0, %v10318
    %v10320 = vpop.f32.mrf.mxu0
    %v10321 = vadd.f32 0.0, %v10320
    %10322 = vmatprep.mubr.bf16.mxu0 %v2687
    %10323 = vmatmul.mubr.bf16.gmra.mxu0 %v2686
    %v10324 = vpop.f32.mrf.mxu0
    %v10325 = vadd.f32 0.0, %v10324
    %v10326 = vpop.f32.mrf.mxu0
    %v10327 = vadd.f32 0.0, %v10326
    %v10328 = vpop.f32.mrf.mxu0
    %v10329 = vadd.f32 0.0, %v10328
    %v10330 = vpop.f32.mrf.mxu0
    %v10331 = vadd.f32 0.0, %v10330
    %10332 = vmatprep.mubr.bf16.mxu0 %v2691
    %10333 = vmatmul.mubr.bf16.gmra.mxu0 %v2690
    %v10334 = vpop.f32.mrf.mxu0
    %v10335 = vadd.f32 0.0, %v10334
    %v10336 = vpop.f32.mrf.mxu0
    %v10337 = vadd.f32 0.0, %v10336
    %v10338 = vpop.f32.mrf.mxu0
    %v10339 = vadd.f32 0.0, %v10338
    %v10340 = vpop.f32.mrf.mxu0
    %v10341 = vadd.f32 0.0, %v10340
    %10342 = vmatprep.mubr.bf16.mxu0 %v2695
    %10343 = vmatmul.mubr.bf16.gmra.mxu0 %v2694
    %v10344 = vpop.f32.mrf.mxu0
    %v10345 = vadd.f32 0.0, %v10344
    %v10346 = vpop.f32.mrf.mxu0
    %v10347 = vadd.f32 0.0, %v10346
    %v10348 = vpop.f32.mrf.mxu0
    %v10349 = vadd.f32 0.0, %v10348
    %v10350 = vpop.f32.mrf.mxu0
    %v10351 = vadd.f32 0.0, %v10350
    %10352 = vmatprep.mubr.bf16.mxu0 %v2699
    %10353 = vmatmul.mubr.bf16.gmra.mxu0 %v2698
    %v10354 = vpop.f32.mrf.mxu0
    %v10355 = vadd.f32 0.0, %v10354
    %v10356 = vpop.f32.mrf.mxu0
    %v10357 = vadd.f32 0.0, %v10356
    %v10358 = vpop.f32.mrf.mxu0
    %v10359 = vadd.f32 0.0, %v10358
    %v10360 = vpop.f32.mrf.mxu0
    %v10361 = vadd.f32 0.0, %v10360
    %10362 = vdwg.mxu0
    %10363 = vmatprep.subr.bf16.mxu0 %v8575
    %10364 = vmatpush1.bf16.msra.mxu0 %v8574
    %10365 = vmatprep.subr.bf16.mxu0 %v8571
    %10366 = vmatpush1.bf16.msra.mxu0 %v8570
    %10367 = vmatprep.subr.bf16.mxu0 %v8567
    %10368 = vmatpush1.bf16.msra.mxu0 %v8566
    %10369 = vmatprep.subr.bf16.mxu0 %v8563
    %10370 = vmatpush1.bf16.msra.mxu0 %v8562
    %10371 = vmatprep.subr.bf16.mxu0 %v8559
    %10372 = vmatpush1.bf16.msra.mxu0 %v8558
    %10373 = vmatprep.subr.bf16.mxu0 %v8555
    %10374 = vmatpush1.bf16.msra.mxu0 %v8554
    %10375 = vmatprep.subr.bf16.mxu0 %v8551
    %10376 = vmatpush1.bf16.msra.mxu0 %v8550
    %10377 = vmatprep.subr.bf16.mxu0 %v8547
    %10378 = vmatpush1.bf16.msra.mxu0 %v8546
    %10379 = vmatprep.subr.bf16.mxu0 %v8607
    %10380 = vmatpush2.bf16.msra.mxu0 %v8606
    %10381 = vmatprep.subr.bf16.mxu0 %v8603
    %10382 = vmatpush2.bf16.msra.mxu0 %v8602
    %10383 = vmatprep.subr.bf16.mxu0 %v8599
    %10384 = vmatpush2.bf16.msra.mxu0 %v8598
    %10385 = vmatprep.subr.bf16.mxu0 %v8595
    %10386 = vmatpush2.bf16.msra.mxu0 %v8594
    %10387 = vmatprep.subr.bf16.mxu0 %v8591
    %10388 = vmatpush2.bf16.msra.mxu0 %v8590
    %10389 = vmatprep.subr.bf16.mxu0 %v8587
    %10390 = vmatpush2.bf16.msra.mxu0 %v8586
    %10391 = vmatprep.subr.bf16.mxu0 %v8583
    %10392 = vmatpush2.bf16.msra.mxu0 %v8582
    %10393 = vmatprep.subr.bf16.mxu0 %v8579
    %10394 = vmatpush2.bf16.msra.mxu0 %v8578
    %10395 = vmatprep.mubr.bf16.mxu0 %v2961
    %10396 = vmatmul.mubr.bf16.gmra.mxu0 0
    %v10397 = vpop.f32.mrf.mxu0
    %v10398 = vadd.f32 %v10225, %v10397
    %v10399 = vpop.f32.mrf.mxu0
    %v10400 = vadd.f32 %v10227, %v10399
    %v10401 = vpop.f32.mrf.mxu0
    %v10402 = vadd.f32 %v10229, %v10401
    %v10403 = vpop.f32.mrf.mxu0
    %v10404 = vadd.f32 %v10231, %v10403
    %10405 = vmatprep.mubr.bf16.mxu0 %v2965
    %10406 = vmatmul.mubr.bf16.gmra.mxu0 %v2652
    %v10407 = vpop.f32.mrf.mxu0
    %v10408 = vadd.f32 %v10235, %v10407
    %v10409 = vpop.f32.mrf.mxu0
    %v10410 = vadd.f32 %v10237, %v10409
    %v10411 = vpop.f32.mrf.mxu0
    %v10412 = vadd.f32 %v10239, %v10411
    %v10413 = vpop.f32.mrf.mxu0
    %v10414 = vadd.f32 %v10241, %v10413
    %10415 = vmatprep.mubr.bf16.mxu0 %v2969
    %10416 = vmatmul.mubr.bf16.gmra.mxu0 %v2656
    %v10417 = vpop.f32.mrf.mxu0
    %v10418 = vadd.f32 %v10245, %v10417
    %v10419 = vpop.f32.mrf.mxu0
    %v10420 = vadd.f32 %v10247, %v10419
    %v10421 = vpop.f32.mrf.mxu0
    %v10422 = vadd.f32 %v10249, %v10421
    %v10423 = vpop.f32.mrf.mxu0
    %v10424 = vadd.f32 %v10251, %v10423
    %10425 = vmatprep.mubr.bf16.mxu0 %v2973
    %10426 = vmatmul.mubr.bf16.gmra.mxu0 %v2660
    %v10427 = vpop.f32.mrf.mxu0
    %v10428 = vadd.f32 %v10255, %v10427
    %v10429 = vpop.f32.mrf.mxu0
    %v10430 = vadd.f32 %v10257, %v10429
    %v10431 = vpop.f32.mrf.mxu0
    %v10432 = vadd.f32 %v10259, %v10431
    %v10433 = vpop.f32.mrf.mxu0
    %v10434 = vadd.f32 %v10261, %v10433
    %10435 = vmatprep.mubr.bf16.mxu0 %v2977
    %10436 = vmatmul.mubr.bf16.gmra.mxu0 %v2664
    %v10437 = vpop.f32.mrf.mxu0
    %v10438 = vadd.f32 %v10265, %v10437
    %v10439 = vpop.f32.mrf.mxu0
    %v10440 = vadd.f32 %v10267, %v10439
    %v10441 = vpop.f32.mrf.mxu0
    %v10442 = vadd.f32 %v10269, %v10441
    %v10443 = vpop.f32.mrf.mxu0
    %v10444 = vadd.f32 %v10271, %v10443
    %10445 = vmatprep.mubr.bf16.mxu0 %v2981
    %10446 = vmatmul.mubr.bf16.gmra.mxu0 %v2668
    %v10447 = vpop.f32.mrf.mxu0
    %v10448 = vadd.f32 %v10275, %v10447
    %v10449 = vpop.f32.mrf.mxu0
    %v10450 = vadd.f32 %v10277, %v10449
    %v10451 = vpop.f32.mrf.mxu0
    %v10452 = vadd.f32 %v10279, %v10451
    %v10453 = vpop.f32.mrf.mxu0
    %v10454 = vadd.f32 %v10281, %v10453
    %10455 = vmatprep.mubr.bf16.mxu0 %v2985
    %10456 = vmatmul.mubr.bf16.gmra.mxu0 %v2672
    %v10457 = vpop.f32.mrf.mxu0
    %v10458 = vadd.f32 %v10285, %v10457
    %v10459 = vpop.f32.mrf.mxu0
    %v10460 = vadd.f32 %v10287, %v10459
    %v10461 = vpop.f32.mrf.mxu0
    %v10462 = vadd.f32 %v10289, %v10461
    %v10463 = vpop.f32.mrf.mxu0
    %v10464 = vadd.f32 %v10291, %v10463
    %10465 = vmatprep.mubr.bf16.mxu0 %v2989
    %10466 = vmatmul.mubr.bf16.gmra.mxu0 %v2676
    %v10467 = vpop.f32.mrf.mxu0
    %v10468 = vadd.f32 %v10295, %v10467
    %v10469 = vpop.f32.mrf.mxu0
    %v10470 = vadd.f32 %v10297, %v10469
    %v10471 = vpop.f32.mrf.mxu0
    %v10472 = vadd.f32 %v10299, %v10471
    %v10473 = vpop.f32.mrf.mxu0
    %v10474 = vadd.f32 %v10301, %v10473
    %10475 = vmatprep.mubr.bf16.mxu0 %v2993
    %10476 = vmatmul.mubr.bf16.gmra.mxu0 %v2680
    %v10477 = vpop.f32.mrf.mxu0
    %v10478 = vadd.f32 %v10305, %v10477
    %v10479 = vpop.f32.mrf.mxu0
    %v10480 = vadd.f32 %v10307, %v10479
    %v10481 = vpop.f32.mrf.mxu0
    %v10482 = vadd.f32 %v10309, %v10481
    %v10483 = vpop.f32.mrf.mxu0
    %v10484 = vadd.f32 %v10311, %v10483
    %10485 = vmatprep.mubr.bf16.mxu0 %v2997
    %10486 = vmatmul.mubr.bf16.gmra.mxu0 %v2684
    %v10487 = vpop.f32.mrf.mxu0
    %v10488 = vadd.f32 %v10315, %v10487
    %v10489 = vpop.f32.mrf.mxu0
    %v10490 = vadd.f32 %v10317, %v10489
    %v10491 = vpop.f32.mrf.mxu0
    %v10492 = vadd.f32 %v10319, %v10491
    %v10493 = vpop.f32.mrf.mxu0
    %v10494 = vadd.f32 %v10321, %v10493
    %10495 = vmatprep.mubr.bf16.mxu0 %v3001
    %10496 = vmatmul.mubr.bf16.gmra.mxu0 %v2688
    %v10497 = vpop.f32.mrf.mxu0
    %v10498 = vadd.f32 %v10325, %v10497
    %v10499 = vpop.f32.mrf.mxu0
    %v10500 = vadd.f32 %v10327, %v10499
    %v10501 = vpop.f32.mrf.mxu0
    %v10502 = vadd.f32 %v10329, %v10501
    %v10503 = vpop.f32.mrf.mxu0
    %v10504 = vadd.f32 %v10331, %v10503
    %10505 = vmatprep.mubr.bf16.mxu0 %v3005
    %10506 = vmatmul.mubr.bf16.gmra.mxu0 %v2692
    %v10507 = vpop.f32.mrf.mxu0
    %v10508 = vadd.f32 %v10335, %v10507
    %v10509 = vpop.f32.mrf.mxu0
    %v10510 = vadd.f32 %v10337, %v10509
    %v10511 = vpop.f32.mrf.mxu0
    %v10512 = vadd.f32 %v10339, %v10511
    %v10513 = vpop.f32.mrf.mxu0
    %v10514 = vadd.f32 %v10341, %v10513
    %10515 = vmatprep.mubr.bf16.mxu0 %v3009
    %10516 = vmatmul.mubr.bf16.gmra.mxu0 %v2696
    %v10517 = vpop.f32.mrf.mxu0
    %v10518 = vadd.f32 %v10345, %v10517
    %v10519 = vpop.f32.mrf.mxu0
    %v10520 = vadd.f32 %v10347, %v10519
    %v10521 = vpop.f32.mrf.mxu0
    %v10522 = vadd.f32 %v10349, %v10521
    %v10523 = vpop.f32.mrf.mxu0
    %v10524 = vadd.f32 %v10351, %v10523
    %10525 = vmatprep.mubr.bf16.mxu0 %v3013
    %10526 = vmatmul.mubr.bf16.gmra.mxu0 %v2700
    %v10527 = vpop.f32.mrf.mxu0
    %v10528 = vadd.f32 %v10355, %v10527
    %v10529 = vpop.f32.mrf.mxu0
    %v10530 = vadd.f32 %v10357, %v10529
    %v10531 = vpop.f32.mrf.mxu0
    %v10532 = vadd.f32 %v10359, %v10531
    %v10533 = vpop.f32.mrf.mxu0
    %v10534 = vadd.f32 %v10361, %v10533
    %10535 = vdwg.mxu0
    %10536 = vmatprep.subr.bf16.mxu0 %v8639
    %10537 = vmatpush1.bf16.msra.mxu0 %v8638
    %10538 = vmatprep.subr.bf16.mxu0 %v8635
    %10539 = vmatpush1.bf16.msra.mxu0 %v8634
    %10540 = vmatprep.subr.bf16.mxu0 %v8631
    %10541 = vmatpush1.bf16.msra.mxu0 %v8630
    %10542 = vmatprep.subr.bf16.mxu0 %v8627
    %10543 = vmatpush1.bf16.msra.mxu0 %v8626
    %10544 = vmatprep.subr.bf16.mxu0 %v8623
    %10545 = vmatpush1.bf16.msra.mxu0 %v8622
    %10546 = vmatprep.subr.bf16.mxu0 %v8619
    %10547 = vmatpush1.bf16.msra.mxu0 %v8618
    %10548 = vmatprep.subr.bf16.mxu0 %v8615
    %10549 = vmatpush1.bf16.msra.mxu0 %v8614
    %10550 = vmatprep.subr.bf16.mxu0 %v8611
    %10551 = vmatpush1.bf16.msra.mxu0 %v8610
    %10552 = vmatprep.subr.bf16.mxu0 %v8671
    %10553 = vmatpush2.bf16.msra.mxu0 %v8670
    %10554 = vmatprep.subr.bf16.mxu0 %v8667
    %10555 = vmatpush2.bf16.msra.mxu0 %v8666
    %10556 = vmatprep.subr.bf16.mxu0 %v8663
    %10557 = vmatpush2.bf16.msra.mxu0 %v8662
    %10558 = vmatprep.subr.bf16.mxu0 %v8659
    %10559 = vmatpush2.bf16.msra.mxu0 %v8658
    %10560 = vmatprep.subr.bf16.mxu0 %v8655
    %10561 = vmatpush2.bf16.msra.mxu0 %v8654
    %10562 = vmatprep.subr.bf16.mxu0 %v8651
    %10563 = vmatpush2.bf16.msra.mxu0 %v8650
    %10564 = vmatprep.subr.bf16.mxu0 %v8647
    %10565 = vmatpush2.bf16.msra.mxu0 %v8646
    %10566 = vmatprep.subr.bf16.mxu0 %v8643
    %10567 = vmatpush2.bf16.msra.mxu0 %v8642
    %10568 = vmatprep.mubr.bf16.mxu0 %v2876
    %10569 = vmatmul.mubr.bf16.gmra.mxu0 %v2875
    %v10570 = vpop.f32.mrf.mxu0
    %v10571 = vadd.f32 %v10398, %v10570
    %v10572 = vpop.f32.mrf.mxu0
    %v10573 = vadd.f32 %v10400, %v10572
    %v10574 = vpop.f32.mrf.mxu0
    %v10575 = vadd.f32 %v10402, %v10574
    %v10576 = vpop.f32.mrf.mxu0
    %v10577 = vadd.f32 %v10404, %v10576
    %10578 = vmatprep.mubr.bf16.mxu0 %v2879
    %10579 = vmatmul.mubr.bf16.gmra.mxu0 %v2878
    %v10580 = vpop.f32.mrf.mxu0
    %v10581 = vadd.f32 %v10408, %v10580
    %v10582 = vpop.f32.mrf.mxu0
    %v10583 = vadd.f32 %v10410, %v10582
    %v10584 = vpop.f32.mrf.mxu0
    %v10585 = vadd.f32 %v10412, %v10584
    %v10586 = vpop.f32.mrf.mxu0
    %v10587 = vadd.f32 %v10414, %v10586
    %10588 = vmatprep.mubr.bf16.mxu0 %v2882
    %10589 = vmatmul.mubr.bf16.gmra.mxu0 %v2881
    %v10590 = vpop.f32.mrf.mxu0
    %v10591 = vadd.f32 %v10418, %v10590
    %v10592 = vpop.f32.mrf.mxu0
    %v10593 = vadd.f32 %v10420, %v10592
    %v10594 = vpop.f32.mrf.mxu0
    %v10595 = vadd.f32 %v10422, %v10594
    %v10596 = vpop.f32.mrf.mxu0
    %v10597 = vadd.f32 %v10424, %v10596
    %10598 = vmatprep.mubr.bf16.mxu0 %v2885
    %10599 = vmatmul.mubr.bf16.gmra.mxu0 %v2884
    %v10600 = vpop.f32.mrf.mxu0
    %v10601 = vadd.f32 %v10428, %v10600
    %v10602 = vpop.f32.mrf.mxu0
    %v10603 = vadd.f32 %v10430, %v10602
    %v10604 = vpop.f32.mrf.mxu0
    %v10605 = vadd.f32 %v10432, %v10604
    %v10606 = vpop.f32.mrf.mxu0
    %v10607 = vadd.f32 %v10434, %v10606
    %10608 = vmatprep.mubr.bf16.mxu0 %v2888
    %10609 = vmatmul.mubr.bf16.gmra.mxu0 %v2887
    %v10610 = vpop.f32.mrf.mxu0
    %v10611 = vadd.f32 %v10438, %v10610
    %v10612 = vpop.f32.mrf.mxu0
    %v10613 = vadd.f32 %v10440, %v10612
    %v10614 = vpop.f32.mrf.mxu0
    %v10615 = vadd.f32 %v10442, %v10614
    %v10616 = vpop.f32.mrf.mxu0
    %v10617 = vadd.f32 %v10444, %v10616
    %10618 = vmatprep.mubr.bf16.mxu0 %v2891
    %10619 = vmatmul.mubr.bf16.gmra.mxu0 %v2890
    %v10620 = vpop.f32.mrf.mxu0
    %v10621 = vadd.f32 %v10448, %v10620
    %v10622 = vpop.f32.mrf.mxu0
    %v10623 = vadd.f32 %v10450, %v10622
    %v10624 = vpop.f32.mrf.mxu0
    %v10625 = vadd.f32 %v10452, %v10624
    %v10626 = vpop.f32.mrf.mxu0
    %v10627 = vadd.f32 %v10454, %v10626
    %10628 = vmatprep.mubr.bf16.mxu0 %v2894
    %10629 = vmatmul.mubr.bf16.gmra.mxu0 %v2893
    %v10630 = vpop.f32.mrf.mxu0
    %v10631 = vadd.f32 %v10458, %v10630
    %v10632 = vpop.f32.mrf.mxu0
    %v10633 = vadd.f32 %v10460, %v10632
    %v10634 = vpop.f32.mrf.mxu0
    %v10635 = vadd.f32 %v10462, %v10634
    %v10636 = vpop.f32.mrf.mxu0
    %v10637 = vadd.f32 %v10464, %v10636
    %10638 = vmatprep.mubr.bf16.mxu0 %v2897
    %10639 = vmatmul.mubr.bf16.gmra.mxu0 %v2896
    %v10640 = vpop.f32.mrf.mxu0
    %v10641 = vadd.f32 %v10468, %v10640
    %v10642 = vpop.f32.mrf.mxu0
    %v10643 = vadd.f32 %v10470, %v10642
    %v10644 = vpop.f32.mrf.mxu0
    %v10645 = vadd.f32 %v10472, %v10644
    %v10646 = vpop.f32.mrf.mxu0
    %v10647 = vadd.f32 %v10474, %v10646
    %10648 = vmatprep.mubr.bf16.mxu0 %v2900
    %10649 = vmatmul.mubr.bf16.gmra.mxu0 %v2899
    %v10650 = vpop.f32.mrf.mxu0
    %v10651 = vadd.f32 %v10478, %v10650
    %v10652 = vpop.f32.mrf.mxu0
    %v10653 = vadd.f32 %v10480, %v10652
    %v10654 = vpop.f32.mrf.mxu0
    %v10655 = vadd.f32 %v10482, %v10654
    %v10656 = vpop.f32.mrf.mxu0
    %v10657 = vadd.f32 %v10484, %v10656
    %10658 = vmatprep.mubr.bf16.mxu0 %v2903
    %10659 = vmatmul.mubr.bf16.gmra.mxu0 %v2902
    %v10660 = vpop.f32.mrf.mxu0
    %v10661 = vadd.f32 %v10488, %v10660
    %v10662 = vpop.f32.mrf.mxu0
    %v10663 = vadd.f32 %v10490, %v10662
    %v10664 = vpop.f32.mrf.mxu0
    %v10665 = vadd.f32 %v10492, %v10664
    %v10666 = vpop.f32.mrf.mxu0
    %v10667 = vadd.f32 %v10494, %v10666
    %10668 = vmatprep.mubr.bf16.mxu0 %v2906
    %10669 = vmatmul.mubr.bf16.gmra.mxu0 %v2905
    %v10670 = vpop.f32.mrf.mxu0
    %v10671 = vadd.f32 %v10498, %v10670
    %v10672 = vpop.f32.mrf.mxu0
    %v10673 = vadd.f32 %v10500, %v10672
    %v10674 = vpop.f32.mrf.mxu0
    %v10675 = vadd.f32 %v10502, %v10674
    %v10676 = vpop.f32.mrf.mxu0
    %v10677 = vadd.f32 %v10504, %v10676
    %10678 = vmatprep.mubr.bf16.mxu0 %v2909
    %10679 = vmatmul.mubr.bf16.gmra.mxu0 %v2908
    %v10680 = vpop.f32.mrf.mxu0
    %v10681 = vadd.f32 %v10508, %v10680
    %v10682 = vpop.f32.mrf.mxu0
    %v10683 = vadd.f32 %v10510, %v10682
    %v10684 = vpop.f32.mrf.mxu0
    %v10685 = vadd.f32 %v10512, %v10684
    %v10686 = vpop.f32.mrf.mxu0
    %v10687 = vadd.f32 %v10514, %v10686
    %10688 = vmatprep.mubr.bf16.mxu0 %v2912
    %10689 = vmatmul.mubr.bf16.gmra.mxu0 %v2911
    %v10690 = vpop.f32.mrf.mxu0
    %v10691 = vadd.f32 %v10518, %v10690
    %v10692 = vpop.f32.mrf.mxu0
    %v10693 = vadd.f32 %v10520, %v10692
    %v10694 = vpop.f32.mrf.mxu0
    %v10695 = vadd.f32 %v10522, %v10694
    %v10696 = vpop.f32.mrf.mxu0
    %v10697 = vadd.f32 %v10524, %v10696
    %10698 = vmatprep.mubr.bf16.mxu0 %v2915
    %10699 = vmatmul.mubr.bf16.gmra.mxu0 %v2914
    %v10700 = vpop.f32.mrf.mxu0
    %v10701 = vadd.f32 %v10528, %v10700
    %v10702 = vpop.f32.mrf.mxu0
    %v10703 = vadd.f32 %v10530, %v10702
    %v10704 = vpop.f32.mrf.mxu0
    %v10705 = vadd.f32 %v10532, %v10704
    %v10706 = vpop.f32.mrf.mxu0
    %v10707 = vadd.f32 %v10534, %v10706
    %10708 = vdwg.mxu0
    %10709 = vmatprep.subr.bf16.mxu0 %v8703
    %10710 = vmatpush1.bf16.msra.mxu0 %v8702
    %10711 = vmatprep.subr.bf16.mxu0 %v8699
    %10712 = vmatpush1.bf16.msra.mxu0 %v8698
    %10713 = vmatprep.subr.bf16.mxu0 %v8695
    %10714 = vmatpush1.bf16.msra.mxu0 %v8694
    %10715 = vmatprep.subr.bf16.mxu0 %v8691
    %10716 = vmatpush1.bf16.msra.mxu0 %v8690
    %10717 = vmatprep.subr.bf16.mxu0 %v8687
    %10718 = vmatpush1.bf16.msra.mxu0 %v8686
    %10719 = vmatprep.subr.bf16.mxu0 %v8683
    %10720 = vmatpush1.bf16.msra.mxu0 %v8682
    %10721 = vmatprep.subr.bf16.mxu0 %v8679
    %10722 = vmatpush1.bf16.msra.mxu0 %v8678
    %10723 = vmatprep.subr.bf16.mxu0 %v8675
    %10724 = vmatpush1.bf16.msra.mxu0 %v8674
    %10725 = vmatprep.subr.bf16.mxu0 %v8735
    %10726 = vmatpush2.bf16.msra.mxu0 %v8734
    %10727 = vmatprep.subr.bf16.mxu0 %v8731
    %10728 = vmatpush2.bf16.msra.mxu0 %v8730
    %10729 = vmatprep.subr.bf16.mxu0 %v8727
    %10730 = vmatpush2.bf16.msra.mxu0 %v8726
    %10731 = vmatprep.subr.bf16.mxu0 %v8723
    %10732 = vmatpush2.bf16.msra.mxu0 %v8722
    %10733 = vmatprep.subr.bf16.mxu0 %v8719
    %10734 = vmatpush2.bf16.msra.mxu0 %v8718
    %10735 = vmatprep.subr.bf16.mxu0 %v8715
    %10736 = vmatpush2.bf16.msra.mxu0 %v8714
    %10737 = vmatprep.subr.bf16.mxu0 %v8711
    %10738 = vmatpush2.bf16.msra.mxu0 %v8710
    %10739 = vmatprep.subr.bf16.mxu0 %v8707
    %10740 = vmatpush2.bf16.msra.mxu0 %v8706
    %10741 = vmatprep.mubr.bf16.mxu0 %v2654
    %10742 = vmatmul.mubr.bf16.gmra.mxu0 %v2877
    %v10743 = vpop.f32.mrf.mxu0
    %v10744 = vadd.f32 %v10571, %v10743
    %v10745 = vpop.f32.mrf.mxu0
    %v10746 = vadd.f32 %v10573, %v10745
    %v10747 = vpop.f32.mrf.mxu0
    %v10748 = vadd.f32 %v10575, %v10747
    %v10749 = vpop.f32.mrf.mxu0
    %v10750 = vadd.f32 %v10577, %v10749
    %10751 = vmatprep.mubr.bf16.mxu0 %v2658
    %10752 = vmatmul.mubr.bf16.gmra.mxu0 %v2880
    %v10753 = vpop.f32.mrf.mxu0
    %v10754 = vadd.f32 %v10581, %v10753
    %v10755 = vpop.f32.mrf.mxu0
    %v10756 = vadd.f32 %v10583, %v10755
    %v10757 = vpop.f32.mrf.mxu0
    %v10758 = vadd.f32 %v10585, %v10757
    %v10759 = vpop.f32.mrf.mxu0
    %v10760 = vadd.f32 %v10587, %v10759
    %10761 = vmatprep.mubr.bf16.mxu0 %v2662
    %10762 = vmatmul.mubr.bf16.gmra.mxu0 %v2883
    %v10763 = vpop.f32.mrf.mxu0
    %v10764 = vadd.f32 %v10591, %v10763
    %v10765 = vpop.f32.mrf.mxu0
    %v10766 = vadd.f32 %v10593, %v10765
    %v10767 = vpop.f32.mrf.mxu0
    %v10768 = vadd.f32 %v10595, %v10767
    %v10769 = vpop.f32.mrf.mxu0
    %v10770 = vadd.f32 %v10597, %v10769
    %10771 = vmatprep.mubr.bf16.mxu0 %v2666
    %10772 = vmatmul.mubr.bf16.gmra.mxu0 %v2886
    %v10773 = vpop.f32.mrf.mxu0
    %v10774 = vadd.f32 %v10601, %v10773
    %v10775 = vpop.f32.mrf.mxu0
    %v10776 = vadd.f32 %v10603, %v10775
    %v10777 = vpop.f32.mrf.mxu0
    %v10778 = vadd.f32 %v10605, %v10777
    %v10779 = vpop.f32.mrf.mxu0
    %v10780 = vadd.f32 %v10607, %v10779
    %10781 = vmatprep.mubr.bf16.mxu0 %v2670
    %10782 = vmatmul.mubr.bf16.gmra.mxu0 %v2889
    %v10783 = vpop.f32.mrf.mxu0
    %v10784 = vadd.f32 %v10611, %v10783
    %v10785 = vpop.f32.mrf.mxu0
    %v10786 = vadd.f32 %v10613, %v10785
    %v10787 = vpop.f32.mrf.mxu0
    %v10788 = vadd.f32 %v10615, %v10787
    %v10789 = vpop.f32.mrf.mxu0
    %v10790 = vadd.f32 %v10617, %v10789
    %10791 = vmatprep.mubr.bf16.mxu0 %v2674
    %10792 = vmatmul.mubr.bf16.gmra.mxu0 %v2892
    %v10793 = vpop.f32.mrf.mxu0
    %v10794 = vadd.f32 %v10621, %v10793
    %v10795 = vpop.f32.mrf.mxu0
    %v10796 = vadd.f32 %v10623, %v10795
    %v10797 = vpop.f32.mrf.mxu0
    %v10798 = vadd.f32 %v10625, %v10797
    %v10799 = vpop.f32.mrf.mxu0
    %v10800 = vadd.f32 %v10627, %v10799
    %10801 = vmatprep.mubr.bf16.mxu0 %v2678
    %10802 = vmatmul.mubr.bf16.gmra.mxu0 %v2895
    %v10803 = vpop.f32.mrf.mxu0
    %v10804 = vadd.f32 %v10631, %v10803
    %v10805 = vpop.f32.mrf.mxu0
    %v10806 = vadd.f32 %v10633, %v10805
    %v10807 = vpop.f32.mrf.mxu0
    %v10808 = vadd.f32 %v10635, %v10807
    %v10809 = vpop.f32.mrf.mxu0
    %v10810 = vadd.f32 %v10637, %v10809
    %10811 = vmatprep.mubr.bf16.mxu0 %v2682
    %10812 = vmatmul.mubr.bf16.gmra.mxu0 %v2898
    %v10813 = vpop.f32.mrf.mxu0
    %v10814 = vadd.f32 %v10641, %v10813
    %v10815 = vpop.f32.mrf.mxu0
    %v10816 = vadd.f32 %v10643, %v10815
    %v10817 = vpop.f32.mrf.mxu0
    %v10818 = vadd.f32 %v10645, %v10817
    %v10819 = vpop.f32.mrf.mxu0
    %v10820 = vadd.f32 %v10647, %v10819
    %10821 = vmatprep.mubr.bf16.mxu0 %v2686
    %10822 = vmatmul.mubr.bf16.gmra.mxu0 %v2901
    %v10823 = vpop.f32.mrf.mxu0
    %v10824 = vadd.f32 %v10651, %v10823
    %v10825 = vpop.f32.mrf.mxu0
    %v10826 = vadd.f32 %v10653, %v10825
    %v10827 = vpop.f32.mrf.mxu0
    %v10828 = vadd.f32 %v10655, %v10827
    %v10829 = vpop.f32.mrf.mxu0
    %v10830 = vadd.f32 %v10657, %v10829
    %10831 = vmatprep.mubr.bf16.mxu0 %v2690
    %10832 = vmatmul.mubr.bf16.gmra.mxu0 %v2904
    %v10833 = vpop.f32.mrf.mxu0
    %v10834 = vadd.f32 %v10661, %v10833
    %v10835 = vpop.f32.mrf.mxu0
    %v10836 = vadd.f32 %v10663, %v10835
    %v10837 = vpop.f32.mrf.mxu0
    %v10838 = vadd.f32 %v10665, %v10837
    %v10839 = vpop.f32.mrf.mxu0
    %v10840 = vadd.f32 %v10667, %v10839
    %10841 = vmatprep.mubr.bf16.mxu0 %v2694
    %10842 = vmatmul.mubr.bf16.gmra.mxu0 %v2907
    %v10843 = vpop.f32.mrf.mxu0
    %v10844 = vadd.f32 %v10671, %v10843
    %v10845 = vpop.f32.mrf.mxu0
    %v10846 = vadd.f32 %v10673, %v10845
    %v10847 = vpop.f32.mrf.mxu0
    %v10848 = vadd.f32 %v10675, %v10847
    %v10849 = vpop.f32.mrf.mxu0
    %v10850 = vadd.f32 %v10677, %v10849
    %10851 = vmatprep.mubr.bf16.mxu0 %v2698
    %10852 = vmatmul.mubr.bf16.gmra.mxu0 %v2910
    %v10853 = vpop.f32.mrf.mxu0
    %v10854 = vadd.f32 %v10681, %v10853
    %v10855 = vpop.f32.mrf.mxu0
    %v10856 = vadd.f32 %v10683, %v10855
    %v10857 = vpop.f32.mrf.mxu0
    %v10858 = vadd.f32 %v10685, %v10857
    %v10859 = vpop.f32.mrf.mxu0
    %v10860 = vadd.f32 %v10687, %v10859
    %10861 = vmatprep.mubr.bf16.mxu0 %v2702
    %10862 = vmatmul.mubr.bf16.gmra.mxu0 %v2913
    %v10863 = vpop.f32.mrf.mxu0
    %v10864 = vadd.f32 %v10691, %v10863
    %v10865 = vpop.f32.mrf.mxu0
    %v10866 = vadd.f32 %v10693, %v10865
    %v10867 = vpop.f32.mrf.mxu0
    %v10868 = vadd.f32 %v10695, %v10867
    %v10869 = vpop.f32.mrf.mxu0
    %v10870 = vadd.f32 %v10697, %v10869
    %10871 = vmatprep.mubr.bf16.mxu0 0
    %10872 = vmatmul.mubr.bf16.gmra.mxu0 %v2916
    %v10873 = vpop.f32.mrf.mxu0
    %v10874 = vadd.f32 %v10701, %v10873
    %v10875 = vpop.f32.mrf.mxu0
    %v10876 = vadd.f32 %v10703, %v10875
    %v10877 = vpop.f32.mrf.mxu0
    %v10878 = vadd.f32 %v10705, %v10877
    %v10879 = vpop.f32.mrf.mxu0
    %v10880 = vadd.f32 %v10707, %v10879
    %10881 = vdwg.mxu0
    %10882 = vmatprep.subr.bf16.mxu0 %v8767
    %10883 = vmatpush1.bf16.msra.mxu0 %v8766
    %10884 = vmatprep.subr.bf16.mxu0 %v8763
    %10885 = vmatpush1.bf16.msra.mxu0 %v8762
    %10886 = vmatprep.subr.bf16.mxu0 %v8759
    %10887 = vmatpush1.bf16.msra.mxu0 %v8758
    %10888 = vmatprep.subr.bf16.mxu0 %v8755
    %10889 = vmatpush1.bf16.msra.mxu0 %v8754
    %10890 = vmatprep.subr.bf16.mxu0 %v8751
    %10891 = vmatpush1.bf16.msra.mxu0 %v8750
    %10892 = vmatprep.subr.bf16.mxu0 %v8747
    %10893 = vmatpush1.bf16.msra.mxu0 %v8746
    %10894 = vmatprep.subr.bf16.mxu0 %v8743
    %10895 = vmatpush1.bf16.msra.mxu0 %v8742
    %10896 = vmatprep.subr.bf16.mxu0 %v8739
    %10897 = vmatpush1.bf16.msra.mxu0 %v8738
    %10898 = vmatprep.subr.bf16.mxu0 %v8799
    %10899 = vmatpush2.bf16.msra.mxu0 %v8798
    %10900 = vmatprep.subr.bf16.mxu0 %v8795
    %10901 = vmatpush2.bf16.msra.mxu0 %v8794
    %10902 = vmatprep.subr.bf16.mxu0 %v8791
    %10903 = vmatpush2.bf16.msra.mxu0 %v8790
    %10904 = vmatprep.subr.bf16.mxu0 %v8787
    %10905 = vmatpush2.bf16.msra.mxu0 %v8786
    %10906 = vmatprep.subr.bf16.mxu0 %v8783
    %10907 = vmatpush2.bf16.msra.mxu0 %v8782
    %10908 = vmatprep.subr.bf16.mxu0 %v8779
    %10909 = vmatpush2.bf16.msra.mxu0 %v8778
    %10910 = vmatprep.subr.bf16.mxu0 %v8775
    %10911 = vmatpush2.bf16.msra.mxu0 %v8774
    %10912 = vmatprep.subr.bf16.mxu0 %v8771
    %10913 = vmatpush2.bf16.msra.mxu0 %v8770
    %10914 = vmatprep.mubr.bf16.mxu0 %v2656
    %10915 = vmatmul.mubr.bf16.gmra.mxu0 %v2655
    %v10916 = vpop.f32.mrf.mxu0
    %v10917 = vadd.f32 %v10744, %v10916
    %v10918 = vpop.f32.mrf.mxu0
    %v10919 = vadd.f32 %v10746, %v10918
    %v10920 = vpop.f32.mrf.mxu0
    %v10921 = vadd.f32 %v10748, %v10920
    %v10922 = vpop.f32.mrf.mxu0
    %v10923 = vadd.f32 %v10750, %v10922
    %10924 = vmatprep.mubr.bf16.mxu0 %v2660
    %10925 = vmatmul.mubr.bf16.gmra.mxu0 %v2659
    %v10926 = vpop.f32.mrf.mxu0
    %v10927 = vadd.f32 %v10754, %v10926
    %v10928 = vpop.f32.mrf.mxu0
    %v10929 = vadd.f32 %v10756, %v10928
    %v10930 = vpop.f32.mrf.mxu0
    %v10931 = vadd.f32 %v10758, %v10930
    %v10932 = vpop.f32.mrf.mxu0
    %v10933 = vadd.f32 %v10760, %v10932
    %10934 = vmatprep.mubr.bf16.mxu0 %v2664
    %10935 = vmatmul.mubr.bf16.gmra.mxu0 %v2663
    %v10936 = vpop.f32.mrf.mxu0
    %v10937 = vadd.f32 %v10764, %v10936
    %v10938 = vpop.f32.mrf.mxu0
    %v10939 = vadd.f32 %v10766, %v10938
    %v10940 = vpop.f32.mrf.mxu0
    %v10941 = vadd.f32 %v10768, %v10940
    %v10942 = vpop.f32.mrf.mxu0
    %v10943 = vadd.f32 %v10770, %v10942
    %10944 = vmatprep.mubr.bf16.mxu0 %v2668
    %10945 = vmatmul.mubr.bf16.gmra.mxu0 %v2667
    %v10946 = vpop.f32.mrf.mxu0
    %v10947 = vadd.f32 %v10774, %v10946
    %v10948 = vpop.f32.mrf.mxu0
    %v10949 = vadd.f32 %v10776, %v10948
    %v10950 = vpop.f32.mrf.mxu0
    %v10951 = vadd.f32 %v10778, %v10950
    %v10952 = vpop.f32.mrf.mxu0
    %v10953 = vadd.f32 %v10780, %v10952
    %10954 = vmatprep.mubr.bf16.mxu0 %v2672
    %10955 = vmatmul.mubr.bf16.gmra.mxu0 %v2671
    %v10956 = vpop.f32.mrf.mxu0
    %v10957 = vadd.f32 %v10784, %v10956
    %v10958 = vpop.f32.mrf.mxu0
    %v10959 = vadd.f32 %v10786, %v10958
    %v10960 = vpop.f32.mrf.mxu0
    %v10961 = vadd.f32 %v10788, %v10960
    %v10962 = vpop.f32.mrf.mxu0
    %v10963 = vadd.f32 %v10790, %v10962
    %10964 = vmatprep.mubr.bf16.mxu0 %v2676
    %10965 = vmatmul.mubr.bf16.gmra.mxu0 %v2675
    %v10966 = vpop.f32.mrf.mxu0
    %v10967 = vadd.f32 %v10794, %v10966
    %v10968 = vpop.f32.mrf.mxu0
    %v10969 = vadd.f32 %v10796, %v10968
    %v10970 = vpop.f32.mrf.mxu0
    %v10971 = vadd.f32 %v10798, %v10970
    %v10972 = vpop.f32.mrf.mxu0
    %v10973 = vadd.f32 %v10800, %v10972
    %10974 = vmatprep.mubr.bf16.mxu0 %v2680
    %10975 = vmatmul.mubr.bf16.gmra.mxu0 %v2679
    %v10976 = vpop.f32.mrf.mxu0
    %v10977 = vadd.f32 %v10804, %v10976
    %v10978 = vpop.f32.mrf.mxu0
    %v10979 = vadd.f32 %v10806, %v10978
    %v10980 = vpop.f32.mrf.mxu0
    %v10981 = vadd.f32 %v10808, %v10980
    %v10982 = vpop.f32.mrf.mxu0
    %v10983 = vadd.f32 %v10810, %v10982
    %10984 = vmatprep.mubr.bf16.mxu0 %v2684
    %10985 = vmatmul.mubr.bf16.gmra.mxu0 %v2683
    %v10986 = vpop.f32.mrf.mxu0
    %v10987 = vadd.f32 %v10814, %v10986
    %v10988 = vpop.f32.mrf.mxu0
    %v10989 = vadd.f32 %v10816, %v10988
    %v10990 = vpop.f32.mrf.mxu0
    %v10991 = vadd.f32 %v10818, %v10990
    %v10992 = vpop.f32.mrf.mxu0
    %v10993 = vadd.f32 %v10820, %v10992
    %10994 = vmatprep.mubr.bf16.mxu0 %v2688
    %10995 = vmatmul.mubr.bf16.gmra.mxu0 %v2687
    %v10996 = vpop.f32.mrf.mxu0
    %v10997 = vadd.f32 %v10824, %v10996
    %v10998 = vpop.f32.mrf.mxu0
    %v10999 = vadd.f32 %v10826, %v10998
    %v11000 = vpop.f32.mrf.mxu0
    %v11001 = vadd.f32 %v10828, %v11000
    %v11002 = vpop.f32.mrf.mxu0
    %v11003 = vadd.f32 %v10830, %v11002
    %11004 = vmatprep.mubr.bf16.mxu0 %v2692
    %11005 = vmatmul.mubr.bf16.gmra.mxu0 %v2691
    %v11006 = vpop.f32.mrf.mxu0
    %v11007 = vadd.f32 %v10834, %v11006
    %v11008 = vpop.f32.mrf.mxu0
    %v11009 = vadd.f32 %v10836, %v11008
    %v11010 = vpop.f32.mrf.mxu0
    %v11011 = vadd.f32 %v10838, %v11010
    %v11012 = vpop.f32.mrf.mxu0
    %v11013 = vadd.f32 %v10840, %v11012
    %11014 = vmatprep.mubr.bf16.mxu0 %v2696
    %11015 = vmatmul.mubr.bf16.gmra.mxu0 %v2695
    %v11016 = vpop.f32.mrf.mxu0
    %v11017 = vadd.f32 %v10844, %v11016
    %v11018 = vpop.f32.mrf.mxu0
    %v11019 = vadd.f32 %v10846, %v11018
    %v11020 = vpop.f32.mrf.mxu0
    %v11021 = vadd.f32 %v10848, %v11020
    %v11022 = vpop.f32.mrf.mxu0
    %v11023 = vadd.f32 %v10850, %v11022
    %11024 = vmatprep.mubr.bf16.mxu0 %v2700
    %11025 = vmatmul.mubr.bf16.gmra.mxu0 %v2699
    %v11026 = vpop.f32.mrf.mxu0
    %v11027 = vadd.f32 %v10854, %v11026
    %v11028 = vpop.f32.mrf.mxu0
    %v11029 = vadd.f32 %v10856, %v11028
    %v11030 = vpop.f32.mrf.mxu0
    %v11031 = vadd.f32 %v10858, %v11030
    %v11032 = vpop.f32.mrf.mxu0
    %v11033 = vadd.f32 %v10860, %v11032
    %11034 = vmatprep.mubr.bf16.mxu0 %v2704
    %11035 = vmatmul.mubr.bf16.gmra.mxu0 %v2703
    %v11036 = vpop.f32.mrf.mxu0
    %v11037 = vadd.f32 %v10864, %v11036
    %v11038 = vpop.f32.mrf.mxu0
    %v11039 = vadd.f32 %v10866, %v11038
    %v11040 = vpop.f32.mrf.mxu0
    %v11041 = vadd.f32 %v10868, %v11040
    %v11042 = vpop.f32.mrf.mxu0
    %v11043 = vadd.f32 %v10870, %v11042
    %11044 = vmatprep.mubr.bf16.mxu0 0
    %11045 = vmatmul.mubr.bf16.gmra.mxu0 0
    %v11046 = vpop.f32.mrf.mxu0
    %v11047 = vadd.f32 %v10874, %v11046
    %v11048 = vpop.f32.mrf.mxu0
    %v11049 = vadd.f32 %v10876, %v11048
    %v11050 = vpop.f32.mrf.mxu0
    %v11051 = vadd.f32 %v10878, %v11050
    %v11052 = vpop.f32.mrf.mxu0
    %v11053 = vadd.f32 %v10880, %v11052
    %11054 = vdwg.mxu0
    %11055 = vmatprep.subr.bf16.mxu0 0
    %11056 = vmatpush1.bf16.msra.mxu0 0
    %11057 = vmatprep.subr.bf16.mxu0 0
    %11058 = vmatpush1.bf16.msra.mxu0 0
    %11059 = vmatprep.subr.bf16.mxu0 0
    %11060 = vmatpush1.bf16.msra.mxu0 0
    %11061 = vmatprep.subr.bf16.mxu0 0
    %11062 = vmatpush1.bf16.msra.mxu0 0
    %11063 = vmatprep.subr.bf16.mxu0 %v8815
    %11064 = vmatpush1.bf16.msra.mxu0 %v8814
    %11065 = vmatprep.subr.bf16.mxu0 %v8811
    %11066 = vmatpush1.bf16.msra.mxu0 %v8810
    %11067 = vmatprep.subr.bf16.mxu0 %v8807
    %11068 = vmatpush1.bf16.msra.mxu0 %v8806
    %11069 = vmatprep.subr.bf16.mxu0 %v8803
    %11070 = vmatpush1.bf16.msra.mxu0 %v8802
    %11071 = vmatprep.subr.bf16.mxu0 0
    %11072 = vmatpush2.bf16.msra.mxu0 0
    %11073 = vmatprep.subr.bf16.mxu0 0
    %11074 = vmatpush2.bf16.msra.mxu0 0
    %11075 = vmatprep.subr.bf16.mxu0 0
    %11076 = vmatpush2.bf16.msra.mxu0 0
    %11077 = vmatprep.subr.bf16.mxu0 0
    %11078 = vmatpush2.bf16.msra.mxu0 0
    %11079 = vmatprep.subr.bf16.mxu0 0
    %11080 = vmatpush2.bf16.msra.mxu0 0
    %11081 = vmatprep.subr.bf16.mxu0 0
    %11082 = vmatpush2.bf16.msra.mxu0 0
    %11083 = vmatprep.subr.bf16.mxu0 0
    %11084 = vmatpush2.bf16.msra.mxu0 0
    %11085 = vmatprep.subr.bf16.mxu0 0
    %11086 = vmatpush2.bf16.msra.mxu0 0
    %11087 = vmatprep.mubr.bf16.mxu0 0
    %11088 = vmatmul.mubr.bf16.gmra.mxu0 %v5031
    %v11089 = vpop.f32.mrf.mxu0
    %v11090 = vadd.f32 %v10917, %v11089
    %v11091 = vpop.f32.mrf.mxu0
    %v11092 = vadd.f32 %v10919, %v11091
    %v11093 = vpop.f32.mrf.mxu0
    %v11094 = vadd.f32 %v10921, %v11093
    %v11095 = vpop.f32.mrf.mxu0
    %v11096 = vadd.f32 %v10923, %v11095
    %11097 = vmatprep.mubr.bf16.mxu0 0
    %11098 = vmatmul.mubr.bf16.gmra.mxu0 %v5033
    %v11099 = vpop.f32.mrf.mxu0
    %v11100 = vadd.f32 %v10927, %v11099
    %v11101 = vpop.f32.mrf.mxu0
    %v11102 = vadd.f32 %v10929, %v11101
    %v11103 = vpop.f32.mrf.mxu0
    %v11104 = vadd.f32 %v10931, %v11103
    %v11105 = vpop.f32.mrf.mxu0
    %v11106 = vadd.f32 %v10933, %v11105
    %11107 = vmatprep.mubr.bf16.mxu0 0
    %11108 = vmatmul.mubr.bf16.gmra.mxu0 %v5035
    %v11109 = vpop.f32.mrf.mxu0
    %v11110 = vadd.f32 %v10937, %v11109
    %v11111 = vpop.f32.mrf.mxu0
    %v11112 = vadd.f32 %v10939, %v11111
    %v11113 = vpop.f32.mrf.mxu0
    %v11114 = vadd.f32 %v10941, %v11113
    %v11115 = vpop.f32.mrf.mxu0
    %v11116 = vadd.f32 %v10943, %v11115
    %11117 = vmatprep.mubr.bf16.mxu0 0
    %11118 = vmatmul.mubr.bf16.gmra.mxu0 %v5037
    %v11119 = vpop.f32.mrf.mxu0
    %v11120 = vadd.f32 %v10947, %v11119
    %v11121 = vpop.f32.mrf.mxu0
    %v11122 = vadd.f32 %v10949, %v11121
    %v11123 = vpop.f32.mrf.mxu0
    %v11124 = vadd.f32 %v10951, %v11123
    %v11125 = vpop.f32.mrf.mxu0
    %v11126 = vadd.f32 %v10953, %v11125
    %11127 = vmatprep.mubr.bf16.mxu0 0
    %11128 = vmatmul.mubr.bf16.gmra.mxu0 %v5039
    %v11129 = vpop.f32.mrf.mxu0
    %v11130 = vadd.f32 %v10957, %v11129
    %v11131 = vpop.f32.mrf.mxu0
    %v11132 = vadd.f32 %v10959, %v11131
    %v11133 = vpop.f32.mrf.mxu0
    %v11134 = vadd.f32 %v10961, %v11133
    %v11135 = vpop.f32.mrf.mxu0
    %v11136 = vadd.f32 %v10963, %v11135
    %11137 = vmatprep.mubr.bf16.mxu0 0
    %11138 = vmatmul.mubr.bf16.gmra.mxu0 %v5041
    %v11139 = vpop.f32.mrf.mxu0
    %v11140 = vadd.f32 %v10967, %v11139
    %v11141 = vpop.f32.mrf.mxu0
    %v11142 = vadd.f32 %v10969, %v11141
    %v11143 = vpop.f32.mrf.mxu0
    %v11144 = vadd.f32 %v10971, %v11143
    %v11145 = vpop.f32.mrf.mxu0
    %v11146 = vadd.f32 %v10973, %v11145
    %11147 = vmatprep.mubr.bf16.mxu0 0
    %11148 = vmatmul.mubr.bf16.gmra.mxu0 %v5043
    %v11149 = vpop.f32.mrf.mxu0
    %v11150 = vadd.f32 %v10977, %v11149
    %v11151 = vpop.f32.mrf.mxu0
    %v11152 = vadd.f32 %v10979, %v11151
    %v11153 = vpop.f32.mrf.mxu0
    %v11154 = vadd.f32 %v10981, %v11153
    %v11155 = vpop.f32.mrf.mxu0
    %v11156 = vadd.f32 %v10983, %v11155
    %11157 = vmatprep.mubr.bf16.mxu0 0
    %11158 = vmatmul.mubr.bf16.gmra.mxu0 %v5045
    %v11159 = vpop.f32.mrf.mxu0
    %v11160 = vadd.f32 %v10987, %v11159
    %v11161 = vpop.f32.mrf.mxu0
    %v11162 = vadd.f32 %v10989, %v11161
    %v11163 = vpop.f32.mrf.mxu0
    %v11164 = vadd.f32 %v10991, %v11163
    %v11165 = vpop.f32.mrf.mxu0
    %v11166 = vadd.f32 %v10993, %v11165
    %11167 = vmatprep.mubr.bf16.mxu0 0
    %11168 = vmatmul.mubr.bf16.gmra.mxu0 %v5047
    %v11169 = vpop.f32.mrf.mxu0
    %v11170 = vadd.f32 %v10997, %v11169
    %v11171 = vpop.f32.mrf.mxu0
    %v11172 = vadd.f32 %v10999, %v11171
    %v11173 = vpop.f32.mrf.mxu0
    %v11174 = vadd.f32 %v11001, %v11173
    %v11175 = vpop.f32.mrf.mxu0
    %v11176 = vadd.f32 %v11003, %v11175
    %11177 = vmatprep.mubr.bf16.mxu0 0
    %11178 = vmatmul.mubr.bf16.gmra.mxu0 %v5049
    %v11179 = vpop.f32.mrf.mxu0
    %v11180 = vadd.f32 %v11007, %v11179
    %v11181 = vpop.f32.mrf.mxu0
    %v11182 = vadd.f32 %v11009, %v11181
    %v11183 = vpop.f32.mrf.mxu0
    %v11184 = vadd.f32 %v11011, %v11183
    %v11185 = vpop.f32.mrf.mxu0
    %v11186 = vadd.f32 %v11013, %v11185
    %11187 = vmatprep.mubr.bf16.mxu0 0
    %11188 = vmatmul.mubr.bf16.gmra.mxu0 %v5051
    %v11189 = vpop.f32.mrf.mxu0
    %v11190 = vadd.f32 %v11017, %v11189
    %v11191 = vpop.f32.mrf.mxu0
    %v11192 = vadd.f32 %v11019, %v11191
    %v11193 = vpop.f32.mrf.mxu0
    %v11194 = vadd.f32 %v11021, %v11193
    %v11195 = vpop.f32.mrf.mxu0
    %v11196 = vadd.f32 %v11023, %v11195
    %11197 = vmatprep.mubr.bf16.mxu0 0
    %11198 = vmatmul.mubr.bf16.gmra.mxu0 %v5053
    %v11199 = vpop.f32.mrf.mxu0
    %v11200 = vadd.f32 %v11027, %v11199
    %v11201 = vpop.f32.mrf.mxu0
    %v11202 = vadd.f32 %v11029, %v11201
    %v11203 = vpop.f32.mrf.mxu0
    %v11204 = vadd.f32 %v11031, %v11203
    %v11205 = vpop.f32.mrf.mxu0
    %v11206 = vadd.f32 %v11033, %v11205
    %11207 = vmatprep.mubr.bf16.mxu0 0
    %11208 = vmatmul.mubr.bf16.gmra.mxu0 %v5056
    %v11209 = vpop.f32.mrf.mxu0
    %v11210 = vadd.f32 %v11037, %v11209
    %v11211 = vpop.f32.mrf.mxu0
    %v11212 = vadd.f32 %v11039, %v11211
    %v11213 = vpop.f32.mrf.mxu0
    %v11214 = vadd.f32 %v11041, %v11213
    %v11215 = vpop.f32.mrf.mxu0
    %v11216 = vadd.f32 %v11043, %v11215
    %11217 = vmatprep.mubr.bf16.mxu0 0
    %11218 = vmatmul.mubr.bf16.gmra.mxu0 %v5058
    %v11219 = vpop.f32.mrf.mxu0
    %v11220 = vadd.f32 %v11047, %v11219
    %v11221 = vpop.f32.mrf.mxu0
    %v11222 = vadd.f32 %v11049, %v11221
    %v11223 = vpop.f32.mrf.mxu0
    %v11224 = vadd.f32 %v11051, %v11223
    %v11225 = vpop.f32.mrf.mxu0
    %v11226 = vadd.f32 %v11053, %v11225
    %11227 = vdwg.mxu0
    %v11228 = vmax.f32 %v5960, %v10052
    %v11229 = vmax.f32 %v5962, %v10054
    %v11230 = vmax.f32 %v6998, %v11090
    %v11231 = vmax.f32 %v7000, %v11092
    %v11232 = vmax.f32 %v5964, %v10056
    %v11233 = vmax.f32 %v5966, %v10058
    %v11234 = vmax.f32 %v7002, %v11094
    %v11235 = vmax.f32 %v7004, %v11096
    %v11236 = vmax.f32 %v5970, %v10062
    %v11237 = vmax.f32 %v5972, %v10064
    %v11238 = vmax.f32 %v7008, %v11100
    %v11239 = vmax.f32 %v7010, %v11102
    %v11240 = vmax.f32 %v5974, %v10066
    %v11241 = vmax.f32 %v5976, %v10068
    %v11242 = vmax.f32 %v7012, %v11104
    %v11243 = vmax.f32 %v7014, %v11106
    %v11244 = vmax.f32 %v5980, %v10072
    %v11245 = vmax.f32 %v5982, %v10074
    %v11246 = vmax.f32 %v7018, %v11110
    %v11247 = vmax.f32 %v7020, %v11112
    %v11248 = vmax.f32 %v5984, %v10076
    %v11249 = vmax.f32 %v5986, %v10078
    %v11250 = vmax.f32 %v7022, %v11114
    %v11251 = vmax.f32 %v7024, %v11116
    %v11252 = vmax.f32 %v5990, %v10082
    %v11253 = vmax.f32 %v5992, %v10084
    %v11254 = vmax.f32 %v7028, %v11120
    %v11255 = vmax.f32 %v7030, %v11122
    %v11256 = vmax.f32 %v5994, %v10086
    %v11257 = vmax.f32 %v5996, %v10088
    %v11258 = vmax.f32 %v7032, %v11124
    %v11259 = vmax.f32 %v7034, %v11126
    %v11260 = vmax.f32 %v6000, %v10092
    %v11261 = vmax.f32 %v6002, %v10094
    %v11262 = vmax.f32 %v7038, %v11130
    %v11263 = vmax.f32 %v7040, %v11132
    %v11264 = vmax.f32 %v6004, %v10096
    %v11265 = vmax.f32 %v6006, %v10098
    %v11266 = vmax.f32 %v7042, %v11134
    %v11267 = vmax.f32 %v7044, %v11136
    %v11268 = vmax.f32 %v6010, %v10102
    %v11269 = vmax.f32 %v6012, %v10104
    %v11270 = vmax.f32 %v7048, %v11140
    %v11271 = vmax.f32 %v7050, %v11142
    %v11272 = vmax.f32 %v6014, %v10106
    %v11273 = vmax.f32 %v6016, %v10108
    %v11274 = vmax.f32 %v7052, %v11144
    %v11275 = vmax.f32 %v7054, %v11146
    %v11276 = vmax.f32 %v6020, %v10112
    %v11277 = vmax.f32 %v6022, %v10114
    %v11278 = vmax.f32 %v7058, %v11150
    %v11279 = vmax.f32 %v7060, %v11152
    %v11280 = vmax.f32 %v6024, %v10116
    %v11281 = vmax.f32 %v6026, %v10118
    %v11282 = vmax.f32 %v7062, %v11154
    %v11283 = vmax.f32 %v7064, %v11156
    %v11284 = vmax.f32 %v6030, %v10122
    %v11285 = vmax.f32 %v6032, %v10124
    %v11286 = vmax.f32 %v7068, %v11160
    %v11287 = vmax.f32 %v7070, %v11162
    %v11288 = vmax.f32 %v6034, %v10126
    %v11289 = vmax.f32 %v6036, %v10128
    %v11290 = vmax.f32 %v7072, %v11164
    %v11291 = vmax.f32 %v7074, %v11166
    %v11292 = vmax.f32 %v6040, %v10132
    %v11293 = vmax.f32 %v6042, %v10134
    %v11294 = vmax.f32 %v7078, %v11170
    %v11295 = vmax.f32 %v7080, %v11172
    %v11296 = vmax.f32 %v6044, %v10136
    %v11297 = vmax.f32 %v6046, %v10138
    %v11298 = vmax.f32 %v7082, %v11174
    %v11299 = vmax.f32 %v7084, %v11176
    %v11300 = vmax.f32 %v6050, %v10142
    %v11301 = vmax.f32 %v6052, %v10144
    %v11302 = vmax.f32 %v7088, %v11180
    %v11303 = vmax.f32 %v7090, %v11182
    %v11304 = vmax.f32 %v6054, %v10146
    %v11305 = vmax.f32 %v6056, %v10148
    %v11306 = vmax.f32 %v7092, %v11184
    %v11307 = vmax.f32 %v7094, %v11186
    %v11308 = vmax.f32 %v6060, %v10152
    %v11309 = vmax.f32 %v6062, %v10154
    %v11310 = vmax.f32 %v7098, %v11190
    %v11311 = vmax.f32 %v7100, %v11192
    %v11312 = vmax.f32 %v6064, %v10156
    %v11313 = vmax.f32 %v6066, %v10158
    %v11314 = vmax.f32 %v7102, %v11194
    %v11315 = vmax.f32 %v7104, %v11196
    %v11316 = vmax.f32 %v6070, %v10162
    %v11317 = vmax.f32 %v6072, %v10164
    %v11318 = vmax.f32 %v7108, %v11200
    %v11319 = vmax.f32 %v7110, %v11202
    %v11320 = vmax.f32 %v6074, %v10166
    %v11321 = vmax.f32 %v6076, %v10168
    %v11322 = vmax.f32 %v7112, %v11204
    %v11323 = vmax.f32 %v7114, %v11206
    %v11324 = vmax.f32 %v6080, %v10172
    %v11325 = vmax.f32 %v6082, %v10174
    %v11326 = vmax.f32 %v7118, %v11210
    %v11327 = vmax.f32 %v7120, %v11212
    %v11328 = vmax.f32 %v6084, %v10176
    %v11329 = vmax.f32 %v6086, %v10178
    %v11330 = vmax.f32 %v7122, %v11214
    %v11331 = vmax.f32 %v7124, %v11216
    %v11332 = vmax.f32 %v6090, %v10182
    %v11333 = vmax.f32 %v6092, %v10184
    %v11334 = vmax.f32 %v7128, %v11220
    %v11335 = vmax.f32 %v7130, %v11222
    %v11336 = vmax.f32 %v6094, %v10186
    %v11337 = vmax.f32 %v6096, %v10188
    %v11338 = vmax.f32 %v7132, %v11224
    %v11339 = vmax.f32 %v7134, %v11226
    %v11340 = vmax.f32 %v11228, %v11236
    %v11341 = vmax.f32 %v11229, %v11237
    %v11342 = vmax.f32 %v11230, %v11238
    %v11343 = vsel %vm2238, %v11231, -inf
    %v11344 = vsel %vm2238, %v11239, -inf
    %v11345 = vmax.f32 %v11343, %v11344
    %v11346 = vmax.f32 %v11232, %v11240
    %v11347 = vmax.f32 %v11233, %v11241
    %v11348 = vmax.f32 %v11234, %v11242
    %v11349 = vsel %vm2238, %v11235, -inf
    %v11350 = vsel %vm2238, %v11243, -inf
    %v11351 = vmax.f32 %v11349, %v11350
    %v11352 = vmax.f32 %v11244, %v11252
    %v11353 = vmax.f32 %v11245, %v11253
    %v11354 = vmax.f32 %v11246, %v11254
    %v11355 = vsel %vm2238, %v11247, -inf
    %v11356 = vsel %vm2238, %v11255, -inf
    %v11357 = vmax.f32 %v11355, %v11356
    %v11358 = vmax.f32 %v11248, %v11256
    %v11359 = vmax.f32 %v11249, %v11257
    %v11360 = vmax.f32 %v11250, %v11258
    %v11361 = vsel %vm2238, %v11251, -inf
    %v11362 = vsel %vm2238, %v11259, -inf
    %v11363 = vmax.f32 %v11361, %v11362
    %v11364 = vmax.f32 %v11260, %v11268
    %v11365 = vmax.f32 %v11261, %v11269
    %v11366 = vmax.f32 %v11262, %v11270
    %v11367 = vsel %vm2238, %v11263, -inf
    %v11368 = vsel %vm2238, %v11271, -inf
    %v11369 = vmax.f32 %v11367, %v11368
    %v11370 = vmax.f32 %v11264, %v11272
    %v11371 = vmax.f32 %v11265, %v11273
    %v11372 = vmax.f32 %v11266, %v11274
    %v11373 = vsel %vm2238, %v11267, -inf
    %v11374 = vsel %vm2238, %v11275, -inf
    %v11375 = vmax.f32 %v11373, %v11374
    %v11376 = vmax.f32 %v11276, %v11284
    %v11377 = vmax.f32 %v11277, %v11285
    %v11378 = vmax.f32 %v11278, %v11286
    %v11379 = vsel %vm2238, %v11279, -inf
    %v11380 = vsel %vm2238, %v11287, -inf
    %v11381 = vmax.f32 %v11379, %v11380
    %v11382 = vmax.f32 %v11280, %v11288
    %v11383 = vmax.f32 %v11281, %v11289
    %v11384 = vmax.f32 %v11282, %v11290
    %v11385 = vsel %vm2238, %v11283, -inf
    %v11386 = vsel %vm2238, %v11291, -inf
    %v11387 = vmax.f32 %v11385, %v11386
    %v11388 = vmax.f32 %v11292, %v11300
    %v11389 = vmax.f32 %v11293, %v11301
    %v11390 = vmax.f32 %v11294, %v11302
    %v11391 = vsel %vm2238, %v11295, -inf
    %v11392 = vsel %vm2238, %v11303, -inf
    %v11393 = vmax.f32 %v11391, %v11392
    %v11394 = vmax.f32 %v11296, %v11304
    %v11395 = vmax.f32 %v11297, %v11305
    %v11396 = vmax.f32 %v11298, %v11306
    %v11397 = vsel %vm2238, %v11299, -inf
    %v11398 = vsel %vm2238, %v11307, -inf
    %v11399 = vmax.f32 %v11397, %v11398
    %v11400 = vmax.f32 %v11308, %v11316
    %v11401 = vmax.f32 %v11309, %v11317
    %v11402 = vmax.f32 %v11310, %v11318
    %v11403 = vsel %vm2238, %v11311, -inf
    %v11404 = vsel %vm2238, %v11319, -inf
    %v11405 = vmax.f32 %v11403, %v11404
    %v11406 = vmax.f32 %v11312, %v11320
    %v11407 = vmax.f32 %v11313, %v11321
    %v11408 = vmax.f32 %v11314, %v11322
    %v11409 = vsel %vm2238, %v11315, -inf
    %v11410 = vsel %vm2238, %v11323, -inf
    %v11411 = vmax.f32 %v11409, %v11410
    %v11412 = vmax.f32 %v11324, %v11332
    %v11413 = vmax.f32 %v11325, %v11333
    %v11414 = vmax.f32 %v11326, %v11334
    %v11415 = vsel %vm2238, %v11327, -inf
    %v11416 = vsel %vm2238, %v11335, -inf
    %v11417 = vmax.f32 %v11415, %v11416
    %v11418 = vmax.f32 %v11328, %v11336
    %v11419 = vmax.f32 %v11329, %v11337
    %v11420 = vmax.f32 %v11330, %v11338
    %v11421 = vsel %vm2238, %v11331, -inf
    %v11422 = vsel %vm2238, %v11339, -inf
    %v11423 = vmax.f32 %v11421, %v11422
    %v11424 = vld [vmem:[%s6] sm:$0xf]
    %v11426 = vlaneseq
    %v11427 = vshrl.u32 %v11426, 7
    %v11428 = vsub.s32 0, %v11427
    %v11429 = vrot.slane %v11424, %v11428
    %v11430 = vlaneseq
    %v11431 = vshrl.u32 %v11430, 7
    %v11432 = vsub.s32 1, %v11431
    %v11433 = vrot.slane %v11424, %v11432
    %v11434 = vlaneseq
    %v11435 = vshrl.u32 %v11434, 7
    %v11436 = vsub.s32 2, %v11435
    %v11437 = vrot.slane %v11424, %v11436
    %v11438 = vlaneseq
    %v11439 = vshrl.u32 %v11438, 7
    %v11440 = vsub.s32 3, %v11439
    %v11441 = vrot.slane %v11424, %v11440
    %v11446 = vadd.f32 %v11340, %v11429
    %v11447 = vadd.f32 %v11341, %v11433
    %v11448 = vadd.f32 %v11342, %v11437
    %v11449 = vadd.f32 %v11345, %v11441
    %v11450 = vadd.f32 %v11346, %v11429
    %v11451 = vadd.f32 %v11347, %v11433
    %v11452 = vadd.f32 %v11348, %v11437
    %v11453 = vadd.f32 %v11351, %v11441
    %v11454 = vadd.f32 %v11352, %v11429
    %v11455 = vadd.f32 %v11353, %v11433
    %v11456 = vadd.f32 %v11354, %v11437
    %v11457 = vadd.f32 %v11357, %v11441
    %v11458 = vadd.f32 %v11358, %v11429
    %v11459 = vadd.f32 %v11359, %v11433
    %v11460 = vadd.f32 %v11360, %v11437
    %v11461 = vadd.f32 %v11363, %v11441
    %v11462 = vadd.f32 %v11364, %v11429
    %v11463 = vadd.f32 %v11365, %v11433
    %v11464 = vadd.f32 %v11366, %v11437
    %v11465 = vadd.f32 %v11369, %v11441
    %v11466 = vadd.f32 %v11370, %v11429
    %v11467 = vadd.f32 %v11371, %v11433
    %v11468 = vadd.f32 %v11372, %v11437
    %v11469 = vadd.f32 %v11375, %v11441
    %v11470 = vadd.f32 %v11376, %v11429
    %v11471 = vadd.f32 %v11377, %v11433
    %v11472 = vadd.f32 %v11378, %v11437
    %v11473 = vadd.f32 %v11381, %v11441
    %v11474 = vadd.f32 %v11382, %v11429
    %v11475 = vadd.f32 %v11383, %v11433
    %v11476 = vadd.f32 %v11384, %v11437
    %v11477 = vadd.f32 %v11387, %v11441
    %v11478 = vadd.f32 %v11388, %v11429
    %v11479 = vadd.f32 %v11389, %v11433
    %v11480 = vadd.f32 %v11390, %v11437
    %v11481 = vadd.f32 %v11393, %v11441
    %v11482 = vadd.f32 %v11394, %v11429
    %v11483 = vadd.f32 %v11395, %v11433
    %v11484 = vadd.f32 %v11396, %v11437
    %v11485 = vadd.f32 %v11399, %v11441
    %v11486 = vadd.f32 %v11400, %v11429
    %v11487 = vadd.f32 %v11401, %v11433
    %v11488 = vadd.f32 %v11402, %v11437
    %v11489 = vadd.f32 %v11405, %v11441
    %v11490 = vadd.f32 %v11406, %v11429
    %v11491 = vadd.f32 %v11407, %v11433
    %v11492 = vadd.f32 %v11408, %v11437
    %v11493 = vadd.f32 %v11411, %v11441
    %v11494 = vadd.f32 %v11412, %v11429
    %v11495 = vadd.f32 %v11413, %v11433
    %v11496 = vadd.f32 %v11414, %v11437
    %v11497 = vadd.f32 %v11417, %v11441
    %v11498 = vadd.f32 %v11418, %v11429
    %v11499 = vadd.f32 %v11419, %v11433
    %v11500 = vadd.f32 %v11420, %v11437
    %v11501 = vadd.f32 %v11423, %v11441
    %v11502 = vmax.f32 %v11446, 0.0
    %v11503 = vmax.f32 %v11447, 0.0
    %v11504 = vmax.f32 %v11448, 0.0
    %v11505 = vmax.f32 %v11449, 0.0
    %v11506 = vmax.f32 %v11450, 0.0
    %v11507 = vmax.f32 %v11451, 0.0
    %v11508 = vmax.f32 %v11452, 0.0
    %v11509 = vmax.f32 %v11453, 0.0
    %v11510 = vmax.f32 %v11454, 0.0
    %v11511 = vmax.f32 %v11455, 0.0
    %v11512 = vmax.f32 %v11456, 0.0
    %v11513 = vmax.f32 %v11457, 0.0
    %v11514 = vmax.f32 %v11458, 0.0
    %v11515 = vmax.f32 %v11459, 0.0
    %v11516 = vmax.f32 %v11460, 0.0
    %v11517 = vmax.f32 %v11461, 0.0
    %v11518 = vmax.f32 %v11462, 0.0
    %v11519 = vmax.f32 %v11463, 0.0
    %v11520 = vmax.f32 %v11464, 0.0
    %v11521 = vmax.f32 %v11465, 0.0
    %v11522 = vmax.f32 %v11466, 0.0
    %v11523 = vmax.f32 %v11467, 0.0
    %v11524 = vmax.f32 %v11468, 0.0
    %v11525 = vmax.f32 %v11469, 0.0
    %v11526 = vmax.f32 %v11470, 0.0
    %v11527 = vmax.f32 %v11471, 0.0
    %v11528 = vmax.f32 %v11472, 0.0
    %v11529 = vmax.f32 %v11473, 0.0
    %v11530 = vmax.f32 %v11474, 0.0
    %v11531 = vmax.f32 %v11475, 0.0
    %v11532 = vmax.f32 %v11476, 0.0
    %v11533 = vmax.f32 %v11477, 0.0
    %v11534 = vmax.f32 %v11478, 0.0
    %v11535 = vmax.f32 %v11479, 0.0
    %v11536 = vmax.f32 %v11480, 0.0
    %v11537 = vmax.f32 %v11481, 0.0
    %v11538 = vmax.f32 %v11482, 0.0
    %v11539 = vmax.f32 %v11483, 0.0
    %v11540 = vmax.f32 %v11484, 0.0
    %v11541 = vmax.f32 %v11485, 0.0
    %v11542 = vmax.f32 %v11486, 0.0
    %v11543 = vmax.f32 %v11487, 0.0
    %v11544 = vmax.f32 %v11488, 0.0
    %v11545 = vmax.f32 %v11489, 0.0
    %v11546 = vmax.f32 %v11490, 0.0
    %v11547 = vmax.f32 %v11491, 0.0
    %v11548 = vmax.f32 %v11492, 0.0
    %v11549 = vmax.f32 %v11493, 0.0
    %v11550 = vmax.f32 %v11494, 0.0
    %v11551 = vmax.f32 %v11495, 0.0
    %v11552 = vmax.f32 %v11496, 0.0
    %v11553 = vmax.f32 %v11497, 0.0
    %v11554 = vmax.f32 %v11498, 0.0
    %v11555 = vmax.f32 %v11499, 0.0
    %v11556 = vmax.f32 %v11500, 0.0
    %v11557 = vmax.f32 %v11501, 0.0
    %v11558 = vpack.c.bf16 %v11506, %v11502
    %v11559 = vpack.c.bf16 %v11507, %v11503
    %v11560 = vpack.c.bf16 %v11508, %v11504
    %v11561 = vpack.c.bf16 %v11509, %v11505
    %v11562 = vpack.c.bf16 %v11514, %v11510
    %v11563 = vpack.c.bf16 %v11515, %v11511
    %v11564 = vpack.c.bf16 %v11516, %v11512
    %v11565 = vpack.c.bf16 %v11517, %v11513
    %v11566 = vpack.c.bf16 %v11522, %v11518
    %v11567 = vpack.c.bf16 %v11523, %v11519
    %v11568 = vpack.c.bf16 %v11524, %v11520
    %v11569 = vpack.c.bf16 %v11525, %v11521
    %v11570 = vpack.c.bf16 %v11530, %v11526
    %v11571 = vpack.c.bf16 %v11531, %v11527
    %v11572 = vpack.c.bf16 %v11532, %v11528
    %v11573 = vpack.c.bf16 %v11533, %v11529
    %v11574 = vpack.c.bf16 %v11538, %v11534
    %v11575 = vpack.c.bf16 %v11539, %v11535
    %v11576 = vpack.c.bf16 %v11540, %v11536
    %v11577 = vpack.c.bf16 %v11541, %v11537
    %v11578 = vpack.c.bf16 %v11546, %v11542
    %v11579 = vpack.c.bf16 %v11547, %v11543
    %v11580 = vpack.c.bf16 %v11548, %v11544
    %v11581 = vpack.c.bf16 %v11549, %v11545
    %v11582 = vpack.c.bf16 %v11554, %v11550
    %v11583 = vpack.c.bf16 %v11555, %v11551
    %v11584 = vpack.c.bf16 %v11556, %v11552
    %v11585 = vpack.c.bf16 %v11557, %v11553
    %v11586 = vld [vmem:[%s7] sm:$0xf]
    %v11587 = vld [vmem:[%s7 + $0x4] sm:$0xf]
    %v11588 = vld [vmem:[%s7 + $0x8] sm:$0xf]
    %v11589 = vld [vmem:[%s7 + $0xc] sm:$0xf]
    %v11590 = vld [vmem:[%s7 + $0x10] sm:$0xf]
    %v11591 = vld [vmem:[%s7 + $0x14] sm:$0xf]
    %v11592 = vld [vmem:[%s7 + $0x18] sm:$0xf]
    %v11593 = vld [vmem:[%s7 + $0x1c] sm:$0xf]
    %v11594 = vld [vmem:[%s7 + $0x20] sm:$0xf]
    %v11595 = vld [vmem:[%s7 + $0x24] sm:$0xf]
    %v11596 = vld [vmem:[%s7 + $0x28] sm:$0xf]
    %v11597 = vld [vmem:[%s7 + $0x2c] sm:$0xf]
    %v11598 = vld [vmem:[%s7 + $0x30] sm:$0xf]
    %v11599 = vld [vmem:[%s7 + $0x34] sm:$0xf]
    %v11600 = vld [vmem:[%s7 + $0x38] sm:$0xf]
    %v11601 = vld [vmem:[%s7 + $0x3c] sm:$0xf]
    %v11602 = vld [vmem:[%s7 + $0x40] sm:$0xf]
    %v11603 = vld [vmem:[%s7 + $0x44] sm:$0xf]
    %v11604 = vld [vmem:[%s7 + $0x48] sm:$0xf]
    %v11605 = vld [vmem:[%s7 + $0x4c] sm:$0xf]
    %v11606 = vld [vmem:[%s7 + $0x50] sm:$0xf]
    %v11607 = vld [vmem:[%s7 + $0x54] sm:$0xf]
    %v11608 = vld [vmem:[%s7 + $0x58] sm:$0xf]
    %v11609 = vld [vmem:[%s7 + $0x5c] sm:$0xf]
    %v11610 = vld [vmem:[%s7 + $0x60] sm:$0xf]
    %v11611 = vld [vmem:[%s7 + $0x64] sm:$0xf]
    %v11612 = vld [vmem:[%s7 + $0x68] sm:$0xf]
    %v11613 = vld [vmem:[%s7 + $0x6c] sm:$0xf]
    %v11614 = vld [vmem:[%s7 + $0x70] sm:$0xf]
    %v11615 = vld [vmem:[%s7 + $0x74] sm:$0xf]
    %v11616 = vld [vmem:[%s7 + $0x78] sm:$0xf]
    %v11617 = vld [vmem:[%s7 + $0x7c] sm:$0xf]
    %v11618 = vld [vmem:[%s7 + $0x80] sm:$0xf]
    %v11619 = vld [vmem:[%s7 + $0x84] sm:$0xf]
    %v11620 = vld [vmem:[%s7 + $0x88] sm:$0xf]
    %v11621 = vld [vmem:[%s7 + $0x8c] sm:$0xf]
    %v11622 = vld [vmem:[%s7 + $0x90] sm:$0xf]
    %v11623 = vld [vmem:[%s7 + $0x94] sm:$0xf]
    %v11624 = vld [vmem:[%s7 + $0x98] sm:$0xf]
    %v11625 = vld [vmem:[%s7 + $0x9c] sm:$0xf]
    %v11626 = vld [vmem:[%s7 + $0xa0] sm:$0xf]
    %v11627 = vld [vmem:[%s7 + $0xa4] sm:$0xf]
    %v11628 = vld [vmem:[%s7 + $0xa8] sm:$0xf]
    %v11629 = vld [vmem:[%s7 + $0xac] sm:$0xf]
    %v11630 = vld [vmem:[%s7 + $0xb0] sm:$0xf]
    %v11631 = vld [vmem:[%s7 + $0xb4] sm:$0xf]
    %v11632 = vld [vmem:[%s7 + $0xb8] sm:$0xf]
    %v11633 = vld [vmem:[%s7 + $0xbc] sm:$0xf]
    %v11634 = vld [vmem:[%s7 + $0xc0] sm:$0xf]
    %v11635 = vld [vmem:[%s7 + $0xc4] sm:$0xf]
    %v11636 = vld [vmem:[%s7 + $0xc8] sm:$0xf]
    %v11637 = vld [vmem:[%s7 + $0xcc] sm:$0xf]
    %v11638 = vld [vmem:[%s7 + $0xd0] sm:$0xf]
    %v11639 = vld [vmem:[%s7 + $0xd4] sm:$0xf]
    %v11640 = vld [vmem:[%s7 + $0xd8] sm:$0xf]
    %v11641 = vld [vmem:[%s7 + $0xdc] sm:$0xf]
    %s11642 = scalar_lea.vmem %s7, 224
    %v11643 = vld [vmem:[%s11642] sm:$0xf]
    %v11644 = vld [vmem:[%s11642 + $0x4] sm:$0xf]
    %v11645 = vld [vmem:[%s11642 + $0x8] sm:$0xf]
    %v11646 = vld [vmem:[%s11642 + $0xc] sm:$0xf]
    %v11647 = vld [vmem:[%s11642 + $0x10] sm:$0xf]
    %v11648 = vld [vmem:[%s11642 + $0x14] sm:$0xf]
    %v11649 = vld [vmem:[%s11642 + $0x18] sm:$0xf]
    %v11650 = vld [vmem:[%s11642 + $0x1c] sm:$0xf]
    %v11651 = vld [vmem:[%s11642 + $0x20] sm:$0xf]
    %v11652 = vld [vmem:[%s11642 + $0x24] sm:$0xf]
    %v11653 = vld [vmem:[%s11642 + $0x28] sm:$0xf]
    %v11654 = vld [vmem:[%s11642 + $0x2c] sm:$0xf]
    %v11655 = vld [vmem:[%s11642 + $0x30] sm:$0xf]
    %v11656 = vld [vmem:[%s11642 + $0x34] sm:$0xf]
    %v11657 = vld [vmem:[%s11642 + $0x38] sm:$0xf]
    %v11658 = vld [vmem:[%s11642 + $0x3c] sm:$0xf]
    %v11659 = vld [vmem:[%s11642 + $0x40] sm:$0xf]
    %v11660 = vld [vmem:[%s11642 + $0x44] sm:$0xf]
    %v11661 = vld [vmem:[%s11642 + $0x48] sm:$0xf]
    %v11662 = vld [vmem:[%s11642 + $0x4c] sm:$0xf]
    %v11663 = vld [vmem:[%s11642 + $0x50] sm:$0xf]
    %v11664 = vld [vmem:[%s11642 + $0x54] sm:$0xf]
    %v11665 = vld [vmem:[%s11642 + $0x58] sm:$0xf]
    %v11666 = vld [vmem:[%s11642 + $0x5c] sm:$0xf]
    %v11667 = vld [vmem:[%s11642 + $0x60] sm:$0xf]
    %v11668 = vld [vmem:[%s11642 + $0x64] sm:$0xf]
    %v11669 = vld [vmem:[%s11642 + $0x68] sm:$0xf]
    %v11670 = vld [vmem:[%s11642 + $0x6c] sm:$0xf]
    %v11671 = vld [vmem:[%s11642 + $0x70] sm:$0xf]
    %v11672 = vld [vmem:[%s11642 + $0x74] sm:$0xf]
    %v11673 = vld [vmem:[%s11642 + $0x78] sm:$0xf]
    %v11674 = vld [vmem:[%s11642 + $0x7c] sm:$0xf]
    %v11675 = vld [vmem:[%s11642 + $0x80] sm:$0xf]
    %v11676 = vld [vmem:[%s11642 + $0x84] sm:$0xf]
    %v11677 = vld [vmem:[%s11642 + $0x88] sm:$0xf]
    %v11678 = vld [vmem:[%s11642 + $0x8c] sm:$0xf]
    %v11679 = vld [vmem:[%s11642 + $0x90] sm:$0xf]
    %v11680 = vld [vmem:[%s11642 + $0x94] sm:$0xf]
    %v11681 = vld [vmem:[%s11642 + $0x98] sm:$0xf]
    %v11682 = vld [vmem:[%s11642 + $0x9c] sm:$0xf]
    %v11683 = vld [vmem:[%s11642 + $0xa0] sm:$0xf]
    %v11684 = vld [vmem:[%s11642 + $0xa4] sm:$0xf]
    %v11685 = vld [vmem:[%s11642 + $0xa8] sm:$0xf]
    %v11686 = vld [vmem:[%s11642 + $0xac] sm:$0xf]
    %v11687 = vld [vmem:[%s11642 + $0xb0] sm:$0xf]
    %v11688 = vld [vmem:[%s11642 + $0xb4] sm:$0xf]
    %v11689 = vld [vmem:[%s11642 + $0xb8] sm:$0xf]
    %v11690 = vld [vmem:[%s11642 + $0xbc] sm:$0xf]
    %v11691 = vld [vmem:[%s11642 + $0xc0] sm:$0xf]
    %v11692 = vld [vmem:[%s11642 + $0xc4] sm:$0xf]
    %v11693 = vld [vmem:[%s11642 + $0xc8] sm:$0xf]
    %v11694 = vld [vmem:[%s11642 + $0xcc] sm:$0xf]
    %v11695 = vld [vmem:[%s11642 + $0xd0] sm:$0xf]
    %v11696 = vld [vmem:[%s11642 + $0xd4] sm:$0xf]
    %v11697 = vld [vmem:[%s11642 + $0xd8] sm:$0xf]
    %v11698 = vld [vmem:[%s11642 + $0xdc] sm:$0xf]
    %v11755 = vunpack.c.l.b16 %v11643
    %v11756 = vunpack.c.l.b16 %v11644
    %v11757 = vunpack.c.l.b16 %v11645
    %v11758 = vunpack.c.l.b16 %v11646
    %v11759 = vunpack.c.l.b16 %v11647
    %v11760 = vunpack.c.l.b16 %v11648
    %v11761 = vunpack.c.l.b16 %v11649
    %v11762 = vunpack.c.l.b16 %v11650
    %v11763 = vunpack.c.l.b16 %v11651
    %v11764 = vunpack.c.l.b16 %v11652
    %v11765 = vunpack.c.l.b16 %v11653
    %v11766 = vunpack.c.l.b16 %v11654
    %v11767 = vunpack.c.l.b16 %v11655
    %v11768 = vunpack.c.l.b16 %v11656
    %v11769 = vunpack.c.l.b16 %v11657
    %v11770 = vunpack.c.l.b16 %v11658
    %v11771 = vunpack.c.l.b16 %v11659
    %v11772 = vunpack.c.l.b16 %v11660
    %v11773 = vunpack.c.l.b16 %v11661
    %v11774 = vunpack.c.l.b16 %v11662
    %v11775 = vunpack.c.l.b16 %v11663
    %v11776 = vunpack.c.l.b16 %v11664
    %v11777 = vunpack.c.l.b16 %v11665
    %v11778 = vunpack.c.l.b16 %v11666
    %v11779 = vunpack.c.l.b16 %v11667
    %v11780 = vunpack.c.l.b16 %v11668
    %v11781 = vunpack.c.l.b16 %v11669
    %v11782 = vunpack.c.l.b16 %v11670
    %v11783 = vunpack.c.l.b16 %v11671
    %v11784 = vunpack.c.l.b16 %v11672
    %v11785 = vunpack.c.l.b16 %v11673
    %v11786 = vunpack.c.l.b16 %v11674
    %v11787 = vunpack.c.l.b16 %v11675
    %v11788 = vunpack.c.l.b16 %v11676
    %v11789 = vunpack.c.l.b16 %v11677
    %v11790 = vunpack.c.l.b16 %v11678
    %v11791 = vunpack.c.l.b16 %v11679
    %v11792 = vunpack.c.l.b16 %v11680
    %v11793 = vunpack.c.l.b16 %v11681
    %v11794 = vunpack.c.l.b16 %v11682
    %v11795 = vunpack.c.l.b16 %v11683
    %v11796 = vunpack.c.l.b16 %v11684
    %v11797 = vunpack.c.l.b16 %v11685
    %v11798 = vunpack.c.l.b16 %v11686
    %v11799 = vunpack.c.l.b16 %v11687
    %v11800 = vunpack.c.l.b16 %v11688
    %v11801 = vunpack.c.l.b16 %v11689
    %v11802 = vunpack.c.l.b16 %v11690
    %v11803 = vunpack.c.l.b16 %v11691
    %v11804 = vunpack.c.l.b16 %v11692
    %v11805 = vunpack.c.l.b16 %v11693
    %v11806 = vunpack.c.l.b16 %v11694
    %v11807 = vunpack.c.l.b16 %v11695
    %v11808 = vunpack.c.l.b16 %v11696
    %v11809 = vunpack.c.l.b16 %v11697
    %v11810 = vunpack.c.l.b16 %v11698
    %v11811 = vpack.c.b16 %v11756, %v11755
    %v11812 = vpack.c.b16 %v11758, %v11757
    %v11813 = vpack.c.b16 %v11760, %v11759
    %v11814 = vpack.c.b16 %v11762, %v11761
    %v11815 = vpack.c.b16 %v11764, %v11763
    %v11816 = vpack.c.b16 %v11766, %v11765
    %v11817 = vpack.c.b16 %v11768, %v11767
    %v11818 = vpack.c.b16 %v11770, %v11769
    %v11819 = vpack.c.b16 %v11772, %v11771
    %v11820 = vpack.c.b16 %v11774, %v11773
    %v11821 = vpack.c.b16 %v11776, %v11775
    %v11822 = vpack.c.b16 %v11778, %v11777
    %v11823 = vpack.c.b16 %v11780, %v11779
    %v11824 = vpack.c.b16 %v11782, %v11781
    %v11825 = vpack.c.b16 %v11784, %v11783
    %v11826 = vpack.c.b16 %v11786, %v11785
    %v11827 = vpack.c.b16 %v11788, %v11787
    %v11828 = vpack.c.b16 %v11790, %v11789
    %v11829 = vpack.c.b16 %v11792, %v11791
    %v11830 = vpack.c.b16 %v11794, %v11793
    %v11831 = vpack.c.b16 %v11796, %v11795
    %v11832 = vpack.c.b16 %v11798, %v11797
    %v11833 = vpack.c.b16 %v11800, %v11799
    %v11834 = vpack.c.b16 %v11802, %v11801
    %v11835 = vpack.c.b16 %v11804, %v11803
    %v11836 = vpack.c.b16 %v11806, %v11805
    %v11837 = vpack.c.b16 %v11808, %v11807
    %v11838 = vpack.c.b16 %v11810, %v11809
    %v11868 = vsel %vm2238, %v11565, 0
    %11870 = vmatprep.subr.bf16.mxu0 0
    %11871 = vmatpush1.bf16.msra.mxu0 %v11818
    %11872 = vmatprep.subr.bf16.mxu0 0
    %11873 = vmatpush1.bf16.msra.mxu0 %v11817
    %11874 = vmatprep.subr.bf16.mxu0 0
    %11875 = vmatpush1.bf16.msra.mxu0 %v11816
    %11876 = vmatprep.subr.bf16.mxu0 0
    %11877 = vmatpush1.bf16.msra.mxu0 %v11815
    %11878 = vmatprep.subr.bf16.mxu0 0
    %11879 = vmatpush1.bf16.msra.mxu0 %v11814
    %11880 = vmatprep.subr.bf16.mxu0 0
    %11881 = vmatpush1.bf16.msra.mxu0 %v11813
    %11882 = vmatprep.subr.bf16.mxu0 0
    %11883 = vmatpush1.bf16.msra.mxu0 %v11812
    %11884 = vmatprep.subr.bf16.mxu0 0
    %11885 = vmatpush1.bf16.msra.mxu0 %v11811
    %11886 = vmatprep.subr.bf16.mxu0 0
    %11887 = vmatpush2.bf16.msra.mxu0 %v11826
    %11888 = vmatprep.subr.bf16.mxu0 0
    %11889 = vmatpush2.bf16.msra.mxu0 %v11825
    %11890 = vmatprep.subr.bf16.mxu0 0
    %11891 = vmatpush2.bf16.msra.mxu0 %v11824
    %11892 = vmatprep.subr.bf16.mxu0 0
    %11893 = vmatpush2.bf16.msra.mxu0 %v11823
    %11894 = vmatprep.subr.bf16.mxu0 0
    %11895 = vmatpush2.bf16.msra.mxu0 %v11822
    %11896 = vmatprep.subr.bf16.mxu0 0
    %11897 = vmatpush2.bf16.msra.mxu0 %v11821
    %11898 = vmatprep.subr.bf16.mxu0 0
    %11899 = vmatpush2.bf16.msra.mxu0 %v11820
    %11900 = vmatprep.subr.bf16.mxu0 0
    %11901 = vmatpush2.bf16.msra.mxu0 %v11819
    %11902 = vmatprep.mubr.bf16.mxu0 %v11563
    %11903 = vmatmul.mubr.bf16.gmra.mxu0 %v11562
    %v11904 = vpop.f32.mrf.mxu0
    %v11905 = vadd.f32 0.0, %v11904
    %v11906 = vpop.f32.mrf.mxu0
    %v11907 = vpop.f32.mrf.mxu0
    %v11908 = vadd.f32 0.0, %v11907
    %v11909 = vpop.f32.mrf.mxu0
    %11910 = vdwg.mxu0
    %11911 = vmatprep.subr.bf16.mxu0 0
    %11912 = vmatpush1.bf16.msra.mxu0 %v11834
    %11913 = vmatprep.subr.bf16.mxu0 0
    %11914 = vmatpush1.bf16.msra.mxu0 %v11833
    %11915 = vmatprep.subr.bf16.mxu0 0
    %11916 = vmatpush1.bf16.msra.mxu0 %v11832
    %11917 = vmatprep.subr.bf16.mxu0 0
    %11918 = vmatpush1.bf16.msra.mxu0 %v11831
    %11919 = vmatprep.subr.bf16.mxu0 0
    %11920 = vmatpush1.bf16.msra.mxu0 %v11830
    %11921 = vmatprep.subr.bf16.mxu0 0
    %11922 = vmatpush1.bf16.msra.mxu0 %v11829
    %11923 = vmatprep.subr.bf16.mxu0 0
    %11924 = vmatpush1.bf16.msra.mxu0 %v11828
    %11925 = vmatprep.subr.bf16.mxu0 0
    %11926 = vmatpush1.bf16.msra.mxu0 %v11827
    %11927 = vmatprep.subr.bf16.mxu0 0
    %11928 = vmatpush2.bf16.msra.mxu0 0
    %11929 = vmatprep.subr.bf16.mxu0 0
    %11930 = vmatpush2.bf16.msra.mxu0 0
    %11931 = vmatprep.subr.bf16.mxu0 0
    %11932 = vmatpush2.bf16.msra.mxu0 0
    %11933 = vmatprep.subr.bf16.mxu0 0
    %11934 = vmatpush2.bf16.msra.mxu0 0
    %11935 = vmatprep.subr.bf16.mxu0 0
    %11936 = vmatpush2.bf16.msra.mxu0 %v11838
    %11937 = vmatprep.subr.bf16.mxu0 0
    %11938 = vmatpush2.bf16.msra.mxu0 %v11837
    %11939 = vmatprep.subr.bf16.mxu0 0
    %11940 = vmatpush2.bf16.msra.mxu0 %v11836
    %11941 = vmatprep.subr.bf16.mxu0 0
    %11942 = vmatpush2.bf16.msra.mxu0 %v11835
    %11943 = vmatprep.mubr.bf16.mxu0 %v11868
    %11944 = vmatmul.mubr.bf16.gmra.mxu0 %v11564
    %v11945 = vpop.f32.mrf.mxu0
    %v11946 = vadd.f32 %v11905, %v11945
    %v11947 = vpop.f32.mrf.mxu0
    %v11948 = vpop.f32.mrf.mxu0
    %v11949 = vadd.f32 %v11908, %v11948
    %v11950 = vpop.f32.mrf.mxu0
    %11951 = vdwg.mxu0
    %v12008 = vunpack.c.l.b16 %v11586
    %v12009 = vunpack.c.l.b16 %v11587
    %v12010 = vunpack.c.l.b16 %v11588
    %v12011 = vunpack.c.l.b16 %v11589
    %v12012 = vunpack.c.l.b16 %v11590
    %v12013 = vunpack.c.l.b16 %v11591
    %v12014 = vunpack.c.l.b16 %v11592
    %v12015 = vunpack.c.l.b16 %v11593
    %v12016 = vunpack.c.l.b16 %v11594
    %v12017 = vunpack.c.l.b16 %v11595
    %v12018 = vunpack.c.l.b16 %v11596
    %v12019 = vunpack.c.l.b16 %v11597
    %v12020 = vunpack.c.l.b16 %v11598
    %v12021 = vunpack.c.l.b16 %v11599
    %v12022 = vunpack.c.l.b16 %v11600
    %v12023 = vunpack.c.l.b16 %v11601
    %v12024 = vunpack.c.l.b16 %v11602
    %v12025 = vunpack.c.l.b16 %v11603
    %v12026 = vunpack.c.l.b16 %v11604
    %v12027 = vunpack.c.l.b16 %v11605
    %v12028 = vunpack.c.l.b16 %v11606
    %v12029 = vunpack.c.l.b16 %v11607
    %v12030 = vunpack.c.l.b16 %v11608
    %v12031 = vunpack.c.l.b16 %v11609
    %v12032 = vunpack.c.l.b16 %v11610
    %v12033 = vunpack.c.l.b16 %v11611
    %v12034 = vunpack.c.l.b16 %v11612
    %v12035 = vunpack.c.l.b16 %v11613
    %v12036 = vunpack.c.l.b16 %v11614
    %v12037 = vunpack.c.l.b16 %v11615
    %v12038 = vunpack.c.l.b16 %v11616
    %v12039 = vunpack.c.l.b16 %v11617
    %v12040 = vunpack.c.l.b16 %v11618
    %v12041 = vunpack.c.l.b16 %v11619
    %v12042 = vunpack.c.l.b16 %v11620
    %v12043 = vunpack.c.l.b16 %v11621
    %v12044 = vunpack.c.l.b16 %v11622
    %v12045 = vunpack.c.l.b16 %v11623
    %v12046 = vunpack.c.l.b16 %v11624
    %v12047 = vunpack.c.l.b16 %v11625
    %v12048 = vunpack.c.l.b16 %v11626
    %v12049 = vunpack.c.l.b16 %v11627
    %v12050 = vunpack.c.l.b16 %v11628
    %v12051 = vunpack.c.l.b16 %v11629
    %v12052 = vunpack.c.l.b16 %v11630
    %v12053 = vunpack.c.l.b16 %v11631
    %v12054 = vunpack.c.l.b16 %v11632
    %v12055 = vunpack.c.l.b16 %v11633
    %v12056 = vunpack.c.l.b16 %v11634
    %v12057 = vunpack.c.l.b16 %v11635
    %v12058 = vunpack.c.l.b16 %v11636
    %v12059 = vunpack.c.l.b16 %v11637
    %v12060 = vunpack.c.l.b16 %v11638
    %v12061 = vunpack.c.l.b16 %v11639
    %v12062 = vunpack.c.l.b16 %v11640
    %v12063 = vunpack.c.l.b16 %v11641
    %v12064 = vpack.c.b16 %v12009, %v12008
    %v12065 = vpack.c.b16 %v12011, %v12010
    %v12066 = vpack.c.b16 %v12013, %v12012
    %v12067 = vpack.c.b16 %v12015, %v12014
    %v12068 = vpack.c.b16 %v12017, %v12016
    %v12069 = vpack.c.b16 %v12019, %v12018
    %v12070 = vpack.c.b16 %v12021, %v12020
    %v12071 = vpack.c.b16 %v12023, %v12022
    %v12072 = vpack.c.b16 %v12025, %v12024
    %v12073 = vpack.c.b16 %v12027, %v12026
    %v12074 = vpack.c.b16 %v12029, %v12028
    %v12075 = vpack.c.b16 %v12031, %v12030
    %v12076 = vpack.c.b16 %v12033, %v12032
    %v12077 = vpack.c.b16 %v12035, %v12034
    %v12078 = vpack.c.b16 %v12037, %v12036
    %v12079 = vpack.c.b16 %v12039, %v12038
    %v12080 = vpack.c.b16 %v12041, %v12040
    %v12081 = vpack.c.b16 %v12043, %v12042
    %v12082 = vpack.c.b16 %v12045, %v12044
    %v12083 = vpack.c.b16 %v12047, %v12046
    %v12084 = vpack.c.b16 %v12049, %v12048
    %v12085 = vpack.c.b16 %v12051, %v12050
    %v12086 = vpack.c.b16 %v12053, %v12052
    %v12087 = vpack.c.b16 %v12055, %v12054
    %v12088 = vpack.c.b16 %v12057, %v12056
    %v12089 = vpack.c.b16 %v12059, %v12058
    %v12090 = vpack.c.b16 %v12061, %v12060
    %v12091 = vpack.c.b16 %v12063, %v12062
    %v12121 = vsel %vm2238, %v11561, 0
    %12123 = vmatprep.subr.bf16.mxu0 0
    %12124 = vmatpush1.bf16.msra.mxu0 %v12071
    %12125 = vmatprep.subr.bf16.mxu0 0
    %12126 = vmatpush1.bf16.msra.mxu0 %v12070
    %12127 = vmatprep.subr.bf16.mxu0 0
    %12128 = vmatpush1.bf16.msra.mxu0 %v12069
    %12129 = vmatprep.subr.bf16.mxu0 0
    %12130 = vmatpush1.bf16.msra.mxu0 %v12068
    %12131 = vmatprep.subr.bf16.mxu0 0
    %12132 = vmatpush1.bf16.msra.mxu0 %v12067
    %12133 = vmatprep.subr.bf16.mxu0 0
    %12134 = vmatpush1.bf16.msra.mxu0 %v12066
    %12135 = vmatprep.subr.bf16.mxu0 0
    %12136 = vmatpush1.bf16.msra.mxu0 %v12065
    %12137 = vmatprep.subr.bf16.mxu0 0
    %12138 = vmatpush1.bf16.msra.mxu0 %v12064
    %12139 = vmatprep.subr.bf16.mxu0 0
    %12140 = vmatpush2.bf16.msra.mxu0 %v12079
    %12141 = vmatprep.subr.bf16.mxu0 0
    %12142 = vmatpush2.bf16.msra.mxu0 %v12078
    %12143 = vmatprep.subr.bf16.mxu0 0
    %12144 = vmatpush2.bf16.msra.mxu0 %v12077
    %12145 = vmatprep.subr.bf16.mxu0 0
    %12146 = vmatpush2.bf16.msra.mxu0 %v12076
    %12147 = vmatprep.subr.bf16.mxu0 0
    %12148 = vmatpush2.bf16.msra.mxu0 %v12075
    %12149 = vmatprep.subr.bf16.mxu0 0
    %12150 = vmatpush2.bf16.msra.mxu0 %v12074
    %12151 = vmatprep.subr.bf16.mxu0 0
    %12152 = vmatpush2.bf16.msra.mxu0 %v12073
    %12153 = vmatprep.subr.bf16.mxu0 0
    %12154 = vmatpush2.bf16.msra.mxu0 %v12072
    %12155 = vmatprep.mubr.bf16.mxu0 %v11559
    %12156 = vmatmul.mubr.bf16.gmra.mxu0 %v11558
    %v12157 = vpop.f32.mrf.mxu0
    %v12158 = vadd.f32 %v11946, %v12157
    %v12159 = vpop.f32.mrf.mxu0
    %v12160 = vpop.f32.mrf.mxu0
    %v12161 = vadd.f32 %v11949, %v12160
    %v12162 = vpop.f32.mrf.mxu0
    %12163 = vdwg.mxu0
    %12164 = vmatprep.subr.bf16.mxu0 0
    %12165 = vmatpush1.bf16.msra.mxu0 %v12087
    %12166 = vmatprep.subr.bf16.mxu0 0
    %12167 = vmatpush1.bf16.msra.mxu0 %v12086
    %12168 = vmatprep.subr.bf16.mxu0 0
    %12169 = vmatpush1.bf16.msra.mxu0 %v12085
    %12170 = vmatprep.subr.bf16.mxu0 0
    %12171 = vmatpush1.bf16.msra.mxu0 %v12084
    %12172 = vmatprep.subr.bf16.mxu0 0
    %12173 = vmatpush1.bf16.msra.mxu0 %v12083
    %12174 = vmatprep.subr.bf16.mxu0 0
    %12175 = vmatpush1.bf16.msra.mxu0 %v12082
    %12176 = vmatprep.subr.bf16.mxu0 0
    %12177 = vmatpush1.bf16.msra.mxu0 %v12081
    %12178 = vmatprep.subr.bf16.mxu0 0
    %12179 = vmatpush1.bf16.msra.mxu0 %v12080
    %12180 = vmatprep.subr.bf16.mxu0 0
    %12181 = vmatpush2.bf16.msra.mxu0 0
    %12182 = vmatprep.subr.bf16.mxu0 0
    %12183 = vmatpush2.bf16.msra.mxu0 0
    %12184 = vmatprep.subr.bf16.mxu0 0
    %12185 = vmatpush2.bf16.msra.mxu0 0
    %12186 = vmatprep.subr.bf16.mxu0 0
    %12187 = vmatpush2.bf16.msra.mxu0 0
    %12188 = vmatprep.subr.bf16.mxu0 0
    %12189 = vmatpush2.bf16.msra.mxu0 %v12091
    %12190 = vmatprep.subr.bf16.mxu0 0
    %12191 = vmatpush2.bf16.msra.mxu0 %v12090
    %12192 = vmatprep.subr.bf16.mxu0 0
    %12193 = vmatpush2.bf16.msra.mxu0 %v12089
    %12194 = vmatprep.subr.bf16.mxu0 0
    %12195 = vmatpush2.bf16.msra.mxu0 %v12088
    %12196 = vmatprep.mubr.bf16.mxu0 %v12121
    %12197 = vmatmul.mubr.bf16.gmra.mxu0 %v11560
    %v12198 = vpop.f32.mrf.mxu0
    %v12199 = vadd.f32 %v12158, %v12198
    %v12200 = vpop.f32.mrf.mxu0
    %v12201 = vpop.f32.mrf.mxu0
    %v12202 = vadd.f32 %v12161, %v12201
    %v12203 = vpop.f32.mrf.mxu0
    %12204 = vdwg.mxu0
    %s12205 = scalar_lea.vmem %s7, 448
    %v12206 = vld [vmem:[%s12205] sm:$0xf]
    %v12207 = vld [vmem:[%s12205 + $0x4] sm:$0xf]
    %v12208 = vld [vmem:[%s12205 + $0x8] sm:$0xf]
    %v12209 = vld [vmem:[%s12205 + $0xc] sm:$0xf]
    %v12210 = vld [vmem:[%s12205 + $0x10] sm:$0xf]
    %v12211 = vld [vmem:[%s12205 + $0x14] sm:$0xf]
    %v12212 = vld [vmem:[%s12205 + $0x18] sm:$0xf]
    %v12213 = vld [vmem:[%s12205 + $0x1c] sm:$0xf]
    %v12214 = vld [vmem:[%s12205 + $0x20] sm:$0xf]
    %v12215 = vld [vmem:[%s12205 + $0x24] sm:$0xf]
    %v12216 = vld [vmem:[%s12205 + $0x28] sm:$0xf]
    %v12217 = vld [vmem:[%s12205 + $0x2c] sm:$0xf]
    %v12218 = vld [vmem:[%s12205 + $0x30] sm:$0xf]
    %v12219 = vld [vmem:[%s12205 + $0x34] sm:$0xf]
    %v12220 = vld [vmem:[%s12205 + $0x38] sm:$0xf]
    %v12221 = vld [vmem:[%s12205 + $0x3c] sm:$0xf]
    %v12222 = vld [vmem:[%s12205 + $0x40] sm:$0xf]
    %v12223 = vld [vmem:[%s12205 + $0x44] sm:$0xf]
    %v12224 = vld [vmem:[%s12205 + $0x48] sm:$0xf]
    %v12225 = vld [vmem:[%s12205 + $0x4c] sm:$0xf]
    %v12226 = vld [vmem:[%s12205 + $0x50] sm:$0xf]
    %v12227 = vld [vmem:[%s12205 + $0x54] sm:$0xf]
    %v12228 = vld [vmem:[%s12205 + $0x58] sm:$0xf]
    %v12229 = vld [vmem:[%s12205 + $0x5c] sm:$0xf]
    %v12230 = vld [vmem:[%s12205 + $0x60] sm:$0xf]
    %v12231 = vld [vmem:[%s12205 + $0x64] sm:$0xf]
    %v12232 = vld [vmem:[%s12205 + $0x68] sm:$0xf]
    %v12233 = vld [vmem:[%s12205 + $0x6c] sm:$0xf]
    %v12234 = vld [vmem:[%s12205 + $0x70] sm:$0xf]
    %v12235 = vld [vmem:[%s12205 + $0x74] sm:$0xf]
    %v12236 = vld [vmem:[%s12205 + $0x78] sm:$0xf]
    %v12237 = vld [vmem:[%s12205 + $0x7c] sm:$0xf]
    %v12238 = vld [vmem:[%s12205 + $0x80] sm:$0xf]
    %v12239 = vld [vmem:[%s12205 + $0x84] sm:$0xf]
    %v12240 = vld [vmem:[%s12205 + $0x88] sm:$0xf]
    %v12241 = vld [vmem:[%s12205 + $0x8c] sm:$0xf]
    %v12242 = vld [vmem:[%s12205 + $0x90] sm:$0xf]
    %v12243 = vld [vmem:[%s12205 + $0x94] sm:$0xf]
    %v12244 = vld [vmem:[%s12205 + $0x98] sm:$0xf]
    %v12245 = vld [vmem:[%s12205 + $0x9c] sm:$0xf]
    %v12246 = vld [vmem:[%s12205 + $0xa0] sm:$0xf]
    %v12247 = vld [vmem:[%s12205 + $0xa4] sm:$0xf]
    %v12248 = vld [vmem:[%s12205 + $0xa8] sm:$0xf]
    %v12249 = vld [vmem:[%s12205 + $0xac] sm:$0xf]
    %v12250 = vld [vmem:[%s12205 + $0xb0] sm:$0xf]
    %v12251 = vld [vmem:[%s12205 + $0xb4] sm:$0xf]
    %v12252 = vld [vmem:[%s12205 + $0xb8] sm:$0xf]
    %v12253 = vld [vmem:[%s12205 + $0xbc] sm:$0xf]
    %v12254 = vld [vmem:[%s12205 + $0xc0] sm:$0xf]
    %v12255 = vld [vmem:[%s12205 + $0xc4] sm:$0xf]
    %v12256 = vld [vmem:[%s12205 + $0xc8] sm:$0xf]
    %v12257 = vld [vmem:[%s12205 + $0xcc] sm:$0xf]
    %v12258 = vld [vmem:[%s12205 + $0xd0] sm:$0xf]
    %v12259 = vld [vmem:[%s12205 + $0xd4] sm:$0xf]
    %v12260 = vld [vmem:[%s12205 + $0xd8] sm:$0xf]
    %v12261 = vld [vmem:[%s12205 + $0xdc] sm:$0xf]
    %v12318 = vunpack.c.l.b16 %v12206
    %v12319 = vunpack.c.l.b16 %v12207
    %v12320 = vunpack.c.l.b16 %v12208
    %v12321 = vunpack.c.l.b16 %v12209
    %v12322 = vunpack.c.l.b16 %v12210
    %v12323 = vunpack.c.l.b16 %v12211
    %v12324 = vunpack.c.l.b16 %v12212
    %v12325 = vunpack.c.l.b16 %v12213
    %v12326 = vunpack.c.l.b16 %v12214
    %v12327 = vunpack.c.l.b16 %v12215
    %v12328 = vunpack.c.l.b16 %v12216
    %v12329 = vunpack.c.l.b16 %v12217
    %v12330 = vunpack.c.l.b16 %v12218
    %v12331 = vunpack.c.l.b16 %v12219
    %v12332 = vunpack.c.l.b16 %v12220
    %v12333 = vunpack.c.l.b16 %v12221
    %v12334 = vunpack.c.l.b16 %v12222
    %v12335 = vunpack.c.l.b16 %v12223
    %v12336 = vunpack.c.l.b16 %v12224
    %v12337 = vunpack.c.l.b16 %v12225
    %v12338 = vunpack.c.l.b16 %v12226
    %v12339 = vunpack.c.l.b16 %v12227
    %v12340 = vunpack.c.l.b16 %v12228
    %v12341 = vunpack.c.l.b16 %v12229
    %v12342 = vunpack.c.l.b16 %v12230
    %v12343 = vunpack.c.l.b16 %v12231
    %v12344 = vunpack.c.l.b16 %v12232
    %v12345 = vunpack.c.l.b16 %v12233
    %v12346 = vunpack.c.l.b16 %v12234
    %v12347 = vunpack.c.l.b16 %v12235
    %v12348 = vunpack.c.l.b16 %v12236
    %v12349 = vunpack.c.l.b16 %v12237
    %v12350 = vunpack.c.l.b16 %v12238
    %v12351 = vunpack.c.l.b16 %v12239
    %v12352 = vunpack.c.l.b16 %v12240
    %v12353 = vunpack.c.l.b16 %v12241
    %v12354 = vunpack.c.l.b16 %v12242
    %v12355 = vunpack.c.l.b16 %v12243
    %v12356 = vunpack.c.l.b16 %v12244
    %v12357 = vunpack.c.l.b16 %v12245
    %v12358 = vunpack.c.l.b16 %v12246
    %v12359 = vunpack.c.l.b16 %v12247
    %v12360 = vunpack.c.l.b16 %v12248
    %v12361 = vunpack.c.l.b16 %v12249
    %v12362 = vunpack.c.l.b16 %v12250
    %v12363 = vunpack.c.l.b16 %v12251
    %v12364 = vunpack.c.l.b16 %v12252
    %v12365 = vunpack.c.l.b16 %v12253
    %v12366 = vunpack.c.l.b16 %v12254
    %v12367 = vunpack.c.l.b16 %v12255
    %v12368 = vunpack.c.l.b16 %v12256
    %v12369 = vunpack.c.l.b16 %v12257
    %v12370 = vunpack.c.l.b16 %v12258
    %v12371 = vunpack.c.l.b16 %v12259
    %v12372 = vunpack.c.l.b16 %v12260
    %v12373 = vunpack.c.l.b16 %v12261
    %v12374 = vpack.c.b16 %v12319, %v12318
    %v12375 = vpack.c.b16 %v12321, %v12320
    %v12376 = vpack.c.b16 %v12323, %v12322
    %v12377 = vpack.c.b16 %v12325, %v12324
    %v12378 = vpack.c.b16 %v12327, %v12326
    %v12379 = vpack.c.b16 %v12329, %v12328
    %v12380 = vpack.c.b16 %v12331, %v12330
    %v12381 = vpack.c.b16 %v12333, %v12332
    %v12382 = vpack.c.b16 %v12335, %v12334
    %v12383 = vpack.c.b16 %v12337, %v12336
    %v12384 = vpack.c.b16 %v12339, %v12338
    %v12385 = vpack.c.b16 %v12341, %v12340
    %v12386 = vpack.c.b16 %v12343, %v12342
    %v12387 = vpack.c.b16 %v12345, %v12344
    %v12388 = vpack.c.b16 %v12347, %v12346
    %v12389 = vpack.c.b16 %v12349, %v12348
    %v12390 = vpack.c.b16 %v12351, %v12350
    %v12391 = vpack.c.b16 %v12353, %v12352
    %v12392 = vpack.c.b16 %v12355, %v12354
    %v12393 = vpack.c.b16 %v12357, %v12356
    %v12394 = vpack.c.b16 %v12359, %v12358
    %v12395 = vpack.c.b16 %v12361, %v12360
    %v12396 = vpack.c.b16 %v12363, %v12362
    %v12397 = vpack.c.b16 %v12365, %v12364
    %v12398 = vpack.c.b16 %v12367, %v12366
    %v12399 = vpack.c.b16 %v12369, %v12368
    %v12400 = vpack.c.b16 %v12371, %v12370
    %v12401 = vpack.c.b16 %v12373, %v12372
    %v12431 = vsel %vm2238, %v11569, 0
    %12433 = vmatprep.subr.bf16.mxu0 0
    %12434 = vmatpush1.bf16.msra.mxu0 %v12381
    %12435 = vmatprep.subr.bf16.mxu0 0
    %12436 = vmatpush1.bf16.msra.mxu0 %v12380
    %12437 = vmatprep.subr.bf16.mxu0 0
    %12438 = vmatpush1.bf16.msra.mxu0 %v12379
    %12439 = vmatprep.subr.bf16.mxu0 0
    %12440 = vmatpush1.bf16.msra.mxu0 %v12378
    %12441 = vmatprep.subr.bf16.mxu0 0
    %12442 = vmatpush1.bf16.msra.mxu0 %v12377
    %12443 = vmatprep.subr.bf16.mxu0 0
    %12444 = vmatpush1.bf16.msra.mxu0 %v12376
    %12445 = vmatprep.subr.bf16.mxu0 0
    %12446 = vmatpush1.bf16.msra.mxu0 %v12375
    %12447 = vmatprep.subr.bf16.mxu0 0
    %12448 = vmatpush1.bf16.msra.mxu0 %v12374
    %12449 = vmatprep.subr.bf16.mxu0 0
    %12450 = vmatpush2.bf16.msra.mxu0 %v12389
    %12451 = vmatprep.subr.bf16.mxu0 0
    %12452 = vmatpush2.bf16.msra.mxu0 %v12388
    %12453 = vmatprep.subr.bf16.mxu0 0
    %12454 = vmatpush2.bf16.msra.mxu0 %v12387
    %12455 = vmatprep.subr.bf16.mxu0 0
    %12456 = vmatpush2.bf16.msra.mxu0 %v12386
    %12457 = vmatprep.subr.bf16.mxu0 0
    %12458 = vmatpush2.bf16.msra.mxu0 %v12385
    %12459 = vmatprep.subr.bf16.mxu0 0
    %12460 = vmatpush2.bf16.msra.mxu0 %v12384
    %12461 = vmatprep.subr.bf16.mxu0 0
    %12462 = vmatpush2.bf16.msra.mxu0 %v12383
    %12463 = vmatprep.subr.bf16.mxu0 0
    %12464 = vmatpush2.bf16.msra.mxu0 %v12382
    %12465 = vmatprep.mubr.bf16.mxu0 %v11567
    %12466 = vmatmul.mubr.bf16.gmra.mxu0 %v11566
    %v12467 = vpop.f32.mrf.mxu0
    %v12468 = vadd.f32 0.0, %v12467
    %v12469 = vpop.f32.mrf.mxu0
    %v12470 = vpop.f32.mrf.mxu0
    %v12471 = vadd.f32 0.0, %v12470
    %v12472 = vpop.f32.mrf.mxu0
    %12473 = vdwg.mxu0
    %12474 = vmatprep.subr.bf16.mxu0 0
    %12475 = vmatpush1.bf16.msra.mxu0 %v12397
    %12476 = vmatprep.subr.bf16.mxu0 0
    %12477 = vmatpush1.bf16.msra.mxu0 %v12396
    %12478 = vmatprep.subr.bf16.mxu0 0
    %12479 = vmatpush1.bf16.msra.mxu0 %v12395
    %12480 = vmatprep.subr.bf16.mxu0 0
    %12481 = vmatpush1.bf16.msra.mxu0 %v12394
    %12482 = vmatprep.subr.bf16.mxu0 0
    %12483 = vmatpush1.bf16.msra.mxu0 %v12393
    %12484 = vmatprep.subr.bf16.mxu0 0
    %12485 = vmatpush1.bf16.msra.mxu0 %v12392
    %12486 = vmatprep.subr.bf16.mxu0 0
    %12487 = vmatpush1.bf16.msra.mxu0 %v12391
    %12488 = vmatprep.subr.bf16.mxu0 0
    %12489 = vmatpush1.bf16.msra.mxu0 %v12390
    %12490 = vmatprep.subr.bf16.mxu0 0
    %12491 = vmatpush2.bf16.msra.mxu0 0
    %12492 = vmatprep.subr.bf16.mxu0 0
    %12493 = vmatpush2.bf16.msra.mxu0 0
    %12494 = vmatprep.subr.bf16.mxu0 0
    %12495 = vmatpush2.bf16.msra.mxu0 0
    %12496 = vmatprep.subr.bf16.mxu0 0
    %12497 = vmatpush2.bf16.msra.mxu0 0
    %12498 = vmatprep.subr.bf16.mxu0 0
    %12499 = vmatpush2.bf16.msra.mxu0 %v12401
    %12500 = vmatprep.subr.bf16.mxu0 0
    %12501 = vmatpush2.bf16.msra.mxu0 %v12400
    %12502 = vmatprep.subr.bf16.mxu0 0
    %12503 = vmatpush2.bf16.msra.mxu0 %v12399
    %12504 = vmatprep.subr.bf16.mxu0 0
    %12505 = vmatpush2.bf16.msra.mxu0 %v12398
    %12506 = vmatprep.mubr.bf16.mxu0 %v12431
    %12507 = vmatmul.mubr.bf16.gmra.mxu0 %v11568
    %v12508 = vpop.f32.mrf.mxu0
    %v12509 = vadd.f32 %v12468, %v12508
    %v12510 = vpop.f32.mrf.mxu0
    %v12511 = vpop.f32.mrf.mxu0
    %v12512 = vadd.f32 %v12471, %v12511
    %v12513 = vpop.f32.mrf.mxu0
    %12514 = vdwg.mxu0
    %v12515 = vadd.f32 %v12199, %v12509
    %v12516 = vadd.f32 %v12202, %v12512
    %s12517 = scalar_lea.vmem %s7, 672
    %v12518 = vld [vmem:[%s12517] sm:$0xf]
    %v12519 = vld [vmem:[%s12517 + $0x4] sm:$0xf]
    %v12520 = vld [vmem:[%s12517 + $0x8] sm:$0xf]
    %v12521 = vld [vmem:[%s12517 + $0xc] sm:$0xf]
    %v12522 = vld [vmem:[%s12517 + $0x10] sm:$0xf]
    %v12523 = vld [vmem:[%s12517 + $0x14] sm:$0xf]
    %v12524 = vld [vmem:[%s12517 + $0x18] sm:$0xf]
    %v12525 = vld [vmem:[%s12517 + $0x1c] sm:$0xf]
    %v12526 = vld [vmem:[%s12517 + $0x20] sm:$0xf]
    %v12527 = vld [vmem:[%s12517 + $0x24] sm:$0xf]
    %v12528 = vld [vmem:[%s12517 + $0x28] sm:$0xf]
    %v12529 = vld [vmem:[%s12517 + $0x2c] sm:$0xf]
    %v12530 = vld [vmem:[%s12517 + $0x30] sm:$0xf]
    %v12531 = vld [vmem:[%s12517 + $0x34] sm:$0xf]
    %v12532 = vld [vmem:[%s12517 + $0x38] sm:$0xf]
    %v12533 = vld [vmem:[%s12517 + $0x3c] sm:$0xf]
    %v12534 = vld [vmem:[%s12517 + $0x40] sm:$0xf]
    %v12535 = vld [vmem:[%s12517 + $0x44] sm:$0xf]
    %v12536 = vld [vmem:[%s12517 + $0x48] sm:$0xf]
    %v12537 = vld [vmem:[%s12517 + $0x4c] sm:$0xf]
    %v12538 = vld [vmem:[%s12517 + $0x50] sm:$0xf]
    %v12539 = vld [vmem:[%s12517 + $0x54] sm:$0xf]
    %v12540 = vld [vmem:[%s12517 + $0x58] sm:$0xf]
    %v12541 = vld [vmem:[%s12517 + $0x5c] sm:$0xf]
    %v12542 = vld [vmem:[%s12517 + $0x60] sm:$0xf]
    %v12543 = vld [vmem:[%s12517 + $0x64] sm:$0xf]
    %v12544 = vld [vmem:[%s12517 + $0x68] sm:$0xf]
    %v12545 = vld [vmem:[%s12517 + $0x6c] sm:$0xf]
    %v12546 = vld [vmem:[%s12517 + $0x70] sm:$0xf]
    %v12547 = vld [vmem:[%s12517 + $0x74] sm:$0xf]
    %v12548 = vld [vmem:[%s12517 + $0x78] sm:$0xf]
    %v12549 = vld [vmem:[%s12517 + $0x7c] sm:$0xf]
    %v12550 = vld [vmem:[%s12517 + $0x80] sm:$0xf]
    %v12551 = vld [vmem:[%s12517 + $0x84] sm:$0xf]
    %v12552 = vld [vmem:[%s12517 + $0x88] sm:$0xf]
    %v12553 = vld [vmem:[%s12517 + $0x8c] sm:$0xf]
    %v12554 = vld [vmem:[%s12517 + $0x90] sm:$0xf]
    %v12555 = vld [vmem:[%s12517 + $0x94] sm:$0xf]
    %v12556 = vld [vmem:[%s12517 + $0x98] sm:$0xf]
    %v12557 = vld [vmem:[%s12517 + $0x9c] sm:$0xf]
    %v12558 = vld [vmem:[%s12517 + $0xa0] sm:$0xf]
    %v12559 = vld [vmem:[%s12517 + $0xa4] sm:$0xf]
    %v12560 = vld [vmem:[%s12517 + $0xa8] sm:$0xf]
    %v12561 = vld [vmem:[%s12517 + $0xac] sm:$0xf]
    %v12562 = vld [vmem:[%s12517 + $0xb0] sm:$0xf]
    %v12563 = vld [vmem:[%s12517 + $0xb4] sm:$0xf]
    %v12564 = vld [vmem:[%s12517 + $0xb8] sm:$0xf]
    %v12565 = vld [vmem:[%s12517 + $0xbc] sm:$0xf]
    %v12566 = vld [vmem:[%s12517 + $0xc0] sm:$0xf]
    %v12567 = vld [vmem:[%s12517 + $0xc4] sm:$0xf]
    %v12568 = vld [vmem:[%s12517 + $0xc8] sm:$0xf]
    %v12569 = vld [vmem:[%s12517 + $0xcc] sm:$0xf]
    %v12570 = vld [vmem:[%s12517 + $0xd0] sm:$0xf]
    %v12571 = vld [vmem:[%s12517 + $0xd4] sm:$0xf]
    %v12572 = vld [vmem:[%s12517 + $0xd8] sm:$0xf]
    %v12573 = vld [vmem:[%s12517 + $0xdc] sm:$0xf]
    %v12630 = vunpack.c.l.b16 %v12518
    %v12631 = vunpack.c.l.b16 %v12519
    %v12632 = vunpack.c.l.b16 %v12520
    %v12633 = vunpack.c.l.b16 %v12521
    %v12634 = vunpack.c.l.b16 %v12522
    %v12635 = vunpack.c.l.b16 %v12523
    %v12636 = vunpack.c.l.b16 %v12524
    %v12637 = vunpack.c.l.b16 %v12525
    %v12638 = vunpack.c.l.b16 %v12526
    %v12639 = vunpack.c.l.b16 %v12527
    %v12640 = vunpack.c.l.b16 %v12528
    %v12641 = vunpack.c.l.b16 %v12529
    %v12642 = vunpack.c.l.b16 %v12530
    %v12643 = vunpack.c.l.b16 %v12531
    %v12644 = vunpack.c.l.b16 %v12532
    %v12645 = vunpack.c.l.b16 %v12533
    %v12646 = vunpack.c.l.b16 %v12534
    %v12647 = vunpack.c.l.b16 %v12535
    %v12648 = vunpack.c.l.b16 %v12536
    %v12649 = vunpack.c.l.b16 %v12537
    %v12650 = vunpack.c.l.b16 %v12538
    %v12651 = vunpack.c.l.b16 %v12539
    %v12652 = vunpack.c.l.b16 %v12540
    %v12653 = vunpack.c.l.b16 %v12541
    %v12654 = vunpack.c.l.b16 %v12542
    %v12655 = vunpack.c.l.b16 %v12543
    %v12656 = vunpack.c.l.b16 %v12544
    %v12657 = vunpack.c.l.b16 %v12545
    %v12658 = vunpack.c.l.b16 %v12546
    %v12659 = vunpack.c.l.b16 %v12547
    %v12660 = vunpack.c.l.b16 %v12548
    %v12661 = vunpack.c.l.b16 %v12549
    %v12662 = vunpack.c.l.b16 %v12550
    %v12663 = vunpack.c.l.b16 %v12551
    %v12664 = vunpack.c.l.b16 %v12552
    %v12665 = vunpack.c.l.b16 %v12553
    %v12666 = vunpack.c.l.b16 %v12554
    %v12667 = vunpack.c.l.b16 %v12555
    %v12668 = vunpack.c.l.b16 %v12556
    %v12669 = vunpack.c.l.b16 %v12557
    %v12670 = vunpack.c.l.b16 %v12558
    %v12671 = vunpack.c.l.b16 %v12559
    %v12672 = vunpack.c.l.b16 %v12560
    %v12673 = vunpack.c.l.b16 %v12561
    %v12674 = vunpack.c.l.b16 %v12562
    %v12675 = vunpack.c.l.b16 %v12563
    %v12676 = vunpack.c.l.b16 %v12564
    %v12677 = vunpack.c.l.b16 %v12565
    %v12678 = vunpack.c.l.b16 %v12566
    %v12679 = vunpack.c.l.b16 %v12567
    %v12680 = vunpack.c.l.b16 %v12568
    %v12681 = vunpack.c.l.b16 %v12569
    %v12682 = vunpack.c.l.b16 %v12570
    %v12683 = vunpack.c.l.b16 %v12571
    %v12684 = vunpack.c.l.b16 %v12572
    %v12685 = vunpack.c.l.b16 %v12573
    %v12686 = vpack.c.b16 %v12631, %v12630
    %v12687 = vpack.c.b16 %v12633, %v12632
    %v12688 = vpack.c.b16 %v12635, %v12634
    %v12689 = vpack.c.b16 %v12637, %v12636
    %v12690 = vpack.c.b16 %v12639, %v12638
    %v12691 = vpack.c.b16 %v12641, %v12640
    %v12692 = vpack.c.b16 %v12643, %v12642
    %v12693 = vpack.c.b16 %v12645, %v12644
    %v12694 = vpack.c.b16 %v12647, %v12646
    %v12695 = vpack.c.b16 %v12649, %v12648
    %v12696 = vpack.c.b16 %v12651, %v12650
    %v12697 = vpack.c.b16 %v12653, %v12652
    %v12698 = vpack.c.b16 %v12655, %v12654
    %v12699 = vpack.c.b16 %v12657, %v12656
    %v12700 = vpack.c.b16 %v12659, %v12658
    %v12701 = vpack.c.b16 %v12661, %v12660
    %v12702 = vpack.c.b16 %v12663, %v12662
    %v12703 = vpack.c.b16 %v12665, %v12664
    %v12704 = vpack.c.b16 %v12667, %v12666
    %v12705 = vpack.c.b16 %v12669, %v12668
    %v12706 = vpack.c.b16 %v12671, %v12670
    %v12707 = vpack.c.b16 %v12673, %v12672
    %v12708 = vpack.c.b16 %v12675, %v12674
    %v12709 = vpack.c.b16 %v12677, %v12676
    %v12710 = vpack.c.b16 %v12679, %v12678
    %v12711 = vpack.c.b16 %v12681, %v12680
    %v12712 = vpack.c.b16 %v12683, %v12682
    %v12713 = vpack.c.b16 %v12685, %v12684
    %v12743 = vsel %vm2238, %v11573, 0
    %12745 = vmatprep.subr.bf16.mxu0 0
    %12746 = vmatpush1.bf16.msra.mxu0 %v12693
    %12747 = vmatprep.subr.bf16.mxu0 0
    %12748 = vmatpush1.bf16.msra.mxu0 %v12692
    %12749 = vmatprep.subr.bf16.mxu0 0
    %12750 = vmatpush1.bf16.msra.mxu0 %v12691
    %12751 = vmatprep.subr.bf16.mxu0 0
    %12752 = vmatpush1.bf16.msra.mxu0 %v12690
    %12753 = vmatprep.subr.bf16.mxu0 0
    %12754 = vmatpush1.bf16.msra.mxu0 %v12689
    %12755 = vmatprep.subr.bf16.mxu0 0
    %12756 = vmatpush1.bf16.msra.mxu0 %v12688
    %12757 = vmatprep.subr.bf16.mxu0 0
    %12758 = vmatpush1.bf16.msra.mxu0 %v12687
    %12759 = vmatprep.subr.bf16.mxu0 0
    %12760 = vmatpush1.bf16.msra.mxu0 %v12686
    %12761 = vmatprep.subr.bf16.mxu0 0
    %12762 = vmatpush2.bf16.msra.mxu0 %v12701
    %12763 = vmatprep.subr.bf16.mxu0 0
    %12764 = vmatpush2.bf16.msra.mxu0 %v12700
    %12765 = vmatprep.subr.bf16.mxu0 0
    %12766 = vmatpush2.bf16.msra.mxu0 %v12699
    %12767 = vmatprep.subr.bf16.mxu0 0
    %12768 = vmatpush2.bf16.msra.mxu0 %v12698
    %12769 = vmatprep.subr.bf16.mxu0 0
    %12770 = vmatpush2.bf16.msra.mxu0 %v12697
    %12771 = vmatprep.subr.bf16.mxu0 0
    %12772 = vmatpush2.bf16.msra.mxu0 %v12696
    %12773 = vmatprep.subr.bf16.mxu0 0
    %12774 = vmatpush2.bf16.msra.mxu0 %v12695
    %12775 = vmatprep.subr.bf16.mxu0 0
    %12776 = vmatpush2.bf16.msra.mxu0 %v12694
    %12777 = vmatprep.mubr.bf16.mxu0 %v11571
    %12778 = vmatmul.mubr.bf16.gmra.mxu0 %v11570
    %v12779 = vpop.f32.mrf.mxu0
    %v12780 = vadd.f32 0.0, %v12779
    %v12781 = vpop.f32.mrf.mxu0
    %v12782 = vpop.f32.mrf.mxu0
    %v12783 = vadd.f32 0.0, %v12782
    %v12784 = vpop.f32.mrf.mxu0
    %12785 = vdwg.mxu0
    %12786 = vmatprep.subr.bf16.mxu0 0
    %12787 = vmatpush1.bf16.msra.mxu0 %v12709
    %12788 = vmatprep.subr.bf16.mxu0 0
    %12789 = vmatpush1.bf16.msra.mxu0 %v12708
    %12790 = vmatprep.subr.bf16.mxu0 0
    %12791 = vmatpush1.bf16.msra.mxu0 %v12707
    %12792 = vmatprep.subr.bf16.mxu0 0
    %12793 = vmatpush1.bf16.msra.mxu0 %v12706
    %12794 = vmatprep.subr.bf16.mxu0 0
    %12795 = vmatpush1.bf16.msra.mxu0 %v12705
    %12796 = vmatprep.subr.bf16.mxu0 0
    %12797 = vmatpush1.bf16.msra.mxu0 %v12704
    %12798 = vmatprep.subr.bf16.mxu0 0
    %12799 = vmatpush1.bf16.msra.mxu0 %v12703
    %12800 = vmatprep.subr.bf16.mxu0 0
    %12801 = vmatpush1.bf16.msra.mxu0 %v12702
    %12802 = vmatprep.subr.bf16.mxu0 0
    %12803 = vmatpush2.bf16.msra.mxu0 0
    %12804 = vmatprep.subr.bf16.mxu0 0
    %12805 = vmatpush2.bf16.msra.mxu0 0
    %12806 = vmatprep.subr.bf16.mxu0 0
    %12807 = vmatpush2.bf16.msra.mxu0 0
    %12808 = vmatprep.subr.bf16.mxu0 0
    %12809 = vmatpush2.bf16.msra.mxu0 0
    %12810 = vmatprep.subr.bf16.mxu0 0
    %12811 = vmatpush2.bf16.msra.mxu0 %v12713
    %12812 = vmatprep.subr.bf16.mxu0 0
    %12813 = vmatpush2.bf16.msra.mxu0 %v12712
    %12814 = vmatprep.subr.bf16.mxu0 0
    %12815 = vmatpush2.bf16.msra.mxu0 %v12711
    %12816 = vmatprep.subr.bf16.mxu0 0
    %12817 = vmatpush2.bf16.msra.mxu0 %v12710
    %12818 = vmatprep.mubr.bf16.mxu0 %v12743
    %12819 = vmatmul.mubr.bf16.gmra.mxu0 %v11572
    %v12820 = vpop.f32.mrf.mxu0
    %v12821 = vadd.f32 %v12780, %v12820
    %v12822 = vpop.f32.mrf.mxu0
    %v12823 = vpop.f32.mrf.mxu0
    %v12824 = vadd.f32 %v12783, %v12823
    %v12825 = vpop.f32.mrf.mxu0
    %12826 = vdwg.mxu0
    %v12827 = vadd.f32 %v12515, %v12821
    %v12828 = vadd.f32 %v12516, %v12824
    %s12829 = scalar_lea.vmem %s7, 896
    %v12830 = vld [vmem:[%s12829] sm:$0xf]
    %v12831 = vld [vmem:[%s12829 + $0x4] sm:$0xf]
    %v12832 = vld [vmem:[%s12829 + $0x8] sm:$0xf]
    %v12833 = vld [vmem:[%s12829 + $0xc] sm:$0xf]
    %v12834 = vld [vmem:[%s12829 + $0x10] sm:$0xf]
    %v12835 = vld [vmem:[%s12829 + $0x14] sm:$0xf]
    %v12836 = vld [vmem:[%s12829 + $0x18] sm:$0xf]
    %v12837 = vld [vmem:[%s12829 + $0x1c] sm:$0xf]
    %v12838 = vld [vmem:[%s12829 + $0x20] sm:$0xf]
    %v12839 = vld [vmem:[%s12829 + $0x24] sm:$0xf]
    %v12840 = vld [vmem:[%s12829 + $0x28] sm:$0xf]
    %v12841 = vld [vmem:[%s12829 + $0x2c] sm:$0xf]
    %v12842 = vld [vmem:[%s12829 + $0x30] sm:$0xf]
    %v12843 = vld [vmem:[%s12829 + $0x34] sm:$0xf]
    %v12844 = vld [vmem:[%s12829 + $0x38] sm:$0xf]
    %v12845 = vld [vmem:[%s12829 + $0x3c] sm:$0xf]
    %v12846 = vld [vmem:[%s12829 + $0x40] sm:$0xf]
    %v12847 = vld [vmem:[%s12829 + $0x44] sm:$0xf]
    %v12848 = vld [vmem:[%s12829 + $0x48] sm:$0xf]
    %v12849 = vld [vmem:[%s12829 + $0x4c] sm:$0xf]
    %v12850 = vld [vmem:[%s12829 + $0x50] sm:$0xf]
    %v12851 = vld [vmem:[%s12829 + $0x54] sm:$0xf]
    %v12852 = vld [vmem:[%s12829 + $0x58] sm:$0xf]
    %v12853 = vld [vmem:[%s12829 + $0x5c] sm:$0xf]
    %v12854 = vld [vmem:[%s12829 + $0x60] sm:$0xf]
    %v12855 = vld [vmem:[%s12829 + $0x64] sm:$0xf]
    %v12856 = vld [vmem:[%s12829 + $0x68] sm:$0xf]
    %v12857 = vld [vmem:[%s12829 + $0x6c] sm:$0xf]
    %v12858 = vld [vmem:[%s12829 + $0x70] sm:$0xf]
    %v12859 = vld [vmem:[%s12829 + $0x74] sm:$0xf]
    %v12860 = vld [vmem:[%s12829 + $0x78] sm:$0xf]
    %v12861 = vld [vmem:[%s12829 + $0x7c] sm:$0xf]
    %v12862 = vld [vmem:[%s12829 + $0x80] sm:$0xf]
    %v12863 = vld [vmem:[%s12829 + $0x84] sm:$0xf]
    %v12864 = vld [vmem:[%s12829 + $0x88] sm:$0xf]
    %v12865 = vld [vmem:[%s12829 + $0x8c] sm:$0xf]
    %v12866 = vld [vmem:[%s12829 + $0x90] sm:$0xf]
    %v12867 = vld [vmem:[%s12829 + $0x94] sm:$0xf]
    %v12868 = vld [vmem:[%s12829 + $0x98] sm:$0xf]
    %v12869 = vld [vmem:[%s12829 + $0x9c] sm:$0xf]
    %v12870 = vld [vmem:[%s12829 + $0xa0] sm:$0xf]
    %v12871 = vld [vmem:[%s12829 + $0xa4] sm:$0xf]
    %v12872 = vld [vmem:[%s12829 + $0xa8] sm:$0xf]
    %v12873 = vld [vmem:[%s12829 + $0xac] sm:$0xf]
    %v12874 = vld [vmem:[%s12829 + $0xb0] sm:$0xf]
    %v12875 = vld [vmem:[%s12829 + $0xb4] sm:$0xf]
    %v12876 = vld [vmem:[%s12829 + $0xb8] sm:$0xf]
    %v12877 = vld [vmem:[%s12829 + $0xbc] sm:$0xf]
    %v12878 = vld [vmem:[%s12829 + $0xc0] sm:$0xf]
    %v12879 = vld [vmem:[%s12829 + $0xc4] sm:$0xf]
    %v12880 = vld [vmem:[%s12829 + $0xc8] sm:$0xf]
    %v12881 = vld [vmem:[%s12829 + $0xcc] sm:$0xf]
    %v12882 = vld [vmem:[%s12829 + $0xd0] sm:$0xf]
    %v12883 = vld [vmem:[%s12829 + $0xd4] sm:$0xf]
    %v12884 = vld [vmem:[%s12829 + $0xd8] sm:$0xf]
    %v12885 = vld [vmem:[%s12829 + $0xdc] sm:$0xf]
    %v12942 = vunpack.c.l.b16 %v12830
    %v12943 = vunpack.c.l.b16 %v12831
    %v12944 = vunpack.c.l.b16 %v12832
    %v12945 = vunpack.c.l.b16 %v12833
    %v12946 = vunpack.c.l.b16 %v12834
    %v12947 = vunpack.c.l.b16 %v12835
    %v12948 = vunpack.c.l.b16 %v12836
    %v12949 = vunpack.c.l.b16 %v12837
    %v12950 = vunpack.c.l.b16 %v12838
    %v12951 = vunpack.c.l.b16 %v12839
    %v12952 = vunpack.c.l.b16 %v12840
    %v12953 = vunpack.c.l.b16 %v12841
    %v12954 = vunpack.c.l.b16 %v12842
    %v12955 = vunpack.c.l.b16 %v12843
    %v12956 = vunpack.c.l.b16 %v12844
    %v12957 = vunpack.c.l.b16 %v12845
    %v12958 = vunpack.c.l.b16 %v12846
    %v12959 = vunpack.c.l.b16 %v12847
    %v12960 = vunpack.c.l.b16 %v12848
    %v12961 = vunpack.c.l.b16 %v12849
    %v12962 = vunpack.c.l.b16 %v12850
    %v12963 = vunpack.c.l.b16 %v12851
    %v12964 = vunpack.c.l.b16 %v12852
    %v12965 = vunpack.c.l.b16 %v12853
    %v12966 = vunpack.c.l.b16 %v12854
    %v12967 = vunpack.c.l.b16 %v12855
    %v12968 = vunpack.c.l.b16 %v12856
    %v12969 = vunpack.c.l.b16 %v12857
    %v12970 = vunpack.c.l.b16 %v12858
    %v12971 = vunpack.c.l.b16 %v12859
    %v12972 = vunpack.c.l.b16 %v12860
    %v12973 = vunpack.c.l.b16 %v12861
    %v12974 = vunpack.c.l.b16 %v12862
    %v12975 = vunpack.c.l.b16 %v12863
    %v12976 = vunpack.c.l.b16 %v12864
    %v12977 = vunpack.c.l.b16 %v12865
    %v12978 = vunpack.c.l.b16 %v12866
    %v12979 = vunpack.c.l.b16 %v12867
    %v12980 = vunpack.c.l.b16 %v12868
    %v12981 = vunpack.c.l.b16 %v12869
    %v12982 = vunpack.c.l.b16 %v12870
    %v12983 = vunpack.c.l.b16 %v12871
    %v12984 = vunpack.c.l.b16 %v12872
    %v12985 = vunpack.c.l.b16 %v12873
    %v12986 = vunpack.c.l.b16 %v12874
    %v12987 = vunpack.c.l.b16 %v12875
    %v12988 = vunpack.c.l.b16 %v12876
    %v12989 = vunpack.c.l.b16 %v12877
    %v12990 = vunpack.c.l.b16 %v12878
    %v12991 = vunpack.c.l.b16 %v12879
    %v12992 = vunpack.c.l.b16 %v12880
    %v12993 = vunpack.c.l.b16 %v12881
    %v12994 = vunpack.c.l.b16 %v12882
    %v12995 = vunpack.c.l.b16 %v12883
    %v12996 = vunpack.c.l.b16 %v12884
    %v12997 = vunpack.c.l.b16 %v12885
    %v12998 = vpack.c.b16 %v12943, %v12942
    %v12999 = vpack.c.b16 %v12945, %v12944
    %v13000 = vpack.c.b16 %v12947, %v12946
    %v13001 = vpack.c.b16 %v12949, %v12948
    %v13002 = vpack.c.b16 %v12951, %v12950
    %v13003 = vpack.c.b16 %v12953, %v12952
    %v13004 = vpack.c.b16 %v12955, %v12954
    %v13005 = vpack.c.b16 %v12957, %v12956
    %v13006 = vpack.c.b16 %v12959, %v12958
    %v13007 = vpack.c.b16 %v12961, %v12960
    %v13008 = vpack.c.b16 %v12963, %v12962
    %v13009 = vpack.c.b16 %v12965, %v12964
    %v13010 = vpack.c.b16 %v12967, %v12966
    %v13011 = vpack.c.b16 %v12969, %v12968
    %v13012 = vpack.c.b16 %v12971, %v12970
    %v13013 = vpack.c.b16 %v12973, %v12972
    %v13014 = vpack.c.b16 %v12975, %v12974
    %v13015 = vpack.c.b16 %v12977, %v12976
    %v13016 = vpack.c.b16 %v12979, %v12978
    %v13017 = vpack.c.b16 %v12981, %v12980
    %v13018 = vpack.c.b16 %v12983, %v12982
    %v13019 = vpack.c.b16 %v12985, %v12984
    %v13020 = vpack.c.b16 %v12987, %v12986
    %v13021 = vpack.c.b16 %v12989, %v12988
    %v13022 = vpack.c.b16 %v12991, %v12990
    %v13023 = vpack.c.b16 %v12993, %v12992
    %v13024 = vpack.c.b16 %v12995, %v12994
    %v13025 = vpack.c.b16 %v12997, %v12996
    %v13055 = vsel %vm2238, %v11577, 0
    %13057 = vmatprep.subr.bf16.mxu0 0
    %13058 = vmatpush1.bf16.msra.mxu0 %v13005
    %13059 = vmatprep.subr.bf16.mxu0 0
    %13060 = vmatpush1.bf16.msra.mxu0 %v13004
    %13061 = vmatprep.subr.bf16.mxu0 0
    %13062 = vmatpush1.bf16.msra.mxu0 %v13003
    %13063 = vmatprep.subr.bf16.mxu0 0
    %13064 = vmatpush1.bf16.msra.mxu0 %v13002
    %13065 = vmatprep.subr.bf16.mxu0 0
    %13066 = vmatpush1.bf16.msra.mxu0 %v13001
    %13067 = vmatprep.subr.bf16.mxu0 0
    %13068 = vmatpush1.bf16.msra.mxu0 %v13000
    %13069 = vmatprep.subr.bf16.mxu0 0
    %13070 = vmatpush1.bf16.msra.mxu0 %v12999
    %13071 = vmatprep.subr.bf16.mxu0 0
    %13072 = vmatpush1.bf16.msra.mxu0 %v12998
    %13073 = vmatprep.subr.bf16.mxu0 0
    %13074 = vmatpush2.bf16.msra.mxu0 %v13013
    %13075 = vmatprep.subr.bf16.mxu0 0
    %13076 = vmatpush2.bf16.msra.mxu0 %v13012
    %13077 = vmatprep.subr.bf16.mxu0 0
    %13078 = vmatpush2.bf16.msra.mxu0 %v13011
    %13079 = vmatprep.subr.bf16.mxu0 0
    %13080 = vmatpush2.bf16.msra.mxu0 %v13010
    %13081 = vmatprep.subr.bf16.mxu0 0
    %13082 = vmatpush2.bf16.msra.mxu0 %v13009
    %13083 = vmatprep.subr.bf16.mxu0 0
    %13084 = vmatpush2.bf16.msra.mxu0 %v13008
    %13085 = vmatprep.subr.bf16.mxu0 0
    %13086 = vmatpush2.bf16.msra.mxu0 %v13007
    %13087 = vmatprep.subr.bf16.mxu0 0
    %13088 = vmatpush2.bf16.msra.mxu0 %v13006
    %13089 = vmatprep.mubr.bf16.mxu0 %v11575
    %13090 = vmatmul.mubr.bf16.gmra.mxu0 %v11574
    %v13091 = vpop.f32.mrf.mxu0
    %v13092 = vadd.f32 0.0, %v13091
    %v13093 = vpop.f32.mrf.mxu0
    %v13094 = vpop.f32.mrf.mxu0
    %v13095 = vadd.f32 0.0, %v13094
    %v13096 = vpop.f32.mrf.mxu0
    %13097 = vdwg.mxu0
    %13098 = vmatprep.subr.bf16.mxu0 0
    %13099 = vmatpush1.bf16.msra.mxu0 %v13021
    %13100 = vmatprep.subr.bf16.mxu0 0
    %13101 = vmatpush1.bf16.msra.mxu0 %v13020
    %13102 = vmatprep.subr.bf16.mxu0 0
    %13103 = vmatpush1.bf16.msra.mxu0 %v13019
    %13104 = vmatprep.subr.bf16.mxu0 0
    %13105 = vmatpush1.bf16.msra.mxu0 %v13018
    %13106 = vmatprep.subr.bf16.mxu0 0
    %13107 = vmatpush1.bf16.msra.mxu0 %v13017
    %13108 = vmatprep.subr.bf16.mxu0 0
    %13109 = vmatpush1.bf16.msra.mxu0 %v13016
    %13110 = vmatprep.subr.bf16.mxu0 0
    %13111 = vmatpush1.bf16.msra.mxu0 %v13015
    %13112 = vmatprep.subr.bf16.mxu0 0
    %13113 = vmatpush1.bf16.msra.mxu0 %v13014
    %13114 = vmatprep.subr.bf16.mxu0 0
    %13115 = vmatpush2.bf16.msra.mxu0 0
    %13116 = vmatprep.subr.bf16.mxu0 0
    %13117 = vmatpush2.bf16.msra.mxu0 0
    %13118 = vmatprep.subr.bf16.mxu0 0
    %13119 = vmatpush2.bf16.msra.mxu0 0
    %13120 = vmatprep.subr.bf16.mxu0 0
    %13121 = vmatpush2.bf16.msra.mxu0 0
    %13122 = vmatprep.subr.bf16.mxu0 0
    %13123 = vmatpush2.bf16.msra.mxu0 %v13025
    %13124 = vmatprep.subr.bf16.mxu0 0
    %13125 = vmatpush2.bf16.msra.mxu0 %v13024
    %13126 = vmatprep.subr.bf16.mxu0 0
    %13127 = vmatpush2.bf16.msra.mxu0 %v13023
    %13128 = vmatprep.subr.bf16.mxu0 0
    %13129 = vmatpush2.bf16.msra.mxu0 %v13022
    %13130 = vmatprep.mubr.bf16.mxu0 %v13055
    %13131 = vmatmul.mubr.bf16.gmra.mxu0 %v11576
    %v13132 = vpop.f32.mrf.mxu0
    %v13133 = vadd.f32 %v13092, %v13132
    %v13134 = vpop.f32.mrf.mxu0
    %v13135 = vpop.f32.mrf.mxu0
    %v13136 = vadd.f32 %v13095, %v13135
    %v13137 = vpop.f32.mrf.mxu0
    %13138 = vdwg.mxu0
    %v13139 = vadd.f32 %v12827, %v13133
    %v13140 = vadd.f32 %v12828, %v13136
    %s13141 = scalar_lea.vmem %s7, 1120
    %v13142 = vld [vmem:[%s13141] sm:$0xf]
    %v13143 = vld [vmem:[%s13141 + $0x4] sm:$0xf]
    %v13144 = vld [vmem:[%s13141 + $0x8] sm:$0xf]
    %v13145 = vld [vmem:[%s13141 + $0xc] sm:$0xf]
    %v13146 = vld [vmem:[%s13141 + $0x10] sm:$0xf]
    %v13147 = vld [vmem:[%s13141 + $0x14] sm:$0xf]
    %v13148 = vld [vmem:[%s13141 + $0x18] sm:$0xf]
    %v13149 = vld [vmem:[%s13141 + $0x1c] sm:$0xf]
    %v13150 = vld [vmem:[%s13141 + $0x20] sm:$0xf]
    %v13151 = vld [vmem:[%s13141 + $0x24] sm:$0xf]
    %v13152 = vld [vmem:[%s13141 + $0x28] sm:$0xf]
    %v13153 = vld [vmem:[%s13141 + $0x2c] sm:$0xf]
    %v13154 = vld [vmem:[%s13141 + $0x30] sm:$0xf]
    %v13155 = vld [vmem:[%s13141 + $0x34] sm:$0xf]
    %v13156 = vld [vmem:[%s13141 + $0x38] sm:$0xf]
    %v13157 = vld [vmem:[%s13141 + $0x3c] sm:$0xf]
    %v13158 = vld [vmem:[%s13141 + $0x40] sm:$0xf]
    %v13159 = vld [vmem:[%s13141 + $0x44] sm:$0xf]
    %v13160 = vld [vmem:[%s13141 + $0x48] sm:$0xf]
    %v13161 = vld [vmem:[%s13141 + $0x4c] sm:$0xf]
    %v13162 = vld [vmem:[%s13141 + $0x50] sm:$0xf]
    %v13163 = vld [vmem:[%s13141 + $0x54] sm:$0xf]
    %v13164 = vld [vmem:[%s13141 + $0x58] sm:$0xf]
    %v13165 = vld [vmem:[%s13141 + $0x5c] sm:$0xf]
    %v13166 = vld [vmem:[%s13141 + $0x60] sm:$0xf]
    %v13167 = vld [vmem:[%s13141 + $0x64] sm:$0xf]
    %v13168 = vld [vmem:[%s13141 + $0x68] sm:$0xf]
    %v13169 = vld [vmem:[%s13141 + $0x6c] sm:$0xf]
    %v13170 = vld [vmem:[%s13141 + $0x70] sm:$0xf]
    %v13171 = vld [vmem:[%s13141 + $0x74] sm:$0xf]
    %v13172 = vld [vmem:[%s13141 + $0x78] sm:$0xf]
    %v13173 = vld [vmem:[%s13141 + $0x7c] sm:$0xf]
    %v13174 = vld [vmem:[%s13141 + $0x80] sm:$0xf]
    %v13175 = vld [vmem:[%s13141 + $0x84] sm:$0xf]
    %v13176 = vld [vmem:[%s13141 + $0x88] sm:$0xf]
    %v13177 = vld [vmem:[%s13141 + $0x8c] sm:$0xf]
    %v13178 = vld [vmem:[%s13141 + $0x90] sm:$0xf]
    %v13179 = vld [vmem:[%s13141 + $0x94] sm:$0xf]
    %v13180 = vld [vmem:[%s13141 + $0x98] sm:$0xf]
    %v13181 = vld [vmem:[%s13141 + $0x9c] sm:$0xf]
    %v13182 = vld [vmem:[%s13141 + $0xa0] sm:$0xf]
    %v13183 = vld [vmem:[%s13141 + $0xa4] sm:$0xf]
    %v13184 = vld [vmem:[%s13141 + $0xa8] sm:$0xf]
    %v13185 = vld [vmem:[%s13141 + $0xac] sm:$0xf]
    %v13186 = vld [vmem:[%s13141 + $0xb0] sm:$0xf]
    %v13187 = vld [vmem:[%s13141 + $0xb4] sm:$0xf]
    %v13188 = vld [vmem:[%s13141 + $0xb8] sm:$0xf]
    %v13189 = vld [vmem:[%s13141 + $0xbc] sm:$0xf]
    %v13190 = vld [vmem:[%s13141 + $0xc0] sm:$0xf]
    %v13191 = vld [vmem:[%s13141 + $0xc4] sm:$0xf]
    %v13192 = vld [vmem:[%s13141 + $0xc8] sm:$0xf]
    %v13193 = vld [vmem:[%s13141 + $0xcc] sm:$0xf]
    %v13194 = vld [vmem:[%s13141 + $0xd0] sm:$0xf]
    %v13195 = vld [vmem:[%s13141 + $0xd4] sm:$0xf]
    %v13196 = vld [vmem:[%s13141 + $0xd8] sm:$0xf]
    %v13197 = vld [vmem:[%s13141 + $0xdc] sm:$0xf]
    %v13254 = vunpack.c.l.b16 %v13142
    %v13255 = vunpack.c.l.b16 %v13143
    %v13256 = vunpack.c.l.b16 %v13144
    %v13257 = vunpack.c.l.b16 %v13145
    %v13258 = vunpack.c.l.b16 %v13146
    %v13259 = vunpack.c.l.b16 %v13147
    %v13260 = vunpack.c.l.b16 %v13148
    %v13261 = vunpack.c.l.b16 %v13149
    %v13262 = vunpack.c.l.b16 %v13150
    %v13263 = vunpack.c.l.b16 %v13151
    %v13264 = vunpack.c.l.b16 %v13152
    %v13265 = vunpack.c.l.b16 %v13153
    %v13266 = vunpack.c.l.b16 %v13154
    %v13267 = vunpack.c.l.b16 %v13155
    %v13268 = vunpack.c.l.b16 %v13156
    %v13269 = vunpack.c.l.b16 %v13157
    %v13270 = vunpack.c.l.b16 %v13158
    %v13271 = vunpack.c.l.b16 %v13159
    %v13272 = vunpack.c.l.b16 %v13160
    %v13273 = vunpack.c.l.b16 %v13161
    %v13274 = vunpack.c.l.b16 %v13162
    %v13275 = vunpack.c.l.b16 %v13163
    %v13276 = vunpack.c.l.b16 %v13164
    %v13277 = vunpack.c.l.b16 %v13165
    %v13278 = vunpack.c.l.b16 %v13166
    %v13279 = vunpack.c.l.b16 %v13167
    %v13280 = vunpack.c.l.b16 %v13168
    %v13281 = vunpack.c.l.b16 %v13169
    %v13282 = vunpack.c.l.b16 %v13170
    %v13283 = vunpack.c.l.b16 %v13171
    %v13284 = vunpack.c.l.b16 %v13172
    %v13285 = vunpack.c.l.b16 %v13173
    %v13286 = vunpack.c.l.b16 %v13174
    %v13287 = vunpack.c.l.b16 %v13175
    %v13288 = vunpack.c.l.b16 %v13176
    %v13289 = vunpack.c.l.b16 %v13177
    %v13290 = vunpack.c.l.b16 %v13178
    %v13291 = vunpack.c.l.b16 %v13179
    %v13292 = vunpack.c.l.b16 %v13180
    %v13293 = vunpack.c.l.b16 %v13181
    %v13294 = vunpack.c.l.b16 %v13182
    %v13295 = vunpack.c.l.b16 %v13183
    %v13296 = vunpack.c.l.b16 %v13184
    %v13297 = vunpack.c.l.b16 %v13185
    %v13298 = vunpack.c.l.b16 %v13186
    %v13299 = vunpack.c.l.b16 %v13187
    %v13300 = vunpack.c.l.b16 %v13188
    %v13301 = vunpack.c.l.b16 %v13189
    %v13302 = vunpack.c.l.b16 %v13190
    %v13303 = vunpack.c.l.b16 %v13191
    %v13304 = vunpack.c.l.b16 %v13192
    %v13305 = vunpack.c.l.b16 %v13193
    %v13306 = vunpack.c.l.b16 %v13194
    %v13307 = vunpack.c.l.b16 %v13195
    %v13308 = vunpack.c.l.b16 %v13196
    %v13309 = vunpack.c.l.b16 %v13197
    %v13310 = vpack.c.b16 %v13255, %v13254
    %v13311 = vpack.c.b16 %v13257, %v13256
    %v13312 = vpack.c.b16 %v13259, %v13258
    %v13313 = vpack.c.b16 %v13261, %v13260
    %v13314 = vpack.c.b16 %v13263, %v13262
    %v13315 = vpack.c.b16 %v13265, %v13264
    %v13316 = vpack.c.b16 %v13267, %v13266
    %v13317 = vpack.c.b16 %v13269, %v13268
    %v13318 = vpack.c.b16 %v13271, %v13270
    %v13319 = vpack.c.b16 %v13273, %v13272
    %v13320 = vpack.c.b16 %v13275, %v13274
    %v13321 = vpack.c.b16 %v13277, %v13276
    %v13322 = vpack.c.b16 %v13279, %v13278
    %v13323 = vpack.c.b16 %v13281, %v13280
    %v13324 = vpack.c.b16 %v13283, %v13282
    %v13325 = vpack.c.b16 %v13285, %v13284
    %v13326 = vpack.c.b16 %v13287, %v13286
    %v13327 = vpack.c.b16 %v13289, %v13288
    %v13328 = vpack.c.b16 %v13291, %v13290
    %v13329 = vpack.c.b16 %v13293, %v13292
    %v13330 = vpack.c.b16 %v13295, %v13294
    %v13331 = vpack.c.b16 %v13297, %v13296
    %v13332 = vpack.c.b16 %v13299, %v13298
    %v13333 = vpack.c.b16 %v13301, %v13300
    %v13334 = vpack.c.b16 %v13303, %v13302
    %v13335 = vpack.c.b16 %v13305, %v13304
    %v13336 = vpack.c.b16 %v13307, %v13306
    %v13337 = vpack.c.b16 %v13309, %v13308
    %v13367 = vsel %vm2238, %v11581, 0
    %13369 = vmatprep.subr.bf16.mxu0 0
    %13370 = vmatpush1.bf16.msra.mxu0 %v13317
    %13371 = vmatprep.subr.bf16.mxu0 0
    %13372 = vmatpush1.bf16.msra.mxu0 %v13316
    %13373 = vmatprep.subr.bf16.mxu0 0
    %13374 = vmatpush1.bf16.msra.mxu0 %v13315
    %13375 = vmatprep.subr.bf16.mxu0 0
    %13376 = vmatpush1.bf16.msra.mxu0 %v13314
    %13377 = vmatprep.subr.bf16.mxu0 0
    %13378 = vmatpush1.bf16.msra.mxu0 %v13313
    %13379 = vmatprep.subr.bf16.mxu0 0
    %13380 = vmatpush1.bf16.msra.mxu0 %v13312
    %13381 = vmatprep.subr.bf16.mxu0 0
    %13382 = vmatpush1.bf16.msra.mxu0 %v13311
    %13383 = vmatprep.subr.bf16.mxu0 0
    %13384 = vmatpush1.bf16.msra.mxu0 %v13310
    %13385 = vmatprep.subr.bf16.mxu0 0
    %13386 = vmatpush2.bf16.msra.mxu0 %v13325
    %13387 = vmatprep.subr.bf16.mxu0 0
    %13388 = vmatpush2.bf16.msra.mxu0 %v13324
    %13389 = vmatprep.subr.bf16.mxu0 0
    %13390 = vmatpush2.bf16.msra.mxu0 %v13323
    %13391 = vmatprep.subr.bf16.mxu0 0
    %13392 = vmatpush2.bf16.msra.mxu0 %v13322
    %13393 = vmatprep.subr.bf16.mxu0 0
    %13394 = vmatpush2.bf16.msra.mxu0 %v13321
    %13395 = vmatprep.subr.bf16.mxu0 0
    %13396 = vmatpush2.bf16.msra.mxu0 %v13320
    %13397 = vmatprep.subr.bf16.mxu0 0
    %13398 = vmatpush2.bf16.msra.mxu0 %v13319
    %13399 = vmatprep.subr.bf16.mxu0 0
    %13400 = vmatpush2.bf16.msra.mxu0 %v13318
    %13401 = vmatprep.mubr.bf16.mxu0 %v11579
    %13402 = vmatmul.mubr.bf16.gmra.mxu0 %v11578
    %v13403 = vpop.f32.mrf.mxu0
    %v13404 = vadd.f32 0.0, %v13403
    %v13405 = vpop.f32.mrf.mxu0
    %v13406 = vpop.f32.mrf.mxu0
    %v13407 = vadd.f32 0.0, %v13406
    %v13408 = vpop.f32.mrf.mxu0
    %13409 = vdwg.mxu0
    %13410 = vmatprep.subr.bf16.mxu0 0
    %13411 = vmatpush1.bf16.msra.mxu0 %v13333
    %13412 = vmatprep.subr.bf16.mxu0 0
    %13413 = vmatpush1.bf16.msra.mxu0 %v13332
    %13414 = vmatprep.subr.bf16.mxu0 0
    %13415 = vmatpush1.bf16.msra.mxu0 %v13331
    %13416 = vmatprep.subr.bf16.mxu0 0
    %13417 = vmatpush1.bf16.msra.mxu0 %v13330
    %13418 = vmatprep.subr.bf16.mxu0 0
    %13419 = vmatpush1.bf16.msra.mxu0 %v13329
    %13420 = vmatprep.subr.bf16.mxu0 0
    %13421 = vmatpush1.bf16.msra.mxu0 %v13328
    %13422 = vmatprep.subr.bf16.mxu0 0
    %13423 = vmatpush1.bf16.msra.mxu0 %v13327
    %13424 = vmatprep.subr.bf16.mxu0 0
    %13425 = vmatpush1.bf16.msra.mxu0 %v13326
    %13426 = vmatprep.subr.bf16.mxu0 0
    %13427 = vmatpush2.bf16.msra.mxu0 0
    %13428 = vmatprep.subr.bf16.mxu0 0
    %13429 = vmatpush2.bf16.msra.mxu0 0
    %13430 = vmatprep.subr.bf16.mxu0 0
    %13431 = vmatpush2.bf16.msra.mxu0 0
    %13432 = vmatprep.subr.bf16.mxu0 0
    %13433 = vmatpush2.bf16.msra.mxu0 0
    %13434 = vmatprep.subr.bf16.mxu0 0
    %13435 = vmatpush2.bf16.msra.mxu0 %v13337
    %13436 = vmatprep.subr.bf16.mxu0 0
    %13437 = vmatpush2.bf16.msra.mxu0 %v13336
    %13438 = vmatprep.subr.bf16.mxu0 0
    %13439 = vmatpush2.bf16.msra.mxu0 %v13335
    %13440 = vmatprep.subr.bf16.mxu0 0
    %13441 = vmatpush2.bf16.msra.mxu0 %v13334
    %13442 = vmatprep.mubr.bf16.mxu0 %v13367
    %13443 = vmatmul.mubr.bf16.gmra.mxu0 %v11580
    %v13444 = vpop.f32.mrf.mxu0
    %v13445 = vadd.f32 %v13404, %v13444
    %v13446 = vpop.f32.mrf.mxu0
    %v13447 = vpop.f32.mrf.mxu0
    %v13448 = vadd.f32 %v13407, %v13447
    %v13449 = vpop.f32.mrf.mxu0
    %13450 = vdwg.mxu0
    %v13451 = vadd.f32 %v13139, %v13445
    %v13452 = vadd.f32 %v13140, %v13448
    %s13453 = scalar_lea.vmem %s7, 1344
    %v13454 = vld [vmem:[%s13453] sm:$0xf]
    %v13455 = vld [vmem:[%s13453 + $0x4] sm:$0xf]
    %v13456 = vld [vmem:[%s13453 + $0x8] sm:$0xf]
    %v13457 = vld [vmem:[%s13453 + $0xc] sm:$0xf]
    %v13458 = vld [vmem:[%s13453 + $0x10] sm:$0xf]
    %v13459 = vld [vmem:[%s13453 + $0x14] sm:$0xf]
    %v13460 = vld [vmem:[%s13453 + $0x18] sm:$0xf]
    %v13461 = vld [vmem:[%s13453 + $0x1c] sm:$0xf]
    %v13462 = vld [vmem:[%s13453 + $0x20] sm:$0xf]
    %v13463 = vld [vmem:[%s13453 + $0x24] sm:$0xf]
    %v13464 = vld [vmem:[%s13453 + $0x28] sm:$0xf]
    %v13465 = vld [vmem:[%s13453 + $0x2c] sm:$0xf]
    %v13466 = vld [vmem:[%s13453 + $0x30] sm:$0xf]
    %v13467 = vld [vmem:[%s13453 + $0x34] sm:$0xf]
    %v13468 = vld [vmem:[%s13453 + $0x38] sm:$0xf]
    %v13469 = vld [vmem:[%s13453 + $0x3c] sm:$0xf]
    %v13470 = vld [vmem:[%s13453 + $0x40] sm:$0xf]
    %v13471 = vld [vmem:[%s13453 + $0x44] sm:$0xf]
    %v13472 = vld [vmem:[%s13453 + $0x48] sm:$0xf]
    %v13473 = vld [vmem:[%s13453 + $0x4c] sm:$0xf]
    %v13474 = vld [vmem:[%s13453 + $0x50] sm:$0xf]
    %v13475 = vld [vmem:[%s13453 + $0x54] sm:$0xf]
    %v13476 = vld [vmem:[%s13453 + $0x58] sm:$0xf]
    %v13477 = vld [vmem:[%s13453 + $0x5c] sm:$0xf]
    %v13478 = vld [vmem:[%s13453 + $0x60] sm:$0xf]
    %v13479 = vld [vmem:[%s13453 + $0x64] sm:$0xf]
    %v13480 = vld [vmem:[%s13453 + $0x68] sm:$0xf]
    %v13481 = vld [vmem:[%s13453 + $0x6c] sm:$0xf]
    %v13482 = vld [vmem:[%s13453 + $0x70] sm:$0xf]
    %v13483 = vld [vmem:[%s13453 + $0x74] sm:$0xf]
    %v13484 = vld [vmem:[%s13453 + $0x78] sm:$0xf]
    %v13485 = vld [vmem:[%s13453 + $0x7c] sm:$0xf]
    %v13486 = vld [vmem:[%s13453 + $0x80] sm:$0xf]
    %v13487 = vld [vmem:[%s13453 + $0x84] sm:$0xf]
    %v13488 = vld [vmem:[%s13453 + $0x88] sm:$0xf]
    %v13489 = vld [vmem:[%s13453 + $0x8c] sm:$0xf]
    %v13490 = vld [vmem:[%s13453 + $0x90] sm:$0xf]
    %v13491 = vld [vmem:[%s13453 + $0x94] sm:$0xf]
    %v13492 = vld [vmem:[%s13453 + $0x98] sm:$0xf]
    %v13493 = vld [vmem:[%s13453 + $0x9c] sm:$0xf]
    %v13494 = vld [vmem:[%s13453 + $0xa0] sm:$0xf]
    %v13495 = vld [vmem:[%s13453 + $0xa4] sm:$0xf]
    %v13496 = vld [vmem:[%s13453 + $0xa8] sm:$0xf]
    %v13497 = vld [vmem:[%s13453 + $0xac] sm:$0xf]
    %v13498 = vld [vmem:[%s13453 + $0xb0] sm:$0xf]
    %v13499 = vld [vmem:[%s13453 + $0xb4] sm:$0xf]
    %v13500 = vld [vmem:[%s13453 + $0xb8] sm:$0xf]
    %v13501 = vld [vmem:[%s13453 + $0xbc] sm:$0xf]
    %v13502 = vld [vmem:[%s13453 + $0xc0] sm:$0xf]
    %v13503 = vld [vmem:[%s13453 + $0xc4] sm:$0xf]
    %v13504 = vld [vmem:[%s13453 + $0xc8] sm:$0xf]
    %v13505 = vld [vmem:[%s13453 + $0xcc] sm:$0xf]
    %v13506 = vld [vmem:[%s13453 + $0xd0] sm:$0xf]
    %v13507 = vld [vmem:[%s13453 + $0xd4] sm:$0xf]
    %v13508 = vld [vmem:[%s13453 + $0xd8] sm:$0xf]
    %v13509 = vld [vmem:[%s13453 + $0xdc] sm:$0xf]
    %v13566 = vunpack.c.l.b16 %v13454
    %v13567 = vunpack.c.l.b16 %v13455
    %v13568 = vunpack.c.l.b16 %v13456
    %v13569 = vunpack.c.l.b16 %v13457
    %v13570 = vunpack.c.l.b16 %v13458
    %v13571 = vunpack.c.l.b16 %v13459
    %v13572 = vunpack.c.l.b16 %v13460
    %v13573 = vunpack.c.l.b16 %v13461
    %v13574 = vunpack.c.l.b16 %v13462
    %v13575 = vunpack.c.l.b16 %v13463
    %v13576 = vunpack.c.l.b16 %v13464
    %v13577 = vunpack.c.l.b16 %v13465
    %v13578 = vunpack.c.l.b16 %v13466
    %v13579 = vunpack.c.l.b16 %v13467
    %v13580 = vunpack.c.l.b16 %v13468
    %v13581 = vunpack.c.l.b16 %v13469
    %v13582 = vunpack.c.l.b16 %v13470
    %v13583 = vunpack.c.l.b16 %v13471
    %v13584 = vunpack.c.l.b16 %v13472
    %v13585 = vunpack.c.l.b16 %v13473
    %v13586 = vunpack.c.l.b16 %v13474
    %v13587 = vunpack.c.l.b16 %v13475
    %v13588 = vunpack.c.l.b16 %v13476
    %v13589 = vunpack.c.l.b16 %v13477
    %v13590 = vunpack.c.l.b16 %v13478
    %v13591 = vunpack.c.l.b16 %v13479
    %v13592 = vunpack.c.l.b16 %v13480
    %v13593 = vunpack.c.l.b16 %v13481
    %v13594 = vunpack.c.l.b16 %v13482
    %v13595 = vunpack.c.l.b16 %v13483
    %v13596 = vunpack.c.l.b16 %v13484
    %v13597 = vunpack.c.l.b16 %v13485
    %v13598 = vunpack.c.l.b16 %v13486
    %v13599 = vunpack.c.l.b16 %v13487
    %v13600 = vunpack.c.l.b16 %v13488
    %v13601 = vunpack.c.l.b16 %v13489
    %v13602 = vunpack.c.l.b16 %v13490
    %v13603 = vunpack.c.l.b16 %v13491
    %v13604 = vunpack.c.l.b16 %v13492
    %v13605 = vunpack.c.l.b16 %v13493
    %v13606 = vunpack.c.l.b16 %v13494
    %v13607 = vunpack.c.l.b16 %v13495
    %v13608 = vunpack.c.l.b16 %v13496
    %v13609 = vunpack.c.l.b16 %v13497
    %v13610 = vunpack.c.l.b16 %v13498
    %v13611 = vunpack.c.l.b16 %v13499
    %v13612 = vunpack.c.l.b16 %v13500
    %v13613 = vunpack.c.l.b16 %v13501
    %v13614 = vunpack.c.l.b16 %v13502
    %v13615 = vunpack.c.l.b16 %v13503
    %v13616 = vunpack.c.l.b16 %v13504
    %v13617 = vunpack.c.l.b16 %v13505
    %v13618 = vunpack.c.l.b16 %v13506
    %v13619 = vunpack.c.l.b16 %v13507
    %v13620 = vunpack.c.l.b16 %v13508
    %v13621 = vunpack.c.l.b16 %v13509
    %v13622 = vpack.c.b16 %v13567, %v13566
    %v13623 = vpack.c.b16 %v13569, %v13568
    %v13624 = vpack.c.b16 %v13571, %v13570
    %v13625 = vpack.c.b16 %v13573, %v13572
    %v13626 = vpack.c.b16 %v13575, %v13574
    %v13627 = vpack.c.b16 %v13577, %v13576
    %v13628 = vpack.c.b16 %v13579, %v13578
    %v13629 = vpack.c.b16 %v13581, %v13580
    %v13630 = vpack.c.b16 %v13583, %v13582
    %v13631 = vpack.c.b16 %v13585, %v13584
    %v13632 = vpack.c.b16 %v13587, %v13586
    %v13633 = vpack.c.b16 %v13589, %v13588
    %v13634 = vpack.c.b16 %v13591, %v13590
    %v13635 = vpack.c.b16 %v13593, %v13592
    %v13636 = vpack.c.b16 %v13595, %v13594
    %v13637 = vpack.c.b16 %v13597, %v13596
    %v13638 = vpack.c.b16 %v13599, %v13598
    %v13639 = vpack.c.b16 %v13601, %v13600
    %v13640 = vpack.c.b16 %v13603, %v13602
    %v13641 = vpack.c.b16 %v13605, %v13604
    %v13642 = vpack.c.b16 %v13607, %v13606
    %v13643 = vpack.c.b16 %v13609, %v13608
    %v13644 = vpack.c.b16 %v13611, %v13610
    %v13645 = vpack.c.b16 %v13613, %v13612
    %v13646 = vpack.c.b16 %v13615, %v13614
    %v13647 = vpack.c.b16 %v13617, %v13616
    %v13648 = vpack.c.b16 %v13619, %v13618
    %v13649 = vpack.c.b16 %v13621, %v13620
    %v13679 = vsel %vm2238, %v11585, 0
    %13681 = vmatprep.subr.bf16.mxu0 0
    %13682 = vmatpush1.bf16.msra.mxu0 %v13629
    %13683 = vmatprep.subr.bf16.mxu0 0
    %13684 = vmatpush1.bf16.msra.mxu0 %v13628
    %13685 = vmatprep.subr.bf16.mxu0 0
    %13686 = vmatpush1.bf16.msra.mxu0 %v13627
    %13687 = vmatprep.subr.bf16.mxu0 0
    %13688 = vmatpush1.bf16.msra.mxu0 %v13626
    %13689 = vmatprep.subr.bf16.mxu0 0
    %13690 = vmatpush1.bf16.msra.mxu0 %v13625
    %13691 = vmatprep.subr.bf16.mxu0 0
    %13692 = vmatpush1.bf16.msra.mxu0 %v13624
    %13693 = vmatprep.subr.bf16.mxu0 0
    %13694 = vmatpush1.bf16.msra.mxu0 %v13623
    %13695 = vmatprep.subr.bf16.mxu0 0
    %13696 = vmatpush1.bf16.msra.mxu0 %v13622
    %13697 = vmatprep.subr.bf16.mxu0 0
    %13698 = vmatpush2.bf16.msra.mxu0 %v13637
    %13699 = vmatprep.subr.bf16.mxu0 0
    %13700 = vmatpush2.bf16.msra.mxu0 %v13636
    %13701 = vmatprep.subr.bf16.mxu0 0
    %13702 = vmatpush2.bf16.msra.mxu0 %v13635
    %13703 = vmatprep.subr.bf16.mxu0 0
    %13704 = vmatpush2.bf16.msra.mxu0 %v13634
    %13705 = vmatprep.subr.bf16.mxu0 0
    %13706 = vmatpush2.bf16.msra.mxu0 %v13633
    %13707 = vmatprep.subr.bf16.mxu0 0
    %13708 = vmatpush2.bf16.msra.mxu0 %v13632
    %13709 = vmatprep.subr.bf16.mxu0 0
    %13710 = vmatpush2.bf16.msra.mxu0 %v13631
    %13711 = vmatprep.subr.bf16.mxu0 0
    %13712 = vmatpush2.bf16.msra.mxu0 %v13630
    %13713 = vmatprep.mubr.bf16.mxu0 %v11583
    %13714 = vmatmul.mubr.bf16.gmra.mxu0 %v11582
    %v13715 = vpop.f32.mrf.mxu0
    %v13716 = vadd.f32 0.0, %v13715
    %v13717 = vpop.f32.mrf.mxu0
    %v13718 = vpop.f32.mrf.mxu0
    %v13719 = vadd.f32 0.0, %v13718
    %v13720 = vpop.f32.mrf.mxu0
    %13721 = vdwg.mxu0
    %13722 = vmatprep.subr.bf16.mxu0 0
    %13723 = vmatpush1.bf16.msra.mxu0 %v13645
    %13724 = vmatprep.subr.bf16.mxu0 0
    %13725 = vmatpush1.bf16.msra.mxu0 %v13644
    %13726 = vmatprep.subr.bf16.mxu0 0
    %13727 = vmatpush1.bf16.msra.mxu0 %v13643
    %13728 = vmatprep.subr.bf16.mxu0 0
    %13729 = vmatpush1.bf16.msra.mxu0 %v13642
    %13730 = vmatprep.subr.bf16.mxu0 0
    %13731 = vmatpush1.bf16.msra.mxu0 %v13641
    %13732 = vmatprep.subr.bf16.mxu0 0
    %13733 = vmatpush1.bf16.msra.mxu0 %v13640
    %13734 = vmatprep.subr.bf16.mxu0 0
    %13735 = vmatpush1.bf16.msra.mxu0 %v13639
    %13736 = vmatprep.subr.bf16.mxu0 0
    %13737 = vmatpush1.bf16.msra.mxu0 %v13638
    %13738 = vmatprep.subr.bf16.mxu0 0
    %13739 = vmatpush2.bf16.msra.mxu0 0
    %13740 = vmatprep.subr.bf16.mxu0 0
    %13741 = vmatpush2.bf16.msra.mxu0 0
    %13742 = vmatprep.subr.bf16.mxu0 0
    %13743 = vmatpush2.bf16.msra.mxu0 0
    %13744 = vmatprep.subr.bf16.mxu0 0
    %13745 = vmatpush2.bf16.msra.mxu0 0
    %13746 = vmatprep.subr.bf16.mxu0 0
    %13747 = vmatpush2.bf16.msra.mxu0 %v13649
    %13748 = vmatprep.subr.bf16.mxu0 0
    %13749 = vmatpush2.bf16.msra.mxu0 %v13648
    %13750 = vmatprep.subr.bf16.mxu0 0
    %13751 = vmatpush2.bf16.msra.mxu0 %v13647
    %13752 = vmatprep.subr.bf16.mxu0 0
    %13753 = vmatpush2.bf16.msra.mxu0 %v13646
    %13754 = vmatprep.mubr.bf16.mxu0 %v13679
    %13755 = vmatmul.mubr.bf16.gmra.mxu0 %v11584
    %v13756 = vpop.f32.mrf.mxu0
    %v13757 = vadd.f32 %v13716, %v13756
    %v13758 = vpop.f32.mrf.mxu0
    %v13759 = vpop.f32.mrf.mxu0
    %v13760 = vadd.f32 %v13719, %v13759
    %v13761 = vpop.f32.mrf.mxu0
    %13762 = vdwg.mxu0
    %v13763 = vadd.f32 %v13451, %v13757
    %v13764 = vadd.f32 %v13452, %v13760
    %v13765 = vld [vmem:[%s8] sm:$0x1]
    %v13767 = vlaneseq
    %v13768 = vshrl.u32 %v13767, 7
    %v13769 = vsub.s32 0, %v13768
    %v13770 = vrot.slane %v13765, %v13769
    %v13772 = vadd.f32 %v13763, %v13770
    %v13773 = vadd.f32 %v13764, %v13770
    %v13774 = vmax.f32 %v13772, 0.0
    %v13775 = vmax.f32 %v13773, 0.0
    %v13776 = vpack.c.bf16 %v13775, %v13774
    %v13777 = vld [vmem:[%s9] sm:$0xf]
    %v13778 = vld [vmem:[%s9 + $0x4] sm:$0xf]
    %v13779 = vld [vmem:[%s9 + $0x8] sm:$0xf]
    %v13780 = vld [vmem:[%s9 + $0xc] sm:$0xf]
    %v13781 = vld [vmem:[%s9 + $0x10] sm:$0xf]
    %v13782 = vld [vmem:[%s9 + $0x14] sm:$0xf]
    %v13783 = vld [vmem:[%s9 + $0x18] sm:$0xf]
    %v13784 = vld [vmem:[%s9 + $0x1c] sm:$0xf]
    %v13785 = vld [vmem:[%s9 + $0x20] sm:$0xf]
    %v13786 = vld [vmem:[%s9 + $0x24] sm:$0xf]
    %v13787 = vld [vmem:[%s9 + $0x28] sm:$0xf]
    %v13788 = vld [vmem:[%s9 + $0x2c] sm:$0xf]
    %v13789 = vld [vmem:[%s9 + $0x30] sm:$0xf]
    %v13790 = vld [vmem:[%s9 + $0x34] sm:$0xf]
    %v13791 = vld [vmem:[%s9 + $0x38] sm:$0xf]
    %v13792 = vld [vmem:[%s9 + $0x3c] sm:$0xf]
    %v13793 = vld [vmem:[%s10] sm:$0x1]
    %v13795 = vlaneseq
    %v13796 = vshrl.u32 %v13795, 7
    %v13797 = vsub.s32 0, %v13796
    %v13798 = vrot.slane %v13793, %v13797
    %v13816 = vunpack.c.l.b16 %v13777
    %v13817 = vunpack.c.l.b16 %v13778
    %v13818 = vunpack.c.l.b16 %v13779
    %v13819 = vunpack.c.l.b16 %v13780
    %v13820 = vunpack.c.l.b16 %v13781
    %v13821 = vunpack.c.l.b16 %v13782
    %v13822 = vunpack.c.l.b16 %v13783
    %v13823 = vunpack.c.l.b16 %v13784
    %v13824 = vunpack.c.l.b16 %v13785
    %v13825 = vunpack.c.l.b16 %v13786
    %v13826 = vunpack.c.l.b16 %v13787
    %v13827 = vunpack.c.l.b16 %v13788
    %v13828 = vunpack.c.l.b16 %v13789
    %v13829 = vunpack.c.l.b16 %v13790
    %v13830 = vunpack.c.l.b16 %v13791
    %v13831 = vunpack.c.l.b16 %v13792
    %v13832 = vpack.c.b16 %v13817, %v13816
    %v13833 = vpack.c.b16 %v13819, %v13818
    %v13834 = vpack.c.b16 %v13821, %v13820
    %v13835 = vpack.c.b16 %v13823, %v13822
    %v13836 = vpack.c.b16 %v13825, %v13824
    %v13837 = vpack.c.b16 %v13827, %v13826
    %v13838 = vpack.c.b16 %v13829, %v13828
    %v13839 = vpack.c.b16 %v13831, %v13830
    %13848 = vmatprep.subr.bf16.mxu0 0
    %13849 = vmatpush1.bf16.msra.mxu0 %v13839
    %13850 = vmatprep.subr.bf16.mxu0 0
    %13851 = vmatpush1.bf16.msra.mxu0 %v13838
    %13852 = vmatprep.subr.bf16.mxu0 0
    %13853 = vmatpush1.bf16.msra.mxu0 %v13837
    %13854 = vmatprep.subr.bf16.mxu0 0
    %13855 = vmatpush1.bf16.msra.mxu0 %v13836
    %13856 = vmatprep.subr.bf16.mxu0 0
    %13857 = vmatpush1.bf16.msra.mxu0 %v13835
    %13858 = vmatprep.subr.bf16.mxu0 0
    %13859 = vmatpush1.bf16.msra.mxu0 %v13834
    %13860 = vmatprep.subr.bf16.mxu0 0
    %13861 = vmatpush1.bf16.msra.mxu0 %v13833
    %13862 = vmatprep.subr.bf16.mxu0 0
    %13863 = vmatpush1.bf16.msra.mxu0 %v13832
    %13864 = vmatprep.subr.bf16.mxu0 0
    %13865 = vmatpush2.bf16.msra.mxu0 0
    %13866 = vmatprep.subr.bf16.mxu0 0
    %13867 = vmatpush2.bf16.msra.mxu0 0
    %13868 = vmatprep.subr.bf16.mxu0 0
    %13869 = vmatpush2.bf16.msra.mxu0 0
    %13870 = vmatprep.subr.bf16.mxu0 0
    %13871 = vmatpush2.bf16.msra.mxu0 0
    %13872 = vmatprep.subr.bf16.mxu0 0
    %13873 = vmatpush2.bf16.msra.mxu0 0
    %13874 = vmatprep.subr.bf16.mxu0 0
    %13875 = vmatpush2.bf16.msra.mxu0 0
    %13876 = vmatprep.subr.bf16.mxu0 0
    %13877 = vmatpush2.bf16.msra.mxu0 0
    %13878 = vmatprep.subr.bf16.mxu0 0
    %13879 = vmatpush2.bf16.msra.mxu0 0
    %13880 = vmatprep.mubr.bf16.mxu0 0
    %13881 = vmatmul.mubr.bf16.gmra.mxu0 %v13776
    %v13882 = vpop.f32.mrf.mxu0
    %v13883 = vadd.f32 %v13798, %v13882
    %v13884 = vpop.f32.mrf.mxu0
    %v13885 = vpop.f32.mrf.mxu0
    %v13886 = vadd.f32 %v13798, %v13885
    %v13887 = vpop.f32.mrf.mxu0
    %13888 = vdwg.mxu0
    %13889 = vst [vmem:[#allocation2] sm:$0xff] %v13883
    %13890 = vst [vmem:[#allocation2 + $0x8] sm:$0xff] %v13886
    // Predicated region
    $region46: #{tpu_custom_call.1} parent=1 // pred_check
      _
    $region47: #{tpu_custom_call.1} parent=1 // pred_check_branch
      %13892 = sbr.rel (0) target = $region49
    $region48: #{tpu_custom_call.1} parent=1 // pred_region
      %s13894 = ssub.s32 256, 256
      %13895 = vsyncadd [#allocation3], %s13894
      %s13896 = sshll.u32 [#allocation2], 4
      %s13897 = int_to_ptr.vmem [resolvable:$true] %s13896
      %13902 = dma.vmem_to_hbm [thread:$0]  %s13897, 256, %s11, [#allocation3], 128, 128, 8
    $region49: #{tpu_custom_call.1} parent=1 // pred_fallthru
      _
    // Predicated region
    $region50: #{tpu_custom_call.1} parent=1 // pred_check
      _
    $region51: #{tpu_custom_call.1} parent=1 // pred_check_branch
      %13904 = sbr.rel (0) target = $region53
    $region52: #{tpu_custom_call.1} parent=1 // pred_region
      %13905 = dma.done [#allocation3], 256
    $region53: #{tpu_custom_call.1} parent=1 // pred_fallthru
      _
    %13906 = vsyncpa [#allocation3], 1

</llo_original>
